<compile_context>
chip_gen: v7x
topology: tpu7x:2x2x1
jax: 0.10.0
libtpu: 0.0.40
codegen_flags: <defaults>
</compile_context>

<pallas_src>
import math
import functools

import jax
import jax.numpy as jnp
from jax import lax
from jax.experimental import pallas as pl
from jax.experimental.pallas import tpu as pltpu

# ---- model config (small, consistent with the module) ----
BATCH = 2
SEQLEN = 8
DIMS = 32
N_HEADS = 4
N_GROUPS = 2
HEAD_DIMS = DIMS // N_HEADS          # 8
GROUPS_DIMS = N_HEADS // N_GROUPS    # 2
KV_DIMS = N_GROUPS * HEAD_DIMS       # 16


def gqa_kernel(x_ref, wq_ref, bq_ref, wk_ref, bk_ref, wv_ref, bv_ref,
               wo_ref, bo_ref, mask_ref, o_ref, *,
               n_heads, n_groups, head_dims):
    groups_dims = n_heads // n_groups
    dims = n_heads * head_dims
    rows = x_ref.shape[0]
    hi = lax.Precision.HIGHEST

    x = x_ref[...]                                            # (B*S, D)

    # Projections (softmax scale already folded into wq/bq by prepare_params).
    q = jnp.dot(x, wq_ref[...], precision=hi,
                preferred_element_type=jnp.float32) + bq_ref[...]   # (B*S, D)
    k = jnp.dot(x, wk_ref[...], precision=hi,
                preferred_element_type=jnp.float32) + bk_ref[...]   # (B*S, KV)
    v = jnp.dot(x, wv_ref[...], precision=hi,
                preferred_element_type=jnp.float32) + bv_ref[...]   # (B*S, KV)

    mask = mask_ref[...]                                      # (B*S, B*S) additive
    wo = wo_ref[...]                                          # (D, D)

    acc = jnp.zeros((rows, dims), dtype=jnp.float32)
    for g in range(n_groups):                                 # unrolled (2 groups)
        k_g = k[:, g * head_dims:(g + 1) * head_dims]         # (B*S, Hd), sliced once/group
        v_g = v[:, g * head_dims:(g + 1) * head_dims]         # (B*S, Hd)
        for hh in range(groups_dims):                         # unrolled (2 heads/group)
            h = g * groups_dims + hh
            q_h = q[:, h * head_dims:(h + 1) * head_dims]     # (B*S, Hd)
            # Contract last-vs-last: no explicit k.T materialization.
            s = lax.dot_general(q_h, k_g,
                                dimension_numbers=(((1,), (1,)), ((), ())),
                                precision=hi,
                                preferred_element_type=jnp.float32)   # (B*S, B*S)
            s = s + mask
            s = s - jnp.max(s, axis=-1, keepdims=True)
            p = jnp.exp(s)
            p = p / jnp.sum(p, axis=-1, keepdims=True)        # exact divide (tiny)
            head = jnp.dot(p, v_g, precision=hi,
                           preferred_element_type=jnp.float32)        # (B*S, Hd)
            # Sublane-aligned (multiple-of-8) row slice of wo: free.
            acc = acc + jnp.dot(wo[h * head_dims:(h + 1) * head_dims, :].T.T
                                if False else head @ wo[h * head_dims:(h + 1) * head_dims, :],
                                jnp.eye(dims, dtype=jnp.float32), precision=hi,
                                preferred_element_type=jnp.float32) if False else \
                  acc + jnp.dot(head, wo[h * head_dims:(h + 1) * head_dims, :],
                                precision=hi,
                                preferred_element_type=jnp.float32)   # (B*S, D)

    o_ref[...] = (acc + bo_ref[...]).astype(o_ref.dtype)


def prepare_params(wq, bq, wk, bk, wv, bv, wo, bo, *, batch, seqlen, head_dims):
    """One-time parameter prep, hoisted out of the per-call forward path."""
    scale = 1.0 / math.sqrt(head_dims)
    wq_s = (wq * scale).astype(jnp.float32)
    bq_s = (bq * scale).astype(jnp.float32)
    rows = batch * seqlen
    row_b = jnp.arange(rows, dtype=jnp.int32)[:, None] // seqlen
    col_b = jnp.arange(rows, dtype=jnp.int32)[None, :] // seqlen
    # Additive block-diagonal bias: no cross-batch attention. Every row has
    # unmasked entries, so exp/sum never hit the all-masked degenerate case.
    mask = jnp.where(row_b == col_b, 0.0, -1e30).astype(jnp.float32)
    return wq_s, bq_s, wk, bk, wv, bv, wo, bo, mask


@jax.jit
def gqa_forward(x, wq_s, bq_s, wk, bk, wv, bv, wo, bo, mask):
    bs, s, d = x.shape
    x2d = x.reshape(bs * s, d)

    kernel = functools.partial(gqa_kernel, n_heads=N_HEADS,
                               n_groups=N_GROUPS, head_dims=HEAD_DIMS)

    vmem = pl.BlockSpec(memory_space=pltpu.MemorySpace.VMEM)
    out2d = pl.pallas_call(
        kernel,
        out_shape=jax.ShapeDtypeStruct((bs * s, d), x.dtype),
        in_specs=[vmem] * 10,
        out_specs=vmem,
    )(x2d, wq_s, bq_s, wk, bk, wv, bv, wo, bo, mask)
    return out2d.reshape(bs, s, d)


def reference_gqa(x, wq, bq, wk, bk, wv, bv, wo, bo):
    """Pure-JAX reference mirroring the PyTorch forward (eval mode), f32 matmuls."""
    hi = lax.Precision.HIGHEST
    bs, s, d = x.shape
    q = jnp.dot(x, wq, precision=hi) + bq[0]
    k = jnp.dot(x, wk, precision=hi) + bk[0]
    v = jnp.dot(x, wv, precision=hi) + bv[0]
    q = q.reshape(bs, s, N_HEADS, HEAD_DIMS).transpose(0, 2, 1, 3)
    k = k.reshape(bs, s, N_GROUPS, HEAD_DIMS).transpose(0, 2, 1, 3)
    v = v.reshape(bs, s, N_GROUPS, HEAD_DIMS).transpose(0, 2, 1, 3)
    k = jnp.repeat(k, GROUPS_DIMS, axis=1)
    v = jnp.repeat(v, GROUPS_DIMS, axis=1)
    scores = jnp.einsum('bhqd,bhkd->bhqk', q, k, precision=hi) / math.sqrt(HEAD_DIMS)
    probs = jax.nn.softmax(scores, axis=-1)
    out = jnp.einsum('bhqk,bhkd->bhqd', probs, v, precision=hi)
    out = out.transpose(0, 2, 1, 3).reshape(bs, s, d)
    return jnp.dot(out, wo, precision=hi) + bo[0]


if __name__ == "__main__":
    key = jax.random.PRNGKey(0)
    ks = jax.random.split(key, 9)

    x = jax.random.normal(ks[0], (BATCH, SEQLEN, DIMS), dtype=jnp.float32)

    # Deterministic parameter init (Linear weights stored transposed: (in, out))
    init = lambda k, shape, fan_in: (jax.random.uniform(k, shape, jnp.float32,
                                                        -1.0, 1.0) / math.sqrt(fan_in))
    wq = init(ks[1], (DIMS, DIMS), DIMS)
    bq = init(ks[2], (1, DIMS), DIMS)
    wk = init(ks[3], (DIMS, KV_DIMS), DIMS)
    bk = init(ks[4], (1, KV_DIMS), DIMS)
    wv = init(ks[5], (DIMS, KV_DIMS), DIMS)
    bv = init(ks[6], (1, KV_DIMS), DIMS)
    wo = init(ks[7], (DIMS, DIMS), DIMS)
    bo = init(ks[8], (1, DIMS), DIMS)

    # One-time prep (scale folding, block-diagonal mask); not in the hot path.
    params = prepare_params(wq, bq, wk, bk, wv, bv, wo, bo,
                            batch=BATCH, seqlen=SEQLEN, head_dims=HEAD_DIMS)

    out = gqa_forward(x, *params)
    out = jax.block_until_ready(out)

    ref = reference_gqa(x, wq, bq, wk, bk, wv, bv, wo, bo)
    ref = jax.block_until_ready(ref)

    assert out.shape == (BATCH, SEQLEN, DIMS)
    # Both sides use HIGHEST-precision f32 matmuls and an exact softmax divide;
    # remaining differences are summation-order only.
    assert jnp.allclose(out, ref, atol=1e-4, rtol=1e-4), "mismatch vs reference"

    print("KERNEL_OK")
</pallas_src>

<mosaic_0001>
module attributes {stable_mosaic.version = 11 : i64} {
  func.func @gqa_kernel(%arg0: memref<16x32xf32, #tpu.memory_space<vmem>>, %arg1: memref<32x32xf32, #tpu.memory_space<vmem>>, %arg2: memref<1x32xf32, #tpu.memory_space<vmem>>, %arg3: memref<32x16xf32, #tpu.memory_space<vmem>>, %arg4: memref<1x16xf32, #tpu.memory_space<vmem>>, %arg5: memref<32x16xf32, #tpu.memory_space<vmem>>, %arg6: memref<1x16xf32, #tpu.memory_space<vmem>>, %arg7: memref<32x32xf32, #tpu.memory_space<vmem>>, %arg8: memref<1x32xf32, #tpu.memory_space<vmem>>, %arg9: memref<16x16xf32, #tpu.memory_space<vmem>>, %arg10: memref<16x32xf32, #tpu.memory_space<vmem>>) attributes {dimension_semantics = [], scalar_prefetch = 0 : i64, scratch_operands = 0 : i64, tpu.core_type = #tpu.core_type<tc>} {
    %c0 = arith.constant 0 : index
    %c0_0 = arith.constant 0 : index
    %0 = vector.load %arg0[%c0, %c0_0] : memref<16x32xf32, #tpu.memory_space<vmem>>, vector<16x32xf32>
    %c0_1 = arith.constant 0 : index
    %c0_2 = arith.constant 0 : index
    %1 = vector.load %arg1[%c0_1, %c0_2] : memref<32x32xf32, #tpu.memory_space<vmem>>, vector<32x32xf32>
    %cst = arith.constant dense<0.000000e+00> : vector<16x32xf32>
    %2 = tpu.matmul %0, %1, %cst {dimension_numbers = #tpu.dot_dimension_numbers<[1], [0], [0], [1], [0, 0, 1, 1], [], []>, precision = #tpu.contract_precision<fp32>} : vector<16x32xf32>, vector<32x32xf32>, vector<16x32xf32> -> vector<16x32xf32>
    %c0_3 = arith.constant 0 : index
    %c0_4 = arith.constant 0 : index
    %3 = vector.load %arg2[%c0_3, %c0_4] : memref<1x32xf32, #tpu.memory_space<vmem>>, vector<1x32xf32>
    %4 = vector.broadcast %3 : vector<1x32xf32> to vector<16x32xf32>
    %5 = arith.addf %2, %4 : vector<16x32xf32>
    %c0_5 = arith.constant 0 : index
    %c0_6 = arith.constant 0 : index
    %6 = vector.load %arg3[%c0_5, %c0_6] : memref<32x16xf32, #tpu.memory_space<vmem>>, vector<32x16xf32>
    %cst_7 = arith.constant dense<0.000000e+00> : vector<16x16xf32>
    %7 = tpu.matmul %0, %6, %cst_7 {dimension_numbers = #tpu.dot_dimension_numbers<[1], [0], [0], [1], [0, 0, 1, 1], [], []>, precision = #tpu.contract_precision<fp32>} : vector<16x32xf32>, vector<32x16xf32>, vector<16x16xf32> -> vector<16x16xf32>
    %c0_8 = arith.constant 0 : index
    %c0_9 = arith.constant 0 : index
    %8 = vector.load %arg4[%c0_8, %c0_9] : memref<1x16xf32, #tpu.memory_space<vmem>>, vector<1x16xf32>
    %9 = vector.broadcast %8 : vector<1x16xf32> to vector<16x16xf32>
    %10 = arith.addf %7, %9 : vector<16x16xf32>
    %c0_10 = arith.constant 0 : index
    %c0_11 = arith.constant 0 : index
    %11 = vector.load %arg5[%c0_10, %c0_11] : memref<32x16xf32, #tpu.memory_space<vmem>>, vector<32x16xf32>
    %cst_12 = arith.constant dense<0.000000e+00> : vector<16x16xf32>
    %12 = tpu.matmul %0, %11, %cst_12 {dimension_numbers = #tpu.dot_dimension_numbers<[1], [0], [0], [1], [0, 0, 1, 1], [], []>, precision = #tpu.contract_precision<fp32>} : vector<16x32xf32>, vector<32x16xf32>, vector<16x16xf32> -> vector<16x16xf32>
    %c0_13 = arith.constant 0 : index
    %c0_14 = arith.constant 0 : index
    %13 = vector.load %arg6[%c0_13, %c0_14] : memref<1x16xf32, #tpu.memory_space<vmem>>, vector<1x16xf32>
    %14 = vector.broadcast %13 : vector<1x16xf32> to vector<16x16xf32>
    %15 = arith.addf %12, %14 : vector<16x16xf32>
    %c0_15 = arith.constant 0 : index
    %c0_16 = arith.constant 0 : index
    %16 = vector.load %arg9[%c0_15, %c0_16] : memref<16x16xf32, #tpu.memory_space<vmem>>, vector<16x16xf32>
    %c0_17 = arith.constant 0 : index
    %c0_18 = arith.constant 0 : index
    %17 = vector.load %arg7[%c0_17, %c0_18] : memref<32x32xf32, #tpu.memory_space<vmem>>, vector<32x32xf32>
    %cst_19 = arith.constant 0.000000e+00 : f32
    %18 = vector.broadcast %cst_19 : f32 to vector<16x32xf32>
    %19 = vector.extract_strided_slice %10 {offsets = [0, 0], sizes = [16, 8], strides = [1, 1]} : vector<16x16xf32> to vector<16x8xf32>
    %20 = vector.extract_strided_slice %15 {offsets = [0, 0], sizes = [16, 8], strides = [1, 1]} : vector<16x16xf32> to vector<16x8xf32>
    %21 = vector.extract_strided_slice %5 {offsets = [0, 0], sizes = [16, 8], strides = [1, 1]} : vector<16x32xf32> to vector<16x8xf32>
    %cst_20 = arith.constant dense<0.000000e+00> : vector<16x16xf32>
    %22 = tpu.matmul %21, %19, %cst_20 {dimension_numbers = #tpu.dot_dimension_numbers<[1], [1], [0], [0], [0, 0, 1, 0], [], []>, precision = #tpu.contract_precision<fp32>} : vector<16x8xf32>, vector<16x8xf32>, vector<16x16xf32> -> vector<16x16xf32>
    %23 = arith.addf %22, %16 : vector<16x16xf32>
    %cst_21 = arith.constant dense<0xFF800000> : vector<16xf32>
    %24 = vector.multi_reduction <maximumf>, %23, %cst_21 [1] : vector<16x16xf32> to vector<16xf32>
    %25 = vector.shape_cast %24 : vector<16xf32> to vector<16x1xf32>
    %26 = vector.broadcast %25 : vector<16x1xf32> to vector<16x16xf32>
    %27 = arith.subf %23, %26 : vector<16x16xf32>
    %28 = math.exp %27 : vector<16x16xf32>
    %cst_22 = arith.constant dense<0.000000e+00> : vector<16xf32>
    %29 = vector.multi_reduction <add>, %28, %cst_22 [1] : vector<16x16xf32> to vector<16xf32>
    %30 = vector.shape_cast %29 : vector<16xf32> to vector<16x1xf32>
    %31 = vector.broadcast %30 : vector<16x1xf32> to vector<16x16xf32>
    %32 = arith.divf %28, %31 : vector<16x16xf32>
    %cst_23 = arith.constant dense<0.000000e+00> : vector<16x8xf32>
    %33 = tpu.matmul %32, %20, %cst_23 {dimension_numbers = #tpu.dot_dimension_numbers<[1], [0], [0], [1], [0, 0, 1, 1], [], []>, precision = #tpu.contract_precision<fp32>} : vector<16x16xf32>, vector<16x8xf32>, vector<16x8xf32> -> vector<16x8xf32>
    %34 = vector.extract_strided_slice %17 {offsets = [0, 0], sizes = [8, 32], strides = [1, 1]} : vector<32x32xf32> to vector<8x32xf32>
    %cst_24 = arith.constant dense<0.000000e+00> : vector<16x32xf32>
    %35 = tpu.matmul %33, %34, %cst_24 {dimension_numbers = #tpu.dot_dimension_numbers<[1], [0], [0], [1], [0, 0, 1, 1], [], []>, precision = #tpu.contract_precision<fp32>} : vector<16x8xf32>, vector<8x32xf32>, vector<16x32xf32> -> vector<16x32xf32>
    %36 = arith.addf %18, %35 : vector<16x32xf32>
    %37 = vector.extract_strided_slice %5 {offsets = [0, 8], sizes = [16, 8], strides = [1, 1]} : vector<16x32xf32> to vector<16x8xf32>
    %cst_25 = arith.constant dense<0.000000e+00> : vector<16x16xf32>
    %38 = tpu.matmul %37, %19, %cst_25 {dimension_numbers = #tpu.dot_dimension_numbers<[1], [1], [0], [0], [0, 0, 1, 0], [], []>, precision = #tpu.contract_precision<fp32>} : vector<16x8xf32>, vector<16x8xf32>, vector<16x16xf32> -> vector<16x16xf32>
    %39 = arith.addf %38, %16 : vector<16x16xf32>
    %cst_26 = arith.constant dense<0xFF800000> : vector<16xf32>
    %40 = vector.multi_reduction <maximumf>, %39, %cst_26 [1] : vector<16x16xf32> to vector<16xf32>
    %41 = vector.shape_cast %40 : vector<16xf32> to vector<16x1xf32>
    %42 = vector.broadcast %41 : vector<16x1xf32> to vector<16x16xf32>
    %43 = arith.subf %39, %42 : vector<16x16xf32>
    %44 = math.exp %43 : vector<16x16xf32>
    %cst_27 = arith.constant dense<0.000000e+00> : vector<16xf32>
    %45 = vector.multi_reduction <add>, %44, %cst_27 [1] : vector<16x16xf32> to vector<16xf32>
    %46 = vector.shape_cast %45 : vector<16xf32> to vector<16x1xf32>
    %47 = vector.broadcast %46 : vector<16x1xf32> to vector<16x16xf32>
    %48 = arith.divf %44, %47 : vector<16x16xf32>
    %cst_28 = arith.constant dense<0.000000e+00> : vector<16x8xf32>
    %49 = tpu.matmul %48, %20, %cst_28 {dimension_numbers = #tpu.dot_dimension_numbers<[1], [0], [0], [1], [0, 0, 1, 1], [], []>, precision = #tpu.contract_precision<fp32>} : vector<16x16xf32>, vector<16x8xf32>, vector<16x8xf32> -> vector<16x8xf32>
    %50 = vector.extract_strided_slice %17 {offsets = [8, 0], sizes = [8, 32], strides = [1, 1]} : vector<32x32xf32> to vector<8x32xf32>
    %cst_29 = arith.constant dense<0.000000e+00> : vector<16x32xf32>
    %51 = tpu.matmul %49, %50, %cst_29 {dimension_numbers = #tpu.dot_dimension_numbers<[1], [0], [0], [1], [0, 0, 1, 1], [], []>, precision = #tpu.contract_precision<fp32>} : vector<16x8xf32>, vector<8x32xf32>, vector<16x32xf32> -> vector<16x32xf32>
    %52 = arith.addf %36, %51 : vector<16x32xf32>
    %53 = vector.extract_strided_slice %10 {offsets = [0, 8], sizes = [16, 8], strides = [1, 1]} : vector<16x16xf32> to vector<16x8xf32>
    %54 = vector.extract_strided_slice %15 {offsets = [0, 8], sizes = [16, 8], strides = [1, 1]} : vector<16x16xf32> to vector<16x8xf32>
    %55 = vector.extract_strided_slice %5 {offsets = [0, 16], sizes = [16, 8], strides = [1, 1]} : vector<16x32xf32> to vector<16x8xf32>
    %cst_30 = arith.constant dense<0.000000e+00> : vector<16x16xf32>
    %56 = tpu.matmul %55, %53, %cst_30 {dimension_numbers = #tpu.dot_dimension_numbers<[1], [1], [0], [0], [0, 0, 1, 0], [], []>, precision = #tpu.contract_precision<fp32>} : vector<16x8xf32>, vector<16x8xf32>, vector<16x16xf32> -> vector<16x16xf32>
    %57 = arith.addf %56, %16 : vector<16x16xf32>
    %cst_31 = arith.constant dense<0xFF800000> : vector<16xf32>
    %58 = vector.multi_reduction <maximumf>, %57, %cst_31 [1] : vector<16x16xf32> to vector<16xf32>
    %59 = vector.shape_cast %58 : vector<16xf32> to vector<16x1xf32>
    %60 = vector.broadcast %59 : vector<16x1xf32> to vector<16x16xf32>
    %61 = arith.subf %57, %60 : vector<16x16xf32>
    %62 = math.exp %61 : vector<16x16xf32>
    %cst_32 = arith.constant dense<0.000000e+00> : vector<16xf32>
    %63 = vector.multi_reduction <add>, %62, %cst_32 [1] : vector<16x16xf32> to vector<16xf32>
    %64 = vector.shape_cast %63 : vector<16xf32> to vector<16x1xf32>
    %65 = vector.broadcast %64 : vector<16x1xf32> to vector<16x16xf32>
    %66 = arith.divf %62, %65 : vector<16x16xf32>
    %cst_33 = arith.constant dense<0.000000e+00> : vector<16x8xf32>
    %67 = tpu.matmul %66, %54, %cst_33 {dimension_numbers = #tpu.dot_dimension_numbers<[1], [0], [0], [1], [0, 0, 1, 1], [], []>, precision = #tpu.contract_precision<fp32>} : vector<16x16xf32>, vector<16x8xf32>, vector<16x8xf32> -> vector<16x8xf32>
    %68 = vector.extract_strided_slice %17 {offsets = [16, 0], sizes = [8, 32], strides = [1, 1]} : vector<32x32xf32> to vector<8x32xf32>
    %cst_34 = arith.constant dense<0.000000e+00> : vector<16x32xf32>
    %69 = tpu.matmul %67, %68, %cst_34 {dimension_numbers = #tpu.dot_dimension_numbers<[1], [0], [0], [1], [0, 0, 1, 1], [], []>, precision = #tpu.contract_precision<fp32>} : vector<16x8xf32>, vector<8x32xf32>, vector<16x32xf32> -> vector<16x32xf32>
    %70 = arith.addf %52, %69 : vector<16x32xf32>
    %71 = vector.extract_strided_slice %5 {offsets = [0, 24], sizes = [16, 8], strides = [1, 1]} : vector<16x32xf32> to vector<16x8xf32>
    %cst_35 = arith.constant dense<0.000000e+00> : vector<16x16xf32>
    %72 = tpu.matmul %71, %53, %cst_35 {dimension_numbers = #tpu.dot_dimension_numbers<[1], [1], [0], [0], [0, 0, 1, 0], [], []>, precision = #tpu.contract_precision<fp32>} : vector<16x8xf32>, vector<16x8xf32>, vector<16x16xf32> -> vector<16x16xf32>
    %73 = arith.addf %72, %16 : vector<16x16xf32>
    %cst_36 = arith.constant dense<0xFF800000> : vector<16xf32>
    %74 = vector.multi_reduction <maximumf>, %73, %cst_36 [1] : vector<16x16xf32> to vector<16xf32>
    %75 = vector.shape_cast %74 : vector<16xf32> to vector<16x1xf32>
    %76 = vector.broadcast %75 : vector<16x1xf32> to vector<16x16xf32>
    %77 = arith.subf %73, %76 : vector<16x16xf32>
    %78 = math.exp %77 : vector<16x16xf32>
    %cst_37 = arith.constant dense<0.000000e+00> : vector<16xf32>
    %79 = vector.multi_reduction <add>, %78, %cst_37 [1] : vector<16x16xf32> to vector<16xf32>
    %80 = vector.shape_cast %79 : vector<16xf32> to vector<16x1xf32>
    %81 = vector.broadcast %80 : vector<16x1xf32> to vector<16x16xf32>
    %82 = arith.divf %78, %81 : vector<16x16xf32>
    %cst_38 = arith.constant dense<0.000000e+00> : vector<16x8xf32>
    %83 = tpu.matmul %82, %54, %cst_38 {dimension_numbers = #tpu.dot_dimension_numbers<[1], [0], [0], [1], [0, 0, 1, 1], [], []>, precision = #tpu.contract_precision<fp32>} : vector<16x16xf32>, vector<16x8xf32>, vector<16x8xf32> -> vector<16x8xf32>
    %84 = vector.extract_strided_slice %17 {offsets = [24, 0], sizes = [8, 32], strides = [1, 1]} : vector<32x32xf32> to vector<8x32xf32>
    %cst_39 = arith.constant dense<0.000000e+00> : vector<16x32xf32>
    %85 = tpu.matmul %83, %84, %cst_39 {dimension_numbers = #tpu.dot_dimension_numbers<[1], [0], [0], [1], [0, 0, 1, 1], [], []>, precision = #tpu.contract_precision<fp32>} : vector<16x8xf32>, vector<8x32xf32>, vector<16x32xf32> -> vector<16x32xf32>
    %86 = arith.addf %70, %85 : vector<16x32xf32>
    %c0_40 = arith.constant 0 : index
    %c0_41 = arith.constant 0 : index
    %87 = vector.load %arg8[%c0_40, %c0_41] : memref<1x32xf32, #tpu.memory_space<vmem>>, vector<1x32xf32>
    %88 = vector.broadcast %87 : vector<1x32xf32> to vector<16x32xf32>
    %89 = arith.addf %86, %88 : vector<16x32xf32>
    %c0_42 = arith.constant 0 : index
    %c0_43 = arith.constant 0 : index
    %90 = vector.load %arg10[%c0_42, %c0_43] : memref<16x32xf32, #tpu.memory_space<vmem>>, vector<16x32xf32>
    tpu.vector_store %arg10[%c0_42, %c0_43], %89 {strides = array<i32>} : memref<16x32xf32, #tpu.memory_space<vmem>>, vector<16x32xf32>,
    return
  }
}

</mosaic_0001>

<llo_original>
// kernel: gqa_forward.1
$region0: #{gqa_forward.1}
  #allocation0 [shape = 'u32[]', space=smem, size = 0x4, offset = 0x4, fixed_abs, tag = 'smem constant byte address 0x4 - core index']
  #allocation1 [shape = 'u32[144,128]{1,0:T(1,128)}', space=vmem, size = 0x12000, scoped, tag = 'internal scratch']
  %s0 = inlined_call_operand.vmem [shape: f32[16,32], index: 0, kind: input, shape index: {}]
  %s1 = inlined_call_operand.vmem [shape: f32[32,32], index: 1, kind: input, shape index: {}]
  %s2 = inlined_call_operand.vmem [shape: f32[1,32], index: 2, kind: input, shape index: {}]
  %s3 = inlined_call_operand.vmem [shape: f32[32,16], index: 3, kind: input, shape index: {}]
  %s4 = inlined_call_operand.vmem [shape: f32[1,16], index: 4, kind: input, shape index: {}]
  %s5 = inlined_call_operand.vmem [shape: f32[32,16], index: 5, kind: input, shape index: {}]
  %s6 = inlined_call_operand.vmem [shape: f32[1,16], index: 6, kind: input, shape index: {}]
  %s7 = inlined_call_operand.vmem [shape: f32[32,32], index: 7, kind: input, shape index: {}]
  %s8 = inlined_call_operand.vmem [shape: f32[1,32], index: 8, kind: input, shape index: {}]
  %s9 = inlined_call_operand.vmem [shape: f32[16,16], index: 9, kind: input, shape index: {}]
  %s10 = inlined_call_operand.hbm [shape: f32[16,32], index: 10, kind: output, shape index: {}]
  %s11 = sld [smem:[#allocation0]]
  $region50: #{gqa_forward.1} parent=0
    _
  %s13 = ssub.s32 1, %s11
  %s14 = scalar_select 0, %s13, %s11
  $region1: #{gqa_forward.1} parent=0
    #allocation2 [shape = 'u8[8192]{0}', space=vmem, size = 0x2000, scoped, tag = 'output window, operand 0, single buffered']
    #allocation3 [shape = 's32[1]{0}', space=sflag, size = 0x4, scoped, tag = 'scoped memory for gqa_forward.1']
    %15 = vsyncpa [#allocation3], 0
    // Predicated region
    $region2: #{gqa_forward.1} parent=1 // pred_check
      _
    $region3: #{gqa_forward.1} parent=1 // pred_check_branch
      %17 = sbr.rel (0) target = $region5
    $region4: #{gqa_forward.1} parent=1 // pred_region
      _
    $region5: #{gqa_forward.1} parent=1 // pred_fallthru
      _
    // Predicated region
    $region6: #{gqa_forward.1} parent=1 // pred_check
      _
    $region7: #{gqa_forward.1} parent=1 // pred_check_branch
      %19 = sbr.rel (0) target = $region9
    $region8: #{gqa_forward.1} parent=1 // pred_region
      _
    $region9: #{gqa_forward.1} parent=1 // pred_fallthru
      _
    // Predicated region
    $region10: #{gqa_forward.1} parent=1 // pred_check
      _
    $region11: #{gqa_forward.1} parent=1 // pred_check_branch
      %21 = sbr.rel (0) target = $region13
    $region12: #{gqa_forward.1} parent=1 // pred_region
      _
    $region13: #{gqa_forward.1} parent=1 // pred_fallthru
      _
    // Predicated region
    $region14: #{gqa_forward.1} parent=1 // pred_check
      _
    $region15: #{gqa_forward.1} parent=1 // pred_check_branch
      %23 = sbr.rel (0) target = $region17
    $region16: #{gqa_forward.1} parent=1 // pred_region
      _
    $region17: #{gqa_forward.1} parent=1 // pred_fallthru
      _
    // Predicated region
    $region18: #{gqa_forward.1} parent=1 // pred_check
      _
    $region19: #{gqa_forward.1} parent=1 // pred_check_branch
      %25 = sbr.rel (0) target = $region21
    $region20: #{gqa_forward.1} parent=1 // pred_region
      _
    $region21: #{gqa_forward.1} parent=1 // pred_fallthru
      _
    // Predicated region
    $region22: #{gqa_forward.1} parent=1 // pred_check
      _
    $region23: #{gqa_forward.1} parent=1 // pred_check_branch
      %27 = sbr.rel (0) target = $region25
    $region24: #{gqa_forward.1} parent=1 // pred_region
      _
    $region25: #{gqa_forward.1} parent=1 // pred_fallthru
      _
    // Predicated region
    $region26: #{gqa_forward.1} parent=1 // pred_check
      _
    $region27: #{gqa_forward.1} parent=1 // pred_check_branch
      %29 = sbr.rel (0) target = $region29
    $region28: #{gqa_forward.1} parent=1 // pred_region
      _
    $region29: #{gqa_forward.1} parent=1 // pred_fallthru
      _
    // Predicated region
    $region30: #{gqa_forward.1} parent=1 // pred_check
      _
    $region31: #{gqa_forward.1} parent=1 // pred_check_branch
      %31 = sbr.rel (0) target = $region33
    $region32: #{gqa_forward.1} parent=1 // pred_region
      _
    $region33: #{gqa_forward.1} parent=1 // pred_fallthru
      _
    // Predicated region
    $region34: #{gqa_forward.1} parent=1 // pred_check
      _
    $region35: #{gqa_forward.1} parent=1 // pred_check_branch
      %33 = sbr.rel (0) target = $region37
    $region36: #{gqa_forward.1} parent=1 // pred_region
      _
    $region37: #{gqa_forward.1} parent=1 // pred_fallthru
      _
    // Predicated region
    $region38: #{gqa_forward.1} parent=1 // pred_check
      _
    $region39: #{gqa_forward.1} parent=1 // pred_check_branch
      %35 = sbr.rel (0) target = $region41
    $region40: #{gqa_forward.1} parent=1 // pred_region
      _
    $region41: #{gqa_forward.1} parent=1 // pred_fallthru
      _
    %v36 = vld [vmem:[%s0] sm:$0xff]
    %v37 = vld [vmem:[%s0 + $0x8] sm:$0xff]
    %v38 = vld [vmem:[%s1] sm:$0xff]
    %v39 = vld [vmem:[%s1 + $0x8] sm:$0xff]
    %v40 = vld [vmem:[%s1 + $0x10] sm:$0xff]
    %v41 = vld [vmem:[%s1 + $0x18] sm:$0xff]
    %v42 = vld [vmem:[%s2] sm:$0x1]
    %v44 = vlaneseq
    %v45 = vshrl.u32 %v44, 7
    %v46 = vsub.s32 0, %v45
    %v47 = vrot.slane %v42, %v46
    %vm49 = vcmask 261120
    %v51 = vsel %vm49, %v36, 0
    %v54 = vsel %vm49, %v37, 0
    %56 = vmatprep.subr.mxu0 0.0
    %v57 = vand.u32 %v38, 4294901760
    %58 = vmatpush1.msra.mxu0 %v57
    %59 = vmatprep.subr.mxu0 0.0
    %v60 = vand.u32 %v39, 4294901760
    %61 = vmatpush1.msra.mxu0 %v60
    %62 = vmatprep.subr.mxu0 0.0
    %v63 = vand.u32 %v40, 4294901760
    %64 = vmatpush1.msra.mxu0 %v63
    %65 = vmatprep.subr.mxu0 0.0
    %v66 = vand.u32 %v41, 4294901760
    %67 = vmatpush1.msra.mxu0 %v66
    %68 = vmatprep.subr.mxu0 0.0
    %69 = vmatpush1.msra.mxu0 0.0
    %70 = vmatprep.subr.mxu0 0.0
    %71 = vmatpush1.msra.mxu0 0.0
    %72 = vmatprep.subr.mxu0 0.0
    %73 = vmatpush1.msra.mxu0 0.0
    %74 = vmatprep.subr.mxu0 0.0
    %75 = vmatpush1.msra.mxu0 0.0
    %76 = vmatprep.subr.mxu0 0.0
    %77 = vmatpush1.msra.mxu0 0.0
    %78 = vmatprep.subr.mxu0 0.0
    %79 = vmatpush1.msra.mxu0 0.0
    %80 = vmatprep.subr.mxu0 0.0
    %81 = vmatpush1.msra.mxu0 0.0
    %82 = vmatprep.subr.mxu0 0.0
    %83 = vmatpush1.msra.mxu0 0.0
    %84 = vmatprep.subr.mxu0 0.0
    %85 = vmatpush1.msra.mxu0 0.0
    %86 = vmatprep.subr.mxu0 0.0
    %87 = vmatpush1.msra.mxu0 0.0
    %88 = vmatprep.subr.mxu0 0.0
    %89 = vmatpush1.msra.mxu0 0.0
    %90 = vmatprep.subr.mxu0 0.0
    %91 = vmatpush1.msra.mxu0 0.0
    %92 = vmatprep.subr.mxu0 0.0
    %93 = vmatpush1.msra.mxu0 0.0
    %94 = vmatprep.subr.mxu0 0.0
    %95 = vmatpush1.msra.mxu0 0.0
    %96 = vmatprep.subr.mxu0 0.0
    %97 = vmatpush1.msra.mxu0 0.0
    %98 = vmatprep.subr.mxu0 0.0
    %99 = vmatpush1.msra.mxu0 0.0
    %100 = vmatprep.subr.mxu0 0.0
    %101 = vmatpush1.msra.mxu0 0.0
    %102 = vmatprep.subr.mxu0 0.0
    %103 = vmatpush1.msra.mxu0 0.0
    %104 = vmatprep.subr.mxu0 0.0
    %105 = vmatpush1.msra.mxu0 0.0
    %106 = vmatprep.subr.mxu0 0.0
    %107 = vmatpush1.msra.mxu0 0.0
    %108 = vmatprep.subr.mxu0 0.0
    %109 = vmatpush1.msra.mxu0 0.0
    %110 = vmatprep.subr.mxu0 0.0
    %111 = vmatpush1.msra.mxu0 0.0
    %112 = vmatprep.subr.mxu0 0.0
    %113 = vmatpush1.msra.mxu0 0.0
    %114 = vmatprep.subr.mxu0 0.0
    %115 = vmatpush1.msra.mxu0 0.0
    %116 = vmatprep.subr.mxu0 0.0
    %117 = vmatpush1.msra.mxu0 0.0
    %118 = vmatprep.subr.mxu0 0.0
    %119 = vmatpush1.msra.mxu0 0.0
    %120 = vmatprep.subr.mxu0 0.0
    %121 = vmatpush1.msra.mxu0 0.0
    %122 = vmatprep.subr.mxu0 0.0
    %123 = vmatpush1.msra.mxu0 0.0
    %124 = vmatprep.mubr.f32.mxu0 0.0
    %v125 = vand.u32 %v51, 4294901760
    %v126 = vsub.f32 %v51, %v125
    %v127 = vand.u32 %v126, 4294901760
    %v128 = vsub.f32 %v126, %v127
    %v129 = vand.u32 %v128, 4294901760
    %130 = vmatmul.mubr.f32.gmra.mrb[0].mxu0 %v129
    %v131 = vpop.f32.mrb[0].mxu0
    %v132 = vadd.f32 %v47, %v131
    %v133 = vpop.f32.mrb[0].mxu0
    %134 = vmatprep.mubr.f32.mxu0 0.0
    %v135 = vand.u32 %v54, 4294901760
    %v136 = vsub.f32 %v54, %v135
    %v137 = vand.u32 %v136, 4294901760
    %v138 = vsub.f32 %v136, %v137
    %v139 = vand.u32 %v138, 4294901760
    %140 = vmatmul.mubr.f32.gmra.mrb[0].mxu0 %v139
    %v141 = vpop.f32.mrb[0].mxu0
    %v142 = vadd.f32 %v47, %v141
    %v143 = vpop.f32.mrb[0].mxu0
    %144 = vdwg.mxu0
    %145 = vmatprep.subr.mxu0 0.0
    %v146 = vand.u32 %v38, 4294901760
    %v147 = vsub.f32 %v38, %v146
    %v148 = vand.u32 %v147, 4294901760
    %v149 = vsub.f32 %v147, %v148
    %v150 = vand.u32 %v149, 4294901760
    %151 = vmatpush1.msra.mxu0 %v150
    %152 = vmatprep.subr.mxu0 0.0
    %v153 = vand.u32 %v39, 4294901760
    %v154 = vsub.f32 %v39, %v153
    %v155 = vand.u32 %v154, 4294901760
    %v156 = vsub.f32 %v154, %v155
    %v157 = vand.u32 %v156, 4294901760
    %158 = vmatpush1.msra.mxu0 %v157
    %159 = vmatprep.subr.mxu0 0.0
    %v160 = vand.u32 %v40, 4294901760
    %v161 = vsub.f32 %v40, %v160
    %v162 = vand.u32 %v161, 4294901760
    %v163 = vsub.f32 %v161, %v162
    %v164 = vand.u32 %v163, 4294901760
    %165 = vmatpush1.msra.mxu0 %v164
    %166 = vmatprep.subr.mxu0 0.0
    %v167 = vand.u32 %v41, 4294901760
    %v168 = vsub.f32 %v41, %v167
    %v169 = vand.u32 %v168, 4294901760
    %v170 = vsub.f32 %v168, %v169
    %v171 = vand.u32 %v170, 4294901760
    %172 = vmatpush1.msra.mxu0 %v171
    %173 = vmatprep.subr.mxu0 0.0
    %174 = vmatpush1.msra.mxu0 0.0
    %175 = vmatprep.subr.mxu0 0.0
    %176 = vmatpush1.msra.mxu0 0.0
    %177 = vmatprep.subr.mxu0 0.0
    %178 = vmatpush1.msra.mxu0 0.0
    %179 = vmatprep.subr.mxu0 0.0
    %180 = vmatpush1.msra.mxu0 0.0
    %181 = vmatprep.subr.mxu0 0.0
    %182 = vmatpush1.msra.mxu0 0.0
    %183 = vmatprep.subr.mxu0 0.0
    %184 = vmatpush1.msra.mxu0 0.0
    %185 = vmatprep.subr.mxu0 0.0
    %186 = vmatpush1.msra.mxu0 0.0
    %187 = vmatprep.subr.mxu0 0.0
    %188 = vmatpush1.msra.mxu0 0.0
    %189 = vmatprep.subr.mxu0 0.0
    %190 = vmatpush1.msra.mxu0 0.0
    %191 = vmatprep.subr.mxu0 0.0
    %192 = vmatpush1.msra.mxu0 0.0
    %193 = vmatprep.subr.mxu0 0.0
    %194 = vmatpush1.msra.mxu0 0.0
    %195 = vmatprep.subr.mxu0 0.0
    %196 = vmatpush1.msra.mxu0 0.0
    %197 = vmatprep.subr.mxu0 0.0
    %198 = vmatpush1.msra.mxu0 0.0
    %199 = vmatprep.subr.mxu0 0.0
    %200 = vmatpush1.msra.mxu0 0.0
    %201 = vmatprep.subr.mxu0 0.0
    %202 = vmatpush1.msra.mxu0 0.0
    %203 = vmatprep.subr.mxu0 0.0
    %204 = vmatpush1.msra.mxu0 0.0
    %205 = vmatprep.subr.mxu0 0.0
    %206 = vmatpush1.msra.mxu0 0.0
    %207 = vmatprep.subr.mxu0 0.0
    %208 = vmatpush1.msra.mxu0 0.0
    %209 = vmatprep.subr.mxu0 0.0
    %210 = vmatpush1.msra.mxu0 0.0
    %211 = vmatprep.subr.mxu0 0.0
    %212 = vmatpush1.msra.mxu0 0.0
    %213 = vmatprep.subr.mxu0 0.0
    %214 = vmatpush1.msra.mxu0 0.0
    %215 = vmatprep.subr.mxu0 0.0
    %216 = vmatpush1.msra.mxu0 0.0
    %217 = vmatprep.subr.mxu0 0.0
    %218 = vmatpush1.msra.mxu0 0.0
    %219 = vmatprep.subr.mxu0 0.0
    %220 = vmatpush1.msra.mxu0 0.0
    %221 = vmatprep.subr.mxu0 0.0
    %222 = vmatpush1.msra.mxu0 0.0
    %223 = vmatprep.subr.mxu0 0.0
    %224 = vmatpush1.msra.mxu0 0.0
    %225 = vmatprep.subr.mxu0 0.0
    %226 = vmatpush1.msra.mxu0 0.0
    %227 = vmatprep.subr.mxu0 0.0
    %228 = vmatpush1.msra.mxu0 0.0
    %229 = vmatprep.mubr.f32.mxu0 0.0
    %v230 = vand.u32 %v51, 4294901760
    %231 = vmatmul.mubr.f32.gmra.mrb[0].mxu0 %v230
    %v232 = vpop.f32.mrb[0].mxu0
    %v233 = vadd.f32 %v132, %v232
    %v234 = vpop.f32.mrb[0].mxu0
    %235 = vmatprep.mubr.f32.mxu0 0.0
    %v236 = vand.u32 %v54, 4294901760
    %237 = vmatmul.mubr.f32.gmra.mrb[0].mxu0 %v236
    %v238 = vpop.f32.mrb[0].mxu0
    %v239 = vadd.f32 %v142, %v238
    %v240 = vpop.f32.mrb[0].mxu0
    %241 = vdwg.mxu0
    %242 = vmatprep.subr.mxu0 0.0
    %v243 = vand.u32 %v38, 4294901760
    %v244 = vsub.f32 %v38, %v243
    %245 = vmatpush1.msra.mxu0 %v244
    %246 = vmatprep.subr.mxu0 0.0
    %v247 = vand.u32 %v39, 4294901760
    %v248 = vsub.f32 %v39, %v247
    %249 = vmatpush1.msra.mxu0 %v248
    %250 = vmatprep.subr.mxu0 0.0
    %v251 = vand.u32 %v40, 4294901760
    %v252 = vsub.f32 %v40, %v251
    %253 = vmatpush1.msra.mxu0 %v252
    %254 = vmatprep.subr.mxu0 0.0
    %v255 = vand.u32 %v41, 4294901760
    %v256 = vsub.f32 %v41, %v255
    %257 = vmatpush1.msra.mxu0 %v256
    %258 = vmatprep.subr.mxu0 0.0
    %259 = vmatpush1.msra.mxu0 0.0
    %260 = vmatprep.subr.mxu0 0.0
    %261 = vmatpush1.msra.mxu0 0.0
    %262 = vmatprep.subr.mxu0 0.0
    %263 = vmatpush1.msra.mxu0 0.0
    %264 = vmatprep.subr.mxu0 0.0
    %265 = vmatpush1.msra.mxu0 0.0
    %266 = vmatprep.subr.mxu0 0.0
    %267 = vmatpush1.msra.mxu0 0.0
    %268 = vmatprep.subr.mxu0 0.0
    %269 = vmatpush1.msra.mxu0 0.0
    %270 = vmatprep.subr.mxu0 0.0
    %271 = vmatpush1.msra.mxu0 0.0
    %272 = vmatprep.subr.mxu0 0.0
    %273 = vmatpush1.msra.mxu0 0.0
    %274 = vmatprep.subr.mxu0 0.0
    %275 = vmatpush1.msra.mxu0 0.0
    %276 = vmatprep.subr.mxu0 0.0
    %277 = vmatpush1.msra.mxu0 0.0
    %278 = vmatprep.subr.mxu0 0.0
    %279 = vmatpush1.msra.mxu0 0.0
    %280 = vmatprep.subr.mxu0 0.0
    %281 = vmatpush1.msra.mxu0 0.0
    %282 = vmatprep.subr.mxu0 0.0
    %283 = vmatpush1.msra.mxu0 0.0
    %284 = vmatprep.subr.mxu0 0.0
    %285 = vmatpush1.msra.mxu0 0.0
    %286 = vmatprep.subr.mxu0 0.0
    %287 = vmatpush1.msra.mxu0 0.0
    %288 = vmatprep.subr.mxu0 0.0
    %289 = vmatpush1.msra.mxu0 0.0
    %290 = vmatprep.subr.mxu0 0.0
    %291 = vmatpush1.msra.mxu0 0.0
    %292 = vmatprep.subr.mxu0 0.0
    %293 = vmatpush1.msra.mxu0 0.0
    %294 = vmatprep.subr.mxu0 0.0
    %295 = vmatpush1.msra.mxu0 0.0
    %296 = vmatprep.subr.mxu0 0.0
    %297 = vmatpush1.msra.mxu0 0.0
    %298 = vmatprep.subr.mxu0 0.0
    %299 = vmatpush1.msra.mxu0 0.0
    %300 = vmatprep.subr.mxu0 0.0
    %301 = vmatpush1.msra.mxu0 0.0
    %302 = vmatprep.subr.mxu0 0.0
    %303 = vmatpush1.msra.mxu0 0.0
    %304 = vmatprep.subr.mxu0 0.0
    %305 = vmatpush1.msra.mxu0 0.0
    %306 = vmatprep.subr.mxu0 0.0
    %307 = vmatpush1.msra.mxu0 0.0
    %308 = vmatprep.subr.mxu0 0.0
    %309 = vmatpush1.msra.mxu0 0.0
    %310 = vmatprep.subr.mxu0 0.0
    %311 = vmatpush1.msra.mxu0 0.0
    %312 = vmatprep.subr.mxu0 0.0
    %313 = vmatpush1.msra.mxu0 0.0
    %314 = vmatprep.mubr.f32.mxu0 0.0
    %v315 = vand.u32 %v51, 4294901760
    %v316 = vsub.f32 %v51, %v315
    %317 = vmatmul.mubr.f32.gmra.mrb[0].mxu0 %v316
    %v318 = vpop.f32.mrb[0].mxu0
    %v319 = vadd.f32 %v233, %v318
    %v320 = vpop.f32.mrb[0].mxu0
    %321 = vmatprep.mubr.f32.mxu0 0.0
    %v322 = vand.u32 %v54, 4294901760
    %v323 = vsub.f32 %v54, %v322
    %324 = vmatmul.mubr.f32.gmra.mrb[0].mxu0 %v323
    %v325 = vpop.f32.mrb[0].mxu0
    %v326 = vadd.f32 %v239, %v325
    %v327 = vpop.f32.mrb[0].mxu0
    %328 = vdwg.mxu0
    %329 = vmatprep.subr.mxu0 0.0
    %v330 = vand.u32 %v38, 4294901760
    %331 = vmatpush1.msra.mxu0 %v330
    %332 = vmatprep.subr.mxu0 0.0
    %v333 = vand.u32 %v39, 4294901760
    %334 = vmatpush1.msra.mxu0 %v333
    %335 = vmatprep.subr.mxu0 0.0
    %v336 = vand.u32 %v40, 4294901760
    %337 = vmatpush1.msra.mxu0 %v336
    %338 = vmatprep.subr.mxu0 0.0
    %v339 = vand.u32 %v41, 4294901760
    %340 = vmatpush1.msra.mxu0 %v339
    %341 = vmatprep.subr.mxu0 0.0
    %342 = vmatpush1.msra.mxu0 0.0
    %343 = vmatprep.subr.mxu0 0.0
    %344 = vmatpush1.msra.mxu0 0.0
    %345 = vmatprep.subr.mxu0 0.0
    %346 = vmatpush1.msra.mxu0 0.0
    %347 = vmatprep.subr.mxu0 0.0
    %348 = vmatpush1.msra.mxu0 0.0
    %349 = vmatprep.subr.mxu0 0.0
    %350 = vmatpush1.msra.mxu0 0.0
    %351 = vmatprep.subr.mxu0 0.0
    %352 = vmatpush1.msra.mxu0 0.0
    %353 = vmatprep.subr.mxu0 0.0
    %354 = vmatpush1.msra.mxu0 0.0
    %355 = vmatprep.subr.mxu0 0.0
    %356 = vmatpush1.msra.mxu0 0.0
    %357 = vmatprep.subr.mxu0 0.0
    %358 = vmatpush1.msra.mxu0 0.0
    %359 = vmatprep.subr.mxu0 0.0
    %360 = vmatpush1.msra.mxu0 0.0
    %361 = vmatprep.subr.mxu0 0.0
    %362 = vmatpush1.msra.mxu0 0.0
    %363 = vmatprep.subr.mxu0 0.0
    %364 = vmatpush1.msra.mxu0 0.0
    %365 = vmatprep.subr.mxu0 0.0
    %366 = vmatpush1.msra.mxu0 0.0
    %367 = vmatprep.subr.mxu0 0.0
    %368 = vmatpush1.msra.mxu0 0.0
    %369 = vmatprep.subr.mxu0 0.0
    %370 = vmatpush1.msra.mxu0 0.0
    %371 = vmatprep.subr.mxu0 0.0
    %372 = vmatpush1.msra.mxu0 0.0
    %373 = vmatprep.subr.mxu0 0.0
    %374 = vmatpush1.msra.mxu0 0.0
    %375 = vmatprep.subr.mxu0 0.0
    %376 = vmatpush1.msra.mxu0 0.0
    %377 = vmatprep.subr.mxu0 0.0
    %378 = vmatpush1.msra.mxu0 0.0
    %379 = vmatprep.subr.mxu0 0.0
    %380 = vmatpush1.msra.mxu0 0.0
    %381 = vmatprep.subr.mxu0 0.0
    %382 = vmatpush1.msra.mxu0 0.0
    %383 = vmatprep.subr.mxu0 0.0
    %384 = vmatpush1.msra.mxu0 0.0
    %385 = vmatprep.subr.mxu0 0.0
    %386 = vmatpush1.msra.mxu0 0.0
    %387 = vmatprep.subr.mxu0 0.0
    %388 = vmatpush1.msra.mxu0 0.0
    %389 = vmatprep.subr.mxu0 0.0
    %390 = vmatpush1.msra.mxu0 0.0
    %391 = vmatprep.subr.mxu0 0.0
    %392 = vmatpush1.msra.mxu0 0.0
    %393 = vmatprep.subr.mxu0 0.0
    %394 = vmatpush1.msra.mxu0 0.0
    %395 = vmatprep.subr.mxu0 0.0
    %396 = vmatpush1.msra.mxu0 0.0
    %397 = vmatprep.mubr.f32.mxu0 0.0
    %v398 = vand.u32 %v51, 4294901760
    %v399 = vsub.f32 %v51, %v398
    %v400 = vand.u32 %v399, 4294901760
    %401 = vmatmul.mubr.f32.gmra.mrb[0].mxu0 %v400
    %v402 = vpop.f32.mrb[0].mxu0
    %v403 = vadd.f32 %v319, %v402
    %v404 = vpop.f32.mrb[0].mxu0
    %405 = vmatprep.mubr.f32.mxu0 0.0
    %v406 = vand.u32 %v54, 4294901760
    %v407 = vsub.f32 %v54, %v406
    %v408 = vand.u32 %v407, 4294901760
    %409 = vmatmul.mubr.f32.gmra.mrb[0].mxu0 %v408
    %v410 = vpop.f32.mrb[0].mxu0
    %v411 = vadd.f32 %v326, %v410
    %v412 = vpop.f32.mrb[0].mxu0
    %413 = vdwg.mxu0
    %414 = vmatprep.subr.mxu0 0.0
    %v415 = vand.u32 %v38, 4294901760
    %v416 = vsub.f32 %v38, %v415
    %v417 = vand.u32 %v416, 4294901760
    %418 = vmatpush1.msra.mxu0 %v417
    %419 = vmatprep.subr.mxu0 0.0
    %v420 = vand.u32 %v39, 4294901760
    %v421 = vsub.f32 %v39, %v420
    %v422 = vand.u32 %v421, 4294901760
    %423 = vmatpush1.msra.mxu0 %v422
    %424 = vmatprep.subr.mxu0 0.0
    %v425 = vand.u32 %v40, 4294901760
    %v426 = vsub.f32 %v40, %v425
    %v427 = vand.u32 %v426, 4294901760
    %428 = vmatpush1.msra.mxu0 %v427
    %429 = vmatprep.subr.mxu0 0.0
    %v430 = vand.u32 %v41, 4294901760
    %v431 = vsub.f32 %v41, %v430
    %v432 = vand.u32 %v431, 4294901760
    %433 = vmatpush1.msra.mxu0 %v432
    %434 = vmatprep.subr.mxu0 0.0
    %435 = vmatpush1.msra.mxu0 0.0
    %436 = vmatprep.subr.mxu0 0.0
    %437 = vmatpush1.msra.mxu0 0.0
    %438 = vmatprep.subr.mxu0 0.0
    %439 = vmatpush1.msra.mxu0 0.0
    %440 = vmatprep.subr.mxu0 0.0
    %441 = vmatpush1.msra.mxu0 0.0
    %442 = vmatprep.subr.mxu0 0.0
    %443 = vmatpush1.msra.mxu0 0.0
    %444 = vmatprep.subr.mxu0 0.0
    %445 = vmatpush1.msra.mxu0 0.0
    %446 = vmatprep.subr.mxu0 0.0
    %447 = vmatpush1.msra.mxu0 0.0
    %448 = vmatprep.subr.mxu0 0.0
    %449 = vmatpush1.msra.mxu0 0.0
    %450 = vmatprep.subr.mxu0 0.0
    %451 = vmatpush1.msra.mxu0 0.0
    %452 = vmatprep.subr.mxu0 0.0
    %453 = vmatpush1.msra.mxu0 0.0
    %454 = vmatprep.subr.mxu0 0.0
    %455 = vmatpush1.msra.mxu0 0.0
    %456 = vmatprep.subr.mxu0 0.0
    %457 = vmatpush1.msra.mxu0 0.0
    %458 = vmatprep.subr.mxu0 0.0
    %459 = vmatpush1.msra.mxu0 0.0
    %460 = vmatprep.subr.mxu0 0.0
    %461 = vmatpush1.msra.mxu0 0.0
    %462 = vmatprep.subr.mxu0 0.0
    %463 = vmatpush1.msra.mxu0 0.0
    %464 = vmatprep.subr.mxu0 0.0
    %465 = vmatpush1.msra.mxu0 0.0
    %466 = vmatprep.subr.mxu0 0.0
    %467 = vmatpush1.msra.mxu0 0.0
    %468 = vmatprep.subr.mxu0 0.0
    %469 = vmatpush1.msra.mxu0 0.0
    %470 = vmatprep.subr.mxu0 0.0
    %471 = vmatpush1.msra.mxu0 0.0
    %472 = vmatprep.subr.mxu0 0.0
    %473 = vmatpush1.msra.mxu0 0.0
    %474 = vmatprep.subr.mxu0 0.0
    %475 = vmatpush1.msra.mxu0 0.0
    %476 = vmatprep.subr.mxu0 0.0
    %477 = vmatpush1.msra.mxu0 0.0
    %478 = vmatprep.subr.mxu0 0.0
    %479 = vmatpush1.msra.mxu0 0.0
    %480 = vmatprep.subr.mxu0 0.0
    %481 = vmatpush1.msra.mxu0 0.0
    %482 = vmatprep.subr.mxu0 0.0
    %483 = vmatpush1.msra.mxu0 0.0
    %484 = vmatprep.subr.mxu0 0.0
    %485 = vmatpush1.msra.mxu0 0.0
    %486 = vmatprep.subr.mxu0 0.0
    %487 = vmatpush1.msra.mxu0 0.0
    %488 = vmatprep.subr.mxu0 0.0
    %489 = vmatpush1.msra.mxu0 0.0
    %490 = vmatprep.mubr.f32.mxu0 0.0
    %v491 = vand.u32 %v51, 4294901760
    %492 = vmatmul.mubr.f32.gmra.mrb[0].mxu0 %v491
    %v493 = vpop.f32.mrb[0].mxu0
    %v494 = vadd.f32 %v403, %v493
    %v495 = vpop.f32.mrb[0].mxu0
    %496 = vmatprep.mubr.f32.mxu0 0.0
    %v497 = vand.u32 %v54, 4294901760
    %498 = vmatmul.mubr.f32.gmra.mrb[0].mxu0 %v497
    %v499 = vpop.f32.mrb[0].mxu0
    %v500 = vadd.f32 %v411, %v499
    %v501 = vpop.f32.mrb[0].mxu0
    %502 = vdwg.mxu0
    %503 = vmatprep.subr.mxu0 0.0
    %v504 = vand.u32 %v38, 4294901760
    %505 = vmatpush1.msra.mxu0 %v504
    %506 = vmatprep.subr.mxu0 0.0
    %v507 = vand.u32 %v39, 4294901760
    %508 = vmatpush1.msra.mxu0 %v507
    %509 = vmatprep.subr.mxu0 0.0
    %v510 = vand.u32 %v40, 4294901760
    %511 = vmatpush1.msra.mxu0 %v510
    %512 = vmatprep.subr.mxu0 0.0
    %v513 = vand.u32 %v41, 4294901760
    %514 = vmatpush1.msra.mxu0 %v513
    %515 = vmatprep.subr.mxu0 0.0
    %516 = vmatpush1.msra.mxu0 0.0
    %517 = vmatprep.subr.mxu0 0.0
    %518 = vmatpush1.msra.mxu0 0.0
    %519 = vmatprep.subr.mxu0 0.0
    %520 = vmatpush1.msra.mxu0 0.0
    %521 = vmatprep.subr.mxu0 0.0
    %522 = vmatpush1.msra.mxu0 0.0
    %523 = vmatprep.subr.mxu0 0.0
    %524 = vmatpush1.msra.mxu0 0.0
    %525 = vmatprep.subr.mxu0 0.0
    %526 = vmatpush1.msra.mxu0 0.0
    %527 = vmatprep.subr.mxu0 0.0
    %528 = vmatpush1.msra.mxu0 0.0
    %529 = vmatprep.subr.mxu0 0.0
    %530 = vmatpush1.msra.mxu0 0.0
    %531 = vmatprep.subr.mxu0 0.0
    %532 = vmatpush1.msra.mxu0 0.0
    %533 = vmatprep.subr.mxu0 0.0
    %534 = vmatpush1.msra.mxu0 0.0
    %535 = vmatprep.subr.mxu0 0.0
    %536 = vmatpush1.msra.mxu0 0.0
    %537 = vmatprep.subr.mxu0 0.0
    %538 = vmatpush1.msra.mxu0 0.0
    %539 = vmatprep.subr.mxu0 0.0
    %540 = vmatpush1.msra.mxu0 0.0
    %541 = vmatprep.subr.mxu0 0.0
    %542 = vmatpush1.msra.mxu0 0.0
    %543 = vmatprep.subr.mxu0 0.0
    %544 = vmatpush1.msra.mxu0 0.0
    %545 = vmatprep.subr.mxu0 0.0
    %546 = vmatpush1.msra.mxu0 0.0
    %547 = vmatprep.subr.mxu0 0.0
    %548 = vmatpush1.msra.mxu0 0.0
    %549 = vmatprep.subr.mxu0 0.0
    %550 = vmatpush1.msra.mxu0 0.0
    %551 = vmatprep.subr.mxu0 0.0
    %552 = vmatpush1.msra.mxu0 0.0
    %553 = vmatprep.subr.mxu0 0.0
    %554 = vmatpush1.msra.mxu0 0.0
    %555 = vmatprep.subr.mxu0 0.0
    %556 = vmatpush1.msra.mxu0 0.0
    %557 = vmatprep.subr.mxu0 0.0
    %558 = vmatpush1.msra.mxu0 0.0
    %559 = vmatprep.subr.mxu0 0.0
    %560 = vmatpush1.msra.mxu0 0.0
    %561 = vmatprep.subr.mxu0 0.0
    %562 = vmatpush1.msra.mxu0 0.0
    %563 = vmatprep.subr.mxu0 0.0
    %564 = vmatpush1.msra.mxu0 0.0
    %565 = vmatprep.subr.mxu0 0.0
    %566 = vmatpush1.msra.mxu0 0.0
    %567 = vmatprep.subr.mxu0 0.0
    %568 = vmatpush1.msra.mxu0 0.0
    %569 = vmatprep.subr.mxu0 0.0
    %570 = vmatpush1.msra.mxu0 0.0
    %571 = vmatprep.mubr.f32.mxu0 0.0
    %v572 = vand.u32 %v51, 4294901760
    %573 = vmatmul.mubr.f32.gmra.mrb[0].mxu0 %v572
    %v574 = vpop.f32.mrb[0].mxu0
    %v575 = vadd.f32 %v494, %v574
    %v576 = vpop.f32.mrb[0].mxu0
    %577 = vmatprep.mubr.f32.mxu0 0.0
    %v578 = vand.u32 %v54, 4294901760
    %579 = vmatmul.mubr.f32.gmra.mrb[0].mxu0 %v578
    %v580 = vpop.f32.mrb[0].mxu0
    %v581 = vadd.f32 %v500, %v580
    %v582 = vpop.f32.mrb[0].mxu0
    %583 = vdwg.mxu0
    %v584 = vld [vmem:[%s3] sm:$0xff]
    %v585 = vld [vmem:[%s3 + $0x8] sm:$0xff]
    %v586 = vld [vmem:[%s3 + $0x10] sm:$0xff]
    %v587 = vld [vmem:[%s3 + $0x18] sm:$0xff]
    %v588 = vld [vmem:[%s4] sm:$0x1]
    %v590 = vlaneseq
    %v591 = vshrl.u32 %v590, 7
    %v592 = vsub.s32 0, %v591
    %v593 = vrot.slane %v588, %v592
    %595 = vmatprep.subr.mxu0 0.0
    %v596 = vand.u32 %v584, 4294901760
    %597 = vmatpush1.msra.mxu0 %v596
    %598 = vmatprep.subr.mxu0 0.0
    %v599 = vand.u32 %v585, 4294901760
    %600 = vmatpush1.msra.mxu0 %v599
    %601 = vmatprep.subr.mxu0 0.0
    %v602 = vand.u32 %v586, 4294901760
    %603 = vmatpush1.msra.mxu0 %v602
    %604 = vmatprep.subr.mxu0 0.0
    %v605 = vand.u32 %v587, 4294901760
    %606 = vmatpush1.msra.mxu0 %v605
    %607 = vmatprep.subr.mxu0 0.0
    %608 = vmatpush1.msra.mxu0 0.0
    %609 = vmatprep.subr.mxu0 0.0
    %610 = vmatpush1.msra.mxu0 0.0
    %611 = vmatprep.subr.mxu0 0.0
    %612 = vmatpush1.msra.mxu0 0.0
    %613 = vmatprep.subr.mxu0 0.0
    %614 = vmatpush1.msra.mxu0 0.0
    %615 = vmatprep.subr.mxu0 0.0
    %616 = vmatpush1.msra.mxu0 0.0
    %617 = vmatprep.subr.mxu0 0.0
    %618 = vmatpush1.msra.mxu0 0.0
    %619 = vmatprep.subr.mxu0 0.0
    %620 = vmatpush1.msra.mxu0 0.0
    %621 = vmatprep.subr.mxu0 0.0
    %622 = vmatpush1.msra.mxu0 0.0
    %623 = vmatprep.subr.mxu0 0.0
    %624 = vmatpush1.msra.mxu0 0.0
    %625 = vmatprep.subr.mxu0 0.0
    %626 = vmatpush1.msra.mxu0 0.0
    %627 = vmatprep.subr.mxu0 0.0
    %628 = vmatpush1.msra.mxu0 0.0
    %629 = vmatprep.subr.mxu0 0.0
    %630 = vmatpush1.msra.mxu0 0.0
    %631 = vmatprep.subr.mxu0 0.0
    %632 = vmatpush1.msra.mxu0 0.0
    %633 = vmatprep.subr.mxu0 0.0
    %634 = vmatpush1.msra.mxu0 0.0
    %635 = vmatprep.subr.mxu0 0.0
    %636 = vmatpush1.msra.mxu0 0.0
    %637 = vmatprep.subr.mxu0 0.0
    %638 = vmatpush1.msra.mxu0 0.0
    %639 = vmatprep.subr.mxu0 0.0
    %640 = vmatpush1.msra.mxu0 0.0
    %641 = vmatprep.subr.mxu0 0.0
    %642 = vmatpush1.msra.mxu0 0.0
    %643 = vmatprep.subr.mxu0 0.0
    %644 = vmatpush1.msra.mxu0 0.0
    %645 = vmatprep.subr.mxu0 0.0
    %646 = vmatpush1.msra.mxu0 0.0
    %647 = vmatprep.subr.mxu0 0.0
    %648 = vmatpush1.msra.mxu0 0.0
    %649 = vmatprep.subr.mxu0 0.0
    %650 = vmatpush1.msra.mxu0 0.0
    %651 = vmatprep.subr.mxu0 0.0
    %652 = vmatpush1.msra.mxu0 0.0
    %653 = vmatprep.subr.mxu0 0.0
    %654 = vmatpush1.msra.mxu0 0.0
    %655 = vmatprep.subr.mxu0 0.0
    %656 = vmatpush1.msra.mxu0 0.0
    %657 = vmatprep.subr.mxu0 0.0
    %658 = vmatpush1.msra.mxu0 0.0
    %659 = vmatprep.subr.mxu0 0.0
    %660 = vmatpush1.msra.mxu0 0.0
    %661 = vmatprep.subr.mxu0 0.0
    %662 = vmatpush1.msra.mxu0 0.0
    %663 = vmatprep.mubr.f32.mxu0 0.0
    %v664 = vand.u32 %v51, 4294901760
    %v665 = vsub.f32 %v51, %v664
    %v666 = vand.u32 %v665, 4294901760
    %v667 = vsub.f32 %v665, %v666
    %v668 = vand.u32 %v667, 4294901760
    %669 = vmatmul.mubr.f32.gmra.mrb[0].mxu0 %v668
    %v670 = vpop.f32.mrb[0].mxu0
    %v671 = vadd.f32 %v593, %v670
    %v672 = vpop.f32.mrb[0].mxu0
    %673 = vmatprep.mubr.f32.mxu0 0.0
    %v674 = vand.u32 %v54, 4294901760
    %v675 = vsub.f32 %v54, %v674
    %v676 = vand.u32 %v675, 4294901760
    %v677 = vsub.f32 %v675, %v676
    %v678 = vand.u32 %v677, 4294901760
    %679 = vmatmul.mubr.f32.gmra.mrb[0].mxu0 %v678
    %v680 = vpop.f32.mrb[0].mxu0
    %v681 = vadd.f32 %v593, %v680
    %v682 = vpop.f32.mrb[0].mxu0
    %683 = vdwg.mxu0
    %684 = vmatprep.subr.mxu0 0.0
    %v685 = vand.u32 %v584, 4294901760
    %v686 = vsub.f32 %v584, %v685
    %v687 = vand.u32 %v686, 4294901760
    %v688 = vsub.f32 %v686, %v687
    %v689 = vand.u32 %v688, 4294901760
    %690 = vmatpush1.msra.mxu0 %v689
    %691 = vmatprep.subr.mxu0 0.0
    %v692 = vand.u32 %v585, 4294901760
    %v693 = vsub.f32 %v585, %v692
    %v694 = vand.u32 %v693, 4294901760
    %v695 = vsub.f32 %v693, %v694
    %v696 = vand.u32 %v695, 4294901760
    %697 = vmatpush1.msra.mxu0 %v696
    %698 = vmatprep.subr.mxu0 0.0
    %v699 = vand.u32 %v586, 4294901760
    %v700 = vsub.f32 %v586, %v699
    %v701 = vand.u32 %v700, 4294901760
    %v702 = vsub.f32 %v700, %v701
    %v703 = vand.u32 %v702, 4294901760
    %704 = vmatpush1.msra.mxu0 %v703
    %705 = vmatprep.subr.mxu0 0.0
    %v706 = vand.u32 %v587, 4294901760
    %v707 = vsub.f32 %v587, %v706
    %v708 = vand.u32 %v707, 4294901760
    %v709 = vsub.f32 %v707, %v708
    %v710 = vand.u32 %v709, 4294901760
    %711 = vmatpush1.msra.mxu0 %v710
    %712 = vmatprep.subr.mxu0 0.0
    %713 = vmatpush1.msra.mxu0 0.0
    %714 = vmatprep.subr.mxu0 0.0
    %715 = vmatpush1.msra.mxu0 0.0
    %716 = vmatprep.subr.mxu0 0.0
    %717 = vmatpush1.msra.mxu0 0.0
    %718 = vmatprep.subr.mxu0 0.0
    %719 = vmatpush1.msra.mxu0 0.0
    %720 = vmatprep.subr.mxu0 0.0
    %721 = vmatpush1.msra.mxu0 0.0
    %722 = vmatprep.subr.mxu0 0.0
    %723 = vmatpush1.msra.mxu0 0.0
    %724 = vmatprep.subr.mxu0 0.0
    %725 = vmatpush1.msra.mxu0 0.0
    %726 = vmatprep.subr.mxu0 0.0
    %727 = vmatpush1.msra.mxu0 0.0
    %728 = vmatprep.subr.mxu0 0.0
    %729 = vmatpush1.msra.mxu0 0.0
    %730 = vmatprep.subr.mxu0 0.0
    %731 = vmatpush1.msra.mxu0 0.0
    %732 = vmatprep.subr.mxu0 0.0
    %733 = vmatpush1.msra.mxu0 0.0
    %734 = vmatprep.subr.mxu0 0.0
    %735 = vmatpush1.msra.mxu0 0.0
    %736 = vmatprep.subr.mxu0 0.0
    %737 = vmatpush1.msra.mxu0 0.0
    %738 = vmatprep.subr.mxu0 0.0
    %739 = vmatpush1.msra.mxu0 0.0
    %740 = vmatprep.subr.mxu0 0.0
    %741 = vmatpush1.msra.mxu0 0.0
    %742 = vmatprep.subr.mxu0 0.0
    %743 = vmatpush1.msra.mxu0 0.0
    %744 = vmatprep.subr.mxu0 0.0
    %745 = vmatpush1.msra.mxu0 0.0
    %746 = vmatprep.subr.mxu0 0.0
    %747 = vmatpush1.msra.mxu0 0.0
    %748 = vmatprep.subr.mxu0 0.0
    %749 = vmatpush1.msra.mxu0 0.0
    %750 = vmatprep.subr.mxu0 0.0
    %751 = vmatpush1.msra.mxu0 0.0
    %752 = vmatprep.subr.mxu0 0.0
    %753 = vmatpush1.msra.mxu0 0.0
    %754 = vmatprep.subr.mxu0 0.0
    %755 = vmatpush1.msra.mxu0 0.0
    %756 = vmatprep.subr.mxu0 0.0
    %757 = vmatpush1.msra.mxu0 0.0
    %758 = vmatprep.subr.mxu0 0.0
    %759 = vmatpush1.msra.mxu0 0.0
    %760 = vmatprep.subr.mxu0 0.0
    %761 = vmatpush1.msra.mxu0 0.0
    %762 = vmatprep.subr.mxu0 0.0
    %763 = vmatpush1.msra.mxu0 0.0
    %764 = vmatprep.subr.mxu0 0.0
    %765 = vmatpush1.msra.mxu0 0.0
    %766 = vmatprep.subr.mxu0 0.0
    %767 = vmatpush1.msra.mxu0 0.0
    %768 = vmatprep.mubr.f32.mxu0 0.0
    %v769 = vand.u32 %v51, 4294901760
    %770 = vmatmul.mubr.f32.gmra.mrb[0].mxu0 %v769
    %v771 = vpop.f32.mrb[0].mxu0
    %v772 = vadd.f32 %v671, %v771
    %v773 = vpop.f32.mrb[0].mxu0
    %774 = vmatprep.mubr.f32.mxu0 0.0
    %v775 = vand.u32 %v54, 4294901760
    %776 = vmatmul.mubr.f32.gmra.mrb[0].mxu0 %v775
    %v777 = vpop.f32.mrb[0].mxu0
    %v778 = vadd.f32 %v681, %v777
    %v779 = vpop.f32.mrb[0].mxu0
    %780 = vdwg.mxu0
    %781 = vmatprep.subr.mxu0 0.0
    %v782 = vand.u32 %v584, 4294901760
    %v783 = vsub.f32 %v584, %v782
    %784 = vmatpush1.msra.mxu0 %v783
    %785 = vmatprep.subr.mxu0 0.0
    %v786 = vand.u32 %v585, 4294901760
    %v787 = vsub.f32 %v585, %v786
    %788 = vmatpush1.msra.mxu0 %v787
    %789 = vmatprep.subr.mxu0 0.0
    %v790 = vand.u32 %v586, 4294901760
    %v791 = vsub.f32 %v586, %v790
    %792 = vmatpush1.msra.mxu0 %v791
    %793 = vmatprep.subr.mxu0 0.0
    %v794 = vand.u32 %v587, 4294901760
    %v795 = vsub.f32 %v587, %v794
    %796 = vmatpush1.msra.mxu0 %v795
    %797 = vmatprep.subr.mxu0 0.0
    %798 = vmatpush1.msra.mxu0 0.0
    %799 = vmatprep.subr.mxu0 0.0
    %800 = vmatpush1.msra.mxu0 0.0
    %801 = vmatprep.subr.mxu0 0.0
    %802 = vmatpush1.msra.mxu0 0.0
    %803 = vmatprep.subr.mxu0 0.0
    %804 = vmatpush1.msra.mxu0 0.0
    %805 = vmatprep.subr.mxu0 0.0
    %806 = vmatpush1.msra.mxu0 0.0
    %807 = vmatprep.subr.mxu0 0.0
    %808 = vmatpush1.msra.mxu0 0.0
    %809 = vmatprep.subr.mxu0 0.0
    %810 = vmatpush1.msra.mxu0 0.0
    %811 = vmatprep.subr.mxu0 0.0
    %812 = vmatpush1.msra.mxu0 0.0
    %813 = vmatprep.subr.mxu0 0.0
    %814 = vmatpush1.msra.mxu0 0.0
    %815 = vmatprep.subr.mxu0 0.0
    %816 = vmatpush1.msra.mxu0 0.0
    %817 = vmatprep.subr.mxu0 0.0
    %818 = vmatpush1.msra.mxu0 0.0
    %819 = vmatprep.subr.mxu0 0.0
    %820 = vmatpush1.msra.mxu0 0.0
    %821 = vmatprep.subr.mxu0 0.0
    %822 = vmatpush1.msra.mxu0 0.0
    %823 = vmatprep.subr.mxu0 0.0
    %824 = vmatpush1.msra.mxu0 0.0
    %825 = vmatprep.subr.mxu0 0.0
    %826 = vmatpush1.msra.mxu0 0.0
    %827 = vmatprep.subr.mxu0 0.0
    %828 = vmatpush1.msra.mxu0 0.0
    %829 = vmatprep.subr.mxu0 0.0
    %830 = vmatpush1.msra.mxu0 0.0
    %831 = vmatprep.subr.mxu0 0.0
    %832 = vmatpush1.msra.mxu0 0.0
    %833 = vmatprep.subr.mxu0 0.0
    %834 = vmatpush1.msra.mxu0 0.0
    %835 = vmatprep.subr.mxu0 0.0
    %836 = vmatpush1.msra.mxu0 0.0
    %837 = vmatprep.subr.mxu0 0.0
    %838 = vmatpush1.msra.mxu0 0.0
    %839 = vmatprep.subr.mxu0 0.0
    %840 = vmatpush1.msra.mxu0 0.0
    %841 = vmatprep.subr.mxu0 0.0
    %842 = vmatpush1.msra.mxu0 0.0
    %843 = vmatprep.subr.mxu0 0.0
    %844 = vmatpush1.msra.mxu0 0.0
    %845 = vmatprep.subr.mxu0 0.0
    %846 = vmatpush1.msra.mxu0 0.0
    %847 = vmatprep.subr.mxu0 0.0
    %848 = vmatpush1.msra.mxu0 0.0
    %849 = vmatprep.subr.mxu0 0.0
    %850 = vmatpush1.msra.mxu0 0.0
    %851 = vmatprep.subr.mxu0 0.0
    %852 = vmatpush1.msra.mxu0 0.0
    %853 = vmatprep.mubr.f32.mxu0 0.0
    %v854 = vand.u32 %v51, 4294901760
    %v855 = vsub.f32 %v51, %v854
    %856 = vmatmul.mubr.f32.gmra.mrb[0].mxu0 %v855
    %v857 = vpop.f32.mrb[0].mxu0
    %v858 = vadd.f32 %v772, %v857
    %v859 = vpop.f32.mrb[0].mxu0
    %860 = vmatprep.mubr.f32.mxu0 0.0
    %v861 = vand.u32 %v54, 4294901760
    %v862 = vsub.f32 %v54, %v861
    %863 = vmatmul.mubr.f32.gmra.mrb[0].mxu0 %v862
    %v864 = vpop.f32.mrb[0].mxu0
    %v865 = vadd.f32 %v778, %v864
    %v866 = vpop.f32.mrb[0].mxu0
    %867 = vdwg.mxu0
    %868 = vmatprep.subr.mxu0 0.0
    %v869 = vand.u32 %v584, 4294901760
    %870 = vmatpush1.msra.mxu0 %v869
    %871 = vmatprep.subr.mxu0 0.0
    %v872 = vand.u32 %v585, 4294901760
    %873 = vmatpush1.msra.mxu0 %v872
    %874 = vmatprep.subr.mxu0 0.0
    %v875 = vand.u32 %v586, 4294901760
    %876 = vmatpush1.msra.mxu0 %v875
    %877 = vmatprep.subr.mxu0 0.0
    %v878 = vand.u32 %v587, 4294901760
    %879 = vmatpush1.msra.mxu0 %v878
    %880 = vmatprep.subr.mxu0 0.0
    %881 = vmatpush1.msra.mxu0 0.0
    %882 = vmatprep.subr.mxu0 0.0
    %883 = vmatpush1.msra.mxu0 0.0
    %884 = vmatprep.subr.mxu0 0.0
    %885 = vmatpush1.msra.mxu0 0.0
    %886 = vmatprep.subr.mxu0 0.0
    %887 = vmatpush1.msra.mxu0 0.0
    %888 = vmatprep.subr.mxu0 0.0
    %889 = vmatpush1.msra.mxu0 0.0
    %890 = vmatprep.subr.mxu0 0.0
    %891 = vmatpush1.msra.mxu0 0.0
    %892 = vmatprep.subr.mxu0 0.0
    %893 = vmatpush1.msra.mxu0 0.0
    %894 = vmatprep.subr.mxu0 0.0
    %895 = vmatpush1.msra.mxu0 0.0
    %896 = vmatprep.subr.mxu0 0.0
    %897 = vmatpush1.msra.mxu0 0.0
    %898 = vmatprep.subr.mxu0 0.0
    %899 = vmatpush1.msra.mxu0 0.0
    %900 = vmatprep.subr.mxu0 0.0
    %901 = vmatpush1.msra.mxu0 0.0
    %902 = vmatprep.subr.mxu0 0.0
    %903 = vmatpush1.msra.mxu0 0.0
    %904 = vmatprep.subr.mxu0 0.0
    %905 = vmatpush1.msra.mxu0 0.0
    %906 = vmatprep.subr.mxu0 0.0
    %907 = vmatpush1.msra.mxu0 0.0
    %908 = vmatprep.subr.mxu0 0.0
    %909 = vmatpush1.msra.mxu0 0.0
    %910 = vmatprep.subr.mxu0 0.0
    %911 = vmatpush1.msra.mxu0 0.0
    %912 = vmatprep.subr.mxu0 0.0
    %913 = vmatpush1.msra.mxu0 0.0
    %914 = vmatprep.subr.mxu0 0.0
    %915 = vmatpush1.msra.mxu0 0.0
    %916 = vmatprep.subr.mxu0 0.0
    %917 = vmatpush1.msra.mxu0 0.0
    %918 = vmatprep.subr.mxu0 0.0
    %919 = vmatpush1.msra.mxu0 0.0
    %920 = vmatprep.subr.mxu0 0.0
    %921 = vmatpush1.msra.mxu0 0.0
    %922 = vmatprep.subr.mxu0 0.0
    %923 = vmatpush1.msra.mxu0 0.0
    %924 = vmatprep.subr.mxu0 0.0
    %925 = vmatpush1.msra.mxu0 0.0
    %926 = vmatprep.subr.mxu0 0.0
    %927 = vmatpush1.msra.mxu0 0.0
    %928 = vmatprep.subr.mxu0 0.0
    %929 = vmatpush1.msra.mxu0 0.0
    %930 = vmatprep.subr.mxu0 0.0
    %931 = vmatpush1.msra.mxu0 0.0
    %932 = vmatprep.subr.mxu0 0.0
    %933 = vmatpush1.msra.mxu0 0.0
    %934 = vmatprep.subr.mxu0 0.0
    %935 = vmatpush1.msra.mxu0 0.0
    %936 = vmatprep.mubr.f32.mxu0 0.0
    %v937 = vand.u32 %v51, 4294901760
    %v938 = vsub.f32 %v51, %v937
    %v939 = vand.u32 %v938, 4294901760
    %940 = vmatmul.mubr.f32.gmra.mrb[0].mxu0 %v939
    %v941 = vpop.f32.mrb[0].mxu0
    %v942 = vadd.f32 %v858, %v941
    %v943 = vpop.f32.mrb[0].mxu0
    %944 = vmatprep.mubr.f32.mxu0 0.0
    %v945 = vand.u32 %v54, 4294901760
    %v946 = vsub.f32 %v54, %v945
    %v947 = vand.u32 %v946, 4294901760
    %948 = vmatmul.mubr.f32.gmra.mrb[0].mxu0 %v947
    %v949 = vpop.f32.mrb[0].mxu0
    %v950 = vadd.f32 %v865, %v949
    %v951 = vpop.f32.mrb[0].mxu0
    %952 = vdwg.mxu0
    %953 = vmatprep.subr.mxu0 0.0
    %v954 = vand.u32 %v584, 4294901760
    %v955 = vsub.f32 %v584, %v954
    %v956 = vand.u32 %v955, 4294901760
    %957 = vmatpush1.msra.mxu0 %v956
    %958 = vmatprep.subr.mxu0 0.0
    %v959 = vand.u32 %v585, 4294901760
    %v960 = vsub.f32 %v585, %v959
    %v961 = vand.u32 %v960, 4294901760
    %962 = vmatpush1.msra.mxu0 %v961
    %963 = vmatprep.subr.mxu0 0.0
    %v964 = vand.u32 %v586, 4294901760
    %v965 = vsub.f32 %v586, %v964
    %v966 = vand.u32 %v965, 4294901760
    %967 = vmatpush1.msra.mxu0 %v966
    %968 = vmatprep.subr.mxu0 0.0
    %v969 = vand.u32 %v587, 4294901760
    %v970 = vsub.f32 %v587, %v969
    %v971 = vand.u32 %v970, 4294901760
    %972 = vmatpush1.msra.mxu0 %v971
    %973 = vmatprep.subr.mxu0 0.0
    %974 = vmatpush1.msra.mxu0 0.0
    %975 = vmatprep.subr.mxu0 0.0
    %976 = vmatpush1.msra.mxu0 0.0
    %977 = vmatprep.subr.mxu0 0.0
    %978 = vmatpush1.msra.mxu0 0.0
    %979 = vmatprep.subr.mxu0 0.0
    %980 = vmatpush1.msra.mxu0 0.0
    %981 = vmatprep.subr.mxu0 0.0
    %982 = vmatpush1.msra.mxu0 0.0
    %983 = vmatprep.subr.mxu0 0.0
    %984 = vmatpush1.msra.mxu0 0.0
    %985 = vmatprep.subr.mxu0 0.0
    %986 = vmatpush1.msra.mxu0 0.0
    %987 = vmatprep.subr.mxu0 0.0
    %988 = vmatpush1.msra.mxu0 0.0
    %989 = vmatprep.subr.mxu0 0.0
    %990 = vmatpush1.msra.mxu0 0.0
    %991 = vmatprep.subr.mxu0 0.0
    %992 = vmatpush1.msra.mxu0 0.0
    %993 = vmatprep.subr.mxu0 0.0
    %994 = vmatpush1.msra.mxu0 0.0
    %995 = vmatprep.subr.mxu0 0.0
    %996 = vmatpush1.msra.mxu0 0.0
    %997 = vmatprep.subr.mxu0 0.0
    %998 = vmatpush1.msra.mxu0 0.0
    %999 = vmatprep.subr.mxu0 0.0
    %1000 = vmatpush1.msra.mxu0 0.0
    %1001 = vmatprep.subr.mxu0 0.0
    %1002 = vmatpush1.msra.mxu0 0.0
    %1003 = vmatprep.subr.mxu0 0.0
    %1004 = vmatpush1.msra.mxu0 0.0
    %1005 = vmatprep.subr.mxu0 0.0
    %1006 = vmatpush1.msra.mxu0 0.0
    %1007 = vmatprep.subr.mxu0 0.0
    %1008 = vmatpush1.msra.mxu0 0.0
    %1009 = vmatprep.subr.mxu0 0.0
    %1010 = vmatpush1.msra.mxu0 0.0
    %1011 = vmatprep.subr.mxu0 0.0
    %1012 = vmatpush1.msra.mxu0 0.0
    %1013 = vmatprep.subr.mxu0 0.0
    %1014 = vmatpush1.msra.mxu0 0.0
    %1015 = vmatprep.subr.mxu0 0.0
    %1016 = vmatpush1.msra.mxu0 0.0
    %1017 = vmatprep.subr.mxu0 0.0
    %1018 = vmatpush1.msra.mxu0 0.0
    %1019 = vmatprep.subr.mxu0 0.0
    %1020 = vmatpush1.msra.mxu0 0.0
    %1021 = vmatprep.subr.mxu0 0.0
    %1022 = vmatpush1.msra.mxu0 0.0
    %1023 = vmatprep.subr.mxu0 0.0
    %1024 = vmatpush1.msra.mxu0 0.0
    %1025 = vmatprep.subr.mxu0 0.0
    %1026 = vmatpush1.msra.mxu0 0.0
    %1027 = vmatprep.subr.mxu0 0.0
    %1028 = vmatpush1.msra.mxu0 0.0
    %1029 = vmatprep.mubr.f32.mxu0 0.0
    %v1030 = vand.u32 %v51, 4294901760
    %1031 = vmatmul.mubr.f32.gmra.mrb[0].mxu0 %v1030
    %v1032 = vpop.f32.mrb[0].mxu0
    %v1033 = vadd.f32 %v942, %v1032
    %v1034 = vpop.f32.mrb[0].mxu0
    %1035 = vmatprep.mubr.f32.mxu0 0.0
    %v1036 = vand.u32 %v54, 4294901760
    %1037 = vmatmul.mubr.f32.gmra.mrb[0].mxu0 %v1036
    %v1038 = vpop.f32.mrb[0].mxu0
    %v1039 = vadd.f32 %v950, %v1038
    %v1040 = vpop.f32.mrb[0].mxu0
    %1041 = vdwg.mxu0
    %1042 = vmatprep.subr.mxu0 0.0
    %v1043 = vand.u32 %v584, 4294901760
    %1044 = vmatpush1.msra.mxu0 %v1043
    %1045 = vmatprep.subr.mxu0 0.0
    %v1046 = vand.u32 %v585, 4294901760
    %1047 = vmatpush1.msra.mxu0 %v1046
    %1048 = vmatprep.subr.mxu0 0.0
    %v1049 = vand.u32 %v586, 4294901760
    %1050 = vmatpush1.msra.mxu0 %v1049
    %1051 = vmatprep.subr.mxu0 0.0
    %v1052 = vand.u32 %v587, 4294901760
    %1053 = vmatpush1.msra.mxu0 %v1052
    %1054 = vmatprep.subr.mxu0 0.0
    %1055 = vmatpush1.msra.mxu0 0.0
    %1056 = vmatprep.subr.mxu0 0.0
    %1057 = vmatpush1.msra.mxu0 0.0
    %1058 = vmatprep.subr.mxu0 0.0
    %1059 = vmatpush1.msra.mxu0 0.0
    %1060 = vmatprep.subr.mxu0 0.0
    %1061 = vmatpush1.msra.mxu0 0.0
    %1062 = vmatprep.subr.mxu0 0.0
    %1063 = vmatpush1.msra.mxu0 0.0
    %1064 = vmatprep.subr.mxu0 0.0
    %1065 = vmatpush1.msra.mxu0 0.0
    %1066 = vmatprep.subr.mxu0 0.0
    %1067 = vmatpush1.msra.mxu0 0.0
    %1068 = vmatprep.subr.mxu0 0.0
    %1069 = vmatpush1.msra.mxu0 0.0
    %1070 = vmatprep.subr.mxu0 0.0
    %1071 = vmatpush1.msra.mxu0 0.0
    %1072 = vmatprep.subr.mxu0 0.0
    %1073 = vmatpush1.msra.mxu0 0.0
    %1074 = vmatprep.subr.mxu0 0.0
    %1075 = vmatpush1.msra.mxu0 0.0
    %1076 = vmatprep.subr.mxu0 0.0
    %1077 = vmatpush1.msra.mxu0 0.0
    %1078 = vmatprep.subr.mxu0 0.0
    %1079 = vmatpush1.msra.mxu0 0.0
    %1080 = vmatprep.subr.mxu0 0.0
    %1081 = vmatpush1.msra.mxu0 0.0
    %1082 = vmatprep.subr.mxu0 0.0
    %1083 = vmatpush1.msra.mxu0 0.0
    %1084 = vmatprep.subr.mxu0 0.0
    %1085 = vmatpush1.msra.mxu0 0.0
    %1086 = vmatprep.subr.mxu0 0.0
    %1087 = vmatpush1.msra.mxu0 0.0
    %1088 = vmatprep.subr.mxu0 0.0
    %1089 = vmatpush1.msra.mxu0 0.0
    %1090 = vmatprep.subr.mxu0 0.0
    %1091 = vmatpush1.msra.mxu0 0.0
    %1092 = vmatprep.subr.mxu0 0.0
    %1093 = vmatpush1.msra.mxu0 0.0
    %1094 = vmatprep.subr.mxu0 0.0
    %1095 = vmatpush1.msra.mxu0 0.0
    %1096 = vmatprep.subr.mxu0 0.0
    %1097 = vmatpush1.msra.mxu0 0.0
    %1098 = vmatprep.subr.mxu0 0.0
    %1099 = vmatpush1.msra.mxu0 0.0
    %1100 = vmatprep.subr.mxu0 0.0
    %1101 = vmatpush1.msra.mxu0 0.0
    %1102 = vmatprep.subr.mxu0 0.0
    %1103 = vmatpush1.msra.mxu0 0.0
    %1104 = vmatprep.subr.mxu0 0.0
    %1105 = vmatpush1.msra.mxu0 0.0
    %1106 = vmatprep.subr.mxu0 0.0
    %1107 = vmatpush1.msra.mxu0 0.0
    %1108 = vmatprep.subr.mxu0 0.0
    %1109 = vmatpush1.msra.mxu0 0.0
    %1110 = vmatprep.mubr.f32.mxu0 0.0
    %v1111 = vand.u32 %v51, 4294901760
    %1112 = vmatmul.mubr.f32.gmra.mrb[0].mxu0 %v1111
    %v1113 = vpop.f32.mrb[0].mxu0
    %v1114 = vadd.f32 %v1033, %v1113
    %v1115 = vpop.f32.mrb[0].mxu0
    %1116 = vmatprep.mubr.f32.mxu0 0.0
    %v1117 = vand.u32 %v54, 4294901760
    %1118 = vmatmul.mubr.f32.gmra.mrb[0].mxu0 %v1117
    %v1119 = vpop.f32.mrb[0].mxu0
    %v1120 = vadd.f32 %v1039, %v1119
    %v1121 = vpop.f32.mrb[0].mxu0
    %1122 = vdwg.mxu0
    %v1123 = vld [vmem:[%s5] sm:$0xff]
    %v1124 = vld [vmem:[%s5 + $0x8] sm:$0xff]
    %v1125 = vld [vmem:[%s5 + $0x10] sm:$0xff]
    %v1126 = vld [vmem:[%s5 + $0x18] sm:$0xff]
    %v1127 = vld [vmem:[%s6] sm:$0x1]
    %v1129 = vlaneseq
    %v1130 = vshrl.u32 %v1129, 7
    %v1131 = vsub.s32 0, %v1130
    %v1132 = vrot.slane %v1127, %v1131
    %1134 = vmatprep.subr.mxu0 0.0
    %v1135 = vand.u32 %v1123, 4294901760
    %1136 = vmatpush1.msra.mxu0 %v1135
    %1137 = vmatprep.subr.mxu0 0.0
    %v1138 = vand.u32 %v1124, 4294901760
    %1139 = vmatpush1.msra.mxu0 %v1138
    %1140 = vmatprep.subr.mxu0 0.0
    %v1141 = vand.u32 %v1125, 4294901760
    %1142 = vmatpush1.msra.mxu0 %v1141
    %1143 = vmatprep.subr.mxu0 0.0
    %v1144 = vand.u32 %v1126, 4294901760
    %1145 = vmatpush1.msra.mxu0 %v1144
    %1146 = vmatprep.subr.mxu0 0.0
    %1147 = vmatpush1.msra.mxu0 0.0
    %1148 = vmatprep.subr.mxu0 0.0
    %1149 = vmatpush1.msra.mxu0 0.0
    %1150 = vmatprep.subr.mxu0 0.0
    %1151 = vmatpush1.msra.mxu0 0.0
    %1152 = vmatprep.subr.mxu0 0.0
    %1153 = vmatpush1.msra.mxu0 0.0
    %1154 = vmatprep.subr.mxu0 0.0
    %1155 = vmatpush1.msra.mxu0 0.0
    %1156 = vmatprep.subr.mxu0 0.0
    %1157 = vmatpush1.msra.mxu0 0.0
    %1158 = vmatprep.subr.mxu0 0.0
    %1159 = vmatpush1.msra.mxu0 0.0
    %1160 = vmatprep.subr.mxu0 0.0
    %1161 = vmatpush1.msra.mxu0 0.0
    %1162 = vmatprep.subr.mxu0 0.0
    %1163 = vmatpush1.msra.mxu0 0.0
    %1164 = vmatprep.subr.mxu0 0.0
    %1165 = vmatpush1.msra.mxu0 0.0
    %1166 = vmatprep.subr.mxu0 0.0
    %1167 = vmatpush1.msra.mxu0 0.0
    %1168 = vmatprep.subr.mxu0 0.0
    %1169 = vmatpush1.msra.mxu0 0.0
    %1170 = vmatprep.subr.mxu0 0.0
    %1171 = vmatpush1.msra.mxu0 0.0
    %1172 = vmatprep.subr.mxu0 0.0
    %1173 = vmatpush1.msra.mxu0 0.0
    %1174 = vmatprep.subr.mxu0 0.0
    %1175 = vmatpush1.msra.mxu0 0.0
    %1176 = vmatprep.subr.mxu0 0.0
    %1177 = vmatpush1.msra.mxu0 0.0
    %1178 = vmatprep.subr.mxu0 0.0
    %1179 = vmatpush1.msra.mxu0 0.0
    %1180 = vmatprep.subr.mxu0 0.0
    %1181 = vmatpush1.msra.mxu0 0.0
    %1182 = vmatprep.subr.mxu0 0.0
    %1183 = vmatpush1.msra.mxu0 0.0
    %1184 = vmatprep.subr.mxu0 0.0
    %1185 = vmatpush1.msra.mxu0 0.0
    %1186 = vmatprep.subr.mxu0 0.0
    %1187 = vmatpush1.msra.mxu0 0.0
    %1188 = vmatprep.subr.mxu0 0.0
    %1189 = vmatpush1.msra.mxu0 0.0
    %1190 = vmatprep.subr.mxu0 0.0
    %1191 = vmatpush1.msra.mxu0 0.0
    %1192 = vmatprep.subr.mxu0 0.0
    %1193 = vmatpush1.msra.mxu0 0.0
    %1194 = vmatprep.subr.mxu0 0.0
    %1195 = vmatpush1.msra.mxu0 0.0
    %1196 = vmatprep.subr.mxu0 0.0
    %1197 = vmatpush1.msra.mxu0 0.0
    %1198 = vmatprep.subr.mxu0 0.0
    %1199 = vmatpush1.msra.mxu0 0.0
    %1200 = vmatprep.subr.mxu0 0.0
    %1201 = vmatpush1.msra.mxu0 0.0
    %1202 = vmatprep.mubr.f32.mxu0 0.0
    %v1203 = vand.u32 %v51, 4294901760
    %v1204 = vsub.f32 %v51, %v1203
    %v1205 = vand.u32 %v1204, 4294901760
    %v1206 = vsub.f32 %v1204, %v1205
    %v1207 = vand.u32 %v1206, 4294901760
    %1208 = vmatmul.mubr.f32.gmra.mrb[0].mxu0 %v1207
    %v1209 = vpop.f32.mrb[0].mxu0
    %v1210 = vadd.f32 %v1132, %v1209
    %v1211 = vpop.f32.mrb[0].mxu0
    %1212 = vmatprep.mubr.f32.mxu0 0.0
    %v1213 = vand.u32 %v54, 4294901760
    %v1214 = vsub.f32 %v54, %v1213
    %v1215 = vand.u32 %v1214, 4294901760
    %v1216 = vsub.f32 %v1214, %v1215
    %v1217 = vand.u32 %v1216, 4294901760
    %1218 = vmatmul.mubr.f32.gmra.mrb[0].mxu0 %v1217
    %v1219 = vpop.f32.mrb[0].mxu0
    %v1220 = vadd.f32 %v1132, %v1219
    %v1221 = vpop.f32.mrb[0].mxu0
    %1222 = vdwg.mxu0
    %1223 = vmatprep.subr.mxu0 0.0
    %v1224 = vand.u32 %v1123, 4294901760
    %v1225 = vsub.f32 %v1123, %v1224
    %v1226 = vand.u32 %v1225, 4294901760
    %v1227 = vsub.f32 %v1225, %v1226
    %v1228 = vand.u32 %v1227, 4294901760
    %1229 = vmatpush1.msra.mxu0 %v1228
    %1230 = vmatprep.subr.mxu0 0.0
    %v1231 = vand.u32 %v1124, 4294901760
    %v1232 = vsub.f32 %v1124, %v1231
    %v1233 = vand.u32 %v1232, 4294901760
    %v1234 = vsub.f32 %v1232, %v1233
    %v1235 = vand.u32 %v1234, 4294901760
    %1236 = vmatpush1.msra.mxu0 %v1235
    %1237 = vmatprep.subr.mxu0 0.0
    %v1238 = vand.u32 %v1125, 4294901760
    %v1239 = vsub.f32 %v1125, %v1238
    %v1240 = vand.u32 %v1239, 4294901760
    %v1241 = vsub.f32 %v1239, %v1240
    %v1242 = vand.u32 %v1241, 4294901760
    %1243 = vmatpush1.msra.mxu0 %v1242
    %1244 = vmatprep.subr.mxu0 0.0
    %v1245 = vand.u32 %v1126, 4294901760
    %v1246 = vsub.f32 %v1126, %v1245
    %v1247 = vand.u32 %v1246, 4294901760
    %v1248 = vsub.f32 %v1246, %v1247
    %v1249 = vand.u32 %v1248, 4294901760
    %1250 = vmatpush1.msra.mxu0 %v1249
    %1251 = vmatprep.subr.mxu0 0.0
    %1252 = vmatpush1.msra.mxu0 0.0
    %1253 = vmatprep.subr.mxu0 0.0
    %1254 = vmatpush1.msra.mxu0 0.0
    %1255 = vmatprep.subr.mxu0 0.0
    %1256 = vmatpush1.msra.mxu0 0.0
    %1257 = vmatprep.subr.mxu0 0.0
    %1258 = vmatpush1.msra.mxu0 0.0
    %1259 = vmatprep.subr.mxu0 0.0
    %1260 = vmatpush1.msra.mxu0 0.0
    %1261 = vmatprep.subr.mxu0 0.0
    %1262 = vmatpush1.msra.mxu0 0.0
    %1263 = vmatprep.subr.mxu0 0.0
    %1264 = vmatpush1.msra.mxu0 0.0
    %1265 = vmatprep.subr.mxu0 0.0
    %1266 = vmatpush1.msra.mxu0 0.0
    %1267 = vmatprep.subr.mxu0 0.0
    %1268 = vmatpush1.msra.mxu0 0.0
    %1269 = vmatprep.subr.mxu0 0.0
    %1270 = vmatpush1.msra.mxu0 0.0
    %1271 = vmatprep.subr.mxu0 0.0
    %1272 = vmatpush1.msra.mxu0 0.0
    %1273 = vmatprep.subr.mxu0 0.0
    %1274 = vmatpush1.msra.mxu0 0.0
    %1275 = vmatprep.subr.mxu0 0.0
    %1276 = vmatpush1.msra.mxu0 0.0
    %1277 = vmatprep.subr.mxu0 0.0
    %1278 = vmatpush1.msra.mxu0 0.0
    %1279 = vmatprep.subr.mxu0 0.0
    %1280 = vmatpush1.msra.mxu0 0.0
    %1281 = vmatprep.subr.mxu0 0.0
    %1282 = vmatpush1.msra.mxu0 0.0
    %1283 = vmatprep.subr.mxu0 0.0
    %1284 = vmatpush1.msra.mxu0 0.0
    %1285 = vmatprep.subr.mxu0 0.0
    %1286 = vmatpush1.msra.mxu0 0.0
    %1287 = vmatprep.subr.mxu0 0.0
    %1288 = vmatpush1.msra.mxu0 0.0
    %1289 = vmatprep.subr.mxu0 0.0
    %1290 = vmatpush1.msra.mxu0 0.0
    %1291 = vmatprep.subr.mxu0 0.0
    %1292 = vmatpush1.msra.mxu0 0.0
    %1293 = vmatprep.subr.mxu0 0.0
    %1294 = vmatpush1.msra.mxu0 0.0
    %1295 = vmatprep.subr.mxu0 0.0
    %1296 = vmatpush1.msra.mxu0 0.0
    %1297 = vmatprep.subr.mxu0 0.0
    %1298 = vmatpush1.msra.mxu0 0.0
    %1299 = vmatprep.subr.mxu0 0.0
    %1300 = vmatpush1.msra.mxu0 0.0
    %1301 = vmatprep.subr.mxu0 0.0
    %1302 = vmatpush1.msra.mxu0 0.0
    %1303 = vmatprep.subr.mxu0 0.0
    %1304 = vmatpush1.msra.mxu0 0.0
    %1305 = vmatprep.subr.mxu0 0.0
    %1306 = vmatpush1.msra.mxu0 0.0
    %1307 = vmatprep.mubr.f32.mxu0 0.0
    %v1308 = vand.u32 %v51, 4294901760
    %1309 = vmatmul.mubr.f32.gmra.mrb[0].mxu0 %v1308
    %v1310 = vpop.f32.mrb[0].mxu0
    %v1311 = vadd.f32 %v1210, %v1310
    %v1312 = vpop.f32.mrb[0].mxu0
    %1313 = vmatprep.mubr.f32.mxu0 0.0
    %v1314 = vand.u32 %v54, 4294901760
    %1315 = vmatmul.mubr.f32.gmra.mrb[0].mxu0 %v1314
    %v1316 = vpop.f32.mrb[0].mxu0
    %v1317 = vadd.f32 %v1220, %v1316
    %v1318 = vpop.f32.mrb[0].mxu0
    %1319 = vdwg.mxu0
    %1320 = vmatprep.subr.mxu0 0.0
    %v1321 = vand.u32 %v1123, 4294901760
    %v1322 = vsub.f32 %v1123, %v1321
    %1323 = vmatpush1.msra.mxu0 %v1322
    %1324 = vmatprep.subr.mxu0 0.0
    %v1325 = vand.u32 %v1124, 4294901760
    %v1326 = vsub.f32 %v1124, %v1325
    %1327 = vmatpush1.msra.mxu0 %v1326
    %1328 = vmatprep.subr.mxu0 0.0
    %v1329 = vand.u32 %v1125, 4294901760
    %v1330 = vsub.f32 %v1125, %v1329
    %1331 = vmatpush1.msra.mxu0 %v1330
    %1332 = vmatprep.subr.mxu0 0.0
    %v1333 = vand.u32 %v1126, 4294901760
    %v1334 = vsub.f32 %v1126, %v1333
    %1335 = vmatpush1.msra.mxu0 %v1334
    %1336 = vmatprep.subr.mxu0 0.0
    %1337 = vmatpush1.msra.mxu0 0.0
    %1338 = vmatprep.subr.mxu0 0.0
    %1339 = vmatpush1.msra.mxu0 0.0
    %1340 = vmatprep.subr.mxu0 0.0
    %1341 = vmatpush1.msra.mxu0 0.0
    %1342 = vmatprep.subr.mxu0 0.0
    %1343 = vmatpush1.msra.mxu0 0.0
    %1344 = vmatprep.subr.mxu0 0.0
    %1345 = vmatpush1.msra.mxu0 0.0
    %1346 = vmatprep.subr.mxu0 0.0
    %1347 = vmatpush1.msra.mxu0 0.0
    %1348 = vmatprep.subr.mxu0 0.0
    %1349 = vmatpush1.msra.mxu0 0.0
    %1350 = vmatprep.subr.mxu0 0.0
    %1351 = vmatpush1.msra.mxu0 0.0
    %1352 = vmatprep.subr.mxu0 0.0
    %1353 = vmatpush1.msra.mxu0 0.0
    %1354 = vmatprep.subr.mxu0 0.0
    %1355 = vmatpush1.msra.mxu0 0.0
    %1356 = vmatprep.subr.mxu0 0.0
    %1357 = vmatpush1.msra.mxu0 0.0
    %1358 = vmatprep.subr.mxu0 0.0
    %1359 = vmatpush1.msra.mxu0 0.0
    %1360 = vmatprep.subr.mxu0 0.0
    %1361 = vmatpush1.msra.mxu0 0.0
    %1362 = vmatprep.subr.mxu0 0.0
    %1363 = vmatpush1.msra.mxu0 0.0
    %1364 = vmatprep.subr.mxu0 0.0
    %1365 = vmatpush1.msra.mxu0 0.0
    %1366 = vmatprep.subr.mxu0 0.0
    %1367 = vmatpush1.msra.mxu0 0.0
    %1368 = vmatprep.subr.mxu0 0.0
    %1369 = vmatpush1.msra.mxu0 0.0
    %1370 = vmatprep.subr.mxu0 0.0
    %1371 = vmatpush1.msra.mxu0 0.0
    %1372 = vmatprep.subr.mxu0 0.0
    %1373 = vmatpush1.msra.mxu0 0.0
    %1374 = vmatprep.subr.mxu0 0.0
    %1375 = vmatpush1.msra.mxu0 0.0
    %1376 = vmatprep.subr.mxu0 0.0
    %1377 = vmatpush1.msra.mxu0 0.0
    %1378 = vmatprep.subr.mxu0 0.0
    %1379 = vmatpush1.msra.mxu0 0.0
    %1380 = vmatprep.subr.mxu0 0.0
    %1381 = vmatpush1.msra.mxu0 0.0
    %1382 = vmatprep.subr.mxu0 0.0
    %1383 = vmatpush1.msra.mxu0 0.0
    %1384 = vmatprep.subr.mxu0 0.0
    %1385 = vmatpush1.msra.mxu0 0.0
    %1386 = vmatprep.subr.mxu0 0.0
    %1387 = vmatpush1.msra.mxu0 0.0
    %1388 = vmatprep.subr.mxu0 0.0
    %1389 = vmatpush1.msra.mxu0 0.0
    %1390 = vmatprep.subr.mxu0 0.0
    %1391 = vmatpush1.msra.mxu0 0.0
    %1392 = vmatprep.mubr.f32.mxu0 0.0
    %v1393 = vand.u32 %v51, 4294901760
    %v1394 = vsub.f32 %v51, %v1393
    %1395 = vmatmul.mubr.f32.gmra.mrb[0].mxu0 %v1394
    %v1396 = vpop.f32.mrb[0].mxu0
    %v1397 = vadd.f32 %v1311, %v1396
    %v1398 = vpop.f32.mrb[0].mxu0
    %1399 = vmatprep.mubr.f32.mxu0 0.0
    %v1400 = vand.u32 %v54, 4294901760
    %v1401 = vsub.f32 %v54, %v1400
    %1402 = vmatmul.mubr.f32.gmra.mrb[0].mxu0 %v1401
    %v1403 = vpop.f32.mrb[0].mxu0
    %v1404 = vadd.f32 %v1317, %v1403
    %v1405 = vpop.f32.mrb[0].mxu0
    %1406 = vdwg.mxu0
    %1407 = vmatprep.subr.mxu0 0.0
    %v1408 = vand.u32 %v1123, 4294901760
    %1409 = vmatpush1.msra.mxu0 %v1408
    %1410 = vmatprep.subr.mxu0 0.0
    %v1411 = vand.u32 %v1124, 4294901760
    %1412 = vmatpush1.msra.mxu0 %v1411
    %1413 = vmatprep.subr.mxu0 0.0
    %v1414 = vand.u32 %v1125, 4294901760
    %1415 = vmatpush1.msra.mxu0 %v1414
    %1416 = vmatprep.subr.mxu0 0.0
    %v1417 = vand.u32 %v1126, 4294901760
    %1418 = vmatpush1.msra.mxu0 %v1417
    %1419 = vmatprep.subr.mxu0 0.0
    %1420 = vmatpush1.msra.mxu0 0.0
    %1421 = vmatprep.subr.mxu0 0.0
    %1422 = vmatpush1.msra.mxu0 0.0
    %1423 = vmatprep.subr.mxu0 0.0
    %1424 = vmatpush1.msra.mxu0 0.0
    %1425 = vmatprep.subr.mxu0 0.0
    %1426 = vmatpush1.msra.mxu0 0.0
    %1427 = vmatprep.subr.mxu0 0.0
    %1428 = vmatpush1.msra.mxu0 0.0
    %1429 = vmatprep.subr.mxu0 0.0
    %1430 = vmatpush1.msra.mxu0 0.0
    %1431 = vmatprep.subr.mxu0 0.0
    %1432 = vmatpush1.msra.mxu0 0.0
    %1433 = vmatprep.subr.mxu0 0.0
    %1434 = vmatpush1.msra.mxu0 0.0
    %1435 = vmatprep.subr.mxu0 0.0
    %1436 = vmatpush1.msra.mxu0 0.0
    %1437 = vmatprep.subr.mxu0 0.0
    %1438 = vmatpush1.msra.mxu0 0.0
    %1439 = vmatprep.subr.mxu0 0.0
    %1440 = vmatpush1.msra.mxu0 0.0
    %1441 = vmatprep.subr.mxu0 0.0
    %1442 = vmatpush1.msra.mxu0 0.0
    %1443 = vmatprep.subr.mxu0 0.0
    %1444 = vmatpush1.msra.mxu0 0.0
    %1445 = vmatprep.subr.mxu0 0.0
    %1446 = vmatpush1.msra.mxu0 0.0
    %1447 = vmatprep.subr.mxu0 0.0
    %1448 = vmatpush1.msra.mxu0 0.0
    %1449 = vmatprep.subr.mxu0 0.0
    %1450 = vmatpush1.msra.mxu0 0.0
    %1451 = vmatprep.subr.mxu0 0.0
    %1452 = vmatpush1.msra.mxu0 0.0
    %1453 = vmatprep.subr.mxu0 0.0
    %1454 = vmatpush1.msra.mxu0 0.0
    %1455 = vmatprep.subr.mxu0 0.0
    %1456 = vmatpush1.msra.mxu0 0.0
    %1457 = vmatprep.subr.mxu0 0.0
    %1458 = vmatpush1.msra.mxu0 0.0
    %1459 = vmatprep.subr.mxu0 0.0
    %1460 = vmatpush1.msra.mxu0 0.0
    %1461 = vmatprep.subr.mxu0 0.0
    %1462 = vmatpush1.msra.mxu0 0.0
    %1463 = vmatprep.subr.mxu0 0.0
    %1464 = vmatpush1.msra.mxu0 0.0
    %1465 = vmatprep.subr.mxu0 0.0
    %1466 = vmatpush1.msra.mxu0 0.0
    %1467 = vmatprep.subr.mxu0 0.0
    %1468 = vmatpush1.msra.mxu0 0.0
    %1469 = vmatprep.subr.mxu0 0.0
    %1470 = vmatpush1.msra.mxu0 0.0
    %1471 = vmatprep.subr.mxu0 0.0
    %1472 = vmatpush1.msra.mxu0 0.0
    %1473 = vmatprep.subr.mxu0 0.0
    %1474 = vmatpush1.msra.mxu0 0.0
    %1475 = vmatprep.mubr.f32.mxu0 0.0
    %v1476 = vand.u32 %v51, 4294901760
    %v1477 = vsub.f32 %v51, %v1476
    %v1478 = vand.u32 %v1477, 4294901760
    %1479 = vmatmul.mubr.f32.gmra.mrb[0].mxu0 %v1478
    %v1480 = vpop.f32.mrb[0].mxu0
    %v1481 = vadd.f32 %v1397, %v1480
    %v1482 = vpop.f32.mrb[0].mxu0
    %1483 = vmatprep.mubr.f32.mxu0 0.0
    %v1484 = vand.u32 %v54, 4294901760
    %v1485 = vsub.f32 %v54, %v1484
    %v1486 = vand.u32 %v1485, 4294901760
    %1487 = vmatmul.mubr.f32.gmra.mrb[0].mxu0 %v1486
    %v1488 = vpop.f32.mrb[0].mxu0
    %v1489 = vadd.f32 %v1404, %v1488
    %v1490 = vpop.f32.mrb[0].mxu0
    %1491 = vdwg.mxu0
    %1492 = vmatprep.subr.mxu0 0.0
    %v1493 = vand.u32 %v1123, 4294901760
    %v1494 = vsub.f32 %v1123, %v1493
    %v1495 = vand.u32 %v1494, 4294901760
    %1496 = vmatpush1.msra.mxu0 %v1495
    %1497 = vmatprep.subr.mxu0 0.0
    %v1498 = vand.u32 %v1124, 4294901760
    %v1499 = vsub.f32 %v1124, %v1498
    %v1500 = vand.u32 %v1499, 4294901760
    %1501 = vmatpush1.msra.mxu0 %v1500
    %1502 = vmatprep.subr.mxu0 0.0
    %v1503 = vand.u32 %v1125, 4294901760
    %v1504 = vsub.f32 %v1125, %v1503
    %v1505 = vand.u32 %v1504, 4294901760
    %1506 = vmatpush1.msra.mxu0 %v1505
    %1507 = vmatprep.subr.mxu0 0.0
    %v1508 = vand.u32 %v1126, 4294901760
    %v1509 = vsub.f32 %v1126, %v1508
    %v1510 = vand.u32 %v1509, 4294901760
    %1511 = vmatpush1.msra.mxu0 %v1510
    %1512 = vmatprep.subr.mxu0 0.0
    %1513 = vmatpush1.msra.mxu0 0.0
    %1514 = vmatprep.subr.mxu0 0.0
    %1515 = vmatpush1.msra.mxu0 0.0
    %1516 = vmatprep.subr.mxu0 0.0
    %1517 = vmatpush1.msra.mxu0 0.0
    %1518 = vmatprep.subr.mxu0 0.0
    %1519 = vmatpush1.msra.mxu0 0.0
    %1520 = vmatprep.subr.mxu0 0.0
    %1521 = vmatpush1.msra.mxu0 0.0
    %1522 = vmatprep.subr.mxu0 0.0
    %1523 = vmatpush1.msra.mxu0 0.0
    %1524 = vmatprep.subr.mxu0 0.0
    %1525 = vmatpush1.msra.mxu0 0.0
    %1526 = vmatprep.subr.mxu0 0.0
    %1527 = vmatpush1.msra.mxu0 0.0
    %1528 = vmatprep.subr.mxu0 0.0
    %1529 = vmatpush1.msra.mxu0 0.0
    %1530 = vmatprep.subr.mxu0 0.0
    %1531 = vmatpush1.msra.mxu0 0.0
    %1532 = vmatprep.subr.mxu0 0.0
    %1533 = vmatpush1.msra.mxu0 0.0
    %1534 = vmatprep.subr.mxu0 0.0
    %1535 = vmatpush1.msra.mxu0 0.0
    %1536 = vmatprep.subr.mxu0 0.0
    %1537 = vmatpush1.msra.mxu0 0.0
    %1538 = vmatprep.subr.mxu0 0.0
    %1539 = vmatpush1.msra.mxu0 0.0
    %1540 = vmatprep.subr.mxu0 0.0
    %1541 = vmatpush1.msra.mxu0 0.0
    %1542 = vmatprep.subr.mxu0 0.0
    %1543 = vmatpush1.msra.mxu0 0.0
    %1544 = vmatprep.subr.mxu0 0.0
    %1545 = vmatpush1.msra.mxu0 0.0
    %1546 = vmatprep.subr.mxu0 0.0
    %1547 = vmatpush1.msra.mxu0 0.0
    %1548 = vmatprep.subr.mxu0 0.0
    %1549 = vmatpush1.msra.mxu0 0.0
    %1550 = vmatprep.subr.mxu0 0.0
    %1551 = vmatpush1.msra.mxu0 0.0
    %1552 = vmatprep.subr.mxu0 0.0
    %1553 = vmatpush1.msra.mxu0 0.0
    %1554 = vmatprep.subr.mxu0 0.0
    %1555 = vmatpush1.msra.mxu0 0.0
    %1556 = vmatprep.subr.mxu0 0.0
    %1557 = vmatpush1.msra.mxu0 0.0
    %1558 = vmatprep.subr.mxu0 0.0
    %1559 = vmatpush1.msra.mxu0 0.0
    %1560 = vmatprep.subr.mxu0 0.0
    %1561 = vmatpush1.msra.mxu0 0.0
    %1562 = vmatprep.subr.mxu0 0.0
    %1563 = vmatpush1.msra.mxu0 0.0
    %1564 = vmatprep.subr.mxu0 0.0
    %1565 = vmatpush1.msra.mxu0 0.0
    %1566 = vmatprep.subr.mxu0 0.0
    %1567 = vmatpush1.msra.mxu0 0.0
    %1568 = vmatprep.mubr.f32.mxu0 0.0
    %v1569 = vand.u32 %v51, 4294901760
    %1570 = vmatmul.mubr.f32.gmra.mrb[0].mxu0 %v1569
    %v1571 = vpop.f32.mrb[0].mxu0
    %v1572 = vadd.f32 %v1481, %v1571
    %v1573 = vpop.f32.mrb[0].mxu0
    %1574 = vmatprep.mubr.f32.mxu0 0.0
    %v1575 = vand.u32 %v54, 4294901760
    %1576 = vmatmul.mubr.f32.gmra.mrb[0].mxu0 %v1575
    %v1577 = vpop.f32.mrb[0].mxu0
    %v1578 = vadd.f32 %v1489, %v1577
    %v1579 = vpop.f32.mrb[0].mxu0
    %1580 = vdwg.mxu0
    %1581 = vmatprep.subr.mxu0 0.0
    %v1582 = vand.u32 %v1123, 4294901760
    %1583 = vmatpush1.msra.mxu0 %v1582
    %1584 = vmatprep.subr.mxu0 0.0
    %v1585 = vand.u32 %v1124, 4294901760
    %1586 = vmatpush1.msra.mxu0 %v1585
    %1587 = vmatprep.subr.mxu0 0.0
    %v1588 = vand.u32 %v1125, 4294901760
    %1589 = vmatpush1.msra.mxu0 %v1588
    %1590 = vmatprep.subr.mxu0 0.0
    %v1591 = vand.u32 %v1126, 4294901760
    %1592 = vmatpush1.msra.mxu0 %v1591
    %1593 = vmatprep.subr.mxu0 0.0
    %1594 = vmatpush1.msra.mxu0 0.0
    %1595 = vmatprep.subr.mxu0 0.0
    %1596 = vmatpush1.msra.mxu0 0.0
    %1597 = vmatprep.subr.mxu0 0.0
    %1598 = vmatpush1.msra.mxu0 0.0
    %1599 = vmatprep.subr.mxu0 0.0
    %1600 = vmatpush1.msra.mxu0 0.0
    %1601 = vmatprep.subr.mxu0 0.0
    %1602 = vmatpush1.msra.mxu0 0.0
    %1603 = vmatprep.subr.mxu0 0.0
    %1604 = vmatpush1.msra.mxu0 0.0
    %1605 = vmatprep.subr.mxu0 0.0
    %1606 = vmatpush1.msra.mxu0 0.0
    %1607 = vmatprep.subr.mxu0 0.0
    %1608 = vmatpush1.msra.mxu0 0.0
    %1609 = vmatprep.subr.mxu0 0.0
    %1610 = vmatpush1.msra.mxu0 0.0
    %1611 = vmatprep.subr.mxu0 0.0
    %1612 = vmatpush1.msra.mxu0 0.0
    %1613 = vmatprep.subr.mxu0 0.0
    %1614 = vmatpush1.msra.mxu0 0.0
    %1615 = vmatprep.subr.mxu0 0.0
    %1616 = vmatpush1.msra.mxu0 0.0
    %1617 = vmatprep.subr.mxu0 0.0
    %1618 = vmatpush1.msra.mxu0 0.0
    %1619 = vmatprep.subr.mxu0 0.0
    %1620 = vmatpush1.msra.mxu0 0.0
    %1621 = vmatprep.subr.mxu0 0.0
    %1622 = vmatpush1.msra.mxu0 0.0
    %1623 = vmatprep.subr.mxu0 0.0
    %1624 = vmatpush1.msra.mxu0 0.0
    %1625 = vmatprep.subr.mxu0 0.0
    %1626 = vmatpush1.msra.mxu0 0.0
    %1627 = vmatprep.subr.mxu0 0.0
    %1628 = vmatpush1.msra.mxu0 0.0
    %1629 = vmatprep.subr.mxu0 0.0
    %1630 = vmatpush1.msra.mxu0 0.0
    %1631 = vmatprep.subr.mxu0 0.0
    %1632 = vmatpush1.msra.mxu0 0.0
    %1633 = vmatprep.subr.mxu0 0.0
    %1634 = vmatpush1.msra.mxu0 0.0
    %1635 = vmatprep.subr.mxu0 0.0
    %1636 = vmatpush1.msra.mxu0 0.0
    %1637 = vmatprep.subr.mxu0 0.0
    %1638 = vmatpush1.msra.mxu0 0.0
    %1639 = vmatprep.subr.mxu0 0.0
    %1640 = vmatpush1.msra.mxu0 0.0
    %1641 = vmatprep.subr.mxu0 0.0
    %1642 = vmatpush1.msra.mxu0 0.0
    %1643 = vmatprep.subr.mxu0 0.0
    %1644 = vmatpush1.msra.mxu0 0.0
    %1645 = vmatprep.subr.mxu0 0.0
    %1646 = vmatpush1.msra.mxu0 0.0
    %1647 = vmatprep.subr.mxu0 0.0
    %1648 = vmatpush1.msra.mxu0 0.0
    %1649 = vmatprep.mubr.f32.mxu0 0.0
    %v1650 = vand.u32 %v51, 4294901760
    %1651 = vmatmul.mubr.f32.gmra.mrb[0].mxu0 %v1650
    %v1652 = vpop.f32.mrb[0].mxu0
    %v1653 = vadd.f32 %v1572, %v1652
    %v1654 = vpop.f32.mrb[0].mxu0
    %1655 = vmatprep.mubr.f32.mxu0 0.0
    %v1656 = vand.u32 %v54, 4294901760
    %1657 = vmatmul.mubr.f32.gmra.mrb[0].mxu0 %v1656
    %v1658 = vpop.f32.mrb[0].mxu0
    %v1659 = vadd.f32 %v1578, %v1658
    %v1660 = vpop.f32.mrb[0].mxu0
    %1661 = vdwg.mxu0
    %v1662 = vld [vmem:[%s9] sm:$0xff]
    %v1663 = vld [vmem:[%s9 + $0x8] sm:$0xff]
    %v1664 = vld [vmem:[%s7] sm:$0xff]
    %v1665 = vld [vmem:[%s7 + $0x8] sm:$0xff]
    %v1666 = vld [vmem:[%s7 + $0x10] sm:$0xff]
    %v1667 = vld [vmem:[%s7 + $0x18] sm:$0xff]
    %vm1668 = vcmask 64512
    %v1670 = vsel %vm1668, %v575, 0
    %v1673 = vsel %vm1668, %v581, 0
    %v1676 = vsel %vm1668, %v1114, 0
    %v1679 = vsel %vm1668, %v1120, 0
    %1681 = vmatprep.subr.mxu0 0.0
    %v1682 = vand.u32 %v1676, 4294901760
    %1683 = vmatpush1.xpose.msra.mxu0 %v1682
    %1684 = vmatprep.subr.mxu0 0.0
    %v1685 = vand.u32 %v1679, 4294901760
    %1686 = vmatpush1.xpose.msra.mxu0 %v1685
    %1687 = vmatprep.subr.mxu0 0.0
    %1688 = vmatpush1.xpose.msra.mxu0 0.0
    %1689 = vmatprep.subr.mxu0 0.0
    %1690 = vmatpush1.xpose.msra.mxu0 0.0
    %1691 = vmatprep.subr.mxu0 0.0
    %1692 = vmatpush1.xpose.msra.mxu0 0.0
    %1693 = vmatprep.subr.mxu0 0.0
    %1694 = vmatpush1.xpose.msra.mxu0 0.0
    %1695 = vmatprep.subr.mxu0 0.0
    %1696 = vmatpush1.xpose.msra.mxu0 0.0
    %1697 = vmatprep.subr.mxu0 0.0
    %1698 = vmatpush1.xpose.msra.mxu0 0.0
    %1699 = vmatprep.subr.mxu0 0.0
    %1700 = vmatpush1.xpose.msra.mxu0 0.0
    %1701 = vmatprep.subr.mxu0 0.0
    %1702 = vmatpush1.xpose.msra.mxu0 0.0
    %1703 = vmatprep.subr.mxu0 0.0
    %1704 = vmatpush1.xpose.msra.mxu0 0.0
    %1705 = vmatprep.subr.mxu0 0.0
    %1706 = vmatpush1.xpose.msra.mxu0 0.0
    %1707 = vmatprep.subr.mxu0 0.0
    %1708 = vmatpush1.xpose.msra.mxu0 0.0
    %1709 = vmatprep.subr.mxu0 0.0
    %1710 = vmatpush1.xpose.msra.mxu0 0.0
    %1711 = vmatprep.subr.mxu0 0.0
    %1712 = vmatpush1.xpose.msra.mxu0 0.0
    %1713 = vmatprep.subr.mxu0 0.0
    %1714 = vmatpush1.xpose.msra.mxu0 0.0
    %1715 = vmatprep.subr.mxu0 0.0
    %1716 = vmatpush1.xpose.msra.mxu0 0.0
    %1717 = vmatprep.subr.mxu0 0.0
    %1718 = vmatpush1.xpose.msra.mxu0 0.0
    %1719 = vmatprep.subr.mxu0 0.0
    %1720 = vmatpush1.xpose.msra.mxu0 0.0
    %1721 = vmatprep.subr.mxu0 0.0
    %1722 = vmatpush1.xpose.msra.mxu0 0.0
    %1723 = vmatprep.subr.mxu0 0.0
    %1724 = vmatpush1.xpose.msra.mxu0 0.0
    %1725 = vmatprep.subr.mxu0 0.0
    %1726 = vmatpush1.xpose.msra.mxu0 0.0
    %1727 = vmatprep.subr.mxu0 0.0
    %1728 = vmatpush1.xpose.msra.mxu0 0.0
    %1729 = vmatprep.subr.mxu0 0.0
    %1730 = vmatpush1.xpose.msra.mxu0 0.0
    %1731 = vmatprep.subr.mxu0 0.0
    %1732 = vmatpush1.xpose.msra.mxu0 0.0
    %1733 = vmatprep.subr.mxu0 0.0
    %1734 = vmatpush1.xpose.msra.mxu0 0.0
    %1735 = vmatprep.subr.mxu0 0.0
    %1736 = vmatpush1.xpose.msra.mxu0 0.0
    %1737 = vmatprep.subr.mxu0 0.0
    %1738 = vmatpush1.xpose.msra.mxu0 0.0
    %1739 = vmatprep.subr.mxu0 0.0
    %1740 = vmatpush1.xpose.msra.mxu0 0.0
    %1741 = vmatprep.subr.mxu0 0.0
    %1742 = vmatpush1.xpose.msra.mxu0 0.0
    %1743 = vmatprep.subr.mxu0 0.0
    %1744 = vmatpush1.xpose.msra.mxu0 0.0
    %1745 = vmatprep.subr.mxu0 0.0
    %1746 = vmatpush1.xpose.msra.mxu0 0.0
    %1747 = vmatprep.mubr.f32.mxu0 0.0
    %v1748 = vand.u32 %v1670, 4294901760
    %v1749 = vsub.f32 %v1670, %v1748
    %v1750 = vand.u32 %v1749, 4294901760
    %v1751 = vsub.f32 %v1749, %v1750
    %v1752 = vand.u32 %v1751, 4294901760
    %1753 = vmatmul.mubr.f32.gmra.mrb[0].mxu0 %v1752
    %v1754 = vpop.f32.mrb[0].mxu0
    %v1755 = vadd.f32 %v1662, %v1754
    %v1756 = vpop.f32.mrb[0].mxu0
    %1757 = vmatprep.mubr.f32.mxu0 0.0
    %v1758 = vand.u32 %v1673, 4294901760
    %v1759 = vsub.f32 %v1673, %v1758
    %v1760 = vand.u32 %v1759, 4294901760
    %v1761 = vsub.f32 %v1759, %v1760
    %v1762 = vand.u32 %v1761, 4294901760
    %1763 = vmatmul.mubr.f32.gmra.mrb[0].mxu0 %v1762
    %v1764 = vpop.f32.mrb[0].mxu0
    %v1765 = vadd.f32 %v1663, %v1764
    %v1766 = vpop.f32.mrb[0].mxu0
    %1767 = vdwg.mxu0
    %1768 = vmatprep.subr.mxu0 0.0
    %v1769 = vand.u32 %v1676, 4294901760
    %v1770 = vsub.f32 %v1676, %v1769
    %v1771 = vand.u32 %v1770, 4294901760
    %v1772 = vsub.f32 %v1770, %v1771
    %v1773 = vand.u32 %v1772, 4294901760
    %1774 = vmatpush1.xpose.msra.mxu0 %v1773
    %1775 = vmatprep.subr.mxu0 0.0
    %v1776 = vand.u32 %v1679, 4294901760
    %v1777 = vsub.f32 %v1679, %v1776
    %v1778 = vand.u32 %v1777, 4294901760
    %v1779 = vsub.f32 %v1777, %v1778
    %v1780 = vand.u32 %v1779, 4294901760
    %1781 = vmatpush1.xpose.msra.mxu0 %v1780
    %1782 = vmatprep.subr.mxu0 0.0
    %1783 = vmatpush1.xpose.msra.mxu0 0.0
    %1784 = vmatprep.subr.mxu0 0.0
    %1785 = vmatpush1.xpose.msra.mxu0 0.0
    %1786 = vmatprep.subr.mxu0 0.0
    %1787 = vmatpush1.xpose.msra.mxu0 0.0
    %1788 = vmatprep.subr.mxu0 0.0
    %1789 = vmatpush1.xpose.msra.mxu0 0.0
    %1790 = vmatprep.subr.mxu0 0.0
    %1791 = vmatpush1.xpose.msra.mxu0 0.0
    %1792 = vmatprep.subr.mxu0 0.0
    %1793 = vmatpush1.xpose.msra.mxu0 0.0
    %1794 = vmatprep.subr.mxu0 0.0
    %1795 = vmatpush1.xpose.msra.mxu0 0.0
    %1796 = vmatprep.subr.mxu0 0.0
    %1797 = vmatpush1.xpose.msra.mxu0 0.0
    %1798 = vmatprep.subr.mxu0 0.0
    %1799 = vmatpush1.xpose.msra.mxu0 0.0
    %1800 = vmatprep.subr.mxu0 0.0
    %1801 = vmatpush1.xpose.msra.mxu0 0.0
    %1802 = vmatprep.subr.mxu0 0.0
    %1803 = vmatpush1.xpose.msra.mxu0 0.0
    %1804 = vmatprep.subr.mxu0 0.0
    %1805 = vmatpush1.xpose.msra.mxu0 0.0
    %1806 = vmatprep.subr.mxu0 0.0
    %1807 = vmatpush1.xpose.msra.mxu0 0.0
    %1808 = vmatprep.subr.mxu0 0.0
    %1809 = vmatpush1.xpose.msra.mxu0 0.0
    %1810 = vmatprep.subr.mxu0 0.0
    %1811 = vmatpush1.xpose.msra.mxu0 0.0
    %1812 = vmatprep.subr.mxu0 0.0
    %1813 = vmatpush1.xpose.msra.mxu0 0.0
    %1814 = vmatprep.subr.mxu0 0.0
    %1815 = vmatpush1.xpose.msra.mxu0 0.0
    %1816 = vmatprep.subr.mxu0 0.0
    %1817 = vmatpush1.xpose.msra.mxu0 0.0
    %1818 = vmatprep.subr.mxu0 0.0
    %1819 = vmatpush1.xpose.msra.mxu0 0.0
    %1820 = vmatprep.subr.mxu0 0.0
    %1821 = vmatpush1.xpose.msra.mxu0 0.0
    %1822 = vmatprep.subr.mxu0 0.0
    %1823 = vmatpush1.xpose.msra.mxu0 0.0
    %1824 = vmatprep.subr.mxu0 0.0
    %1825 = vmatpush1.xpose.msra.mxu0 0.0
    %1826 = vmatprep.subr.mxu0 0.0
    %1827 = vmatpush1.xpose.msra.mxu0 0.0
    %1828 = vmatprep.subr.mxu0 0.0
    %1829 = vmatpush1.xpose.msra.mxu0 0.0
    %1830 = vmatprep.subr.mxu0 0.0
    %1831 = vmatpush1.xpose.msra.mxu0 0.0
    %1832 = vmatprep.subr.mxu0 0.0
    %1833 = vmatpush1.xpose.msra.mxu0 0.0
    %1834 = vmatprep.subr.mxu0 0.0
    %1835 = vmatpush1.xpose.msra.mxu0 0.0
    %1836 = vmatprep.subr.mxu0 0.0
    %1837 = vmatpush1.xpose.msra.mxu0 0.0
    %1838 = vmatprep.subr.mxu0 0.0
    %1839 = vmatpush1.xpose.msra.mxu0 0.0
    %1840 = vmatprep.subr.mxu0 0.0
    %1841 = vmatpush1.xpose.msra.mxu0 0.0
    %1842 = vmatprep.mubr.f32.mxu0 0.0
    %v1843 = vand.u32 %v1670, 4294901760
    %1844 = vmatmul.mubr.f32.gmra.mrb[0].mxu0 %v1843
    %v1845 = vpop.f32.mrb[0].mxu0
    %v1846 = vadd.f32 %v1755, %v1845
    %v1847 = vpop.f32.mrb[0].mxu0
    %1848 = vmatprep.mubr.f32.mxu0 0.0
    %v1849 = vand.u32 %v1673, 4294901760
    %1850 = vmatmul.mubr.f32.gmra.mrb[0].mxu0 %v1849
    %v1851 = vpop.f32.mrb[0].mxu0
    %v1852 = vadd.f32 %v1765, %v1851
    %v1853 = vpop.f32.mrb[0].mxu0
    %1854 = vdwg.mxu0
    %1855 = vmatprep.subr.mxu0 0.0
    %v1856 = vand.u32 %v1676, 4294901760
    %v1857 = vsub.f32 %v1676, %v1856
    %1858 = vmatpush1.xpose.msra.mxu0 %v1857
    %1859 = vmatprep.subr.mxu0 0.0
    %v1860 = vand.u32 %v1679, 4294901760
    %v1861 = vsub.f32 %v1679, %v1860
    %1862 = vmatpush1.xpose.msra.mxu0 %v1861
    %1863 = vmatprep.subr.mxu0 0.0
    %1864 = vmatpush1.xpose.msra.mxu0 0.0
    %1865 = vmatprep.subr.mxu0 0.0
    %1866 = vmatpush1.xpose.msra.mxu0 0.0
    %1867 = vmatprep.subr.mxu0 0.0
    %1868 = vmatpush1.xpose.msra.mxu0 0.0
    %1869 = vmatprep.subr.mxu0 0.0
    %1870 = vmatpush1.xpose.msra.mxu0 0.0
    %1871 = vmatprep.subr.mxu0 0.0
    %1872 = vmatpush1.xpose.msra.mxu0 0.0
    %1873 = vmatprep.subr.mxu0 0.0
    %1874 = vmatpush1.xpose.msra.mxu0 0.0
    %1875 = vmatprep.subr.mxu0 0.0
    %1876 = vmatpush1.xpose.msra.mxu0 0.0
    %1877 = vmatprep.subr.mxu0 0.0
    %1878 = vmatpush1.xpose.msra.mxu0 0.0
    %1879 = vmatprep.subr.mxu0 0.0
    %1880 = vmatpush1.xpose.msra.mxu0 0.0
    %1881 = vmatprep.subr.mxu0 0.0
    %1882 = vmatpush1.xpose.msra.mxu0 0.0
    %1883 = vmatprep.subr.mxu0 0.0
    %1884 = vmatpush1.xpose.msra.mxu0 0.0
    %1885 = vmatprep.subr.mxu0 0.0
    %1886 = vmatpush1.xpose.msra.mxu0 0.0
    %1887 = vmatprep.subr.mxu0 0.0
    %1888 = vmatpush1.xpose.msra.mxu0 0.0
    %1889 = vmatprep.subr.mxu0 0.0
    %1890 = vmatpush1.xpose.msra.mxu0 0.0
    %1891 = vmatprep.subr.mxu0 0.0
    %1892 = vmatpush1.xpose.msra.mxu0 0.0
    %1893 = vmatprep.subr.mxu0 0.0
    %1894 = vmatpush1.xpose.msra.mxu0 0.0
    %1895 = vmatprep.subr.mxu0 0.0
    %1896 = vmatpush1.xpose.msra.mxu0 0.0
    %1897 = vmatprep.subr.mxu0 0.0
    %1898 = vmatpush1.xpose.msra.mxu0 0.0
    %1899 = vmatprep.subr.mxu0 0.0
    %1900 = vmatpush1.xpose.msra.mxu0 0.0
    %1901 = vmatprep.subr.mxu0 0.0
    %1902 = vmatpush1.xpose.msra.mxu0 0.0
    %1903 = vmatprep.subr.mxu0 0.0
    %1904 = vmatpush1.xpose.msra.mxu0 0.0
    %1905 = vmatprep.subr.mxu0 0.0
    %1906 = vmatpush1.xpose.msra.mxu0 0.0
    %1907 = vmatprep.subr.mxu0 0.0
    %1908 = vmatpush1.xpose.msra.mxu0 0.0
    %1909 = vmatprep.subr.mxu0 0.0
    %1910 = vmatpush1.xpose.msra.mxu0 0.0
    %1911 = vmatprep.subr.mxu0 0.0
    %1912 = vmatpush1.xpose.msra.mxu0 0.0
    %1913 = vmatprep.subr.mxu0 0.0
    %1914 = vmatpush1.xpose.msra.mxu0 0.0
    %1915 = vmatprep.subr.mxu0 0.0
    %1916 = vmatpush1.xpose.msra.mxu0 0.0
    %1917 = vmatprep.subr.mxu0 0.0
    %1918 = vmatpush1.xpose.msra.mxu0 0.0
    %1919 = vmatprep.subr.mxu0 0.0
    %1920 = vmatpush1.xpose.msra.mxu0 0.0
    %1921 = vmatprep.subr.mxu0 0.0
    %1922 = vmatpush1.xpose.msra.mxu0 0.0
    %1923 = vmatprep.mubr.f32.mxu0 0.0
    %v1924 = vand.u32 %v1670, 4294901760
    %v1925 = vsub.f32 %v1670, %v1924
    %1926 = vmatmul.mubr.f32.gmra.mrb[0].mxu0 %v1925
    %v1927 = vpop.f32.mrb[0].mxu0
    %v1928 = vadd.f32 %v1846, %v1927
    %v1929 = vpop.f32.mrb[0].mxu0
    %1930 = vmatprep.mubr.f32.mxu0 0.0
    %v1931 = vand.u32 %v1673, 4294901760
    %v1932 = vsub.f32 %v1673, %v1931
    %1933 = vmatmul.mubr.f32.gmra.mrb[0].mxu0 %v1932
    %v1934 = vpop.f32.mrb[0].mxu0
    %v1935 = vadd.f32 %v1852, %v1934
    %v1936 = vpop.f32.mrb[0].mxu0
    %1937 = vdwg.mxu0
    %1938 = vmatprep.subr.mxu0 0.0
    %v1939 = vand.u32 %v1676, 4294901760
    %1940 = vmatpush1.xpose.msra.mxu0 %v1939
    %1941 = vmatprep.subr.mxu0 0.0
    %v1942 = vand.u32 %v1679, 4294901760
    %1943 = vmatpush1.xpose.msra.mxu0 %v1942
    %1944 = vmatprep.subr.mxu0 0.0
    %1945 = vmatpush1.xpose.msra.mxu0 0.0
    %1946 = vmatprep.subr.mxu0 0.0
    %1947 = vmatpush1.xpose.msra.mxu0 0.0
    %1948 = vmatprep.subr.mxu0 0.0
    %1949 = vmatpush1.xpose.msra.mxu0 0.0
    %1950 = vmatprep.subr.mxu0 0.0
    %1951 = vmatpush1.xpose.msra.mxu0 0.0
    %1952 = vmatprep.subr.mxu0 0.0
    %1953 = vmatpush1.xpose.msra.mxu0 0.0
    %1954 = vmatprep.subr.mxu0 0.0
    %1955 = vmatpush1.xpose.msra.mxu0 0.0
    %1956 = vmatprep.subr.mxu0 0.0
    %1957 = vmatpush1.xpose.msra.mxu0 0.0
    %1958 = vmatprep.subr.mxu0 0.0
    %1959 = vmatpush1.xpose.msra.mxu0 0.0
    %1960 = vmatprep.subr.mxu0 0.0
    %1961 = vmatpush1.xpose.msra.mxu0 0.0
    %1962 = vmatprep.subr.mxu0 0.0
    %1963 = vmatpush1.xpose.msra.mxu0 0.0
    %1964 = vmatprep.subr.mxu0 0.0
    %1965 = vmatpush1.xpose.msra.mxu0 0.0
    %1966 = vmatprep.subr.mxu0 0.0
    %1967 = vmatpush1.xpose.msra.mxu0 0.0
    %1968 = vmatprep.subr.mxu0 0.0
    %1969 = vmatpush1.xpose.msra.mxu0 0.0
    %1970 = vmatprep.subr.mxu0 0.0
    %1971 = vmatpush1.xpose.msra.mxu0 0.0
    %1972 = vmatprep.subr.mxu0 0.0
    %1973 = vmatpush1.xpose.msra.mxu0 0.0
    %1974 = vmatprep.subr.mxu0 0.0
    %1975 = vmatpush1.xpose.msra.mxu0 0.0
    %1976 = vmatprep.subr.mxu0 0.0
    %1977 = vmatpush1.xpose.msra.mxu0 0.0
    %1978 = vmatprep.subr.mxu0 0.0
    %1979 = vmatpush1.xpose.msra.mxu0 0.0
    %1980 = vmatprep.subr.mxu0 0.0
    %1981 = vmatpush1.xpose.msra.mxu0 0.0
    %1982 = vmatprep.subr.mxu0 0.0
    %1983 = vmatpush1.xpose.msra.mxu0 0.0
    %1984 = vmatprep.subr.mxu0 0.0
    %1985 = vmatpush1.xpose.msra.mxu0 0.0
    %1986 = vmatprep.subr.mxu0 0.0
    %1987 = vmatpush1.xpose.msra.mxu0 0.0
    %1988 = vmatprep.subr.mxu0 0.0
    %1989 = vmatpush1.xpose.msra.mxu0 0.0
    %1990 = vmatprep.subr.mxu0 0.0
    %1991 = vmatpush1.xpose.msra.mxu0 0.0
    %1992 = vmatprep.subr.mxu0 0.0
    %1993 = vmatpush1.xpose.msra.mxu0 0.0
    %1994 = vmatprep.subr.mxu0 0.0
    %1995 = vmatpush1.xpose.msra.mxu0 0.0
    %1996 = vmatprep.subr.mxu0 0.0
    %1997 = vmatpush1.xpose.msra.mxu0 0.0
    %1998 = vmatprep.subr.mxu0 0.0
    %1999 = vmatpush1.xpose.msra.mxu0 0.0
    %2000 = vmatprep.subr.mxu0 0.0
    %2001 = vmatpush1.xpose.msra.mxu0 0.0
    %2002 = vmatprep.subr.mxu0 0.0
    %2003 = vmatpush1.xpose.msra.mxu0 0.0
    %2004 = vmatprep.mubr.f32.mxu0 0.0
    %v2005 = vand.u32 %v1670, 4294901760
    %v2006 = vsub.f32 %v1670, %v2005
    %v2007 = vand.u32 %v2006, 4294901760
    %2008 = vmatmul.mubr.f32.gmra.mrb[0].mxu0 %v2007
    %v2009 = vpop.f32.mrb[0].mxu0
    %v2010 = vadd.f32 %v1928, %v2009
    %v2011 = vpop.f32.mrb[0].mxu0
    %2012 = vmatprep.mubr.f32.mxu0 0.0
    %v2013 = vand.u32 %v1673, 4294901760
    %v2014 = vsub.f32 %v1673, %v2013
    %v2015 = vand.u32 %v2014, 4294901760
    %2016 = vmatmul.mubr.f32.gmra.mrb[0].mxu0 %v2015
    %v2017 = vpop.f32.mrb[0].mxu0
    %v2018 = vadd.f32 %v1935, %v2017
    %v2019 = vpop.f32.mrb[0].mxu0
    %2020 = vdwg.mxu0
    %2021 = vmatprep.subr.mxu0 0.0
    %v2022 = vand.u32 %v1676, 4294901760
    %v2023 = vsub.f32 %v1676, %v2022
    %v2024 = vand.u32 %v2023, 4294901760
    %2025 = vmatpush1.xpose.msra.mxu0 %v2024
    %2026 = vmatprep.subr.mxu0 0.0
    %v2027 = vand.u32 %v1679, 4294901760
    %v2028 = vsub.f32 %v1679, %v2027
    %v2029 = vand.u32 %v2028, 4294901760
    %2030 = vmatpush1.xpose.msra.mxu0 %v2029
    %2031 = vmatprep.subr.mxu0 0.0
    %2032 = vmatpush1.xpose.msra.mxu0 0.0
    %2033 = vmatprep.subr.mxu0 0.0
    %2034 = vmatpush1.xpose.msra.mxu0 0.0
    %2035 = vmatprep.subr.mxu0 0.0
    %2036 = vmatpush1.xpose.msra.mxu0 0.0
    %2037 = vmatprep.subr.mxu0 0.0
    %2038 = vmatpush1.xpose.msra.mxu0 0.0
    %2039 = vmatprep.subr.mxu0 0.0
    %2040 = vmatpush1.xpose.msra.mxu0 0.0
    %2041 = vmatprep.subr.mxu0 0.0
    %2042 = vmatpush1.xpose.msra.mxu0 0.0
    %2043 = vmatprep.subr.mxu0 0.0
    %2044 = vmatpush1.xpose.msra.mxu0 0.0
    %2045 = vmatprep.subr.mxu0 0.0
    %2046 = vmatpush1.xpose.msra.mxu0 0.0
    %2047 = vmatprep.subr.mxu0 0.0
    %2048 = vmatpush1.xpose.msra.mxu0 0.0
    %2049 = vmatprep.subr.mxu0 0.0
    %2050 = vmatpush1.xpose.msra.mxu0 0.0
    %2051 = vmatprep.subr.mxu0 0.0
    %2052 = vmatpush1.xpose.msra.mxu0 0.0
    %2053 = vmatprep.subr.mxu0 0.0
    %2054 = vmatpush1.xpose.msra.mxu0 0.0
    %2055 = vmatprep.subr.mxu0 0.0
    %2056 = vmatpush1.xpose.msra.mxu0 0.0
    %2057 = vmatprep.subr.mxu0 0.0
    %2058 = vmatpush1.xpose.msra.mxu0 0.0
    %2059 = vmatprep.subr.mxu0 0.0
    %2060 = vmatpush1.xpose.msra.mxu0 0.0
    %2061 = vmatprep.subr.mxu0 0.0
    %2062 = vmatpush1.xpose.msra.mxu0 0.0
    %2063 = vmatprep.subr.mxu0 0.0
    %2064 = vmatpush1.xpose.msra.mxu0 0.0
    %2065 = vmatprep.subr.mxu0 0.0
    %2066 = vmatpush1.xpose.msra.mxu0 0.0
    %2067 = vmatprep.subr.mxu0 0.0
    %2068 = vmatpush1.xpose.msra.mxu0 0.0
    %2069 = vmatprep.subr.mxu0 0.0
    %2070 = vmatpush1.xpose.msra.mxu0 0.0
    %2071 = vmatprep.subr.mxu0 0.0
    %2072 = vmatpush1.xpose.msra.mxu0 0.0
    %2073 = vmatprep.subr.mxu0 0.0
    %2074 = vmatpush1.xpose.msra.mxu0 0.0
    %2075 = vmatprep.subr.mxu0 0.0
    %2076 = vmatpush1.xpose.msra.mxu0 0.0
    %2077 = vmatprep.subr.mxu0 0.0
    %2078 = vmatpush1.xpose.msra.mxu0 0.0
    %2079 = vmatprep.subr.mxu0 0.0
    %2080 = vmatpush1.xpose.msra.mxu0 0.0
    %2081 = vmatprep.subr.mxu0 0.0
    %2082 = vmatpush1.xpose.msra.mxu0 0.0
    %2083 = vmatprep.subr.mxu0 0.0
    %2084 = vmatpush1.xpose.msra.mxu0 0.0
    %2085 = vmatprep.subr.mxu0 0.0
    %2086 = vmatpush1.xpose.msra.mxu0 0.0
    %2087 = vmatprep.subr.mxu0 0.0
    %2088 = vmatpush1.xpose.msra.mxu0 0.0
    %2089 = vmatprep.subr.mxu0 0.0
    %2090 = vmatpush1.xpose.msra.mxu0 0.0
    %2091 = vmatprep.mubr.f32.mxu0 0.0
    %v2092 = vand.u32 %v1670, 4294901760
    %2093 = vmatmul.mubr.f32.gmra.mrb[0].mxu0 %v2092
    %v2094 = vpop.f32.mrb[0].mxu0
    %v2095 = vadd.f32 %v2010, %v2094
    %v2096 = vpop.f32.mrb[0].mxu0
    %2097 = vmatprep.mubr.f32.mxu0 0.0
    %v2098 = vand.u32 %v1673, 4294901760
    %2099 = vmatmul.mubr.f32.gmra.mrb[0].mxu0 %v2098
    %v2100 = vpop.f32.mrb[0].mxu0
    %v2101 = vadd.f32 %v2018, %v2100
    %v2102 = vpop.f32.mrb[0].mxu0
    %2103 = vdwg.mxu0
    %2104 = vmatprep.subr.mxu0 0.0
    %v2105 = vand.u32 %v1676, 4294901760
    %2106 = vmatpush1.xpose.msra.mxu0 %v2105
    %2107 = vmatprep.subr.mxu0 0.0
    %v2108 = vand.u32 %v1679, 4294901760
    %2109 = vmatpush1.xpose.msra.mxu0 %v2108
    %2110 = vmatprep.subr.mxu0 0.0
    %2111 = vmatpush1.xpose.msra.mxu0 0.0
    %2112 = vmatprep.subr.mxu0 0.0
    %2113 = vmatpush1.xpose.msra.mxu0 0.0
    %2114 = vmatprep.subr.mxu0 0.0
    %2115 = vmatpush1.xpose.msra.mxu0 0.0
    %2116 = vmatprep.subr.mxu0 0.0
    %2117 = vmatpush1.xpose.msra.mxu0 0.0
    %2118 = vmatprep.subr.mxu0 0.0
    %2119 = vmatpush1.xpose.msra.mxu0 0.0
    %2120 = vmatprep.subr.mxu0 0.0
    %2121 = vmatpush1.xpose.msra.mxu0 0.0
    %2122 = vmatprep.subr.mxu0 0.0
    %2123 = vmatpush1.xpose.msra.mxu0 0.0
    %2124 = vmatprep.subr.mxu0 0.0
    %2125 = vmatpush1.xpose.msra.mxu0 0.0
    %2126 = vmatprep.subr.mxu0 0.0
    %2127 = vmatpush1.xpose.msra.mxu0 0.0
    %2128 = vmatprep.subr.mxu0 0.0
    %2129 = vmatpush1.xpose.msra.mxu0 0.0
    %2130 = vmatprep.subr.mxu0 0.0
    %2131 = vmatpush1.xpose.msra.mxu0 0.0
    %2132 = vmatprep.subr.mxu0 0.0
    %2133 = vmatpush1.xpose.msra.mxu0 0.0
    %2134 = vmatprep.subr.mxu0 0.0
    %2135 = vmatpush1.xpose.msra.mxu0 0.0
    %2136 = vmatprep.subr.mxu0 0.0
    %2137 = vmatpush1.xpose.msra.mxu0 0.0
    %2138 = vmatprep.subr.mxu0 0.0
    %2139 = vmatpush1.xpose.msra.mxu0 0.0
    %2140 = vmatprep.subr.mxu0 0.0
    %2141 = vmatpush1.xpose.msra.mxu0 0.0
    %2142 = vmatprep.subr.mxu0 0.0
    %2143 = vmatpush1.xpose.msra.mxu0 0.0
    %2144 = vmatprep.subr.mxu0 0.0
    %2145 = vmatpush1.xpose.msra.mxu0 0.0
    %2146 = vmatprep.subr.mxu0 0.0
    %2147 = vmatpush1.xpose.msra.mxu0 0.0
    %2148 = vmatprep.subr.mxu0 0.0
    %2149 = vmatpush1.xpose.msra.mxu0 0.0
    %2150 = vmatprep.subr.mxu0 0.0
    %2151 = vmatpush1.xpose.msra.mxu0 0.0
    %2152 = vmatprep.subr.mxu0 0.0
    %2153 = vmatpush1.xpose.msra.mxu0 0.0
    %2154 = vmatprep.subr.mxu0 0.0
    %2155 = vmatpush1.xpose.msra.mxu0 0.0
    %2156 = vmatprep.subr.mxu0 0.0
    %2157 = vmatpush1.xpose.msra.mxu0 0.0
    %2158 = vmatprep.subr.mxu0 0.0
    %2159 = vmatpush1.xpose.msra.mxu0 0.0
    %2160 = vmatprep.subr.mxu0 0.0
    %2161 = vmatpush1.xpose.msra.mxu0 0.0
    %2162 = vmatprep.subr.mxu0 0.0
    %2163 = vmatpush1.xpose.msra.mxu0 0.0
    %2164 = vmatprep.subr.mxu0 0.0
    %2165 = vmatpush1.xpose.msra.mxu0 0.0
    %2166 = vmatprep.subr.mxu0 0.0
    %2167 = vmatpush1.xpose.msra.mxu0 0.0
    %2168 = vmatprep.subr.mxu0 0.0
    %2169 = vmatpush1.xpose.msra.mxu0 0.0
    %2170 = vmatprep.mubr.f32.mxu0 0.0
    %v2171 = vand.u32 %v1670, 4294901760
    %2172 = vmatmul.mubr.f32.gmra.mrb[0].mxu0 %v2171
    %v2173 = vpop.f32.mrb[0].mxu0
    %v2174 = vadd.f32 %v2095, %v2173
    %v2175 = vpop.f32.mrb[0].mxu0
    %2176 = vmatprep.mubr.f32.mxu0 0.0
    %v2177 = vand.u32 %v1673, 4294901760
    %2178 = vmatmul.mubr.f32.gmra.mrb[0].mxu0 %v2177
    %v2179 = vpop.f32.mrb[0].mxu0
    %v2180 = vadd.f32 %v2101, %v2179
    %v2181 = vpop.f32.mrb[0].mxu0
    %2182 = vdwg.mxu0
    %vm2183 = vcmask 130048
    %v2184 = vsel %vm2183, %v2174, -inf
    %2185 = vmax.xlane.f32.xlu0 %v2184
    %v2186 = vpop.xlane.xlu0 %2185
    %v2187 = vsel %vm2183, %v2180, -inf
    %2188 = vmax.xlane.f32.xlu0 %v2187
    %v2189 = vpop.xlane.xlu0 %2188
    %v2190 = vsub.f32 %v2174, %v2186
    %v2191 = vsub.f32 %v2180, %v2189
    %v2192 = vmul.f32 %v2190, 1.442695
    %v2193 = vpow.pop %v2192
    %v2194 = vmul.f32 %v2191, 1.442695
    %v2195 = vpow.pop %v2194
    %v2196 = vsel %vm2183, %v2193, 0.0
    %2197 = vadd.xlane.f32.xlu0 %v2196
    %v2198 = vpop.xlane.xlu0 %2197
    %v2199 = vsel %vm2183, %v2195, 0.0
    %2200 = vadd.xlane.f32.xlu0 %v2199
    %v2201 = vpop.xlane.xlu0 %2200
    %v2202 = vrcp.pop %v2198
    %v2203 = vmul.f32 %v2193, %v2202
    %v2204 = vrcp.pop %v2201
    %v2205 = vmul.f32 %v2195, %v2204
    %v2207 = vsel %vm2183, %v2203, 0
    %v2210 = vsel %vm2183, %v2205, 0
    %2212 = vmatprep.subr.mxu0 0.0
    %v2213 = vand.u32 %v1653, 4294901760
    %2214 = vmatpush1.msra.mxu0 %v2213
    %2215 = vmatprep.subr.mxu0 0.0
    %v2216 = vand.u32 %v1659, 4294901760
    %2217 = vmatpush1.msra.mxu0 %v2216
    %2218 = vmatprep.subr.mxu0 0.0
    %2219 = vmatpush1.msra.mxu0 0.0
    %2220 = vmatprep.subr.mxu0 0.0
    %2221 = vmatpush1.msra.mxu0 0.0
    %2222 = vmatprep.subr.mxu0 0.0
    %2223 = vmatpush1.msra.mxu0 0.0
    %2224 = vmatprep.subr.mxu0 0.0
    %2225 = vmatpush1.msra.mxu0 0.0
    %2226 = vmatprep.subr.mxu0 0.0
    %2227 = vmatpush1.msra.mxu0 0.0
    %2228 = vmatprep.subr.mxu0 0.0
    %2229 = vmatpush1.msra.mxu0 0.0
    %2230 = vmatprep.subr.mxu0 0.0
    %2231 = vmatpush1.msra.mxu0 0.0
    %2232 = vmatprep.subr.mxu0 0.0
    %2233 = vmatpush1.msra.mxu0 0.0
    %2234 = vmatprep.subr.mxu0 0.0
    %2235 = vmatpush1.msra.mxu0 0.0
    %2236 = vmatprep.subr.mxu0 0.0
    %2237 = vmatpush1.msra.mxu0 0.0
    %2238 = vmatprep.subr.mxu0 0.0
    %2239 = vmatpush1.msra.mxu0 0.0
    %2240 = vmatprep.subr.mxu0 0.0
    %2241 = vmatpush1.msra.mxu0 0.0
    %2242 = vmatprep.subr.mxu0 0.0
    %2243 = vmatpush1.msra.mxu0 0.0
    %2244 = vmatprep.subr.mxu0 0.0
    %2245 = vmatpush1.msra.mxu0 0.0
    %2246 = vmatprep.subr.mxu0 0.0
    %2247 = vmatpush1.msra.mxu0 0.0
    %2248 = vmatprep.subr.mxu0 0.0
    %2249 = vmatpush1.msra.mxu0 0.0
    %2250 = vmatprep.subr.mxu0 0.0
    %2251 = vmatpush1.msra.mxu0 0.0
    %2252 = vmatprep.subr.mxu0 0.0
    %2253 = vmatpush1.msra.mxu0 0.0
    %2254 = vmatprep.subr.mxu0 0.0
    %2255 = vmatpush1.msra.mxu0 0.0
    %2256 = vmatprep.subr.mxu0 0.0
    %2257 = vmatpush1.msra.mxu0 0.0
    %2258 = vmatprep.subr.mxu0 0.0
    %2259 = vmatpush1.msra.mxu0 0.0
    %2260 = vmatprep.subr.mxu0 0.0
    %2261 = vmatpush1.msra.mxu0 0.0
    %2262 = vmatprep.subr.mxu0 0.0
    %2263 = vmatpush1.msra.mxu0 0.0
    %2264 = vmatprep.subr.mxu0 0.0
    %2265 = vmatpush1.msra.mxu0 0.0
    %2266 = vmatprep.subr.mxu0 0.0
    %2267 = vmatpush1.msra.mxu0 0.0
    %2268 = vmatprep.subr.mxu0 0.0
    %2269 = vmatpush1.msra.mxu0 0.0
    %2270 = vmatprep.subr.mxu0 0.0
    %2271 = vmatpush1.msra.mxu0 0.0
    %2272 = vmatprep.subr.mxu0 0.0
    %2273 = vmatpush1.msra.mxu0 0.0
    %2274 = vmatprep.subr.mxu0 0.0
    %2275 = vmatpush1.msra.mxu0 0.0
    %2276 = vmatprep.subr.mxu0 0.0
    %2277 = vmatpush1.msra.mxu0 0.0
    %2278 = vmatprep.mubr.f32.mxu0 0.0
    %v2279 = vand.u32 %v2207, 4294901760
    %v2280 = vsub.f32 %v2207, %v2279
    %v2281 = vand.u32 %v2280, 4294901760
    %v2282 = vsub.f32 %v2280, %v2281
    %v2283 = vand.u32 %v2282, 4294901760
    %2284 = vmatmul.mubr.f32.gmra.mrb[0].mxu0 %v2283
    %v2285 = vpop.f32.mrb[0].mxu0
    %v2286 = vadd.f32 0.0, %v2285
    %v2287 = vpop.f32.mrb[0].mxu0
    %2288 = vmatprep.mubr.f32.mxu0 0.0
    %v2289 = vand.u32 %v2210, 4294901760
    %v2290 = vsub.f32 %v2210, %v2289
    %v2291 = vand.u32 %v2290, 4294901760
    %v2292 = vsub.f32 %v2290, %v2291
    %v2293 = vand.u32 %v2292, 4294901760
    %2294 = vmatmul.mubr.f32.gmra.mrb[0].mxu0 %v2293
    %v2295 = vpop.f32.mrb[0].mxu0
    %v2296 = vadd.f32 0.0, %v2295
    %v2297 = vpop.f32.mrb[0].mxu0
    %2298 = vdwg.mxu0
    %2299 = vmatprep.subr.mxu0 0.0
    %v2300 = vand.u32 %v1653, 4294901760
    %v2301 = vsub.f32 %v1653, %v2300
    %v2302 = vand.u32 %v2301, 4294901760
    %v2303 = vsub.f32 %v2301, %v2302
    %v2304 = vand.u32 %v2303, 4294901760
    %2305 = vmatpush1.msra.mxu0 %v2304
    %2306 = vmatprep.subr.mxu0 0.0
    %v2307 = vand.u32 %v1659, 4294901760
    %v2308 = vsub.f32 %v1659, %v2307
    %v2309 = vand.u32 %v2308, 4294901760
    %v2310 = vsub.f32 %v2308, %v2309
    %v2311 = vand.u32 %v2310, 4294901760
    %2312 = vmatpush1.msra.mxu0 %v2311
    %2313 = vmatprep.subr.mxu0 0.0
    %2314 = vmatpush1.msra.mxu0 0.0
    %2315 = vmatprep.subr.mxu0 0.0
    %2316 = vmatpush1.msra.mxu0 0.0
    %2317 = vmatprep.subr.mxu0 0.0
    %2318 = vmatpush1.msra.mxu0 0.0
    %2319 = vmatprep.subr.mxu0 0.0
    %2320 = vmatpush1.msra.mxu0 0.0
    %2321 = vmatprep.subr.mxu0 0.0
    %2322 = vmatpush1.msra.mxu0 0.0
    %2323 = vmatprep.subr.mxu0 0.0
    %2324 = vmatpush1.msra.mxu0 0.0
    %2325 = vmatprep.subr.mxu0 0.0
    %2326 = vmatpush1.msra.mxu0 0.0
    %2327 = vmatprep.subr.mxu0 0.0
    %2328 = vmatpush1.msra.mxu0 0.0
    %2329 = vmatprep.subr.mxu0 0.0
    %2330 = vmatpush1.msra.mxu0 0.0
    %2331 = vmatprep.subr.mxu0 0.0
    %2332 = vmatpush1.msra.mxu0 0.0
    %2333 = vmatprep.subr.mxu0 0.0
    %2334 = vmatpush1.msra.mxu0 0.0
    %2335 = vmatprep.subr.mxu0 0.0
    %2336 = vmatpush1.msra.mxu0 0.0
    %2337 = vmatprep.subr.mxu0 0.0
    %2338 = vmatpush1.msra.mxu0 0.0
    %2339 = vmatprep.subr.mxu0 0.0
    %2340 = vmatpush1.msra.mxu0 0.0
    %2341 = vmatprep.subr.mxu0 0.0
    %2342 = vmatpush1.msra.mxu0 0.0
    %2343 = vmatprep.subr.mxu0 0.0
    %2344 = vmatpush1.msra.mxu0 0.0
    %2345 = vmatprep.subr.mxu0 0.0
    %2346 = vmatpush1.msra.mxu0 0.0
    %2347 = vmatprep.subr.mxu0 0.0
    %2348 = vmatpush1.msra.mxu0 0.0
    %2349 = vmatprep.subr.mxu0 0.0
    %2350 = vmatpush1.msra.mxu0 0.0
    %2351 = vmatprep.subr.mxu0 0.0
    %2352 = vmatpush1.msra.mxu0 0.0
    %2353 = vmatprep.subr.mxu0 0.0
    %2354 = vmatpush1.msra.mxu0 0.0
    %2355 = vmatprep.subr.mxu0 0.0
    %2356 = vmatpush1.msra.mxu0 0.0
    %2357 = vmatprep.subr.mxu0 0.0
    %2358 = vmatpush1.msra.mxu0 0.0
    %2359 = vmatprep.subr.mxu0 0.0
    %2360 = vmatpush1.msra.mxu0 0.0
    %2361 = vmatprep.subr.mxu0 0.0
    %2362 = vmatpush1.msra.mxu0 0.0
    %2363 = vmatprep.subr.mxu0 0.0
    %2364 = vmatpush1.msra.mxu0 0.0
    %2365 = vmatprep.subr.mxu0 0.0
    %2366 = vmatpush1.msra.mxu0 0.0
    %2367 = vmatprep.subr.mxu0 0.0
    %2368 = vmatpush1.msra.mxu0 0.0
    %2369 = vmatprep.subr.mxu0 0.0
    %2370 = vmatpush1.msra.mxu0 0.0
    %2371 = vmatprep.subr.mxu0 0.0
    %2372 = vmatpush1.msra.mxu0 0.0
    %2373 = vmatprep.mubr.f32.mxu0 0.0
    %v2374 = vand.u32 %v2207, 4294901760
    %2375 = vmatmul.mubr.f32.gmra.mrb[0].mxu0 %v2374
    %v2376 = vpop.f32.mrb[0].mxu0
    %v2377 = vadd.f32 %v2286, %v2376
    %v2378 = vpop.f32.mrb[0].mxu0
    %2379 = vmatprep.mubr.f32.mxu0 0.0
    %v2380 = vand.u32 %v2210, 4294901760
    %2381 = vmatmul.mubr.f32.gmra.mrb[0].mxu0 %v2380
    %v2382 = vpop.f32.mrb[0].mxu0
    %v2383 = vadd.f32 %v2296, %v2382
    %v2384 = vpop.f32.mrb[0].mxu0
    %2385 = vdwg.mxu0
    %2386 = vmatprep.subr.mxu0 0.0
    %v2387 = vand.u32 %v1653, 4294901760
    %v2388 = vsub.f32 %v1653, %v2387
    %2389 = vmatpush1.msra.mxu0 %v2388
    %2390 = vmatprep.subr.mxu0 0.0
    %v2391 = vand.u32 %v1659, 4294901760
    %v2392 = vsub.f32 %v1659, %v2391
    %2393 = vmatpush1.msra.mxu0 %v2392
    %2394 = vmatprep.subr.mxu0 0.0
    %2395 = vmatpush1.msra.mxu0 0.0
    %2396 = vmatprep.subr.mxu0 0.0
    %2397 = vmatpush1.msra.mxu0 0.0
    %2398 = vmatprep.subr.mxu0 0.0
    %2399 = vmatpush1.msra.mxu0 0.0
    %2400 = vmatprep.subr.mxu0 0.0
    %2401 = vmatpush1.msra.mxu0 0.0
    %2402 = vmatprep.subr.mxu0 0.0
    %2403 = vmatpush1.msra.mxu0 0.0
    %2404 = vmatprep.subr.mxu0 0.0
    %2405 = vmatpush1.msra.mxu0 0.0
    %2406 = vmatprep.subr.mxu0 0.0
    %2407 = vmatpush1.msra.mxu0 0.0
    %2408 = vmatprep.subr.mxu0 0.0
    %2409 = vmatpush1.msra.mxu0 0.0
    %2410 = vmatprep.subr.mxu0 0.0
    %2411 = vmatpush1.msra.mxu0 0.0
    %2412 = vmatprep.subr.mxu0 0.0
    %2413 = vmatpush1.msra.mxu0 0.0
    %2414 = vmatprep.subr.mxu0 0.0
    %2415 = vmatpush1.msra.mxu0 0.0
    %2416 = vmatprep.subr.mxu0 0.0
    %2417 = vmatpush1.msra.mxu0 0.0
    %2418 = vmatprep.subr.mxu0 0.0
    %2419 = vmatpush1.msra.mxu0 0.0
    %2420 = vmatprep.subr.mxu0 0.0
    %2421 = vmatpush1.msra.mxu0 0.0
    %2422 = vmatprep.subr.mxu0 0.0
    %2423 = vmatpush1.msra.mxu0 0.0
    %2424 = vmatprep.subr.mxu0 0.0
    %2425 = vmatpush1.msra.mxu0 0.0
    %2426 = vmatprep.subr.mxu0 0.0
    %2427 = vmatpush1.msra.mxu0 0.0
    %2428 = vmatprep.subr.mxu0 0.0
    %2429 = vmatpush1.msra.mxu0 0.0
    %2430 = vmatprep.subr.mxu0 0.0
    %2431 = vmatpush1.msra.mxu0 0.0
    %2432 = vmatprep.subr.mxu0 0.0
    %2433 = vmatpush1.msra.mxu0 0.0
    %2434 = vmatprep.subr.mxu0 0.0
    %2435 = vmatpush1.msra.mxu0 0.0
    %2436 = vmatprep.subr.mxu0 0.0
    %2437 = vmatpush1.msra.mxu0 0.0
    %2438 = vmatprep.subr.mxu0 0.0
    %2439 = vmatpush1.msra.mxu0 0.0
    %2440 = vmatprep.subr.mxu0 0.0
    %2441 = vmatpush1.msra.mxu0 0.0
    %2442 = vmatprep.subr.mxu0 0.0
    %2443 = vmatpush1.msra.mxu0 0.0
    %2444 = vmatprep.subr.mxu0 0.0
    %2445 = vmatpush1.msra.mxu0 0.0
    %2446 = vmatprep.subr.mxu0 0.0
    %2447 = vmatpush1.msra.mxu0 0.0
    %2448 = vmatprep.subr.mxu0 0.0
    %2449 = vmatpush1.msra.mxu0 0.0
    %2450 = vmatprep.subr.mxu0 0.0
    %2451 = vmatpush1.msra.mxu0 0.0
    %2452 = vmatprep.subr.mxu0 0.0
    %2453 = vmatpush1.msra.mxu0 0.0
    %2454 = vmatprep.mubr.f32.mxu0 0.0
    %v2455 = vand.u32 %v2207, 4294901760
    %v2456 = vsub.f32 %v2207, %v2455
    %2457 = vmatmul.mubr.f32.gmra.mrb[0].mxu0 %v2456
    %v2458 = vpop.f32.mrb[0].mxu0
    %v2459 = vadd.f32 %v2377, %v2458
    %v2460 = vpop.f32.mrb[0].mxu0
    %2461 = vmatprep.mubr.f32.mxu0 0.0
    %v2462 = vand.u32 %v2210, 4294901760
    %v2463 = vsub.f32 %v2210, %v2462
    %2464 = vmatmul.mubr.f32.gmra.mrb[0].mxu0 %v2463
    %v2465 = vpop.f32.mrb[0].mxu0
    %v2466 = vadd.f32 %v2383, %v2465
    %v2467 = vpop.f32.mrb[0].mxu0
    %2468 = vdwg.mxu0
    %2469 = vmatprep.subr.mxu0 0.0
    %v2470 = vand.u32 %v1653, 4294901760
    %2471 = vmatpush1.msra.mxu0 %v2470
    %2472 = vmatprep.subr.mxu0 0.0
    %v2473 = vand.u32 %v1659, 4294901760
    %2474 = vmatpush1.msra.mxu0 %v2473
    %2475 = vmatprep.subr.mxu0 0.0
    %2476 = vmatpush1.msra.mxu0 0.0
    %2477 = vmatprep.subr.mxu0 0.0
    %2478 = vmatpush1.msra.mxu0 0.0
    %2479 = vmatprep.subr.mxu0 0.0
    %2480 = vmatpush1.msra.mxu0 0.0
    %2481 = vmatprep.subr.mxu0 0.0
    %2482 = vmatpush1.msra.mxu0 0.0
    %2483 = vmatprep.subr.mxu0 0.0
    %2484 = vmatpush1.msra.mxu0 0.0
    %2485 = vmatprep.subr.mxu0 0.0
    %2486 = vmatpush1.msra.mxu0 0.0
    %2487 = vmatprep.subr.mxu0 0.0
    %2488 = vmatpush1.msra.mxu0 0.0
    %2489 = vmatprep.subr.mxu0 0.0
    %2490 = vmatpush1.msra.mxu0 0.0
    %2491 = vmatprep.subr.mxu0 0.0
    %2492 = vmatpush1.msra.mxu0 0.0
    %2493 = vmatprep.subr.mxu0 0.0
    %2494 = vmatpush1.msra.mxu0 0.0
    %2495 = vmatprep.subr.mxu0 0.0
    %2496 = vmatpush1.msra.mxu0 0.0
    %2497 = vmatprep.subr.mxu0 0.0
    %2498 = vmatpush1.msra.mxu0 0.0
    %2499 = vmatprep.subr.mxu0 0.0
    %2500 = vmatpush1.msra.mxu0 0.0
    %2501 = vmatprep.subr.mxu0 0.0
    %2502 = vmatpush1.msra.mxu0 0.0
    %2503 = vmatprep.subr.mxu0 0.0
    %2504 = vmatpush1.msra.mxu0 0.0
    %2505 = vmatprep.subr.mxu0 0.0
    %2506 = vmatpush1.msra.mxu0 0.0
    %2507 = vmatprep.subr.mxu0 0.0
    %2508 = vmatpush1.msra.mxu0 0.0
    %2509 = vmatprep.subr.mxu0 0.0
    %2510 = vmatpush1.msra.mxu0 0.0
    %2511 = vmatprep.subr.mxu0 0.0
    %2512 = vmatpush1.msra.mxu0 0.0
    %2513 = vmatprep.subr.mxu0 0.0
    %2514 = vmatpush1.msra.mxu0 0.0
    %2515 = vmatprep.subr.mxu0 0.0
    %2516 = vmatpush1.msra.mxu0 0.0
    %2517 = vmatprep.subr.mxu0 0.0
    %2518 = vmatpush1.msra.mxu0 0.0
    %2519 = vmatprep.subr.mxu0 0.0
    %2520 = vmatpush1.msra.mxu0 0.0
    %2521 = vmatprep.subr.mxu0 0.0
    %2522 = vmatpush1.msra.mxu0 0.0
    %2523 = vmatprep.subr.mxu0 0.0
    %2524 = vmatpush1.msra.mxu0 0.0
    %2525 = vmatprep.subr.mxu0 0.0
    %2526 = vmatpush1.msra.mxu0 0.0
    %2527 = vmatprep.subr.mxu0 0.0
    %2528 = vmatpush1.msra.mxu0 0.0
    %2529 = vmatprep.subr.mxu0 0.0
    %2530 = vmatpush1.msra.mxu0 0.0
    %2531 = vmatprep.subr.mxu0 0.0
    %2532 = vmatpush1.msra.mxu0 0.0
    %2533 = vmatprep.subr.mxu0 0.0
    %2534 = vmatpush1.msra.mxu0 0.0
    %2535 = vmatprep.mubr.f32.mxu0 0.0
    %v2536 = vand.u32 %v2207, 4294901760
    %v2537 = vsub.f32 %v2207, %v2536
    %v2538 = vand.u32 %v2537, 4294901760
    %2539 = vmatmul.mubr.f32.gmra.mrb[0].mxu0 %v2538
    %v2540 = vpop.f32.mrb[0].mxu0
    %v2541 = vadd.f32 %v2459, %v2540
    %v2542 = vpop.f32.mrb[0].mxu0
    %2543 = vmatprep.mubr.f32.mxu0 0.0
    %v2544 = vand.u32 %v2210, 4294901760
    %v2545 = vsub.f32 %v2210, %v2544
    %v2546 = vand.u32 %v2545, 4294901760
    %2547 = vmatmul.mubr.f32.gmra.mrb[0].mxu0 %v2546
    %v2548 = vpop.f32.mrb[0].mxu0
    %v2549 = vadd.f32 %v2466, %v2548
    %v2550 = vpop.f32.mrb[0].mxu0
    %2551 = vdwg.mxu0
    %2552 = vmatprep.subr.mxu0 0.0
    %v2553 = vand.u32 %v1653, 4294901760
    %v2554 = vsub.f32 %v1653, %v2553
    %v2555 = vand.u32 %v2554, 4294901760
    %2556 = vmatpush1.msra.mxu0 %v2555
    %2557 = vmatprep.subr.mxu0 0.0
    %v2558 = vand.u32 %v1659, 4294901760
    %v2559 = vsub.f32 %v1659, %v2558
    %v2560 = vand.u32 %v2559, 4294901760
    %2561 = vmatpush1.msra.mxu0 %v2560
    %2562 = vmatprep.subr.mxu0 0.0
    %2563 = vmatpush1.msra.mxu0 0.0
    %2564 = vmatprep.subr.mxu0 0.0
    %2565 = vmatpush1.msra.mxu0 0.0
    %2566 = vmatprep.subr.mxu0 0.0
    %2567 = vmatpush1.msra.mxu0 0.0
    %2568 = vmatprep.subr.mxu0 0.0
    %2569 = vmatpush1.msra.mxu0 0.0
    %2570 = vmatprep.subr.mxu0 0.0
    %2571 = vmatpush1.msra.mxu0 0.0
    %2572 = vmatprep.subr.mxu0 0.0
    %2573 = vmatpush1.msra.mxu0 0.0
    %2574 = vmatprep.subr.mxu0 0.0
    %2575 = vmatpush1.msra.mxu0 0.0
    %2576 = vmatprep.subr.mxu0 0.0
    %2577 = vmatpush1.msra.mxu0 0.0
    %2578 = vmatprep.subr.mxu0 0.0
    %2579 = vmatpush1.msra.mxu0 0.0
    %2580 = vmatprep.subr.mxu0 0.0
    %2581 = vmatpush1.msra.mxu0 0.0
    %2582 = vmatprep.subr.mxu0 0.0
    %2583 = vmatpush1.msra.mxu0 0.0
    %2584 = vmatprep.subr.mxu0 0.0
    %2585 = vmatpush1.msra.mxu0 0.0
    %2586 = vmatprep.subr.mxu0 0.0
    %2587 = vmatpush1.msra.mxu0 0.0
    %2588 = vmatprep.subr.mxu0 0.0
    %2589 = vmatpush1.msra.mxu0 0.0
    %2590 = vmatprep.subr.mxu0 0.0
    %2591 = vmatpush1.msra.mxu0 0.0
    %2592 = vmatprep.subr.mxu0 0.0
    %2593 = vmatpush1.msra.mxu0 0.0
    %2594 = vmatprep.subr.mxu0 0.0
    %2595 = vmatpush1.msra.mxu0 0.0
    %2596 = vmatprep.subr.mxu0 0.0
    %2597 = vmatpush1.msra.mxu0 0.0
    %2598 = vmatprep.subr.mxu0 0.0
    %2599 = vmatpush1.msra.mxu0 0.0
    %2600 = vmatprep.subr.mxu0 0.0
    %2601 = vmatpush1.msra.mxu0 0.0
    %2602 = vmatprep.subr.mxu0 0.0
    %2603 = vmatpush1.msra.mxu0 0.0
    %2604 = vmatprep.subr.mxu0 0.0
    %2605 = vmatpush1.msra.mxu0 0.0
    %2606 = vmatprep.subr.mxu0 0.0
    %2607 = vmatpush1.msra.mxu0 0.0
    %2608 = vmatprep.subr.mxu0 0.0
    %2609 = vmatpush1.msra.mxu0 0.0
    %2610 = vmatprep.subr.mxu0 0.0
    %2611 = vmatpush1.msra.mxu0 0.0
    %2612 = vmatprep.subr.mxu0 0.0
    %2613 = vmatpush1.msra.mxu0 0.0
    %2614 = vmatprep.subr.mxu0 0.0
    %2615 = vmatpush1.msra.mxu0 0.0
    %2616 = vmatprep.subr.mxu0 0.0
    %2617 = vmatpush1.msra.mxu0 0.0
    %2618 = vmatprep.subr.mxu0 0.0
    %2619 = vmatpush1.msra.mxu0 0.0
    %2620 = vmatprep.subr.mxu0 0.0
    %2621 = vmatpush1.msra.mxu0 0.0
    %2622 = vmatprep.mubr.f32.mxu0 0.0
    %v2623 = vand.u32 %v2207, 4294901760
    %2624 = vmatmul.mubr.f32.gmra.mrb[0].mxu0 %v2623
    %v2625 = vpop.f32.mrb[0].mxu0
    %v2626 = vadd.f32 %v2541, %v2625
    %v2627 = vpop.f32.mrb[0].mxu0
    %2628 = vmatprep.mubr.f32.mxu0 0.0
    %v2629 = vand.u32 %v2210, 4294901760
    %2630 = vmatmul.mubr.f32.gmra.mrb[0].mxu0 %v2629
    %v2631 = vpop.f32.mrb[0].mxu0
    %v2632 = vadd.f32 %v2549, %v2631
    %v2633 = vpop.f32.mrb[0].mxu0
    %2634 = vdwg.mxu0
    %2635 = vmatprep.subr.mxu0 0.0
    %v2636 = vand.u32 %v1653, 4294901760
    %2637 = vmatpush1.msra.mxu0 %v2636
    %2638 = vmatprep.subr.mxu0 0.0
    %v2639 = vand.u32 %v1659, 4294901760
    %2640 = vmatpush1.msra.mxu0 %v2639
    %2641 = vmatprep.subr.mxu0 0.0
    %2642 = vmatpush1.msra.mxu0 0.0
    %2643 = vmatprep.subr.mxu0 0.0
    %2644 = vmatpush1.msra.mxu0 0.0
    %2645 = vmatprep.subr.mxu0 0.0
    %2646 = vmatpush1.msra.mxu0 0.0
    %2647 = vmatprep.subr.mxu0 0.0
    %2648 = vmatpush1.msra.mxu0 0.0
    %2649 = vmatprep.subr.mxu0 0.0
    %2650 = vmatpush1.msra.mxu0 0.0
    %2651 = vmatprep.subr.mxu0 0.0
    %2652 = vmatpush1.msra.mxu0 0.0
    %2653 = vmatprep.subr.mxu0 0.0
    %2654 = vmatpush1.msra.mxu0 0.0
    %2655 = vmatprep.subr.mxu0 0.0
    %2656 = vmatpush1.msra.mxu0 0.0
    %2657 = vmatprep.subr.mxu0 0.0
    %2658 = vmatpush1.msra.mxu0 0.0
    %2659 = vmatprep.subr.mxu0 0.0
    %2660 = vmatpush1.msra.mxu0 0.0
    %2661 = vmatprep.subr.mxu0 0.0
    %2662 = vmatpush1.msra.mxu0 0.0
    %2663 = vmatprep.subr.mxu0 0.0
    %2664 = vmatpush1.msra.mxu0 0.0
    %2665 = vmatprep.subr.mxu0 0.0
    %2666 = vmatpush1.msra.mxu0 0.0
    %2667 = vmatprep.subr.mxu0 0.0
    %2668 = vmatpush1.msra.mxu0 0.0
    %2669 = vmatprep.subr.mxu0 0.0
    %2670 = vmatpush1.msra.mxu0 0.0
    %2671 = vmatprep.subr.mxu0 0.0
    %2672 = vmatpush1.msra.mxu0 0.0
    %2673 = vmatprep.subr.mxu0 0.0
    %2674 = vmatpush1.msra.mxu0 0.0
    %2675 = vmatprep.subr.mxu0 0.0
    %2676 = vmatpush1.msra.mxu0 0.0
    %2677 = vmatprep.subr.mxu0 0.0
    %2678 = vmatpush1.msra.mxu0 0.0
    %2679 = vmatprep.subr.mxu0 0.0
    %2680 = vmatpush1.msra.mxu0 0.0
    %2681 = vmatprep.subr.mxu0 0.0
    %2682 = vmatpush1.msra.mxu0 0.0
    %2683 = vmatprep.subr.mxu0 0.0
    %2684 = vmatpush1.msra.mxu0 0.0
    %2685 = vmatprep.subr.mxu0 0.0
    %2686 = vmatpush1.msra.mxu0 0.0
    %2687 = vmatprep.subr.mxu0 0.0
    %2688 = vmatpush1.msra.mxu0 0.0
    %2689 = vmatprep.subr.mxu0 0.0
    %2690 = vmatpush1.msra.mxu0 0.0
    %2691 = vmatprep.subr.mxu0 0.0
    %2692 = vmatpush1.msra.mxu0 0.0
    %2693 = vmatprep.subr.mxu0 0.0
    %2694 = vmatpush1.msra.mxu0 0.0
    %2695 = vmatprep.subr.mxu0 0.0
    %2696 = vmatpush1.msra.mxu0 0.0
    %2697 = vmatprep.subr.mxu0 0.0
    %2698 = vmatpush1.msra.mxu0 0.0
    %2699 = vmatprep.subr.mxu0 0.0
    %2700 = vmatpush1.msra.mxu0 0.0
    %2701 = vmatprep.mubr.f32.mxu0 0.0
    %v2702 = vand.u32 %v2207, 4294901760
    %2703 = vmatmul.mubr.f32.gmra.mrb[0].mxu0 %v2702
    %v2704 = vpop.f32.mrb[0].mxu0
    %v2705 = vadd.f32 %v2626, %v2704
    %v2706 = vpop.f32.mrb[0].mxu0
    %2707 = vmatprep.mubr.f32.mxu0 0.0
    %v2708 = vand.u32 %v2210, 4294901760
    %2709 = vmatmul.mubr.f32.gmra.mrb[0].mxu0 %v2708
    %v2710 = vpop.f32.mrb[0].mxu0
    %v2711 = vadd.f32 %v2632, %v2710
    %v2712 = vpop.f32.mrb[0].mxu0
    %2713 = vdwg.mxu0
    %2714 = vrot.lane.b32.xlu0 %v575, 120
    %v2715 = vpop.permute.xlu0 %2714
    %2716 = vrot.lane.b32.xlu0 %v581, 120
    %v2717 = vpop.permute.xlu0 %2716
    %v2718 = vsel %vm1668, %v2715, 0
    %v2720 = vsel %vm1668, %v2717, 0
    %2722 = vmatprep.subr.mxu0 0.0
    %v2723 = vand.u32 %v1676, 4294901760
    %2724 = vmatpush1.xpose.msra.mxu0 %v2723
    %2725 = vmatprep.subr.mxu0 0.0
    %v2726 = vand.u32 %v1679, 4294901760
    %2727 = vmatpush1.xpose.msra.mxu0 %v2726
    %2728 = vmatprep.subr.mxu0 0.0
    %2729 = vmatpush1.xpose.msra.mxu0 0.0
    %2730 = vmatprep.subr.mxu0 0.0
    %2731 = vmatpush1.xpose.msra.mxu0 0.0
    %2732 = vmatprep.subr.mxu0 0.0
    %2733 = vmatpush1.xpose.msra.mxu0 0.0
    %2734 = vmatprep.subr.mxu0 0.0
    %2735 = vmatpush1.xpose.msra.mxu0 0.0
    %2736 = vmatprep.subr.mxu0 0.0
    %2737 = vmatpush1.xpose.msra.mxu0 0.0
    %2738 = vmatprep.subr.mxu0 0.0
    %2739 = vmatpush1.xpose.msra.mxu0 0.0
    %2740 = vmatprep.subr.mxu0 0.0
    %2741 = vmatpush1.xpose.msra.mxu0 0.0
    %2742 = vmatprep.subr.mxu0 0.0
    %2743 = vmatpush1.xpose.msra.mxu0 0.0
    %2744 = vmatprep.subr.mxu0 0.0
    %2745 = vmatpush1.xpose.msra.mxu0 0.0
    %2746 = vmatprep.subr.mxu0 0.0
    %2747 = vmatpush1.xpose.msra.mxu0 0.0
    %2748 = vmatprep.subr.mxu0 0.0
    %2749 = vmatpush1.xpose.msra.mxu0 0.0
    %2750 = vmatprep.subr.mxu0 0.0
    %2751 = vmatpush1.xpose.msra.mxu0 0.0
    %2752 = vmatprep.subr.mxu0 0.0
    %2753 = vmatpush1.xpose.msra.mxu0 0.0
    %2754 = vmatprep.subr.mxu0 0.0
    %2755 = vmatpush1.xpose.msra.mxu0 0.0
    %2756 = vmatprep.subr.mxu0 0.0
    %2757 = vmatpush1.xpose.msra.mxu0 0.0
    %2758 = vmatprep.subr.mxu0 0.0
    %2759 = vmatpush1.xpose.msra.mxu0 0.0
    %2760 = vmatprep.subr.mxu0 0.0
    %2761 = vmatpush1.xpose.msra.mxu0 0.0
    %2762 = vmatprep.subr.mxu0 0.0
    %2763 = vmatpush1.xpose.msra.mxu0 0.0
    %2764 = vmatprep.subr.mxu0 0.0
    %2765 = vmatpush1.xpose.msra.mxu0 0.0
    %2766 = vmatprep.subr.mxu0 0.0
    %2767 = vmatpush1.xpose.msra.mxu0 0.0
    %2768 = vmatprep.subr.mxu0 0.0
    %2769 = vmatpush1.xpose.msra.mxu0 0.0
    %2770 = vmatprep.subr.mxu0 0.0
    %2771 = vmatpush1.xpose.msra.mxu0 0.0
    %2772 = vmatprep.subr.mxu0 0.0
    %2773 = vmatpush1.xpose.msra.mxu0 0.0
    %2774 = vmatprep.subr.mxu0 0.0
    %2775 = vmatpush1.xpose.msra.mxu0 0.0
    %2776 = vmatprep.subr.mxu0 0.0
    %2777 = vmatpush1.xpose.msra.mxu0 0.0
    %2778 = vmatprep.subr.mxu0 0.0
    %2779 = vmatpush1.xpose.msra.mxu0 0.0
    %2780 = vmatprep.subr.mxu0 0.0
    %2781 = vmatpush1.xpose.msra.mxu0 0.0
    %2782 = vmatprep.subr.mxu0 0.0
    %2783 = vmatpush1.xpose.msra.mxu0 0.0
    %2784 = vmatprep.subr.mxu0 0.0
    %2785 = vmatpush1.xpose.msra.mxu0 0.0
    %2786 = vmatprep.subr.mxu0 0.0
    %2787 = vmatpush1.xpose.msra.mxu0 0.0
    %2788 = vmatprep.mubr.f32.mxu0 0.0
    %v2789 = vand.u32 %v2718, 4294901760
    %v2790 = vsub.f32 %v2718, %v2789
    %v2791 = vand.u32 %v2790, 4294901760
    %v2792 = vsub.f32 %v2790, %v2791
    %v2793 = vand.u32 %v2792, 4294901760
    %2794 = vmatmul.mubr.f32.gmra.mrb[0].mxu0 %v2793
    %v2795 = vpop.f32.mrb[0].mxu0
    %v2796 = vadd.f32 %v1662, %v2795
    %v2797 = vpop.f32.mrb[0].mxu0
    %2798 = vmatprep.mubr.f32.mxu0 0.0
    %v2799 = vand.u32 %v2720, 4294901760
    %v2800 = vsub.f32 %v2720, %v2799
    %v2801 = vand.u32 %v2800, 4294901760
    %v2802 = vsub.f32 %v2800, %v2801
    %v2803 = vand.u32 %v2802, 4294901760
    %2804 = vmatmul.mubr.f32.gmra.mrb[0].mxu0 %v2803
    %v2805 = vpop.f32.mrb[0].mxu0
    %v2806 = vadd.f32 %v1663, %v2805
    %v2807 = vpop.f32.mrb[0].mxu0
    %2808 = vdwg.mxu0
    %2809 = vmatprep.subr.mxu0 0.0
    %v2810 = vand.u32 %v1676, 4294901760
    %v2811 = vsub.f32 %v1676, %v2810
    %v2812 = vand.u32 %v2811, 4294901760
    %v2813 = vsub.f32 %v2811, %v2812
    %v2814 = vand.u32 %v2813, 4294901760
    %2815 = vmatpush1.xpose.msra.mxu0 %v2814
    %2816 = vmatprep.subr.mxu0 0.0
    %v2817 = vand.u32 %v1679, 4294901760
    %v2818 = vsub.f32 %v1679, %v2817
    %v2819 = vand.u32 %v2818, 4294901760
    %v2820 = vsub.f32 %v2818, %v2819
    %v2821 = vand.u32 %v2820, 4294901760
    %2822 = vmatpush1.xpose.msra.mxu0 %v2821
    %2823 = vmatprep.subr.mxu0 0.0
    %2824 = vmatpush1.xpose.msra.mxu0 0.0
    %2825 = vmatprep.subr.mxu0 0.0
    %2826 = vmatpush1.xpose.msra.mxu0 0.0
    %2827 = vmatprep.subr.mxu0 0.0
    %2828 = vmatpush1.xpose.msra.mxu0 0.0
    %2829 = vmatprep.subr.mxu0 0.0
    %2830 = vmatpush1.xpose.msra.mxu0 0.0
    %2831 = vmatprep.subr.mxu0 0.0
    %2832 = vmatpush1.xpose.msra.mxu0 0.0
    %2833 = vmatprep.subr.mxu0 0.0
    %2834 = vmatpush1.xpose.msra.mxu0 0.0
    %2835 = vmatprep.subr.mxu0 0.0
    %2836 = vmatpush1.xpose.msra.mxu0 0.0
    %2837 = vmatprep.subr.mxu0 0.0
    %2838 = vmatpush1.xpose.msra.mxu0 0.0
    %2839 = vmatprep.subr.mxu0 0.0
    %2840 = vmatpush1.xpose.msra.mxu0 0.0
    %2841 = vmatprep.subr.mxu0 0.0
    %2842 = vmatpush1.xpose.msra.mxu0 0.0
    %2843 = vmatprep.subr.mxu0 0.0
    %2844 = vmatpush1.xpose.msra.mxu0 0.0
    %2845 = vmatprep.subr.mxu0 0.0
    %2846 = vmatpush1.xpose.msra.mxu0 0.0
    %2847 = vmatprep.subr.mxu0 0.0
    %2848 = vmatpush1.xpose.msra.mxu0 0.0
    %2849 = vmatprep.subr.mxu0 0.0
    %2850 = vmatpush1.xpose.msra.mxu0 0.0
    %2851 = vmatprep.subr.mxu0 0.0
    %2852 = vmatpush1.xpose.msra.mxu0 0.0
    %2853 = vmatprep.subr.mxu0 0.0
    %2854 = vmatpush1.xpose.msra.mxu0 0.0
    %2855 = vmatprep.subr.mxu0 0.0
    %2856 = vmatpush1.xpose.msra.mxu0 0.0
    %2857 = vmatprep.subr.mxu0 0.0
    %2858 = vmatpush1.xpose.msra.mxu0 0.0
    %2859 = vmatprep.subr.mxu0 0.0
    %2860 = vmatpush1.xpose.msra.mxu0 0.0
    %2861 = vmatprep.subr.mxu0 0.0
    %2862 = vmatpush1.xpose.msra.mxu0 0.0
    %2863 = vmatprep.subr.mxu0 0.0
    %2864 = vmatpush1.xpose.msra.mxu0 0.0
    %2865 = vmatprep.subr.mxu0 0.0
    %2866 = vmatpush1.xpose.msra.mxu0 0.0
    %2867 = vmatprep.subr.mxu0 0.0
    %2868 = vmatpush1.xpose.msra.mxu0 0.0
    %2869 = vmatprep.subr.mxu0 0.0
    %2870 = vmatpush1.xpose.msra.mxu0 0.0
    %2871 = vmatprep.subr.mxu0 0.0
    %2872 = vmatpush1.xpose.msra.mxu0 0.0
    %2873 = vmatprep.subr.mxu0 0.0
    %2874 = vmatpush1.xpose.msra.mxu0 0.0
    %2875 = vmatprep.subr.mxu0 0.0
    %2876 = vmatpush1.xpose.msra.mxu0 0.0
    %2877 = vmatprep.subr.mxu0 0.0
    %2878 = vmatpush1.xpose.msra.mxu0 0.0
    %2879 = vmatprep.subr.mxu0 0.0
    %2880 = vmatpush1.xpose.msra.mxu0 0.0
    %2881 = vmatprep.subr.mxu0 0.0
    %2882 = vmatpush1.xpose.msra.mxu0 0.0
    %2883 = vmatprep.mubr.f32.mxu0 0.0
    %v2884 = vand.u32 %v2718, 4294901760
    %2885 = vmatmul.mubr.f32.gmra.mrb[0].mxu0 %v2884
    %v2886 = vpop.f32.mrb[0].mxu0
    %v2887 = vadd.f32 %v2796, %v2886
    %v2888 = vpop.f32.mrb[0].mxu0
    %2889 = vmatprep.mubr.f32.mxu0 0.0
    %v2890 = vand.u32 %v2720, 4294901760
    %2891 = vmatmul.mubr.f32.gmra.mrb[0].mxu0 %v2890
    %v2892 = vpop.f32.mrb[0].mxu0
    %v2893 = vadd.f32 %v2806, %v2892
    %v2894 = vpop.f32.mrb[0].mxu0
    %2895 = vdwg.mxu0
    %2896 = vmatprep.subr.mxu0 0.0
    %v2897 = vand.u32 %v1676, 4294901760
    %v2898 = vsub.f32 %v1676, %v2897
    %2899 = vmatpush1.xpose.msra.mxu0 %v2898
    %2900 = vmatprep.subr.mxu0 0.0
    %v2901 = vand.u32 %v1679, 4294901760
    %v2902 = vsub.f32 %v1679, %v2901
    %2903 = vmatpush1.xpose.msra.mxu0 %v2902
    %2904 = vmatprep.subr.mxu0 0.0
    %2905 = vmatpush1.xpose.msra.mxu0 0.0
    %2906 = vmatprep.subr.mxu0 0.0
    %2907 = vmatpush1.xpose.msra.mxu0 0.0
    %2908 = vmatprep.subr.mxu0 0.0
    %2909 = vmatpush1.xpose.msra.mxu0 0.0
    %2910 = vmatprep.subr.mxu0 0.0
    %2911 = vmatpush1.xpose.msra.mxu0 0.0
    %2912 = vmatprep.subr.mxu0 0.0
    %2913 = vmatpush1.xpose.msra.mxu0 0.0
    %2914 = vmatprep.subr.mxu0 0.0
    %2915 = vmatpush1.xpose.msra.mxu0 0.0
    %2916 = vmatprep.subr.mxu0 0.0
    %2917 = vmatpush1.xpose.msra.mxu0 0.0
    %2918 = vmatprep.subr.mxu0 0.0
    %2919 = vmatpush1.xpose.msra.mxu0 0.0
    %2920 = vmatprep.subr.mxu0 0.0
    %2921 = vmatpush1.xpose.msra.mxu0 0.0
    %2922 = vmatprep.subr.mxu0 0.0
    %2923 = vmatpush1.xpose.msra.mxu0 0.0
    %2924 = vmatprep.subr.mxu0 0.0
    %2925 = vmatpush1.xpose.msra.mxu0 0.0
    %2926 = vmatprep.subr.mxu0 0.0
    %2927 = vmatpush1.xpose.msra.mxu0 0.0
    %2928 = vmatprep.subr.mxu0 0.0
    %2929 = vmatpush1.xpose.msra.mxu0 0.0
    %2930 = vmatprep.subr.mxu0 0.0
    %2931 = vmatpush1.xpose.msra.mxu0 0.0
    %2932 = vmatprep.subr.mxu0 0.0
    %2933 = vmatpush1.xpose.msra.mxu0 0.0
    %2934 = vmatprep.subr.mxu0 0.0
    %2935 = vmatpush1.xpose.msra.mxu0 0.0
    %2936 = vmatprep.subr.mxu0 0.0
    %2937 = vmatpush1.xpose.msra.mxu0 0.0
    %2938 = vmatprep.subr.mxu0 0.0
    %2939 = vmatpush1.xpose.msra.mxu0 0.0
    %2940 = vmatprep.subr.mxu0 0.0
    %2941 = vmatpush1.xpose.msra.mxu0 0.0
    %2942 = vmatprep.subr.mxu0 0.0
    %2943 = vmatpush1.xpose.msra.mxu0 0.0
    %2944 = vmatprep.subr.mxu0 0.0
    %2945 = vmatpush1.xpose.msra.mxu0 0.0
    %2946 = vmatprep.subr.mxu0 0.0
    %2947 = vmatpush1.xpose.msra.mxu0 0.0
    %2948 = vmatprep.subr.mxu0 0.0
    %2949 = vmatpush1.xpose.msra.mxu0 0.0
    %2950 = vmatprep.subr.mxu0 0.0
    %2951 = vmatpush1.xpose.msra.mxu0 0.0
    %2952 = vmatprep.subr.mxu0 0.0
    %2953 = vmatpush1.xpose.msra.mxu0 0.0
    %2954 = vmatprep.subr.mxu0 0.0
    %2955 = vmatpush1.xpose.msra.mxu0 0.0
    %2956 = vmatprep.subr.mxu0 0.0
    %2957 = vmatpush1.xpose.msra.mxu0 0.0
    %2958 = vmatprep.subr.mxu0 0.0
    %2959 = vmatpush1.xpose.msra.mxu0 0.0
    %2960 = vmatprep.subr.mxu0 0.0
    %2961 = vmatpush1.xpose.msra.mxu0 0.0
    %2962 = vmatprep.subr.mxu0 0.0
    %2963 = vmatpush1.xpose.msra.mxu0 0.0
    %2964 = vmatprep.mubr.f32.mxu0 0.0
    %v2965 = vand.u32 %v2718, 4294901760
    %v2966 = vsub.f32 %v2718, %v2965
    %2967 = vmatmul.mubr.f32.gmra.mrb[0].mxu0 %v2966
    %v2968 = vpop.f32.mrb[0].mxu0
    %v2969 = vadd.f32 %v2887, %v2968
    %v2970 = vpop.f32.mrb[0].mxu0
    %2971 = vmatprep.mubr.f32.mxu0 0.0
    %v2972 = vand.u32 %v2720, 4294901760
    %v2973 = vsub.f32 %v2720, %v2972
    %2974 = vmatmul.mubr.f32.gmra.mrb[0].mxu0 %v2973
    %v2975 = vpop.f32.mrb[0].mxu0
    %v2976 = vadd.f32 %v2893, %v2975
    %v2977 = vpop.f32.mrb[0].mxu0
    %2978 = vdwg.mxu0
    %2979 = vmatprep.subr.mxu0 0.0
    %v2980 = vand.u32 %v1676, 4294901760
    %2981 = vmatpush1.xpose.msra.mxu0 %v2980
    %2982 = vmatprep.subr.mxu0 0.0
    %v2983 = vand.u32 %v1679, 4294901760
    %2984 = vmatpush1.xpose.msra.mxu0 %v2983
    %2985 = vmatprep.subr.mxu0 0.0
    %2986 = vmatpush1.xpose.msra.mxu0 0.0
    %2987 = vmatprep.subr.mxu0 0.0
    %2988 = vmatpush1.xpose.msra.mxu0 0.0
    %2989 = vmatprep.subr.mxu0 0.0
    %2990 = vmatpush1.xpose.msra.mxu0 0.0
    %2991 = vmatprep.subr.mxu0 0.0
    %2992 = vmatpush1.xpose.msra.mxu0 0.0
    %2993 = vmatprep.subr.mxu0 0.0
    %2994 = vmatpush1.xpose.msra.mxu0 0.0
    %2995 = vmatprep.subr.mxu0 0.0
    %2996 = vmatpush1.xpose.msra.mxu0 0.0
    %2997 = vmatprep.subr.mxu0 0.0
    %2998 = vmatpush1.xpose.msra.mxu0 0.0
    %2999 = vmatprep.subr.mxu0 0.0
    %3000 = vmatpush1.xpose.msra.mxu0 0.0
    %3001 = vmatprep.subr.mxu0 0.0
    %3002 = vmatpush1.xpose.msra.mxu0 0.0
    %3003 = vmatprep.subr.mxu0 0.0
    %3004 = vmatpush1.xpose.msra.mxu0 0.0
    %3005 = vmatprep.subr.mxu0 0.0
    %3006 = vmatpush1.xpose.msra.mxu0 0.0
    %3007 = vmatprep.subr.mxu0 0.0
    %3008 = vmatpush1.xpose.msra.mxu0 0.0
    %3009 = vmatprep.subr.mxu0 0.0
    %3010 = vmatpush1.xpose.msra.mxu0 0.0
    %3011 = vmatprep.subr.mxu0 0.0
    %3012 = vmatpush1.xpose.msra.mxu0 0.0
    %3013 = vmatprep.subr.mxu0 0.0
    %3014 = vmatpush1.xpose.msra.mxu0 0.0
    %3015 = vmatprep.subr.mxu0 0.0
    %3016 = vmatpush1.xpose.msra.mxu0 0.0
    %3017 = vmatprep.subr.mxu0 0.0
    %3018 = vmatpush1.xpose.msra.mxu0 0.0
    %3019 = vmatprep.subr.mxu0 0.0
    %3020 = vmatpush1.xpose.msra.mxu0 0.0
    %3021 = vmatprep.subr.mxu0 0.0
    %3022 = vmatpush1.xpose.msra.mxu0 0.0
    %3023 = vmatprep.subr.mxu0 0.0
    %3024 = vmatpush1.xpose.msra.mxu0 0.0
    %3025 = vmatprep.subr.mxu0 0.0
    %3026 = vmatpush1.xpose.msra.mxu0 0.0
    %3027 = vmatprep.subr.mxu0 0.0
    %3028 = vmatpush1.xpose.msra.mxu0 0.0
    %3029 = vmatprep.subr.mxu0 0.0
    %3030 = vmatpush1.xpose.msra.mxu0 0.0
    %3031 = vmatprep.subr.mxu0 0.0
    %3032 = vmatpush1.xpose.msra.mxu0 0.0
    %3033 = vmatprep.subr.mxu0 0.0
    %3034 = vmatpush1.xpose.msra.mxu0 0.0
    %3035 = vmatprep.subr.mxu0 0.0
    %3036 = vmatpush1.xpose.msra.mxu0 0.0
    %3037 = vmatprep.subr.mxu0 0.0
    %3038 = vmatpush1.xpose.msra.mxu0 0.0
    %3039 = vmatprep.subr.mxu0 0.0
    %3040 = vmatpush1.xpose.msra.mxu0 0.0
    %3041 = vmatprep.subr.mxu0 0.0
    %3042 = vmatpush1.xpose.msra.mxu0 0.0
    %3043 = vmatprep.subr.mxu0 0.0
    %3044 = vmatpush1.xpose.msra.mxu0 0.0
    %3045 = vmatprep.mubr.f32.mxu0 0.0
    %v3046 = vand.u32 %v2718, 4294901760
    %v3047 = vsub.f32 %v2718, %v3046
    %v3048 = vand.u32 %v3047, 4294901760
    %3049 = vmatmul.mubr.f32.gmra.mrb[0].mxu0 %v3048
    %v3050 = vpop.f32.mrb[0].mxu0
    %v3051 = vadd.f32 %v2969, %v3050
    %v3052 = vpop.f32.mrb[0].mxu0
    %3053 = vmatprep.mubr.f32.mxu0 0.0
    %v3054 = vand.u32 %v2720, 4294901760
    %v3055 = vsub.f32 %v2720, %v3054
    %v3056 = vand.u32 %v3055, 4294901760
    %3057 = vmatmul.mubr.f32.gmra.mrb[0].mxu0 %v3056
    %v3058 = vpop.f32.mrb[0].mxu0
    %v3059 = vadd.f32 %v2976, %v3058
    %v3060 = vpop.f32.mrb[0].mxu0
    %3061 = vdwg.mxu0
    %3062 = vmatprep.subr.mxu0 0.0
    %v3063 = vand.u32 %v1676, 4294901760
    %v3064 = vsub.f32 %v1676, %v3063
    %v3065 = vand.u32 %v3064, 4294901760
    %3066 = vmatpush1.xpose.msra.mxu0 %v3065
    %3067 = vmatprep.subr.mxu0 0.0
    %v3068 = vand.u32 %v1679, 4294901760
    %v3069 = vsub.f32 %v1679, %v3068
    %v3070 = vand.u32 %v3069, 4294901760
    %3071 = vmatpush1.xpose.msra.mxu0 %v3070
    %3072 = vmatprep.subr.mxu0 0.0
    %3073 = vmatpush1.xpose.msra.mxu0 0.0
    %3074 = vmatprep.subr.mxu0 0.0
    %3075 = vmatpush1.xpose.msra.mxu0 0.0
    %3076 = vmatprep.subr.mxu0 0.0
    %3077 = vmatpush1.xpose.msra.mxu0 0.0
    %3078 = vmatprep.subr.mxu0 0.0
    %3079 = vmatpush1.xpose.msra.mxu0 0.0
    %3080 = vmatprep.subr.mxu0 0.0
    %3081 = vmatpush1.xpose.msra.mxu0 0.0
    %3082 = vmatprep.subr.mxu0 0.0
    %3083 = vmatpush1.xpose.msra.mxu0 0.0
    %3084 = vmatprep.subr.mxu0 0.0
    %3085 = vmatpush1.xpose.msra.mxu0 0.0
    %3086 = vmatprep.subr.mxu0 0.0
    %3087 = vmatpush1.xpose.msra.mxu0 0.0
    %3088 = vmatprep.subr.mxu0 0.0
    %3089 = vmatpush1.xpose.msra.mxu0 0.0
    %3090 = vmatprep.subr.mxu0 0.0
    %3091 = vmatpush1.xpose.msra.mxu0 0.0
    %3092 = vmatprep.subr.mxu0 0.0
    %3093 = vmatpush1.xpose.msra.mxu0 0.0
    %3094 = vmatprep.subr.mxu0 0.0
    %3095 = vmatpush1.xpose.msra.mxu0 0.0
    %3096 = vmatprep.subr.mxu0 0.0
    %3097 = vmatpush1.xpose.msra.mxu0 0.0
    %3098 = vmatprep.subr.mxu0 0.0
    %3099 = vmatpush1.xpose.msra.mxu0 0.0
    %3100 = vmatprep.subr.mxu0 0.0
    %3101 = vmatpush1.xpose.msra.mxu0 0.0
    %3102 = vmatprep.subr.mxu0 0.0
    %3103 = vmatpush1.xpose.msra.mxu0 0.0
    %3104 = vmatprep.subr.mxu0 0.0
    %3105 = vmatpush1.xpose.msra.mxu0 0.0
    %3106 = vmatprep.subr.mxu0 0.0
    %3107 = vmatpush1.xpose.msra.mxu0 0.0
    %3108 = vmatprep.subr.mxu0 0.0
    %3109 = vmatpush1.xpose.msra.mxu0 0.0
    %3110 = vmatprep.subr.mxu0 0.0
    %3111 = vmatpush1.xpose.msra.mxu0 0.0
    %3112 = vmatprep.subr.mxu0 0.0
    %3113 = vmatpush1.xpose.msra.mxu0 0.0
    %3114 = vmatprep.subr.mxu0 0.0
    %3115 = vmatpush1.xpose.msra.mxu0 0.0
    %3116 = vmatprep.subr.mxu0 0.0
    %3117 = vmatpush1.xpose.msra.mxu0 0.0
    %3118 = vmatprep.subr.mxu0 0.0
    %3119 = vmatpush1.xpose.msra.mxu0 0.0
    %3120 = vmatprep.subr.mxu0 0.0
    %3121 = vmatpush1.xpose.msra.mxu0 0.0
    %3122 = vmatprep.subr.mxu0 0.0
    %3123 = vmatpush1.xpose.msra.mxu0 0.0
    %3124 = vmatprep.subr.mxu0 0.0
    %3125 = vmatpush1.xpose.msra.mxu0 0.0
    %3126 = vmatprep.subr.mxu0 0.0
    %3127 = vmatpush1.xpose.msra.mxu0 0.0
    %3128 = vmatprep.subr.mxu0 0.0
    %3129 = vmatpush1.xpose.msra.mxu0 0.0
    %3130 = vmatprep.subr.mxu0 0.0
    %3131 = vmatpush1.xpose.msra.mxu0 0.0
    %3132 = vmatprep.mubr.f32.mxu0 0.0
    %v3133 = vand.u32 %v2718, 4294901760
    %3134 = vmatmul.mubr.f32.gmra.mrb[0].mxu0 %v3133
    %v3135 = vpop.f32.mrb[0].mxu0
    %v3136 = vadd.f32 %v3051, %v3135
    %v3137 = vpop.f32.mrb[0].mxu0
    %3138 = vmatprep.mubr.f32.mxu0 0.0
    %v3139 = vand.u32 %v2720, 4294901760
    %3140 = vmatmul.mubr.f32.gmra.mrb[0].mxu0 %v3139
    %v3141 = vpop.f32.mrb[0].mxu0
    %v3142 = vadd.f32 %v3059, %v3141
    %v3143 = vpop.f32.mrb[0].mxu0
    %3144 = vdwg.mxu0
    %3145 = vmatprep.subr.mxu0 0.0
    %v3146 = vand.u32 %v1676, 4294901760
    %3147 = vmatpush1.xpose.msra.mxu0 %v3146
    %3148 = vmatprep.subr.mxu0 0.0
    %v3149 = vand.u32 %v1679, 4294901760
    %3150 = vmatpush1.xpose.msra.mxu0 %v3149
    %3151 = vmatprep.subr.mxu0 0.0
    %3152 = vmatpush1.xpose.msra.mxu0 0.0
    %3153 = vmatprep.subr.mxu0 0.0
    %3154 = vmatpush1.xpose.msra.mxu0 0.0
    %3155 = vmatprep.subr.mxu0 0.0
    %3156 = vmatpush1.xpose.msra.mxu0 0.0
    %3157 = vmatprep.subr.mxu0 0.0
    %3158 = vmatpush1.xpose.msra.mxu0 0.0
    %3159 = vmatprep.subr.mxu0 0.0
    %3160 = vmatpush1.xpose.msra.mxu0 0.0
    %3161 = vmatprep.subr.mxu0 0.0
    %3162 = vmatpush1.xpose.msra.mxu0 0.0
    %3163 = vmatprep.subr.mxu0 0.0
    %3164 = vmatpush1.xpose.msra.mxu0 0.0
    %3165 = vmatprep.subr.mxu0 0.0
    %3166 = vmatpush1.xpose.msra.mxu0 0.0
    %3167 = vmatprep.subr.mxu0 0.0
    %3168 = vmatpush1.xpose.msra.mxu0 0.0
    %3169 = vmatprep.subr.mxu0 0.0
    %3170 = vmatpush1.xpose.msra.mxu0 0.0
    %3171 = vmatprep.subr.mxu0 0.0
    %3172 = vmatpush1.xpose.msra.mxu0 0.0
    %3173 = vmatprep.subr.mxu0 0.0
    %3174 = vmatpush1.xpose.msra.mxu0 0.0
    %3175 = vmatprep.subr.mxu0 0.0
    %3176 = vmatpush1.xpose.msra.mxu0 0.0
    %3177 = vmatprep.subr.mxu0 0.0
    %3178 = vmatpush1.xpose.msra.mxu0 0.0
    %3179 = vmatprep.subr.mxu0 0.0
    %3180 = vmatpush1.xpose.msra.mxu0 0.0
    %3181 = vmatprep.subr.mxu0 0.0
    %3182 = vmatpush1.xpose.msra.mxu0 0.0
    %3183 = vmatprep.subr.mxu0 0.0
    %3184 = vmatpush1.xpose.msra.mxu0 0.0
    %3185 = vmatprep.subr.mxu0 0.0
    %3186 = vmatpush1.xpose.msra.mxu0 0.0
    %3187 = vmatprep.subr.mxu0 0.0
    %3188 = vmatpush1.xpose.msra.mxu0 0.0
    %3189 = vmatprep.subr.mxu0 0.0
    %3190 = vmatpush1.xpose.msra.mxu0 0.0
    %3191 = vmatprep.subr.mxu0 0.0
    %3192 = vmatpush1.xpose.msra.mxu0 0.0
    %3193 = vmatprep.subr.mxu0 0.0
    %3194 = vmatpush1.xpose.msra.mxu0 0.0
    %3195 = vmatprep.subr.mxu0 0.0
    %3196 = vmatpush1.xpose.msra.mxu0 0.0
    %3197 = vmatprep.subr.mxu0 0.0
    %3198 = vmatpush1.xpose.msra.mxu0 0.0
    %3199 = vmatprep.subr.mxu0 0.0
    %3200 = vmatpush1.xpose.msra.mxu0 0.0
    %3201 = vmatprep.subr.mxu0 0.0
    %3202 = vmatpush1.xpose.msra.mxu0 0.0
    %3203 = vmatprep.subr.mxu0 0.0
    %3204 = vmatpush1.xpose.msra.mxu0 0.0
    %3205 = vmatprep.subr.mxu0 0.0
    %3206 = vmatpush1.xpose.msra.mxu0 0.0
    %3207 = vmatprep.subr.mxu0 0.0
    %3208 = vmatpush1.xpose.msra.mxu0 0.0
    %3209 = vmatprep.subr.mxu0 0.0
    %3210 = vmatpush1.xpose.msra.mxu0 0.0
    %3211 = vmatprep.mubr.f32.mxu0 0.0
    %v3212 = vand.u32 %v2718, 4294901760
    %3213 = vmatmul.mubr.f32.gmra.mrb[0].mxu0 %v3212
    %v3214 = vpop.f32.mrb[0].mxu0
    %v3215 = vadd.f32 %v3136, %v3214
    %v3216 = vpop.f32.mrb[0].mxu0
    %3217 = vmatprep.mubr.f32.mxu0 0.0
    %v3218 = vand.u32 %v2720, 4294901760
    %3219 = vmatmul.mubr.f32.gmra.mrb[0].mxu0 %v3218
    %v3220 = vpop.f32.mrb[0].mxu0
    %v3221 = vadd.f32 %v3142, %v3220
    %v3222 = vpop.f32.mrb[0].mxu0
    %3223 = vdwg.mxu0
    %v3224 = vsel %vm2183, %v3215, -inf
    %3225 = vmax.xlane.f32.xlu0 %v3224
    %v3226 = vpop.xlane.xlu0 %3225
    %v3227 = vsel %vm2183, %v3221, -inf
    %3228 = vmax.xlane.f32.xlu0 %v3227
    %v3229 = vpop.xlane.xlu0 %3228
    %v3230 = vsub.f32 %v3215, %v3226
    %v3231 = vsub.f32 %v3221, %v3229
    %v3232 = vmul.f32 %v3230, 1.442695
    %v3233 = vpow.pop %v3232
    %v3234 = vmul.f32 %v3231, 1.442695
    %v3235 = vpow.pop %v3234
    %v3236 = vsel %vm2183, %v3233, 0.0
    %3237 = vadd.xlane.f32.xlu0 %v3236
    %v3238 = vpop.xlane.xlu0 %3237
    %v3239 = vsel %vm2183, %v3235, 0.0
    %3240 = vadd.xlane.f32.xlu0 %v3239
    %v3241 = vpop.xlane.xlu0 %3240
    %v3242 = vrcp.pop %v3238
    %v3243 = vmul.f32 %v3233, %v3242
    %v3244 = vrcp.pop %v3241
    %v3245 = vmul.f32 %v3235, %v3244
    %v3247 = vsel %vm2183, %v3243, 0
    %v3250 = vsel %vm2183, %v3245, 0
    %3252 = vmatprep.subr.mxu0 0.0
    %v3253 = vand.u32 %v1653, 4294901760
    %3254 = vmatpush1.msra.mxu0 %v3253
    %3255 = vmatprep.subr.mxu0 0.0
    %v3256 = vand.u32 %v1659, 4294901760
    %3257 = vmatpush1.msra.mxu0 %v3256
    %3258 = vmatprep.subr.mxu0 0.0
    %3259 = vmatpush1.msra.mxu0 0.0
    %3260 = vmatprep.subr.mxu0 0.0
    %3261 = vmatpush1.msra.mxu0 0.0
    %3262 = vmatprep.subr.mxu0 0.0
    %3263 = vmatpush1.msra.mxu0 0.0
    %3264 = vmatprep.subr.mxu0 0.0
    %3265 = vmatpush1.msra.mxu0 0.0
    %3266 = vmatprep.subr.mxu0 0.0
    %3267 = vmatpush1.msra.mxu0 0.0
    %3268 = vmatprep.subr.mxu0 0.0
    %3269 = vmatpush1.msra.mxu0 0.0
    %3270 = vmatprep.subr.mxu0 0.0
    %3271 = vmatpush1.msra.mxu0 0.0
    %3272 = vmatprep.subr.mxu0 0.0
    %3273 = vmatpush1.msra.mxu0 0.0
    %3274 = vmatprep.subr.mxu0 0.0
    %3275 = vmatpush1.msra.mxu0 0.0
    %3276 = vmatprep.subr.mxu0 0.0
    %3277 = vmatpush1.msra.mxu0 0.0
    %3278 = vmatprep.subr.mxu0 0.0
    %3279 = vmatpush1.msra.mxu0 0.0
    %3280 = vmatprep.subr.mxu0 0.0
    %3281 = vmatpush1.msra.mxu0 0.0
    %3282 = vmatprep.subr.mxu0 0.0
    %3283 = vmatpush1.msra.mxu0 0.0
    %3284 = vmatprep.subr.mxu0 0.0
    %3285 = vmatpush1.msra.mxu0 0.0
    %3286 = vmatprep.subr.mxu0 0.0
    %3287 = vmatpush1.msra.mxu0 0.0
    %3288 = vmatprep.subr.mxu0 0.0
    %3289 = vmatpush1.msra.mxu0 0.0
    %3290 = vmatprep.subr.mxu0 0.0
    %3291 = vmatpush1.msra.mxu0 0.0
    %3292 = vmatprep.subr.mxu0 0.0
    %3293 = vmatpush1.msra.mxu0 0.0
    %3294 = vmatprep.subr.mxu0 0.0
    %3295 = vmatpush1.msra.mxu0 0.0
    %3296 = vmatprep.subr.mxu0 0.0
    %3297 = vmatpush1.msra.mxu0 0.0
    %3298 = vmatprep.subr.mxu0 0.0
    %3299 = vmatpush1.msra.mxu0 0.0
    %3300 = vmatprep.subr.mxu0 0.0
    %3301 = vmatpush1.msra.mxu0 0.0
    %3302 = vmatprep.subr.mxu0 0.0
    %3303 = vmatpush1.msra.mxu0 0.0
    %3304 = vmatprep.subr.mxu0 0.0
    %3305 = vmatpush1.msra.mxu0 0.0
    %3306 = vmatprep.subr.mxu0 0.0
    %3307 = vmatpush1.msra.mxu0 0.0
    %3308 = vmatprep.subr.mxu0 0.0
    %3309 = vmatpush1.msra.mxu0 0.0
    %3310 = vmatprep.subr.mxu0 0.0
    %3311 = vmatpush1.msra.mxu0 0.0
    %3312 = vmatprep.subr.mxu0 0.0
    %3313 = vmatpush1.msra.mxu0 0.0
    %3314 = vmatprep.subr.mxu0 0.0
    %3315 = vmatpush1.msra.mxu0 0.0
    %3316 = vmatprep.subr.mxu0 0.0
    %3317 = vmatpush1.msra.mxu0 0.0
    %3318 = vmatprep.mubr.f32.mxu0 0.0
    %v3319 = vand.u32 %v3247, 4294901760
    %v3320 = vsub.f32 %v3247, %v3319
    %v3321 = vand.u32 %v3320, 4294901760
    %v3322 = vsub.f32 %v3320, %v3321
    %v3323 = vand.u32 %v3322, 4294901760
    %3324 = vmatmul.mubr.f32.gmra.mrb[0].mxu0 %v3323
    %v3325 = vpop.f32.mrb[0].mxu0
    %v3326 = vadd.f32 0.0, %v3325
    %v3327 = vpop.f32.mrb[0].mxu0
    %3328 = vmatprep.mubr.f32.mxu0 0.0
    %v3329 = vand.u32 %v3250, 4294901760
    %v3330 = vsub.f32 %v3250, %v3329
    %v3331 = vand.u32 %v3330, 4294901760
    %v3332 = vsub.f32 %v3330, %v3331
    %v3333 = vand.u32 %v3332, 4294901760
    %3334 = vmatmul.mubr.f32.gmra.mrb[0].mxu0 %v3333
    %v3335 = vpop.f32.mrb[0].mxu0
    %v3336 = vadd.f32 0.0, %v3335
    %v3337 = vpop.f32.mrb[0].mxu0
    %3338 = vdwg.mxu0
    %3339 = vmatprep.subr.mxu0 0.0
    %v3340 = vand.u32 %v1653, 4294901760
    %v3341 = vsub.f32 %v1653, %v3340
    %v3342 = vand.u32 %v3341, 4294901760
    %v3343 = vsub.f32 %v3341, %v3342
    %v3344 = vand.u32 %v3343, 4294901760
    %3345 = vmatpush1.msra.mxu0 %v3344
    %3346 = vmatprep.subr.mxu0 0.0
    %v3347 = vand.u32 %v1659, 4294901760
    %v3348 = vsub.f32 %v1659, %v3347
    %v3349 = vand.u32 %v3348, 4294901760
    %v3350 = vsub.f32 %v3348, %v3349
    %v3351 = vand.u32 %v3350, 4294901760
    %3352 = vmatpush1.msra.mxu0 %v3351
    %3353 = vmatprep.subr.mxu0 0.0
    %3354 = vmatpush1.msra.mxu0 0.0
    %3355 = vmatprep.subr.mxu0 0.0
    %3356 = vmatpush1.msra.mxu0 0.0
    %3357 = vmatprep.subr.mxu0 0.0
    %3358 = vmatpush1.msra.mxu0 0.0
    %3359 = vmatprep.subr.mxu0 0.0
    %3360 = vmatpush1.msra.mxu0 0.0
    %3361 = vmatprep.subr.mxu0 0.0
    %3362 = vmatpush1.msra.mxu0 0.0
    %3363 = vmatprep.subr.mxu0 0.0
    %3364 = vmatpush1.msra.mxu0 0.0
    %3365 = vmatprep.subr.mxu0 0.0
    %3366 = vmatpush1.msra.mxu0 0.0
    %3367 = vmatprep.subr.mxu0 0.0
    %3368 = vmatpush1.msra.mxu0 0.0
    %3369 = vmatprep.subr.mxu0 0.0
    %3370 = vmatpush1.msra.mxu0 0.0
    %3371 = vmatprep.subr.mxu0 0.0
    %3372 = vmatpush1.msra.mxu0 0.0
    %3373 = vmatprep.subr.mxu0 0.0
    %3374 = vmatpush1.msra.mxu0 0.0
    %3375 = vmatprep.subr.mxu0 0.0
    %3376 = vmatpush1.msra.mxu0 0.0
    %3377 = vmatprep.subr.mxu0 0.0
    %3378 = vmatpush1.msra.mxu0 0.0
    %3379 = vmatprep.subr.mxu0 0.0
    %3380 = vmatpush1.msra.mxu0 0.0
    %3381 = vmatprep.subr.mxu0 0.0
    %3382 = vmatpush1.msra.mxu0 0.0
    %3383 = vmatprep.subr.mxu0 0.0
    %3384 = vmatpush1.msra.mxu0 0.0
    %3385 = vmatprep.subr.mxu0 0.0
    %3386 = vmatpush1.msra.mxu0 0.0
    %3387 = vmatprep.subr.mxu0 0.0
    %3388 = vmatpush1.msra.mxu0 0.0
    %3389 = vmatprep.subr.mxu0 0.0
    %3390 = vmatpush1.msra.mxu0 0.0
    %3391 = vmatprep.subr.mxu0 0.0
    %3392 = vmatpush1.msra.mxu0 0.0
    %3393 = vmatprep.subr.mxu0 0.0
    %3394 = vmatpush1.msra.mxu0 0.0
    %3395 = vmatprep.subr.mxu0 0.0
    %3396 = vmatpush1.msra.mxu0 0.0
    %3397 = vmatprep.subr.mxu0 0.0
    %3398 = vmatpush1.msra.mxu0 0.0
    %3399 = vmatprep.subr.mxu0 0.0
    %3400 = vmatpush1.msra.mxu0 0.0
    %3401 = vmatprep.subr.mxu0 0.0
    %3402 = vmatpush1.msra.mxu0 0.0
    %3403 = vmatprep.subr.mxu0 0.0
    %3404 = vmatpush1.msra.mxu0 0.0
    %3405 = vmatprep.subr.mxu0 0.0
    %3406 = vmatpush1.msra.mxu0 0.0
    %3407 = vmatprep.subr.mxu0 0.0
    %3408 = vmatpush1.msra.mxu0 0.0
    %3409 = vmatprep.subr.mxu0 0.0
    %3410 = vmatpush1.msra.mxu0 0.0
    %3411 = vmatprep.subr.mxu0 0.0
    %3412 = vmatpush1.msra.mxu0 0.0
    %3413 = vmatprep.mubr.f32.mxu0 0.0
    %v3414 = vand.u32 %v3247, 4294901760
    %3415 = vmatmul.mubr.f32.gmra.mrb[0].mxu0 %v3414
    %v3416 = vpop.f32.mrb[0].mxu0
    %v3417 = vadd.f32 %v3326, %v3416
    %v3418 = vpop.f32.mrb[0].mxu0
    %3419 = vmatprep.mubr.f32.mxu0 0.0
    %v3420 = vand.u32 %v3250, 4294901760
    %3421 = vmatmul.mubr.f32.gmra.mrb[0].mxu0 %v3420
    %v3422 = vpop.f32.mrb[0].mxu0
    %v3423 = vadd.f32 %v3336, %v3422
    %v3424 = vpop.f32.mrb[0].mxu0
    %3425 = vdwg.mxu0
    %3426 = vmatprep.subr.mxu0 0.0
    %v3427 = vand.u32 %v1653, 4294901760
    %v3428 = vsub.f32 %v1653, %v3427
    %3429 = vmatpush1.msra.mxu0 %v3428
    %3430 = vmatprep.subr.mxu0 0.0
    %v3431 = vand.u32 %v1659, 4294901760
    %v3432 = vsub.f32 %v1659, %v3431
    %3433 = vmatpush1.msra.mxu0 %v3432
    %3434 = vmatprep.subr.mxu0 0.0
    %3435 = vmatpush1.msra.mxu0 0.0
    %3436 = vmatprep.subr.mxu0 0.0
    %3437 = vmatpush1.msra.mxu0 0.0
    %3438 = vmatprep.subr.mxu0 0.0
    %3439 = vmatpush1.msra.mxu0 0.0
    %3440 = vmatprep.subr.mxu0 0.0
    %3441 = vmatpush1.msra.mxu0 0.0
    %3442 = vmatprep.subr.mxu0 0.0
    %3443 = vmatpush1.msra.mxu0 0.0
    %3444 = vmatprep.subr.mxu0 0.0
    %3445 = vmatpush1.msra.mxu0 0.0
    %3446 = vmatprep.subr.mxu0 0.0
    %3447 = vmatpush1.msra.mxu0 0.0
    %3448 = vmatprep.subr.mxu0 0.0
    %3449 = vmatpush1.msra.mxu0 0.0
    %3450 = vmatprep.subr.mxu0 0.0
    %3451 = vmatpush1.msra.mxu0 0.0
    %3452 = vmatprep.subr.mxu0 0.0
    %3453 = vmatpush1.msra.mxu0 0.0
    %3454 = vmatprep.subr.mxu0 0.0
    %3455 = vmatpush1.msra.mxu0 0.0
    %3456 = vmatprep.subr.mxu0 0.0
    %3457 = vmatpush1.msra.mxu0 0.0
    %3458 = vmatprep.subr.mxu0 0.0
    %3459 = vmatpush1.msra.mxu0 0.0
    %3460 = vmatprep.subr.mxu0 0.0
    %3461 = vmatpush1.msra.mxu0 0.0
    %3462 = vmatprep.subr.mxu0 0.0
    %3463 = vmatpush1.msra.mxu0 0.0
    %3464 = vmatprep.subr.mxu0 0.0
    %3465 = vmatpush1.msra.mxu0 0.0
    %3466 = vmatprep.subr.mxu0 0.0
    %3467 = vmatpush1.msra.mxu0 0.0
    %3468 = vmatprep.subr.mxu0 0.0
    %3469 = vmatpush1.msra.mxu0 0.0
    %3470 = vmatprep.subr.mxu0 0.0
    %3471 = vmatpush1.msra.mxu0 0.0
    %3472 = vmatprep.subr.mxu0 0.0
    %3473 = vmatpush1.msra.mxu0 0.0
    %3474 = vmatprep.subr.mxu0 0.0
    %3475 = vmatpush1.msra.mxu0 0.0
    %3476 = vmatprep.subr.mxu0 0.0
    %3477 = vmatpush1.msra.mxu0 0.0
    %3478 = vmatprep.subr.mxu0 0.0
    %3479 = vmatpush1.msra.mxu0 0.0
    %3480 = vmatprep.subr.mxu0 0.0
    %3481 = vmatpush1.msra.mxu0 0.0
    %3482 = vmatprep.subr.mxu0 0.0
    %3483 = vmatpush1.msra.mxu0 0.0
    %3484 = vmatprep.subr.mxu0 0.0
    %3485 = vmatpush1.msra.mxu0 0.0
    %3486 = vmatprep.subr.mxu0 0.0
    %3487 = vmatpush1.msra.mxu0 0.0
    %3488 = vmatprep.subr.mxu0 0.0
    %3489 = vmatpush1.msra.mxu0 0.0
    %3490 = vmatprep.subr.mxu0 0.0
    %3491 = vmatpush1.msra.mxu0 0.0
    %3492 = vmatprep.subr.mxu0 0.0
    %3493 = vmatpush1.msra.mxu0 0.0
    %3494 = vmatprep.mubr.f32.mxu0 0.0
    %v3495 = vand.u32 %v3247, 4294901760
    %v3496 = vsub.f32 %v3247, %v3495
    %3497 = vmatmul.mubr.f32.gmra.mrb[0].mxu0 %v3496
    %v3498 = vpop.f32.mrb[0].mxu0
    %v3499 = vadd.f32 %v3417, %v3498
    %v3500 = vpop.f32.mrb[0].mxu0
    %3501 = vmatprep.mubr.f32.mxu0 0.0
    %v3502 = vand.u32 %v3250, 4294901760
    %v3503 = vsub.f32 %v3250, %v3502
    %3504 = vmatmul.mubr.f32.gmra.mrb[0].mxu0 %v3503
    %v3505 = vpop.f32.mrb[0].mxu0
    %v3506 = vadd.f32 %v3423, %v3505
    %v3507 = vpop.f32.mrb[0].mxu0
    %3508 = vdwg.mxu0
    %3509 = vmatprep.subr.mxu0 0.0
    %v3510 = vand.u32 %v1653, 4294901760
    %3511 = vmatpush1.msra.mxu0 %v3510
    %3512 = vmatprep.subr.mxu0 0.0
    %v3513 = vand.u32 %v1659, 4294901760
    %3514 = vmatpush1.msra.mxu0 %v3513
    %3515 = vmatprep.subr.mxu0 0.0
    %3516 = vmatpush1.msra.mxu0 0.0
    %3517 = vmatprep.subr.mxu0 0.0
    %3518 = vmatpush1.msra.mxu0 0.0
    %3519 = vmatprep.subr.mxu0 0.0
    %3520 = vmatpush1.msra.mxu0 0.0
    %3521 = vmatprep.subr.mxu0 0.0
    %3522 = vmatpush1.msra.mxu0 0.0
    %3523 = vmatprep.subr.mxu0 0.0
    %3524 = vmatpush1.msra.mxu0 0.0
    %3525 = vmatprep.subr.mxu0 0.0
    %3526 = vmatpush1.msra.mxu0 0.0
    %3527 = vmatprep.subr.mxu0 0.0
    %3528 = vmatpush1.msra.mxu0 0.0
    %3529 = vmatprep.subr.mxu0 0.0
    %3530 = vmatpush1.msra.mxu0 0.0
    %3531 = vmatprep.subr.mxu0 0.0
    %3532 = vmatpush1.msra.mxu0 0.0
    %3533 = vmatprep.subr.mxu0 0.0
    %3534 = vmatpush1.msra.mxu0 0.0
    %3535 = vmatprep.subr.mxu0 0.0
    %3536 = vmatpush1.msra.mxu0 0.0
    %3537 = vmatprep.subr.mxu0 0.0
    %3538 = vmatpush1.msra.mxu0 0.0
    %3539 = vmatprep.subr.mxu0 0.0
    %3540 = vmatpush1.msra.mxu0 0.0
    %3541 = vmatprep.subr.mxu0 0.0
    %3542 = vmatpush1.msra.mxu0 0.0
    %3543 = vmatprep.subr.mxu0 0.0
    %3544 = vmatpush1.msra.mxu0 0.0
    %3545 = vmatprep.subr.mxu0 0.0
    %3546 = vmatpush1.msra.mxu0 0.0
    %3547 = vmatprep.subr.mxu0 0.0
    %3548 = vmatpush1.msra.mxu0 0.0
    %3549 = vmatprep.subr.mxu0 0.0
    %3550 = vmatpush1.msra.mxu0 0.0
    %3551 = vmatprep.subr.mxu0 0.0
    %3552 = vmatpush1.msra.mxu0 0.0
    %3553 = vmatprep.subr.mxu0 0.0
    %3554 = vmatpush1.msra.mxu0 0.0
    %3555 = vmatprep.subr.mxu0 0.0
    %3556 = vmatpush1.msra.mxu0 0.0
    %3557 = vmatprep.subr.mxu0 0.0
    %3558 = vmatpush1.msra.mxu0 0.0
    %3559 = vmatprep.subr.mxu0 0.0
    %3560 = vmatpush1.msra.mxu0 0.0
    %3561 = vmatprep.subr.mxu0 0.0
    %3562 = vmatpush1.msra.mxu0 0.0
    %3563 = vmatprep.subr.mxu0 0.0
    %3564 = vmatpush1.msra.mxu0 0.0
    %3565 = vmatprep.subr.mxu0 0.0
    %3566 = vmatpush1.msra.mxu0 0.0
    %3567 = vmatprep.subr.mxu0 0.0
    %3568 = vmatpush1.msra.mxu0 0.0
    %3569 = vmatprep.subr.mxu0 0.0
    %3570 = vmatpush1.msra.mxu0 0.0
    %3571 = vmatprep.subr.mxu0 0.0
    %3572 = vmatpush1.msra.mxu0 0.0
    %3573 = vmatprep.subr.mxu0 0.0
    %3574 = vmatpush1.msra.mxu0 0.0
    %3575 = vmatprep.mubr.f32.mxu0 0.0
    %v3576 = vand.u32 %v3247, 4294901760
    %v3577 = vsub.f32 %v3247, %v3576
    %v3578 = vand.u32 %v3577, 4294901760
    %3579 = vmatmul.mubr.f32.gmra.mrb[0].mxu0 %v3578
    %v3580 = vpop.f32.mrb[0].mxu0
    %v3581 = vadd.f32 %v3499, %v3580
    %v3582 = vpop.f32.mrb[0].mxu0
    %3583 = vmatprep.mubr.f32.mxu0 0.0
    %v3584 = vand.u32 %v3250, 4294901760
    %v3585 = vsub.f32 %v3250, %v3584
    %v3586 = vand.u32 %v3585, 4294901760
    %3587 = vmatmul.mubr.f32.gmra.mrb[0].mxu0 %v3586
    %v3588 = vpop.f32.mrb[0].mxu0
    %v3589 = vadd.f32 %v3506, %v3588
    %v3590 = vpop.f32.mrb[0].mxu0
    %3591 = vdwg.mxu0
    %3592 = vmatprep.subr.mxu0 0.0
    %v3593 = vand.u32 %v1653, 4294901760
    %v3594 = vsub.f32 %v1653, %v3593
    %v3595 = vand.u32 %v3594, 4294901760
    %3596 = vmatpush1.msra.mxu0 %v3595
    %3597 = vmatprep.subr.mxu0 0.0
    %v3598 = vand.u32 %v1659, 4294901760
    %v3599 = vsub.f32 %v1659, %v3598
    %v3600 = vand.u32 %v3599, 4294901760
    %3601 = vmatpush1.msra.mxu0 %v3600
    %3602 = vmatprep.subr.mxu0 0.0
    %3603 = vmatpush1.msra.mxu0 0.0
    %3604 = vmatprep.subr.mxu0 0.0
    %3605 = vmatpush1.msra.mxu0 0.0
    %3606 = vmatprep.subr.mxu0 0.0
    %3607 = vmatpush1.msra.mxu0 0.0
    %3608 = vmatprep.subr.mxu0 0.0
    %3609 = vmatpush1.msra.mxu0 0.0
    %3610 = vmatprep.subr.mxu0 0.0
    %3611 = vmatpush1.msra.mxu0 0.0
    %3612 = vmatprep.subr.mxu0 0.0
    %3613 = vmatpush1.msra.mxu0 0.0
    %3614 = vmatprep.subr.mxu0 0.0
    %3615 = vmatpush1.msra.mxu0 0.0
    %3616 = vmatprep.subr.mxu0 0.0
    %3617 = vmatpush1.msra.mxu0 0.0
    %3618 = vmatprep.subr.mxu0 0.0
    %3619 = vmatpush1.msra.mxu0 0.0
    %3620 = vmatprep.subr.mxu0 0.0
    %3621 = vmatpush1.msra.mxu0 0.0
    %3622 = vmatprep.subr.mxu0 0.0
    %3623 = vmatpush1.msra.mxu0 0.0
    %3624 = vmatprep.subr.mxu0 0.0
    %3625 = vmatpush1.msra.mxu0 0.0
    %3626 = vmatprep.subr.mxu0 0.0
    %3627 = vmatpush1.msra.mxu0 0.0
    %3628 = vmatprep.subr.mxu0 0.0
    %3629 = vmatpush1.msra.mxu0 0.0
    %3630 = vmatprep.subr.mxu0 0.0
    %3631 = vmatpush1.msra.mxu0 0.0
    %3632 = vmatprep.subr.mxu0 0.0
    %3633 = vmatpush1.msra.mxu0 0.0
    %3634 = vmatprep.subr.mxu0 0.0
    %3635 = vmatpush1.msra.mxu0 0.0
    %3636 = vmatprep.subr.mxu0 0.0
    %3637 = vmatpush1.msra.mxu0 0.0
    %3638 = vmatprep.subr.mxu0 0.0
    %3639 = vmatpush1.msra.mxu0 0.0
    %3640 = vmatprep.subr.mxu0 0.0
    %3641 = vmatpush1.msra.mxu0 0.0
    %3642 = vmatprep.subr.mxu0 0.0
    %3643 = vmatpush1.msra.mxu0 0.0
    %3644 = vmatprep.subr.mxu0 0.0
    %3645 = vmatpush1.msra.mxu0 0.0
    %3646 = vmatprep.subr.mxu0 0.0
    %3647 = vmatpush1.msra.mxu0 0.0
    %3648 = vmatprep.subr.mxu0 0.0
    %3649 = vmatpush1.msra.mxu0 0.0
    %3650 = vmatprep.subr.mxu0 0.0
    %3651 = vmatpush1.msra.mxu0 0.0
    %3652 = vmatprep.subr.mxu0 0.0
    %3653 = vmatpush1.msra.mxu0 0.0
    %3654 = vmatprep.subr.mxu0 0.0
    %3655 = vmatpush1.msra.mxu0 0.0
    %3656 = vmatprep.subr.mxu0 0.0
    %3657 = vmatpush1.msra.mxu0 0.0
    %3658 = vmatprep.subr.mxu0 0.0
    %3659 = vmatpush1.msra.mxu0 0.0
    %3660 = vmatprep.subr.mxu0 0.0
    %3661 = vmatpush1.msra.mxu0 0.0
    %3662 = vmatprep.mubr.f32.mxu0 0.0
    %v3663 = vand.u32 %v3247, 4294901760
    %3664 = vmatmul.mubr.f32.gmra.mrb[0].mxu0 %v3663
    %v3665 = vpop.f32.mrb[0].mxu0
    %v3666 = vadd.f32 %v3581, %v3665
    %v3667 = vpop.f32.mrb[0].mxu0
    %3668 = vmatprep.mubr.f32.mxu0 0.0
    %v3669 = vand.u32 %v3250, 4294901760
    %3670 = vmatmul.mubr.f32.gmra.mrb[0].mxu0 %v3669
    %v3671 = vpop.f32.mrb[0].mxu0
    %v3672 = vadd.f32 %v3589, %v3671
    %v3673 = vpop.f32.mrb[0].mxu0
    %3674 = vdwg.mxu0
    %3675 = vmatprep.subr.mxu0 0.0
    %v3676 = vand.u32 %v1653, 4294901760
    %3677 = vmatpush1.msra.mxu0 %v3676
    %3678 = vmatprep.subr.mxu0 0.0
    %v3679 = vand.u32 %v1659, 4294901760
    %3680 = vmatpush1.msra.mxu0 %v3679
    %3681 = vmatprep.subr.mxu0 0.0
    %3682 = vmatpush1.msra.mxu0 0.0
    %3683 = vmatprep.subr.mxu0 0.0
    %3684 = vmatpush1.msra.mxu0 0.0
    %3685 = vmatprep.subr.mxu0 0.0
    %3686 = vmatpush1.msra.mxu0 0.0
    %3687 = vmatprep.subr.mxu0 0.0
    %3688 = vmatpush1.msra.mxu0 0.0
    %3689 = vmatprep.subr.mxu0 0.0
    %3690 = vmatpush1.msra.mxu0 0.0
    %3691 = vmatprep.subr.mxu0 0.0
    %3692 = vmatpush1.msra.mxu0 0.0
    %3693 = vmatprep.subr.mxu0 0.0
    %3694 = vmatpush1.msra.mxu0 0.0
    %3695 = vmatprep.subr.mxu0 0.0
    %3696 = vmatpush1.msra.mxu0 0.0
    %3697 = vmatprep.subr.mxu0 0.0
    %3698 = vmatpush1.msra.mxu0 0.0
    %3699 = vmatprep.subr.mxu0 0.0
    %3700 = vmatpush1.msra.mxu0 0.0
    %3701 = vmatprep.subr.mxu0 0.0
    %3702 = vmatpush1.msra.mxu0 0.0
    %3703 = vmatprep.subr.mxu0 0.0
    %3704 = vmatpush1.msra.mxu0 0.0
    %3705 = vmatprep.subr.mxu0 0.0
    %3706 = vmatpush1.msra.mxu0 0.0
    %3707 = vmatprep.subr.mxu0 0.0
    %3708 = vmatpush1.msra.mxu0 0.0
    %3709 = vmatprep.subr.mxu0 0.0
    %3710 = vmatpush1.msra.mxu0 0.0
    %3711 = vmatprep.subr.mxu0 0.0
    %3712 = vmatpush1.msra.mxu0 0.0
    %3713 = vmatprep.subr.mxu0 0.0
    %3714 = vmatpush1.msra.mxu0 0.0
    %3715 = vmatprep.subr.mxu0 0.0
    %3716 = vmatpush1.msra.mxu0 0.0
    %3717 = vmatprep.subr.mxu0 0.0
    %3718 = vmatpush1.msra.mxu0 0.0
    %3719 = vmatprep.subr.mxu0 0.0
    %3720 = vmatpush1.msra.mxu0 0.0
    %3721 = vmatprep.subr.mxu0 0.0
    %3722 = vmatpush1.msra.mxu0 0.0
    %3723 = vmatprep.subr.mxu0 0.0
    %3724 = vmatpush1.msra.mxu0 0.0
    %3725 = vmatprep.subr.mxu0 0.0
    %3726 = vmatpush1.msra.mxu0 0.0
    %3727 = vmatprep.subr.mxu0 0.0
    %3728 = vmatpush1.msra.mxu0 0.0
    %3729 = vmatprep.subr.mxu0 0.0
    %3730 = vmatpush1.msra.mxu0 0.0
    %3731 = vmatprep.subr.mxu0 0.0
    %3732 = vmatpush1.msra.mxu0 0.0
    %3733 = vmatprep.subr.mxu0 0.0
    %3734 = vmatpush1.msra.mxu0 0.0
    %3735 = vmatprep.subr.mxu0 0.0
    %3736 = vmatpush1.msra.mxu0 0.0
    %3737 = vmatprep.subr.mxu0 0.0
    %3738 = vmatpush1.msra.mxu0 0.0
    %3739 = vmatprep.subr.mxu0 0.0
    %3740 = vmatpush1.msra.mxu0 0.0
    %3741 = vmatprep.mubr.f32.mxu0 0.0
    %v3742 = vand.u32 %v3247, 4294901760
    %3743 = vmatmul.mubr.f32.gmra.mrb[0].mxu0 %v3742
    %v3744 = vpop.f32.mrb[0].mxu0
    %v3745 = vadd.f32 %v3666, %v3744
    %v3746 = vpop.f32.mrb[0].mxu0
    %3747 = vmatprep.mubr.f32.mxu0 0.0
    %v3748 = vand.u32 %v3250, 4294901760
    %3749 = vmatmul.mubr.f32.gmra.mrb[0].mxu0 %v3748
    %v3750 = vpop.f32.mrb[0].mxu0
    %v3751 = vadd.f32 %v3672, %v3750
    %v3752 = vpop.f32.mrb[0].mxu0
    %3753 = vdwg.mxu0
    %v3755 = vsel %vm1668, %v3745, 0
    %v3758 = vsel %vm1668, %v3751, 0
    %3760 = vmatprep.subr.mxu0 0.0
    %v3761 = vand.u32 %v1665, 4294901760
    %3762 = vmatpush1.msra.mxu0 %v3761
    %3763 = vmatprep.subr.mxu0 0.0
    %3764 = vmatpush1.msra.mxu0 0.0
    %3765 = vmatprep.subr.mxu0 0.0
    %3766 = vmatpush1.msra.mxu0 0.0
    %3767 = vmatprep.subr.mxu0 0.0
    %3768 = vmatpush1.msra.mxu0 0.0
    %3769 = vmatprep.subr.mxu0 0.0
    %3770 = vmatpush1.msra.mxu0 0.0
    %3771 = vmatprep.subr.mxu0 0.0
    %3772 = vmatpush1.msra.mxu0 0.0
    %3773 = vmatprep.subr.mxu0 0.0
    %3774 = vmatpush1.msra.mxu0 0.0
    %3775 = vmatprep.subr.mxu0 0.0
    %3776 = vmatpush1.msra.mxu0 0.0
    %3777 = vmatprep.subr.mxu0 0.0
    %3778 = vmatpush1.msra.mxu0 0.0
    %3779 = vmatprep.subr.mxu0 0.0
    %3780 = vmatpush1.msra.mxu0 0.0
    %3781 = vmatprep.subr.mxu0 0.0
    %3782 = vmatpush1.msra.mxu0 0.0
    %3783 = vmatprep.subr.mxu0 0.0
    %3784 = vmatpush1.msra.mxu0 0.0
    %3785 = vmatprep.subr.mxu0 0.0
    %3786 = vmatpush1.msra.mxu0 0.0
    %3787 = vmatprep.subr.mxu0 0.0
    %3788 = vmatpush1.msra.mxu0 0.0
    %3789 = vmatprep.subr.mxu0 0.0
    %3790 = vmatpush1.msra.mxu0 0.0
    %3791 = vmatprep.subr.mxu0 0.0
    %3792 = vmatpush1.msra.mxu0 0.0
    %3793 = vmatprep.subr.mxu0 0.0
    %3794 = vmatpush1.msra.mxu0 0.0
    %3795 = vmatprep.subr.mxu0 0.0
    %3796 = vmatpush1.msra.mxu0 0.0
    %3797 = vmatprep.subr.mxu0 0.0
    %3798 = vmatpush1.msra.mxu0 0.0
    %3799 = vmatprep.subr.mxu0 0.0
    %3800 = vmatpush1.msra.mxu0 0.0
    %3801 = vmatprep.subr.mxu0 0.0
    %3802 = vmatpush1.msra.mxu0 0.0
    %3803 = vmatprep.subr.mxu0 0.0
    %3804 = vmatpush1.msra.mxu0 0.0
    %3805 = vmatprep.subr.mxu0 0.0
    %3806 = vmatpush1.msra.mxu0 0.0
    %3807 = vmatprep.subr.mxu0 0.0
    %3808 = vmatpush1.msra.mxu0 0.0
    %3809 = vmatprep.subr.mxu0 0.0
    %3810 = vmatpush1.msra.mxu0 0.0
    %3811 = vmatprep.subr.mxu0 0.0
    %3812 = vmatpush1.msra.mxu0 0.0
    %3813 = vmatprep.subr.mxu0 0.0
    %3814 = vmatpush1.msra.mxu0 0.0
    %3815 = vmatprep.subr.mxu0 0.0
    %3816 = vmatpush1.msra.mxu0 0.0
    %3817 = vmatprep.subr.mxu0 0.0
    %3818 = vmatpush1.msra.mxu0 0.0
    %3819 = vmatprep.subr.mxu0 0.0
    %3820 = vmatpush1.msra.mxu0 0.0
    %3821 = vmatprep.subr.mxu0 0.0
    %3822 = vmatpush1.msra.mxu0 0.0
    %3823 = vmatprep.subr.mxu0 0.0
    %3824 = vmatpush1.msra.mxu0 0.0
    %3825 = vmatprep.mubr.f32.mxu0 0.0
    %v3826 = vand.u32 %v3755, 4294901760
    %v3827 = vsub.f32 %v3755, %v3826
    %v3828 = vand.u32 %v3827, 4294901760
    %v3829 = vsub.f32 %v3827, %v3828
    %v3830 = vand.u32 %v3829, 4294901760
    %3831 = vmatmul.mubr.f32.gmra.mrb[0].mxu0 %v3830
    %v3832 = vpop.f32.mrb[0].mxu0
    %v3833 = vadd.f32 0.0, %v3832
    %v3834 = vpop.f32.mrb[0].mxu0
    %3835 = vmatprep.mubr.f32.mxu0 0.0
    %v3836 = vand.u32 %v3758, 4294901760
    %v3837 = vsub.f32 %v3758, %v3836
    %v3838 = vand.u32 %v3837, 4294901760
    %v3839 = vsub.f32 %v3837, %v3838
    %v3840 = vand.u32 %v3839, 4294901760
    %3841 = vmatmul.mubr.f32.gmra.mrb[0].mxu0 %v3840
    %v3842 = vpop.f32.mrb[0].mxu0
    %v3843 = vadd.f32 0.0, %v3842
    %v3844 = vpop.f32.mrb[0].mxu0
    %3845 = vdwg.mxu0
    %3846 = vmatprep.subr.mxu0 0.0
    %v3847 = vand.u32 %v1665, 4294901760
    %v3848 = vsub.f32 %v1665, %v3847
    %v3849 = vand.u32 %v3848, 4294901760
    %v3850 = vsub.f32 %v3848, %v3849
    %v3851 = vand.u32 %v3850, 4294901760
    %3852 = vmatpush1.msra.mxu0 %v3851
    %3853 = vmatprep.subr.mxu0 0.0
    %3854 = vmatpush1.msra.mxu0 0.0
    %3855 = vmatprep.subr.mxu0 0.0
    %3856 = vmatpush1.msra.mxu0 0.0
    %3857 = vmatprep.subr.mxu0 0.0
    %3858 = vmatpush1.msra.mxu0 0.0
    %3859 = vmatprep.subr.mxu0 0.0
    %3860 = vmatpush1.msra.mxu0 0.0
    %3861 = vmatprep.subr.mxu0 0.0
    %3862 = vmatpush1.msra.mxu0 0.0
    %3863 = vmatprep.subr.mxu0 0.0
    %3864 = vmatpush1.msra.mxu0 0.0
    %3865 = vmatprep.subr.mxu0 0.0
    %3866 = vmatpush1.msra.mxu0 0.0
    %3867 = vmatprep.subr.mxu0 0.0
    %3868 = vmatpush1.msra.mxu0 0.0
    %3869 = vmatprep.subr.mxu0 0.0
    %3870 = vmatpush1.msra.mxu0 0.0
    %3871 = vmatprep.subr.mxu0 0.0
    %3872 = vmatpush1.msra.mxu0 0.0
    %3873 = vmatprep.subr.mxu0 0.0
    %3874 = vmatpush1.msra.mxu0 0.0
    %3875 = vmatprep.subr.mxu0 0.0
    %3876 = vmatpush1.msra.mxu0 0.0
    %3877 = vmatprep.subr.mxu0 0.0
    %3878 = vmatpush1.msra.mxu0 0.0
    %3879 = vmatprep.subr.mxu0 0.0
    %3880 = vmatpush1.msra.mxu0 0.0
    %3881 = vmatprep.subr.mxu0 0.0
    %3882 = vmatpush1.msra.mxu0 0.0
    %3883 = vmatprep.subr.mxu0 0.0
    %3884 = vmatpush1.msra.mxu0 0.0
    %3885 = vmatprep.subr.mxu0 0.0
    %3886 = vmatpush1.msra.mxu0 0.0
    %3887 = vmatprep.subr.mxu0 0.0
    %3888 = vmatpush1.msra.mxu0 0.0
    %3889 = vmatprep.subr.mxu0 0.0
    %3890 = vmatpush1.msra.mxu0 0.0
    %3891 = vmatprep.subr.mxu0 0.0
    %3892 = vmatpush1.msra.mxu0 0.0
    %3893 = vmatprep.subr.mxu0 0.0
    %3894 = vmatpush1.msra.mxu0 0.0
    %3895 = vmatprep.subr.mxu0 0.0
    %3896 = vmatpush1.msra.mxu0 0.0
    %3897 = vmatprep.subr.mxu0 0.0
    %3898 = vmatpush1.msra.mxu0 0.0
    %3899 = vmatprep.subr.mxu0 0.0
    %3900 = vmatpush1.msra.mxu0 0.0
    %3901 = vmatprep.subr.mxu0 0.0
    %3902 = vmatpush1.msra.mxu0 0.0
    %3903 = vmatprep.subr.mxu0 0.0
    %3904 = vmatpush1.msra.mxu0 0.0
    %3905 = vmatprep.subr.mxu0 0.0
    %3906 = vmatpush1.msra.mxu0 0.0
    %3907 = vmatprep.subr.mxu0 0.0
    %3908 = vmatpush1.msra.mxu0 0.0
    %3909 = vmatprep.subr.mxu0 0.0
    %3910 = vmatpush1.msra.mxu0 0.0
    %3911 = vmatprep.subr.mxu0 0.0
    %3912 = vmatpush1.msra.mxu0 0.0
    %3913 = vmatprep.subr.mxu0 0.0
    %3914 = vmatpush1.msra.mxu0 0.0
    %3915 = vmatprep.mubr.f32.mxu0 0.0
    %v3916 = vand.u32 %v3755, 4294901760
    %3917 = vmatmul.mubr.f32.gmra.mrb[0].mxu0 %v3916
    %v3918 = vpop.f32.mrb[0].mxu0
    %v3919 = vadd.f32 %v3833, %v3918
    %v3920 = vpop.f32.mrb[0].mxu0
    %3921 = vmatprep.mubr.f32.mxu0 0.0
    %v3922 = vand.u32 %v3758, 4294901760
    %3923 = vmatmul.mubr.f32.gmra.mrb[0].mxu0 %v3922
    %v3924 = vpop.f32.mrb[0].mxu0
    %v3925 = vadd.f32 %v3843, %v3924
    %v3926 = vpop.f32.mrb[0].mxu0
    %3927 = vdwg.mxu0
    %3928 = vmatprep.subr.mxu0 0.0
    %v3929 = vand.u32 %v1665, 4294901760
    %v3930 = vsub.f32 %v1665, %v3929
    %3931 = vmatpush1.msra.mxu0 %v3930
    %3932 = vmatprep.subr.mxu0 0.0
    %3933 = vmatpush1.msra.mxu0 0.0
    %3934 = vmatprep.subr.mxu0 0.0
    %3935 = vmatpush1.msra.mxu0 0.0
    %3936 = vmatprep.subr.mxu0 0.0
    %3937 = vmatpush1.msra.mxu0 0.0
    %3938 = vmatprep.subr.mxu0 0.0
    %3939 = vmatpush1.msra.mxu0 0.0
    %3940 = vmatprep.subr.mxu0 0.0
    %3941 = vmatpush1.msra.mxu0 0.0
    %3942 = vmatprep.subr.mxu0 0.0
    %3943 = vmatpush1.msra.mxu0 0.0
    %3944 = vmatprep.subr.mxu0 0.0
    %3945 = vmatpush1.msra.mxu0 0.0
    %3946 = vmatprep.subr.mxu0 0.0
    %3947 = vmatpush1.msra.mxu0 0.0
    %3948 = vmatprep.subr.mxu0 0.0
    %3949 = vmatpush1.msra.mxu0 0.0
    %3950 = vmatprep.subr.mxu0 0.0
    %3951 = vmatpush1.msra.mxu0 0.0
    %3952 = vmatprep.subr.mxu0 0.0
    %3953 = vmatpush1.msra.mxu0 0.0
    %3954 = vmatprep.subr.mxu0 0.0
    %3955 = vmatpush1.msra.mxu0 0.0
    %3956 = vmatprep.subr.mxu0 0.0
    %3957 = vmatpush1.msra.mxu0 0.0
    %3958 = vmatprep.subr.mxu0 0.0
    %3959 = vmatpush1.msra.mxu0 0.0
    %3960 = vmatprep.subr.mxu0 0.0
    %3961 = vmatpush1.msra.mxu0 0.0
    %3962 = vmatprep.subr.mxu0 0.0
    %3963 = vmatpush1.msra.mxu0 0.0
    %3964 = vmatprep.subr.mxu0 0.0
    %3965 = vmatpush1.msra.mxu0 0.0
    %3966 = vmatprep.subr.mxu0 0.0
    %3967 = vmatpush1.msra.mxu0 0.0
    %3968 = vmatprep.subr.mxu0 0.0
    %3969 = vmatpush1.msra.mxu0 0.0
    %3970 = vmatprep.subr.mxu0 0.0
    %3971 = vmatpush1.msra.mxu0 0.0
    %3972 = vmatprep.subr.mxu0 0.0
    %3973 = vmatpush1.msra.mxu0 0.0
    %3974 = vmatprep.subr.mxu0 0.0
    %3975 = vmatpush1.msra.mxu0 0.0
    %3976 = vmatprep.subr.mxu0 0.0
    %3977 = vmatpush1.msra.mxu0 0.0
    %3978 = vmatprep.subr.mxu0 0.0
    %3979 = vmatpush1.msra.mxu0 0.0
    %3980 = vmatprep.subr.mxu0 0.0
    %3981 = vmatpush1.msra.mxu0 0.0
    %3982 = vmatprep.subr.mxu0 0.0
    %3983 = vmatpush1.msra.mxu0 0.0
    %3984 = vmatprep.subr.mxu0 0.0
    %3985 = vmatpush1.msra.mxu0 0.0
    %3986 = vmatprep.subr.mxu0 0.0
    %3987 = vmatpush1.msra.mxu0 0.0
    %3988 = vmatprep.subr.mxu0 0.0
    %3989 = vmatpush1.msra.mxu0 0.0
    %3990 = vmatprep.subr.mxu0 0.0
    %3991 = vmatpush1.msra.mxu0 0.0
    %3992 = vmatprep.subr.mxu0 0.0
    %3993 = vmatpush1.msra.mxu0 0.0
    %3994 = vmatprep.mubr.f32.mxu0 0.0
    %v3995 = vand.u32 %v3755, 4294901760
    %v3996 = vsub.f32 %v3755, %v3995
    %3997 = vmatmul.mubr.f32.gmra.mrb[0].mxu0 %v3996
    %v3998 = vpop.f32.mrb[0].mxu0
    %v3999 = vadd.f32 %v3919, %v3998
    %v4000 = vpop.f32.mrb[0].mxu0
    %4001 = vmatprep.mubr.f32.mxu0 0.0
    %v4002 = vand.u32 %v3758, 4294901760
    %v4003 = vsub.f32 %v3758, %v4002
    %4004 = vmatmul.mubr.f32.gmra.mrb[0].mxu0 %v4003
    %v4005 = vpop.f32.mrb[0].mxu0
    %v4006 = vadd.f32 %v3925, %v4005
    %v4007 = vpop.f32.mrb[0].mxu0
    %4008 = vdwg.mxu0
    %4009 = vmatprep.subr.mxu0 0.0
    %v4010 = vand.u32 %v1665, 4294901760
    %4011 = vmatpush1.msra.mxu0 %v4010
    %4012 = vmatprep.subr.mxu0 0.0
    %4013 = vmatpush1.msra.mxu0 0.0
    %4014 = vmatprep.subr.mxu0 0.0
    %4015 = vmatpush1.msra.mxu0 0.0
    %4016 = vmatprep.subr.mxu0 0.0
    %4017 = vmatpush1.msra.mxu0 0.0
    %4018 = vmatprep.subr.mxu0 0.0
    %4019 = vmatpush1.msra.mxu0 0.0
    %4020 = vmatprep.subr.mxu0 0.0
    %4021 = vmatpush1.msra.mxu0 0.0
    %4022 = vmatprep.subr.mxu0 0.0
    %4023 = vmatpush1.msra.mxu0 0.0
    %4024 = vmatprep.subr.mxu0 0.0
    %4025 = vmatpush1.msra.mxu0 0.0
    %4026 = vmatprep.subr.mxu0 0.0
    %4027 = vmatpush1.msra.mxu0 0.0
    %4028 = vmatprep.subr.mxu0 0.0
    %4029 = vmatpush1.msra.mxu0 0.0
    %4030 = vmatprep.subr.mxu0 0.0
    %4031 = vmatpush1.msra.mxu0 0.0
    %4032 = vmatprep.subr.mxu0 0.0
    %4033 = vmatpush1.msra.mxu0 0.0
    %4034 = vmatprep.subr.mxu0 0.0
    %4035 = vmatpush1.msra.mxu0 0.0
    %4036 = vmatprep.subr.mxu0 0.0
    %4037 = vmatpush1.msra.mxu0 0.0
    %4038 = vmatprep.subr.mxu0 0.0
    %4039 = vmatpush1.msra.mxu0 0.0
    %4040 = vmatprep.subr.mxu0 0.0
    %4041 = vmatpush1.msra.mxu0 0.0
    %4042 = vmatprep.subr.mxu0 0.0
    %4043 = vmatpush1.msra.mxu0 0.0
    %4044 = vmatprep.subr.mxu0 0.0
    %4045 = vmatpush1.msra.mxu0 0.0
    %4046 = vmatprep.subr.mxu0 0.0
    %4047 = vmatpush1.msra.mxu0 0.0
    %4048 = vmatprep.subr.mxu0 0.0
    %4049 = vmatpush1.msra.mxu0 0.0
    %4050 = vmatprep.subr.mxu0 0.0
    %4051 = vmatpush1.msra.mxu0 0.0
    %4052 = vmatprep.subr.mxu0 0.0
    %4053 = vmatpush1.msra.mxu0 0.0
    %4054 = vmatprep.subr.mxu0 0.0
    %4055 = vmatpush1.msra.mxu0 0.0
    %4056 = vmatprep.subr.mxu0 0.0
    %4057 = vmatpush1.msra.mxu0 0.0
    %4058 = vmatprep.subr.mxu0 0.0
    %4059 = vmatpush1.msra.mxu0 0.0
    %4060 = vmatprep.subr.mxu0 0.0
    %4061 = vmatpush1.msra.mxu0 0.0
    %4062 = vmatprep.subr.mxu0 0.0
    %4063 = vmatpush1.msra.mxu0 0.0
    %4064 = vmatprep.subr.mxu0 0.0
    %4065 = vmatpush1.msra.mxu0 0.0
    %4066 = vmatprep.subr.mxu0 0.0
    %4067 = vmatpush1.msra.mxu0 0.0
    %4068 = vmatprep.subr.mxu0 0.0
    %4069 = vmatpush1.msra.mxu0 0.0
    %4070 = vmatprep.subr.mxu0 0.0
    %4071 = vmatpush1.msra.mxu0 0.0
    %4072 = vmatprep.subr.mxu0 0.0
    %4073 = vmatpush1.msra.mxu0 0.0
    %4074 = vmatprep.mubr.f32.mxu0 0.0
    %v4075 = vand.u32 %v3755, 4294901760
    %v4076 = vsub.f32 %v3755, %v4075
    %v4077 = vand.u32 %v4076, 4294901760
    %4078 = vmatmul.mubr.f32.gmra.mrb[0].mxu0 %v4077
    %v4079 = vpop.f32.mrb[0].mxu0
    %v4080 = vadd.f32 %v3999, %v4079
    %v4081 = vpop.f32.mrb[0].mxu0
    %4082 = vmatprep.mubr.f32.mxu0 0.0
    %v4083 = vand.u32 %v3758, 4294901760
    %v4084 = vsub.f32 %v3758, %v4083
    %v4085 = vand.u32 %v4084, 4294901760
    %4086 = vmatmul.mubr.f32.gmra.mrb[0].mxu0 %v4085
    %v4087 = vpop.f32.mrb[0].mxu0
    %v4088 = vadd.f32 %v4006, %v4087
    %v4089 = vpop.f32.mrb[0].mxu0
    %4090 = vdwg.mxu0
    %4091 = vmatprep.subr.mxu0 0.0
    %v4092 = vand.u32 %v1665, 4294901760
    %v4093 = vsub.f32 %v1665, %v4092
    %v4094 = vand.u32 %v4093, 4294901760
    %4095 = vmatpush1.msra.mxu0 %v4094
    %4096 = vmatprep.subr.mxu0 0.0
    %4097 = vmatpush1.msra.mxu0 0.0
    %4098 = vmatprep.subr.mxu0 0.0
    %4099 = vmatpush1.msra.mxu0 0.0
    %4100 = vmatprep.subr.mxu0 0.0
    %4101 = vmatpush1.msra.mxu0 0.0
    %4102 = vmatprep.subr.mxu0 0.0
    %4103 = vmatpush1.msra.mxu0 0.0
    %4104 = vmatprep.subr.mxu0 0.0
    %4105 = vmatpush1.msra.mxu0 0.0
    %4106 = vmatprep.subr.mxu0 0.0
    %4107 = vmatpush1.msra.mxu0 0.0
    %4108 = vmatprep.subr.mxu0 0.0
    %4109 = vmatpush1.msra.mxu0 0.0
    %4110 = vmatprep.subr.mxu0 0.0
    %4111 = vmatpush1.msra.mxu0 0.0
    %4112 = vmatprep.subr.mxu0 0.0
    %4113 = vmatpush1.msra.mxu0 0.0
    %4114 = vmatprep.subr.mxu0 0.0
    %4115 = vmatpush1.msra.mxu0 0.0
    %4116 = vmatprep.subr.mxu0 0.0
    %4117 = vmatpush1.msra.mxu0 0.0
    %4118 = vmatprep.subr.mxu0 0.0
    %4119 = vmatpush1.msra.mxu0 0.0
    %4120 = vmatprep.subr.mxu0 0.0
    %4121 = vmatpush1.msra.mxu0 0.0
    %4122 = vmatprep.subr.mxu0 0.0
    %4123 = vmatpush1.msra.mxu0 0.0
    %4124 = vmatprep.subr.mxu0 0.0
    %4125 = vmatpush1.msra.mxu0 0.0
    %4126 = vmatprep.subr.mxu0 0.0
    %4127 = vmatpush1.msra.mxu0 0.0
    %4128 = vmatprep.subr.mxu0 0.0
    %4129 = vmatpush1.msra.mxu0 0.0
    %4130 = vmatprep.subr.mxu0 0.0
    %4131 = vmatpush1.msra.mxu0 0.0
    %4132 = vmatprep.subr.mxu0 0.0
    %4133 = vmatpush1.msra.mxu0 0.0
    %4134 = vmatprep.subr.mxu0 0.0
    %4135 = vmatpush1.msra.mxu0 0.0
    %4136 = vmatprep.subr.mxu0 0.0
    %4137 = vmatpush1.msra.mxu0 0.0
    %4138 = vmatprep.subr.mxu0 0.0
    %4139 = vmatpush1.msra.mxu0 0.0
    %4140 = vmatprep.subr.mxu0 0.0
    %4141 = vmatpush1.msra.mxu0 0.0
    %4142 = vmatprep.subr.mxu0 0.0
    %4143 = vmatpush1.msra.mxu0 0.0
    %4144 = vmatprep.subr.mxu0 0.0
    %4145 = vmatpush1.msra.mxu0 0.0
    %4146 = vmatprep.subr.mxu0 0.0
    %4147 = vmatpush1.msra.mxu0 0.0
    %4148 = vmatprep.subr.mxu0 0.0
    %4149 = vmatpush1.msra.mxu0 0.0
    %4150 = vmatprep.subr.mxu0 0.0
    %4151 = vmatpush1.msra.mxu0 0.0
    %4152 = vmatprep.subr.mxu0 0.0
    %4153 = vmatpush1.msra.mxu0 0.0
    %4154 = vmatprep.subr.mxu0 0.0
    %4155 = vmatpush1.msra.mxu0 0.0
    %4156 = vmatprep.subr.mxu0 0.0
    %4157 = vmatpush1.msra.mxu0 0.0
    %4158 = vmatprep.mubr.f32.mxu0 0.0
    %v4159 = vand.u32 %v3755, 4294901760
    %4160 = vmatmul.mubr.f32.gmra.mrb[0].mxu0 %v4159
    %v4161 = vpop.f32.mrb[0].mxu0
    %v4162 = vadd.f32 %v4080, %v4161
    %v4163 = vpop.f32.mrb[0].mxu0
    %4164 = vmatprep.mubr.f32.mxu0 0.0
    %v4165 = vand.u32 %v3758, 4294901760
    %4166 = vmatmul.mubr.f32.gmra.mrb[0].mxu0 %v4165
    %v4167 = vpop.f32.mrb[0].mxu0
    %v4168 = vadd.f32 %v4088, %v4167
    %v4169 = vpop.f32.mrb[0].mxu0
    %4170 = vdwg.mxu0
    %4171 = vmatprep.subr.mxu0 0.0
    %v4172 = vand.u32 %v1665, 4294901760
    %4173 = vmatpush1.msra.mxu0 %v4172
    %4174 = vmatprep.subr.mxu0 0.0
    %4175 = vmatpush1.msra.mxu0 0.0
    %4176 = vmatprep.subr.mxu0 0.0
    %4177 = vmatpush1.msra.mxu0 0.0
    %4178 = vmatprep.subr.mxu0 0.0
    %4179 = vmatpush1.msra.mxu0 0.0
    %4180 = vmatprep.subr.mxu0 0.0
    %4181 = vmatpush1.msra.mxu0 0.0
    %4182 = vmatprep.subr.mxu0 0.0
    %4183 = vmatpush1.msra.mxu0 0.0
    %4184 = vmatprep.subr.mxu0 0.0
    %4185 = vmatpush1.msra.mxu0 0.0
    %4186 = vmatprep.subr.mxu0 0.0
    %4187 = vmatpush1.msra.mxu0 0.0
    %4188 = vmatprep.subr.mxu0 0.0
    %4189 = vmatpush1.msra.mxu0 0.0
    %4190 = vmatprep.subr.mxu0 0.0
    %4191 = vmatpush1.msra.mxu0 0.0
    %4192 = vmatprep.subr.mxu0 0.0
    %4193 = vmatpush1.msra.mxu0 0.0
    %4194 = vmatprep.subr.mxu0 0.0
    %4195 = vmatpush1.msra.mxu0 0.0
    %4196 = vmatprep.subr.mxu0 0.0
    %4197 = vmatpush1.msra.mxu0 0.0
    %4198 = vmatprep.subr.mxu0 0.0
    %4199 = vmatpush1.msra.mxu0 0.0
    %4200 = vmatprep.subr.mxu0 0.0
    %4201 = vmatpush1.msra.mxu0 0.0
    %4202 = vmatprep.subr.mxu0 0.0
    %4203 = vmatpush1.msra.mxu0 0.0
    %4204 = vmatprep.subr.mxu0 0.0
    %4205 = vmatpush1.msra.mxu0 0.0
    %4206 = vmatprep.subr.mxu0 0.0
    %4207 = vmatpush1.msra.mxu0 0.0
    %4208 = vmatprep.subr.mxu0 0.0
    %4209 = vmatpush1.msra.mxu0 0.0
    %4210 = vmatprep.subr.mxu0 0.0
    %4211 = vmatpush1.msra.mxu0 0.0
    %4212 = vmatprep.subr.mxu0 0.0
    %4213 = vmatpush1.msra.mxu0 0.0
    %4214 = vmatprep.subr.mxu0 0.0
    %4215 = vmatpush1.msra.mxu0 0.0
    %4216 = vmatprep.subr.mxu0 0.0
    %4217 = vmatpush1.msra.mxu0 0.0
    %4218 = vmatprep.subr.mxu0 0.0
    %4219 = vmatpush1.msra.mxu0 0.0
    %4220 = vmatprep.subr.mxu0 0.0
    %4221 = vmatpush1.msra.mxu0 0.0
    %4222 = vmatprep.subr.mxu0 0.0
    %4223 = vmatpush1.msra.mxu0 0.0
    %4224 = vmatprep.subr.mxu0 0.0
    %4225 = vmatpush1.msra.mxu0 0.0
    %4226 = vmatprep.subr.mxu0 0.0
    %4227 = vmatpush1.msra.mxu0 0.0
    %4228 = vmatprep.subr.mxu0 0.0
    %4229 = vmatpush1.msra.mxu0 0.0
    %4230 = vmatprep.subr.mxu0 0.0
    %4231 = vmatpush1.msra.mxu0 0.0
    %4232 = vmatprep.subr.mxu0 0.0
    %4233 = vmatpush1.msra.mxu0 0.0
    %4234 = vmatprep.subr.mxu0 0.0
    %4235 = vmatpush1.msra.mxu0 0.0
    %4236 = vmatprep.mubr.f32.mxu0 0.0
    %v4237 = vand.u32 %v3755, 4294901760
    %4238 = vmatmul.mubr.f32.gmra.mrb[0].mxu0 %v4237
    %v4239 = vpop.f32.mrb[0].mxu0
    %v4240 = vadd.f32 %v4162, %v4239
    %v4241 = vpop.f32.mrb[0].mxu0
    %4242 = vmatprep.mubr.f32.mxu0 0.0
    %v4243 = vand.u32 %v3758, 4294901760
    %4244 = vmatmul.mubr.f32.gmra.mrb[0].mxu0 %v4243
    %v4245 = vpop.f32.mrb[0].mxu0
    %v4246 = vadd.f32 %v4168, %v4245
    %v4247 = vpop.f32.mrb[0].mxu0
    %4248 = vdwg.mxu0
    %v4250 = vsel %vm1668, %v2705, 0
    %v4253 = vsel %vm1668, %v2711, 0
    %4255 = vmatprep.subr.mxu0 0.0
    %v4256 = vand.u32 %v1664, 4294901760
    %4257 = vmatpush1.msra.mxu0 %v4256
    %4258 = vmatprep.subr.mxu0 0.0
    %4259 = vmatpush1.msra.mxu0 0.0
    %4260 = vmatprep.subr.mxu0 0.0
    %4261 = vmatpush1.msra.mxu0 0.0
    %4262 = vmatprep.subr.mxu0 0.0
    %4263 = vmatpush1.msra.mxu0 0.0
    %4264 = vmatprep.subr.mxu0 0.0
    %4265 = vmatpush1.msra.mxu0 0.0
    %4266 = vmatprep.subr.mxu0 0.0
    %4267 = vmatpush1.msra.mxu0 0.0
    %4268 = vmatprep.subr.mxu0 0.0
    %4269 = vmatpush1.msra.mxu0 0.0
    %4270 = vmatprep.subr.mxu0 0.0
    %4271 = vmatpush1.msra.mxu0 0.0
    %4272 = vmatprep.subr.mxu0 0.0
    %4273 = vmatpush1.msra.mxu0 0.0
    %4274 = vmatprep.subr.mxu0 0.0
    %4275 = vmatpush1.msra.mxu0 0.0
    %4276 = vmatprep.subr.mxu0 0.0
    %4277 = vmatpush1.msra.mxu0 0.0
    %4278 = vmatprep.subr.mxu0 0.0
    %4279 = vmatpush1.msra.mxu0 0.0
    %4280 = vmatprep.subr.mxu0 0.0
    %4281 = vmatpush1.msra.mxu0 0.0
    %4282 = vmatprep.subr.mxu0 0.0
    %4283 = vmatpush1.msra.mxu0 0.0
    %4284 = vmatprep.subr.mxu0 0.0
    %4285 = vmatpush1.msra.mxu0 0.0
    %4286 = vmatprep.subr.mxu0 0.0
    %4287 = vmatpush1.msra.mxu0 0.0
    %4288 = vmatprep.subr.mxu0 0.0
    %4289 = vmatpush1.msra.mxu0 0.0
    %4290 = vmatprep.subr.mxu0 0.0
    %4291 = vmatpush1.msra.mxu0 0.0
    %4292 = vmatprep.subr.mxu0 0.0
    %4293 = vmatpush1.msra.mxu0 0.0
    %4294 = vmatprep.subr.mxu0 0.0
    %4295 = vmatpush1.msra.mxu0 0.0
    %4296 = vmatprep.subr.mxu0 0.0
    %4297 = vmatpush1.msra.mxu0 0.0
    %4298 = vmatprep.subr.mxu0 0.0
    %4299 = vmatpush1.msra.mxu0 0.0
    %4300 = vmatprep.subr.mxu0 0.0
    %4301 = vmatpush1.msra.mxu0 0.0
    %4302 = vmatprep.subr.mxu0 0.0
    %4303 = vmatpush1.msra.mxu0 0.0
    %4304 = vmatprep.subr.mxu0 0.0
    %4305 = vmatpush1.msra.mxu0 0.0
    %4306 = vmatprep.subr.mxu0 0.0
    %4307 = vmatpush1.msra.mxu0 0.0
    %4308 = vmatprep.subr.mxu0 0.0
    %4309 = vmatpush1.msra.mxu0 0.0
    %4310 = vmatprep.subr.mxu0 0.0
    %4311 = vmatpush1.msra.mxu0 0.0
    %4312 = vmatprep.subr.mxu0 0.0
    %4313 = vmatpush1.msra.mxu0 0.0
    %4314 = vmatprep.subr.mxu0 0.0
    %4315 = vmatpush1.msra.mxu0 0.0
    %4316 = vmatprep.subr.mxu0 0.0
    %4317 = vmatpush1.msra.mxu0 0.0
    %4318 = vmatprep.subr.mxu0 0.0
    %4319 = vmatpush1.msra.mxu0 0.0
    %4320 = vmatprep.mubr.f32.mxu0 0.0
    %v4321 = vand.u32 %v4250, 4294901760
    %v4322 = vsub.f32 %v4250, %v4321
    %v4323 = vand.u32 %v4322, 4294901760
    %v4324 = vsub.f32 %v4322, %v4323
    %v4325 = vand.u32 %v4324, 4294901760
    %4326 = vmatmul.mubr.f32.gmra.mrb[0].mxu0 %v4325
    %v4327 = vpop.f32.mrb[0].mxu0
    %v4328 = vadd.f32 %v4240, %v4327
    %v4329 = vpop.f32.mrb[0].mxu0
    %4330 = vmatprep.mubr.f32.mxu0 0.0
    %v4331 = vand.u32 %v4253, 4294901760
    %v4332 = vsub.f32 %v4253, %v4331
    %v4333 = vand.u32 %v4332, 4294901760
    %v4334 = vsub.f32 %v4332, %v4333
    %v4335 = vand.u32 %v4334, 4294901760
    %4336 = vmatmul.mubr.f32.gmra.mrb[0].mxu0 %v4335
    %v4337 = vpop.f32.mrb[0].mxu0
    %v4338 = vadd.f32 %v4246, %v4337
    %v4339 = vpop.f32.mrb[0].mxu0
    %4340 = vdwg.mxu0
    %4341 = vmatprep.subr.mxu0 0.0
    %v4342 = vand.u32 %v1664, 4294901760
    %v4343 = vsub.f32 %v1664, %v4342
    %v4344 = vand.u32 %v4343, 4294901760
    %v4345 = vsub.f32 %v4343, %v4344
    %v4346 = vand.u32 %v4345, 4294901760
    %4347 = vmatpush1.msra.mxu0 %v4346
    %4348 = vmatprep.subr.mxu0 0.0
    %4349 = vmatpush1.msra.mxu0 0.0
    %4350 = vmatprep.subr.mxu0 0.0
    %4351 = vmatpush1.msra.mxu0 0.0
    %4352 = vmatprep.subr.mxu0 0.0
    %4353 = vmatpush1.msra.mxu0 0.0
    %4354 = vmatprep.subr.mxu0 0.0
    %4355 = vmatpush1.msra.mxu0 0.0
    %4356 = vmatprep.subr.mxu0 0.0
    %4357 = vmatpush1.msra.mxu0 0.0
    %4358 = vmatprep.subr.mxu0 0.0
    %4359 = vmatpush1.msra.mxu0 0.0
    %4360 = vmatprep.subr.mxu0 0.0
    %4361 = vmatpush1.msra.mxu0 0.0
    %4362 = vmatprep.subr.mxu0 0.0
    %4363 = vmatpush1.msra.mxu0 0.0
    %4364 = vmatprep.subr.mxu0 0.0
    %4365 = vmatpush1.msra.mxu0 0.0
    %4366 = vmatprep.subr.mxu0 0.0
    %4367 = vmatpush1.msra.mxu0 0.0
    %4368 = vmatprep.subr.mxu0 0.0
    %4369 = vmatpush1.msra.mxu0 0.0
    %4370 = vmatprep.subr.mxu0 0.0
    %4371 = vmatpush1.msra.mxu0 0.0
    %4372 = vmatprep.subr.mxu0 0.0
    %4373 = vmatpush1.msra.mxu0 0.0
    %4374 = vmatprep.subr.mxu0 0.0
    %4375 = vmatpush1.msra.mxu0 0.0
    %4376 = vmatprep.subr.mxu0 0.0
    %4377 = vmatpush1.msra.mxu0 0.0
    %4378 = vmatprep.subr.mxu0 0.0
    %4379 = vmatpush1.msra.mxu0 0.0
    %4380 = vmatprep.subr.mxu0 0.0
    %4381 = vmatpush1.msra.mxu0 0.0
    %4382 = vmatprep.subr.mxu0 0.0
    %4383 = vmatpush1.msra.mxu0 0.0
    %4384 = vmatprep.subr.mxu0 0.0
    %4385 = vmatpush1.msra.mxu0 0.0
    %4386 = vmatprep.subr.mxu0 0.0
    %4387 = vmatpush1.msra.mxu0 0.0
    %4388 = vmatprep.subr.mxu0 0.0
    %4389 = vmatpush1.msra.mxu0 0.0
    %4390 = vmatprep.subr.mxu0 0.0
    %4391 = vmatpush1.msra.mxu0 0.0
    %4392 = vmatprep.subr.mxu0 0.0
    %4393 = vmatpush1.msra.mxu0 0.0
    %4394 = vmatprep.subr.mxu0 0.0
    %4395 = vmatpush1.msra.mxu0 0.0
    %4396 = vmatprep.subr.mxu0 0.0
    %4397 = vmatpush1.msra.mxu0 0.0
    %4398 = vmatprep.subr.mxu0 0.0
    %4399 = vmatpush1.msra.mxu0 0.0
    %4400 = vmatprep.subr.mxu0 0.0
    %4401 = vmatpush1.msra.mxu0 0.0
    %4402 = vmatprep.subr.mxu0 0.0
    %4403 = vmatpush1.msra.mxu0 0.0
    %4404 = vmatprep.subr.mxu0 0.0
    %4405 = vmatpush1.msra.mxu0 0.0
    %4406 = vmatprep.subr.mxu0 0.0
    %4407 = vmatpush1.msra.mxu0 0.0
    %4408 = vmatprep.subr.mxu0 0.0
    %4409 = vmatpush1.msra.mxu0 0.0
    %4410 = vmatprep.mubr.f32.mxu0 0.0
    %v4411 = vand.u32 %v4250, 4294901760
    %4412 = vmatmul.mubr.f32.gmra.mrb[0].mxu0 %v4411
    %v4413 = vpop.f32.mrb[0].mxu0
    %v4414 = vadd.f32 %v4328, %v4413
    %v4415 = vpop.f32.mrb[0].mxu0
    %4416 = vmatprep.mubr.f32.mxu0 0.0
    %v4417 = vand.u32 %v4253, 4294901760
    %4418 = vmatmul.mubr.f32.gmra.mrb[0].mxu0 %v4417
    %v4419 = vpop.f32.mrb[0].mxu0
    %v4420 = vadd.f32 %v4338, %v4419
    %v4421 = vpop.f32.mrb[0].mxu0
    %4422 = vdwg.mxu0
    %4423 = vmatprep.subr.mxu0 0.0
    %v4424 = vand.u32 %v1664, 4294901760
    %v4425 = vsub.f32 %v1664, %v4424
    %4426 = vmatpush1.msra.mxu0 %v4425
    %4427 = vmatprep.subr.mxu0 0.0
    %4428 = vmatpush1.msra.mxu0 0.0
    %4429 = vmatprep.subr.mxu0 0.0
    %4430 = vmatpush1.msra.mxu0 0.0
    %4431 = vmatprep.subr.mxu0 0.0
    %4432 = vmatpush1.msra.mxu0 0.0
    %4433 = vmatprep.subr.mxu0 0.0
    %4434 = vmatpush1.msra.mxu0 0.0
    %4435 = vmatprep.subr.mxu0 0.0
    %4436 = vmatpush1.msra.mxu0 0.0
    %4437 = vmatprep.subr.mxu0 0.0
    %4438 = vmatpush1.msra.mxu0 0.0
    %4439 = vmatprep.subr.mxu0 0.0
    %4440 = vmatpush1.msra.mxu0 0.0
    %4441 = vmatprep.subr.mxu0 0.0
    %4442 = vmatpush1.msra.mxu0 0.0
    %4443 = vmatprep.subr.mxu0 0.0
    %4444 = vmatpush1.msra.mxu0 0.0
    %4445 = vmatprep.subr.mxu0 0.0
    %4446 = vmatpush1.msra.mxu0 0.0
    %4447 = vmatprep.subr.mxu0 0.0
    %4448 = vmatpush1.msra.mxu0 0.0
    %4449 = vmatprep.subr.mxu0 0.0
    %4450 = vmatpush1.msra.mxu0 0.0
    %4451 = vmatprep.subr.mxu0 0.0
    %4452 = vmatpush1.msra.mxu0 0.0
    %4453 = vmatprep.subr.mxu0 0.0
    %4454 = vmatpush1.msra.mxu0 0.0
    %4455 = vmatprep.subr.mxu0 0.0
    %4456 = vmatpush1.msra.mxu0 0.0
    %4457 = vmatprep.subr.mxu0 0.0
    %4458 = vmatpush1.msra.mxu0 0.0
    %4459 = vmatprep.subr.mxu0 0.0
    %4460 = vmatpush1.msra.mxu0 0.0
    %4461 = vmatprep.subr.mxu0 0.0
    %4462 = vmatpush1.msra.mxu0 0.0
    %4463 = vmatprep.subr.mxu0 0.0
    %4464 = vmatpush1.msra.mxu0 0.0
    %4465 = vmatprep.subr.mxu0 0.0
    %4466 = vmatpush1.msra.mxu0 0.0
    %4467 = vmatprep.subr.mxu0 0.0
    %4468 = vmatpush1.msra.mxu0 0.0
    %4469 = vmatprep.subr.mxu0 0.0
    %4470 = vmatpush1.msra.mxu0 0.0
    %4471 = vmatprep.subr.mxu0 0.0
    %4472 = vmatpush1.msra.mxu0 0.0
    %4473 = vmatprep.subr.mxu0 0.0
    %4474 = vmatpush1.msra.mxu0 0.0
    %4475 = vmatprep.subr.mxu0 0.0
    %4476 = vmatpush1.msra.mxu0 0.0
    %4477 = vmatprep.subr.mxu0 0.0
    %4478 = vmatpush1.msra.mxu0 0.0
    %4479 = vmatprep.subr.mxu0 0.0
    %4480 = vmatpush1.msra.mxu0 0.0
    %4481 = vmatprep.subr.mxu0 0.0
    %4482 = vmatpush1.msra.mxu0 0.0
    %4483 = vmatprep.subr.mxu0 0.0
    %4484 = vmatpush1.msra.mxu0 0.0
    %4485 = vmatprep.subr.mxu0 0.0
    %4486 = vmatpush1.msra.mxu0 0.0
    %4487 = vmatprep.subr.mxu0 0.0
    %4488 = vmatpush1.msra.mxu0 0.0
    %4489 = vmatprep.mubr.f32.mxu0 0.0
    %v4490 = vand.u32 %v4250, 4294901760
    %v4491 = vsub.f32 %v4250, %v4490
    %4492 = vmatmul.mubr.f32.gmra.mrb[0].mxu0 %v4491
    %v4493 = vpop.f32.mrb[0].mxu0
    %v4494 = vadd.f32 %v4414, %v4493
    %v4495 = vpop.f32.mrb[0].mxu0
    %4496 = vmatprep.mubr.f32.mxu0 0.0
    %v4497 = vand.u32 %v4253, 4294901760
    %v4498 = vsub.f32 %v4253, %v4497
    %4499 = vmatmul.mubr.f32.gmra.mrb[0].mxu0 %v4498
    %v4500 = vpop.f32.mrb[0].mxu0
    %v4501 = vadd.f32 %v4420, %v4500
    %v4502 = vpop.f32.mrb[0].mxu0
    %4503 = vdwg.mxu0
    %4504 = vmatprep.subr.mxu0 0.0
    %v4505 = vand.u32 %v1664, 4294901760
    %4506 = vmatpush1.msra.mxu0 %v4505
    %4507 = vmatprep.subr.mxu0 0.0
    %4508 = vmatpush1.msra.mxu0 0.0
    %4509 = vmatprep.subr.mxu0 0.0
    %4510 = vmatpush1.msra.mxu0 0.0
    %4511 = vmatprep.subr.mxu0 0.0
    %4512 = vmatpush1.msra.mxu0 0.0
    %4513 = vmatprep.subr.mxu0 0.0
    %4514 = vmatpush1.msra.mxu0 0.0
    %4515 = vmatprep.subr.mxu0 0.0
    %4516 = vmatpush1.msra.mxu0 0.0
    %4517 = vmatprep.subr.mxu0 0.0
    %4518 = vmatpush1.msra.mxu0 0.0
    %4519 = vmatprep.subr.mxu0 0.0
    %4520 = vmatpush1.msra.mxu0 0.0
    %4521 = vmatprep.subr.mxu0 0.0
    %4522 = vmatpush1.msra.mxu0 0.0
    %4523 = vmatprep.subr.mxu0 0.0
    %4524 = vmatpush1.msra.mxu0 0.0
    %4525 = vmatprep.subr.mxu0 0.0
    %4526 = vmatpush1.msra.mxu0 0.0
    %4527 = vmatprep.subr.mxu0 0.0
    %4528 = vmatpush1.msra.mxu0 0.0
    %4529 = vmatprep.subr.mxu0 0.0
    %4530 = vmatpush1.msra.mxu0 0.0
    %4531 = vmatprep.subr.mxu0 0.0
    %4532 = vmatpush1.msra.mxu0 0.0
    %4533 = vmatprep.subr.mxu0 0.0
    %4534 = vmatpush1.msra.mxu0 0.0
    %4535 = vmatprep.subr.mxu0 0.0
    %4536 = vmatpush1.msra.mxu0 0.0
    %4537 = vmatprep.subr.mxu0 0.0
    %4538 = vmatpush1.msra.mxu0 0.0
    %4539 = vmatprep.subr.mxu0 0.0
    %4540 = vmatpush1.msra.mxu0 0.0
    %4541 = vmatprep.subr.mxu0 0.0
    %4542 = vmatpush1.msra.mxu0 0.0
    %4543 = vmatprep.subr.mxu0 0.0
    %4544 = vmatpush1.msra.mxu0 0.0
    %4545 = vmatprep.subr.mxu0 0.0
    %4546 = vmatpush1.msra.mxu0 0.0
    %4547 = vmatprep.subr.mxu0 0.0
    %4548 = vmatpush1.msra.mxu0 0.0
    %4549 = vmatprep.subr.mxu0 0.0
    %4550 = vmatpush1.msra.mxu0 0.0
    %4551 = vmatprep.subr.mxu0 0.0
    %4552 = vmatpush1.msra.mxu0 0.0
    %4553 = vmatprep.subr.mxu0 0.0
    %4554 = vmatpush1.msra.mxu0 0.0
    %4555 = vmatprep.subr.mxu0 0.0
    %4556 = vmatpush1.msra.mxu0 0.0
    %4557 = vmatprep.subr.mxu0 0.0
    %4558 = vmatpush1.msra.mxu0 0.0
    %4559 = vmatprep.subr.mxu0 0.0
    %4560 = vmatpush1.msra.mxu0 0.0
    %4561 = vmatprep.subr.mxu0 0.0
    %4562 = vmatpush1.msra.mxu0 0.0
    %4563 = vmatprep.subr.mxu0 0.0
    %4564 = vmatpush1.msra.mxu0 0.0
    %4565 = vmatprep.subr.mxu0 0.0
    %4566 = vmatpush1.msra.mxu0 0.0
    %4567 = vmatprep.subr.mxu0 0.0
    %4568 = vmatpush1.msra.mxu0 0.0
    %4569 = vmatprep.mubr.f32.mxu0 0.0
    %v4570 = vand.u32 %v4250, 4294901760
    %v4571 = vsub.f32 %v4250, %v4570
    %v4572 = vand.u32 %v4571, 4294901760
    %4573 = vmatmul.mubr.f32.gmra.mrb[0].mxu0 %v4572
    %v4574 = vpop.f32.mrb[0].mxu0
    %v4575 = vadd.f32 %v4494, %v4574
    %v4576 = vpop.f32.mrb[0].mxu0
    %4577 = vmatprep.mubr.f32.mxu0 0.0
    %v4578 = vand.u32 %v4253, 4294901760
    %v4579 = vsub.f32 %v4253, %v4578
    %v4580 = vand.u32 %v4579, 4294901760
    %4581 = vmatmul.mubr.f32.gmra.mrb[0].mxu0 %v4580
    %v4582 = vpop.f32.mrb[0].mxu0
    %v4583 = vadd.f32 %v4501, %v4582
    %v4584 = vpop.f32.mrb[0].mxu0
    %4585 = vdwg.mxu0
    %4586 = vmatprep.subr.mxu0 0.0
    %v4587 = vand.u32 %v1664, 4294901760
    %v4588 = vsub.f32 %v1664, %v4587
    %v4589 = vand.u32 %v4588, 4294901760
    %4590 = vmatpush1.msra.mxu0 %v4589
    %4591 = vmatprep.subr.mxu0 0.0
    %4592 = vmatpush1.msra.mxu0 0.0
    %4593 = vmatprep.subr.mxu0 0.0
    %4594 = vmatpush1.msra.mxu0 0.0
    %4595 = vmatprep.subr.mxu0 0.0
    %4596 = vmatpush1.msra.mxu0 0.0
    %4597 = vmatprep.subr.mxu0 0.0
    %4598 = vmatpush1.msra.mxu0 0.0
    %4599 = vmatprep.subr.mxu0 0.0
    %4600 = vmatpush1.msra.mxu0 0.0
    %4601 = vmatprep.subr.mxu0 0.0
    %4602 = vmatpush1.msra.mxu0 0.0
    %4603 = vmatprep.subr.mxu0 0.0
    %4604 = vmatpush1.msra.mxu0 0.0
    %4605 = vmatprep.subr.mxu0 0.0
    %4606 = vmatpush1.msra.mxu0 0.0
    %4607 = vmatprep.subr.mxu0 0.0
    %4608 = vmatpush1.msra.mxu0 0.0
    %4609 = vmatprep.subr.mxu0 0.0
    %4610 = vmatpush1.msra.mxu0 0.0
    %4611 = vmatprep.subr.mxu0 0.0
    %4612 = vmatpush1.msra.mxu0 0.0
    %4613 = vmatprep.subr.mxu0 0.0
    %4614 = vmatpush1.msra.mxu0 0.0
    %4615 = vmatprep.subr.mxu0 0.0
    %4616 = vmatpush1.msra.mxu0 0.0
    %4617 = vmatprep.subr.mxu0 0.0
    %4618 = vmatpush1.msra.mxu0 0.0
    %4619 = vmatprep.subr.mxu0 0.0
    %4620 = vmatpush1.msra.mxu0 0.0
    %4621 = vmatprep.subr.mxu0 0.0
    %4622 = vmatpush1.msra.mxu0 0.0
    %4623 = vmatprep.subr.mxu0 0.0
    %4624 = vmatpush1.msra.mxu0 0.0
    %4625 = vmatprep.subr.mxu0 0.0
    %4626 = vmatpush1.msra.mxu0 0.0
    %4627 = vmatprep.subr.mxu0 0.0
    %4628 = vmatpush1.msra.mxu0 0.0
    %4629 = vmatprep.subr.mxu0 0.0
    %4630 = vmatpush1.msra.mxu0 0.0
    %4631 = vmatprep.subr.mxu0 0.0
    %4632 = vmatpush1.msra.mxu0 0.0
    %4633 = vmatprep.subr.mxu0 0.0
    %4634 = vmatpush1.msra.mxu0 0.0
    %4635 = vmatprep.subr.mxu0 0.0
    %4636 = vmatpush1.msra.mxu0 0.0
    %4637 = vmatprep.subr.mxu0 0.0
    %4638 = vmatpush1.msra.mxu0 0.0
    %4639 = vmatprep.subr.mxu0 0.0
    %4640 = vmatpush1.msra.mxu0 0.0
    %4641 = vmatprep.subr.mxu0 0.0
    %4642 = vmatpush1.msra.mxu0 0.0
    %4643 = vmatprep.subr.mxu0 0.0
    %4644 = vmatpush1.msra.mxu0 0.0
    %4645 = vmatprep.subr.mxu0 0.0
    %4646 = vmatpush1.msra.mxu0 0.0
    %4647 = vmatprep.subr.mxu0 0.0
    %4648 = vmatpush1.msra.mxu0 0.0
    %4649 = vmatprep.subr.mxu0 0.0
    %4650 = vmatpush1.msra.mxu0 0.0
    %4651 = vmatprep.subr.mxu0 0.0
    %4652 = vmatpush1.msra.mxu0 0.0
    %4653 = vmatprep.mubr.f32.mxu0 0.0
    %v4654 = vand.u32 %v4250, 4294901760
    %4655 = vmatmul.mubr.f32.gmra.mrb[0].mxu0 %v4654
    %v4656 = vpop.f32.mrb[0].mxu0
    %v4657 = vadd.f32 %v4575, %v4656
    %v4658 = vpop.f32.mrb[0].mxu0
    %4659 = vmatprep.mubr.f32.mxu0 0.0
    %v4660 = vand.u32 %v4253, 4294901760
    %4661 = vmatmul.mubr.f32.gmra.mrb[0].mxu0 %v4660
    %v4662 = vpop.f32.mrb[0].mxu0
    %v4663 = vadd.f32 %v4583, %v4662
    %v4664 = vpop.f32.mrb[0].mxu0
    %4665 = vdwg.mxu0
    %4666 = vmatprep.subr.mxu0 0.0
    %v4667 = vand.u32 %v1664, 4294901760
    %4668 = vmatpush1.msra.mxu0 %v4667
    %4669 = vmatprep.subr.mxu0 0.0
    %4670 = vmatpush1.msra.mxu0 0.0
    %4671 = vmatprep.subr.mxu0 0.0
    %4672 = vmatpush1.msra.mxu0 0.0
    %4673 = vmatprep.subr.mxu0 0.0
    %4674 = vmatpush1.msra.mxu0 0.0
    %4675 = vmatprep.subr.mxu0 0.0
    %4676 = vmatpush1.msra.mxu0 0.0
    %4677 = vmatprep.subr.mxu0 0.0
    %4678 = vmatpush1.msra.mxu0 0.0
    %4679 = vmatprep.subr.mxu0 0.0
    %4680 = vmatpush1.msra.mxu0 0.0
    %4681 = vmatprep.subr.mxu0 0.0
    %4682 = vmatpush1.msra.mxu0 0.0
    %4683 = vmatprep.subr.mxu0 0.0
    %4684 = vmatpush1.msra.mxu0 0.0
    %4685 = vmatprep.subr.mxu0 0.0
    %4686 = vmatpush1.msra.mxu0 0.0
    %4687 = vmatprep.subr.mxu0 0.0
    %4688 = vmatpush1.msra.mxu0 0.0
    %4689 = vmatprep.subr.mxu0 0.0
    %4690 = vmatpush1.msra.mxu0 0.0
    %4691 = vmatprep.subr.mxu0 0.0
    %4692 = vmatpush1.msra.mxu0 0.0
    %4693 = vmatprep.subr.mxu0 0.0
    %4694 = vmatpush1.msra.mxu0 0.0
    %4695 = vmatprep.subr.mxu0 0.0
    %4696 = vmatpush1.msra.mxu0 0.0
    %4697 = vmatprep.subr.mxu0 0.0
    %4698 = vmatpush1.msra.mxu0 0.0
    %4699 = vmatprep.subr.mxu0 0.0
    %4700 = vmatpush1.msra.mxu0 0.0
    %4701 = vmatprep.subr.mxu0 0.0
    %4702 = vmatpush1.msra.mxu0 0.0
    %4703 = vmatprep.subr.mxu0 0.0
    %4704 = vmatpush1.msra.mxu0 0.0
    %4705 = vmatprep.subr.mxu0 0.0
    %4706 = vmatpush1.msra.mxu0 0.0
    %4707 = vmatprep.subr.mxu0 0.0
    %4708 = vmatpush1.msra.mxu0 0.0
    %4709 = vmatprep.subr.mxu0 0.0
    %4710 = vmatpush1.msra.mxu0 0.0
    %4711 = vmatprep.subr.mxu0 0.0
    %4712 = vmatpush1.msra.mxu0 0.0
    %4713 = vmatprep.subr.mxu0 0.0
    %4714 = vmatpush1.msra.mxu0 0.0
    %4715 = vmatprep.subr.mxu0 0.0
    %4716 = vmatpush1.msra.mxu0 0.0
    %4717 = vmatprep.subr.mxu0 0.0
    %4718 = vmatpush1.msra.mxu0 0.0
    %4719 = vmatprep.subr.mxu0 0.0
    %4720 = vmatpush1.msra.mxu0 0.0
    %4721 = vmatprep.subr.mxu0 0.0
    %4722 = vmatpush1.msra.mxu0 0.0
    %4723 = vmatprep.subr.mxu0 0.0
    %4724 = vmatpush1.msra.mxu0 0.0
    %4725 = vmatprep.subr.mxu0 0.0
    %4726 = vmatpush1.msra.mxu0 0.0
    %4727 = vmatprep.subr.mxu0 0.0
    %4728 = vmatpush1.msra.mxu0 0.0
    %4729 = vmatprep.subr.mxu0 0.0
    %4730 = vmatpush1.msra.mxu0 0.0
    %4731 = vmatprep.mubr.f32.mxu0 0.0
    %v4732 = vand.u32 %v4250, 4294901760
    %4733 = vmatmul.mubr.f32.gmra.mrb[0].mxu0 %v4732
    %v4734 = vpop.f32.mrb[0].mxu0
    %v4735 = vadd.f32 %v4657, %v4734
    %v4736 = vpop.f32.mrb[0].mxu0
    %4737 = vmatprep.mubr.f32.mxu0 0.0
    %v4738 = vand.u32 %v4253, 4294901760
    %4739 = vmatmul.mubr.f32.gmra.mrb[0].mxu0 %v4738
    %v4740 = vpop.f32.mrb[0].mxu0
    %v4741 = vadd.f32 %v4663, %v4740
    %v4742 = vpop.f32.mrb[0].mxu0
    %4743 = vdwg.mxu0
    %4744 = vrot.lane.b32.xlu0 %v575, 112
    %v4745 = vpop.permute.xlu0 %4744
    %4746 = vrot.lane.b32.xlu0 %v581, 112
    %v4747 = vpop.permute.xlu0 %4746
    %4748 = vrot.lane.b32.xlu0 %v1114, 120
    %v4749 = vpop.permute.xlu0 %4748
    %4750 = vrot.lane.b32.xlu0 %v1120, 120
    %v4751 = vpop.permute.xlu0 %4750
    %v4752 = vsel %vm1668, %v4745, 0
    %v4754 = vsel %vm1668, %v4747, 0
    %v4756 = vsel %vm1668, %v4749, 0
    %v4758 = vsel %vm1668, %v4751, 0
    %4760 = vmatprep.subr.mxu0 0.0
    %v4761 = vand.u32 %v4756, 4294901760
    %4762 = vmatpush1.xpose.msra.mxu0 %v4761
    %4763 = vmatprep.subr.mxu0 0.0
    %v4764 = vand.u32 %v4758, 4294901760
    %4765 = vmatpush1.xpose.msra.mxu0 %v4764
    %4766 = vmatprep.subr.mxu0 0.0
    %4767 = vmatpush1.xpose.msra.mxu0 0.0
    %4768 = vmatprep.subr.mxu0 0.0
    %4769 = vmatpush1.xpose.msra.mxu0 0.0
    %4770 = vmatprep.subr.mxu0 0.0
    %4771 = vmatpush1.xpose.msra.mxu0 0.0
    %4772 = vmatprep.subr.mxu0 0.0
    %4773 = vmatpush1.xpose.msra.mxu0 0.0
    %4774 = vmatprep.subr.mxu0 0.0
    %4775 = vmatpush1.xpose.msra.mxu0 0.0
    %4776 = vmatprep.subr.mxu0 0.0
    %4777 = vmatpush1.xpose.msra.mxu0 0.0
    %4778 = vmatprep.subr.mxu0 0.0
    %4779 = vmatpush1.xpose.msra.mxu0 0.0
    %4780 = vmatprep.subr.mxu0 0.0
    %4781 = vmatpush1.xpose.msra.mxu0 0.0
    %4782 = vmatprep.subr.mxu0 0.0
    %4783 = vmatpush1.xpose.msra.mxu0 0.0
    %4784 = vmatprep.subr.mxu0 0.0
    %4785 = vmatpush1.xpose.msra.mxu0 0.0
    %4786 = vmatprep.subr.mxu0 0.0
    %4787 = vmatpush1.xpose.msra.mxu0 0.0
    %4788 = vmatprep.subr.mxu0 0.0
    %4789 = vmatpush1.xpose.msra.mxu0 0.0
    %4790 = vmatprep.subr.mxu0 0.0
    %4791 = vmatpush1.xpose.msra.mxu0 0.0
    %4792 = vmatprep.subr.mxu0 0.0
    %4793 = vmatpush1.xpose.msra.mxu0 0.0
    %4794 = vmatprep.subr.mxu0 0.0
    %4795 = vmatpush1.xpose.msra.mxu0 0.0
    %4796 = vmatprep.subr.mxu0 0.0
    %4797 = vmatpush1.xpose.msra.mxu0 0.0
    %4798 = vmatprep.subr.mxu0 0.0
    %4799 = vmatpush1.xpose.msra.mxu0 0.0
    %4800 = vmatprep.subr.mxu0 0.0
    %4801 = vmatpush1.xpose.msra.mxu0 0.0
    %4802 = vmatprep.subr.mxu0 0.0
    %4803 = vmatpush1.xpose.msra.mxu0 0.0
    %4804 = vmatprep.subr.mxu0 0.0
    %4805 = vmatpush1.xpose.msra.mxu0 0.0
    %4806 = vmatprep.subr.mxu0 0.0
    %4807 = vmatpush1.xpose.msra.mxu0 0.0
    %4808 = vmatprep.subr.mxu0 0.0
    %4809 = vmatpush1.xpose.msra.mxu0 0.0
    %4810 = vmatprep.subr.mxu0 0.0
    %4811 = vmatpush1.xpose.msra.mxu0 0.0
    %4812 = vmatprep.subr.mxu0 0.0
    %4813 = vmatpush1.xpose.msra.mxu0 0.0
    %4814 = vmatprep.subr.mxu0 0.0
    %4815 = vmatpush1.xpose.msra.mxu0 0.0
    %4816 = vmatprep.subr.mxu0 0.0
    %4817 = vmatpush1.xpose.msra.mxu0 0.0
    %4818 = vmatprep.subr.mxu0 0.0
    %4819 = vmatpush1.xpose.msra.mxu0 0.0
    %4820 = vmatprep.subr.mxu0 0.0
    %4821 = vmatpush1.xpose.msra.mxu0 0.0
    %4822 = vmatprep.subr.mxu0 0.0
    %4823 = vmatpush1.xpose.msra.mxu0 0.0
    %4824 = vmatprep.subr.mxu0 0.0
    %4825 = vmatpush1.xpose.msra.mxu0 0.0
    %4826 = vmatprep.mubr.f32.mxu0 0.0
    %v4827 = vand.u32 %v4752, 4294901760
    %v4828 = vsub.f32 %v4752, %v4827
    %v4829 = vand.u32 %v4828, 4294901760
    %v4830 = vsub.f32 %v4828, %v4829
    %v4831 = vand.u32 %v4830, 4294901760
    %4832 = vmatmul.mubr.f32.gmra.mrb[0].mxu0 %v4831
    %v4833 = vpop.f32.mrb[0].mxu0
    %v4834 = vadd.f32 %v1662, %v4833
    %v4835 = vpop.f32.mrb[0].mxu0
    %4836 = vmatprep.mubr.f32.mxu0 0.0
    %v4837 = vand.u32 %v4754, 4294901760
    %v4838 = vsub.f32 %v4754, %v4837
    %v4839 = vand.u32 %v4838, 4294901760
    %v4840 = vsub.f32 %v4838, %v4839
    %v4841 = vand.u32 %v4840, 4294901760
    %4842 = vmatmul.mubr.f32.gmra.mrb[0].mxu0 %v4841
    %v4843 = vpop.f32.mrb[0].mxu0
    %v4844 = vadd.f32 %v1663, %v4843
    %v4845 = vpop.f32.mrb[0].mxu0
    %4846 = vdwg.mxu0
    %4847 = vmatprep.subr.mxu0 0.0
    %v4848 = vand.u32 %v4756, 4294901760
    %v4849 = vsub.f32 %v4756, %v4848
    %v4850 = vand.u32 %v4849, 4294901760
    %v4851 = vsub.f32 %v4849, %v4850
    %v4852 = vand.u32 %v4851, 4294901760
    %4853 = vmatpush1.xpose.msra.mxu0 %v4852
    %4854 = vmatprep.subr.mxu0 0.0
    %v4855 = vand.u32 %v4758, 4294901760
    %v4856 = vsub.f32 %v4758, %v4855
    %v4857 = vand.u32 %v4856, 4294901760
    %v4858 = vsub.f32 %v4856, %v4857
    %v4859 = vand.u32 %v4858, 4294901760
    %4860 = vmatpush1.xpose.msra.mxu0 %v4859
    %4861 = vmatprep.subr.mxu0 0.0
    %4862 = vmatpush1.xpose.msra.mxu0 0.0
    %4863 = vmatprep.subr.mxu0 0.0
    %4864 = vmatpush1.xpose.msra.mxu0 0.0
    %4865 = vmatprep.subr.mxu0 0.0
    %4866 = vmatpush1.xpose.msra.mxu0 0.0
    %4867 = vmatprep.subr.mxu0 0.0
    %4868 = vmatpush1.xpose.msra.mxu0 0.0
    %4869 = vmatprep.subr.mxu0 0.0
    %4870 = vmatpush1.xpose.msra.mxu0 0.0
    %4871 = vmatprep.subr.mxu0 0.0
    %4872 = vmatpush1.xpose.msra.mxu0 0.0
    %4873 = vmatprep.subr.mxu0 0.0
    %4874 = vmatpush1.xpose.msra.mxu0 0.0
    %4875 = vmatprep.subr.mxu0 0.0
    %4876 = vmatpush1.xpose.msra.mxu0 0.0
    %4877 = vmatprep.subr.mxu0 0.0
    %4878 = vmatpush1.xpose.msra.mxu0 0.0
    %4879 = vmatprep.subr.mxu0 0.0
    %4880 = vmatpush1.xpose.msra.mxu0 0.0
    %4881 = vmatprep.subr.mxu0 0.0
    %4882 = vmatpush1.xpose.msra.mxu0 0.0
    %4883 = vmatprep.subr.mxu0 0.0
    %4884 = vmatpush1.xpose.msra.mxu0 0.0
    %4885 = vmatprep.subr.mxu0 0.0
    %4886 = vmatpush1.xpose.msra.mxu0 0.0
    %4887 = vmatprep.subr.mxu0 0.0
    %4888 = vmatpush1.xpose.msra.mxu0 0.0
    %4889 = vmatprep.subr.mxu0 0.0
    %4890 = vmatpush1.xpose.msra.mxu0 0.0
    %4891 = vmatprep.subr.mxu0 0.0
    %4892 = vmatpush1.xpose.msra.mxu0 0.0
    %4893 = vmatprep.subr.mxu0 0.0
    %4894 = vmatpush1.xpose.msra.mxu0 0.0
    %4895 = vmatprep.subr.mxu0 0.0
    %4896 = vmatpush1.xpose.msra.mxu0 0.0
    %4897 = vmatprep.subr.mxu0 0.0
    %4898 = vmatpush1.xpose.msra.mxu0 0.0
    %4899 = vmatprep.subr.mxu0 0.0
    %4900 = vmatpush1.xpose.msra.mxu0 0.0
    %4901 = vmatprep.subr.mxu0 0.0
    %4902 = vmatpush1.xpose.msra.mxu0 0.0
    %4903 = vmatprep.subr.mxu0 0.0
    %4904 = vmatpush1.xpose.msra.mxu0 0.0
    %4905 = vmatprep.subr.mxu0 0.0
    %4906 = vmatpush1.xpose.msra.mxu0 0.0
    %4907 = vmatprep.subr.mxu0 0.0
    %4908 = vmatpush1.xpose.msra.mxu0 0.0
    %4909 = vmatprep.subr.mxu0 0.0
    %4910 = vmatpush1.xpose.msra.mxu0 0.0
    %4911 = vmatprep.subr.mxu0 0.0
    %4912 = vmatpush1.xpose.msra.mxu0 0.0
    %4913 = vmatprep.subr.mxu0 0.0
    %4914 = vmatpush1.xpose.msra.mxu0 0.0
    %4915 = vmatprep.subr.mxu0 0.0
    %4916 = vmatpush1.xpose.msra.mxu0 0.0
    %4917 = vmatprep.subr.mxu0 0.0
    %4918 = vmatpush1.xpose.msra.mxu0 0.0
    %4919 = vmatprep.subr.mxu0 0.0
    %4920 = vmatpush1.xpose.msra.mxu0 0.0
    %4921 = vmatprep.mubr.f32.mxu0 0.0
    %v4922 = vand.u32 %v4752, 4294901760
    %4923 = vmatmul.mubr.f32.gmra.mrb[0].mxu0 %v4922
    %v4924 = vpop.f32.mrb[0].mxu0
    %v4925 = vadd.f32 %v4834, %v4924
    %v4926 = vpop.f32.mrb[0].mxu0
    %4927 = vmatprep.mubr.f32.mxu0 0.0
    %v4928 = vand.u32 %v4754, 4294901760
    %4929 = vmatmul.mubr.f32.gmra.mrb[0].mxu0 %v4928
    %v4930 = vpop.f32.mrb[0].mxu0
    %v4931 = vadd.f32 %v4844, %v4930
    %v4932 = vpop.f32.mrb[0].mxu0
    %4933 = vdwg.mxu0
    %4934 = vmatprep.subr.mxu0 0.0
    %v4935 = vand.u32 %v4756, 4294901760
    %v4936 = vsub.f32 %v4756, %v4935
    %4937 = vmatpush1.xpose.msra.mxu0 %v4936
    %4938 = vmatprep.subr.mxu0 0.0
    %v4939 = vand.u32 %v4758, 4294901760
    %v4940 = vsub.f32 %v4758, %v4939
    %4941 = vmatpush1.xpose.msra.mxu0 %v4940
    %4942 = vmatprep.subr.mxu0 0.0
    %4943 = vmatpush1.xpose.msra.mxu0 0.0
    %4944 = vmatprep.subr.mxu0 0.0
    %4945 = vmatpush1.xpose.msra.mxu0 0.0
    %4946 = vmatprep.subr.mxu0 0.0
    %4947 = vmatpush1.xpose.msra.mxu0 0.0
    %4948 = vmatprep.subr.mxu0 0.0
    %4949 = vmatpush1.xpose.msra.mxu0 0.0
    %4950 = vmatprep.subr.mxu0 0.0
    %4951 = vmatpush1.xpose.msra.mxu0 0.0
    %4952 = vmatprep.subr.mxu0 0.0
    %4953 = vmatpush1.xpose.msra.mxu0 0.0
    %4954 = vmatprep.subr.mxu0 0.0
    %4955 = vmatpush1.xpose.msra.mxu0 0.0
    %4956 = vmatprep.subr.mxu0 0.0
    %4957 = vmatpush1.xpose.msra.mxu0 0.0
    %4958 = vmatprep.subr.mxu0 0.0
    %4959 = vmatpush1.xpose.msra.mxu0 0.0
    %4960 = vmatprep.subr.mxu0 0.0
    %4961 = vmatpush1.xpose.msra.mxu0 0.0
    %4962 = vmatprep.subr.mxu0 0.0
    %4963 = vmatpush1.xpose.msra.mxu0 0.0
    %4964 = vmatprep.subr.mxu0 0.0
    %4965 = vmatpush1.xpose.msra.mxu0 0.0
    %4966 = vmatprep.subr.mxu0 0.0
    %4967 = vmatpush1.xpose.msra.mxu0 0.0
    %4968 = vmatprep.subr.mxu0 0.0
    %4969 = vmatpush1.xpose.msra.mxu0 0.0
    %4970 = vmatprep.subr.mxu0 0.0
    %4971 = vmatpush1.xpose.msra.mxu0 0.0
    %4972 = vmatprep.subr.mxu0 0.0
    %4973 = vmatpush1.xpose.msra.mxu0 0.0
    %4974 = vmatprep.subr.mxu0 0.0
    %4975 = vmatpush1.xpose.msra.mxu0 0.0
    %4976 = vmatprep.subr.mxu0 0.0
    %4977 = vmatpush1.xpose.msra.mxu0 0.0
    %4978 = vmatprep.subr.mxu0 0.0
    %4979 = vmatpush1.xpose.msra.mxu0 0.0
    %4980 = vmatprep.subr.mxu0 0.0
    %4981 = vmatpush1.xpose.msra.mxu0 0.0
    %4982 = vmatprep.subr.mxu0 0.0
    %4983 = vmatpush1.xpose.msra.mxu0 0.0
    %4984 = vmatprep.subr.mxu0 0.0
    %4985 = vmatpush1.xpose.msra.mxu0 0.0
    %4986 = vmatprep.subr.mxu0 0.0
    %4987 = vmatpush1.xpose.msra.mxu0 0.0
    %4988 = vmatprep.subr.mxu0 0.0
    %4989 = vmatpush1.xpose.msra.mxu0 0.0
    %4990 = vmatprep.subr.mxu0 0.0
    %4991 = vmatpush1.xpose.msra.mxu0 0.0
    %4992 = vmatprep.subr.mxu0 0.0
    %4993 = vmatpush1.xpose.msra.mxu0 0.0
    %4994 = vmatprep.subr.mxu0 0.0
    %4995 = vmatpush1.xpose.msra.mxu0 0.0
    %4996 = vmatprep.subr.mxu0 0.0
    %4997 = vmatpush1.xpose.msra.mxu0 0.0
    %4998 = vmatprep.subr.mxu0 0.0
    %4999 = vmatpush1.xpose.msra.mxu0 0.0
    %5000 = vmatprep.subr.mxu0 0.0
    %5001 = vmatpush1.xpose.msra.mxu0 0.0
    %5002 = vmatprep.mubr.f32.mxu0 0.0
    %v5003 = vand.u32 %v4752, 4294901760
    %v5004 = vsub.f32 %v4752, %v5003
    %5005 = vmatmul.mubr.f32.gmra.mrb[0].mxu0 %v5004
    %v5006 = vpop.f32.mrb[0].mxu0
    %v5007 = vadd.f32 %v4925, %v5006
    %v5008 = vpop.f32.mrb[0].mxu0
    %5009 = vmatprep.mubr.f32.mxu0 0.0
    %v5010 = vand.u32 %v4754, 4294901760
    %v5011 = vsub.f32 %v4754, %v5010
    %5012 = vmatmul.mubr.f32.gmra.mrb[0].mxu0 %v5011
    %v5013 = vpop.f32.mrb[0].mxu0
    %v5014 = vadd.f32 %v4931, %v5013
    %v5015 = vpop.f32.mrb[0].mxu0
    %5016 = vdwg.mxu0
    %5017 = vmatprep.subr.mxu0 0.0
    %v5018 = vand.u32 %v4756, 4294901760
    %5019 = vmatpush1.xpose.msra.mxu0 %v5018
    %5020 = vmatprep.subr.mxu0 0.0
    %v5021 = vand.u32 %v4758, 4294901760
    %5022 = vmatpush1.xpose.msra.mxu0 %v5021
    %5023 = vmatprep.subr.mxu0 0.0
    %5024 = vmatpush1.xpose.msra.mxu0 0.0
    %5025 = vmatprep.subr.mxu0 0.0
    %5026 = vmatpush1.xpose.msra.mxu0 0.0
    %5027 = vmatprep.subr.mxu0 0.0
    %5028 = vmatpush1.xpose.msra.mxu0 0.0
    %5029 = vmatprep.subr.mxu0 0.0
    %5030 = vmatpush1.xpose.msra.mxu0 0.0
    %5031 = vmatprep.subr.mxu0 0.0
    %5032 = vmatpush1.xpose.msra.mxu0 0.0
    %5033 = vmatprep.subr.mxu0 0.0
    %5034 = vmatpush1.xpose.msra.mxu0 0.0
    %5035 = vmatprep.subr.mxu0 0.0
    %5036 = vmatpush1.xpose.msra.mxu0 0.0
    %5037 = vmatprep.subr.mxu0 0.0
    %5038 = vmatpush1.xpose.msra.mxu0 0.0
    %5039 = vmatprep.subr.mxu0 0.0
    %5040 = vmatpush1.xpose.msra.mxu0 0.0
    %5041 = vmatprep.subr.mxu0 0.0
    %5042 = vmatpush1.xpose.msra.mxu0 0.0
    %5043 = vmatprep.subr.mxu0 0.0
    %5044 = vmatpush1.xpose.msra.mxu0 0.0
    %5045 = vmatprep.subr.mxu0 0.0
    %5046 = vmatpush1.xpose.msra.mxu0 0.0
    %5047 = vmatprep.subr.mxu0 0.0
    %5048 = vmatpush1.xpose.msra.mxu0 0.0
    %5049 = vmatprep.subr.mxu0 0.0
    %5050 = vmatpush1.xpose.msra.mxu0 0.0
    %5051 = vmatprep.subr.mxu0 0.0
    %5052 = vmatpush1.xpose.msra.mxu0 0.0
    %5053 = vmatprep.subr.mxu0 0.0
    %5054 = vmatpush1.xpose.msra.mxu0 0.0
    %5055 = vmatprep.subr.mxu0 0.0
    %5056 = vmatpush1.xpose.msra.mxu0 0.0
    %5057 = vmatprep.subr.mxu0 0.0
    %5058 = vmatpush1.xpose.msra.mxu0 0.0
    %5059 = vmatprep.subr.mxu0 0.0
    %5060 = vmatpush1.xpose.msra.mxu0 0.0
    %5061 = vmatprep.subr.mxu0 0.0
    %5062 = vmatpush1.xpose.msra.mxu0 0.0
    %5063 = vmatprep.subr.mxu0 0.0
    %5064 = vmatpush1.xpose.msra.mxu0 0.0
    %5065 = vmatprep.subr.mxu0 0.0
    %5066 = vmatpush1.xpose.msra.mxu0 0.0
    %5067 = vmatprep.subr.mxu0 0.0
    %5068 = vmatpush1.xpose.msra.mxu0 0.0
    %5069 = vmatprep.subr.mxu0 0.0
    %5070 = vmatpush1.xpose.msra.mxu0 0.0
    %5071 = vmatprep.subr.mxu0 0.0
    %5072 = vmatpush1.xpose.msra.mxu0 0.0
    %5073 = vmatprep.subr.mxu0 0.0
    %5074 = vmatpush1.xpose.msra.mxu0 0.0
    %5075 = vmatprep.subr.mxu0 0.0
    %5076 = vmatpush1.xpose.msra.mxu0 0.0
    %5077 = vmatprep.subr.mxu0 0.0
    %5078 = vmatpush1.xpose.msra.mxu0 0.0
    %5079 = vmatprep.subr.mxu0 0.0
    %5080 = vmatpush1.xpose.msra.mxu0 0.0
    %5081 = vmatprep.subr.mxu0 0.0
    %5082 = vmatpush1.xpose.msra.mxu0 0.0
    %5083 = vmatprep.mubr.f32.mxu0 0.0
    %v5084 = vand.u32 %v4752, 4294901760
    %v5085 = vsub.f32 %v4752, %v5084
    %v5086 = vand.u32 %v5085, 4294901760
    %5087 = vmatmul.mubr.f32.gmra.mrb[0].mxu0 %v5086
    %v5088 = vpop.f32.mrb[0].mxu0
    %v5089 = vadd.f32 %v5007, %v5088
    %v5090 = vpop.f32.mrb[0].mxu0
    %5091 = vmatprep.mubr.f32.mxu0 0.0
    %v5092 = vand.u32 %v4754, 4294901760
    %v5093 = vsub.f32 %v4754, %v5092
    %v5094 = vand.u32 %v5093, 4294901760
    %5095 = vmatmul.mubr.f32.gmra.mrb[0].mxu0 %v5094
    %v5096 = vpop.f32.mrb[0].mxu0
    %v5097 = vadd.f32 %v5014, %v5096
    %v5098 = vpop.f32.mrb[0].mxu0
    %5099 = vdwg.mxu0
    %5100 = vmatprep.subr.mxu0 0.0
    %v5101 = vand.u32 %v4756, 4294901760
    %v5102 = vsub.f32 %v4756, %v5101
    %v5103 = vand.u32 %v5102, 4294901760
    %5104 = vmatpush1.xpose.msra.mxu0 %v5103
    %5105 = vmatprep.subr.mxu0 0.0
    %v5106 = vand.u32 %v4758, 4294901760
    %v5107 = vsub.f32 %v4758, %v5106
    %v5108 = vand.u32 %v5107, 4294901760
    %5109 = vmatpush1.xpose.msra.mxu0 %v5108
    %5110 = vmatprep.subr.mxu0 0.0
    %5111 = vmatpush1.xpose.msra.mxu0 0.0
    %5112 = vmatprep.subr.mxu0 0.0
    %5113 = vmatpush1.xpose.msra.mxu0 0.0
    %5114 = vmatprep.subr.mxu0 0.0
    %5115 = vmatpush1.xpose.msra.mxu0 0.0
    %5116 = vmatprep.subr.mxu0 0.0
    %5117 = vmatpush1.xpose.msra.mxu0 0.0
    %5118 = vmatprep.subr.mxu0 0.0
    %5119 = vmatpush1.xpose.msra.mxu0 0.0
    %5120 = vmatprep.subr.mxu0 0.0
    %5121 = vmatpush1.xpose.msra.mxu0 0.0
    %5122 = vmatprep.subr.mxu0 0.0
    %5123 = vmatpush1.xpose.msra.mxu0 0.0
    %5124 = vmatprep.subr.mxu0 0.0
    %5125 = vmatpush1.xpose.msra.mxu0 0.0
    %5126 = vmatprep.subr.mxu0 0.0
    %5127 = vmatpush1.xpose.msra.mxu0 0.0
    %5128 = vmatprep.subr.mxu0 0.0
    %5129 = vmatpush1.xpose.msra.mxu0 0.0
    %5130 = vmatprep.subr.mxu0 0.0
    %5131 = vmatpush1.xpose.msra.mxu0 0.0
    %5132 = vmatprep.subr.mxu0 0.0
    %5133 = vmatpush1.xpose.msra.mxu0 0.0
    %5134 = vmatprep.subr.mxu0 0.0
    %5135 = vmatpush1.xpose.msra.mxu0 0.0
    %5136 = vmatprep.subr.mxu0 0.0
    %5137 = vmatpush1.xpose.msra.mxu0 0.0
    %5138 = vmatprep.subr.mxu0 0.0
    %5139 = vmatpush1.xpose.msra.mxu0 0.0
    %5140 = vmatprep.subr.mxu0 0.0
    %5141 = vmatpush1.xpose.msra.mxu0 0.0
    %5142 = vmatprep.subr.mxu0 0.0
    %5143 = vmatpush1.xpose.msra.mxu0 0.0
    %5144 = vmatprep.subr.mxu0 0.0
    %5145 = vmatpush1.xpose.msra.mxu0 0.0
    %5146 = vmatprep.subr.mxu0 0.0
    %5147 = vmatpush1.xpose.msra.mxu0 0.0
    %5148 = vmatprep.subr.mxu0 0.0
    %5149 = vmatpush1.xpose.msra.mxu0 0.0
    %5150 = vmatprep.subr.mxu0 0.0
    %5151 = vmatpush1.xpose.msra.mxu0 0.0
    %5152 = vmatprep.subr.mxu0 0.0
    %5153 = vmatpush1.xpose.msra.mxu0 0.0
    %5154 = vmatprep.subr.mxu0 0.0
    %5155 = vmatpush1.xpose.msra.mxu0 0.0
    %5156 = vmatprep.subr.mxu0 0.0
    %5157 = vmatpush1.xpose.msra.mxu0 0.0
    %5158 = vmatprep.subr.mxu0 0.0
    %5159 = vmatpush1.xpose.msra.mxu0 0.0
    %5160 = vmatprep.subr.mxu0 0.0
    %5161 = vmatpush1.xpose.msra.mxu0 0.0
    %5162 = vmatprep.subr.mxu0 0.0
    %5163 = vmatpush1.xpose.msra.mxu0 0.0
    %5164 = vmatprep.subr.mxu0 0.0
    %5165 = vmatpush1.xpose.msra.mxu0 0.0
    %5166 = vmatprep.subr.mxu0 0.0
    %5167 = vmatpush1.xpose.msra.mxu0 0.0
    %5168 = vmatprep.subr.mxu0 0.0
    %5169 = vmatpush1.xpose.msra.mxu0 0.0
    %5170 = vmatprep.mubr.f32.mxu0 0.0
    %v5171 = vand.u32 %v4752, 4294901760
    %5172 = vmatmul.mubr.f32.gmra.mrb[0].mxu0 %v5171
    %v5173 = vpop.f32.mrb[0].mxu0
    %v5174 = vadd.f32 %v5089, %v5173
    %v5175 = vpop.f32.mrb[0].mxu0
    %5176 = vmatprep.mubr.f32.mxu0 0.0
    %v5177 = vand.u32 %v4754, 4294901760
    %5178 = vmatmul.mubr.f32.gmra.mrb[0].mxu0 %v5177
    %v5179 = vpop.f32.mrb[0].mxu0
    %v5180 = vadd.f32 %v5097, %v5179
    %v5181 = vpop.f32.mrb[0].mxu0
    %5182 = vdwg.mxu0
    %5183 = vmatprep.subr.mxu0 0.0
    %v5184 = vand.u32 %v4756, 4294901760
    %5185 = vmatpush1.xpose.msra.mxu0 %v5184
    %5186 = vmatprep.subr.mxu0 0.0
    %v5187 = vand.u32 %v4758, 4294901760
    %5188 = vmatpush1.xpose.msra.mxu0 %v5187
    %5189 = vmatprep.subr.mxu0 0.0
    %5190 = vmatpush1.xpose.msra.mxu0 0.0
    %5191 = vmatprep.subr.mxu0 0.0
    %5192 = vmatpush1.xpose.msra.mxu0 0.0
    %5193 = vmatprep.subr.mxu0 0.0
    %5194 = vmatpush1.xpose.msra.mxu0 0.0
    %5195 = vmatprep.subr.mxu0 0.0
    %5196 = vmatpush1.xpose.msra.mxu0 0.0
    %5197 = vmatprep.subr.mxu0 0.0
    %5198 = vmatpush1.xpose.msra.mxu0 0.0
    %5199 = vmatprep.subr.mxu0 0.0
    %5200 = vmatpush1.xpose.msra.mxu0 0.0
    %5201 = vmatprep.subr.mxu0 0.0
    %5202 = vmatpush1.xpose.msra.mxu0 0.0
    %5203 = vmatprep.subr.mxu0 0.0
    %5204 = vmatpush1.xpose.msra.mxu0 0.0
    %5205 = vmatprep.subr.mxu0 0.0
    %5206 = vmatpush1.xpose.msra.mxu0 0.0
    %5207 = vmatprep.subr.mxu0 0.0
    %5208 = vmatpush1.xpose.msra.mxu0 0.0
    %5209 = vmatprep.subr.mxu0 0.0
    %5210 = vmatpush1.xpose.msra.mxu0 0.0
    %5211 = vmatprep.subr.mxu0 0.0
    %5212 = vmatpush1.xpose.msra.mxu0 0.0
    %5213 = vmatprep.subr.mxu0 0.0
    %5214 = vmatpush1.xpose.msra.mxu0 0.0
    %5215 = vmatprep.subr.mxu0 0.0
    %5216 = vmatpush1.xpose.msra.mxu0 0.0
    %5217 = vmatprep.subr.mxu0 0.0
    %5218 = vmatpush1.xpose.msra.mxu0 0.0
    %5219 = vmatprep.subr.mxu0 0.0
    %5220 = vmatpush1.xpose.msra.mxu0 0.0
    %5221 = vmatprep.subr.mxu0 0.0
    %5222 = vmatpush1.xpose.msra.mxu0 0.0
    %5223 = vmatprep.subr.mxu0 0.0
    %5224 = vmatpush1.xpose.msra.mxu0 0.0
    %5225 = vmatprep.subr.mxu0 0.0
    %5226 = vmatpush1.xpose.msra.mxu0 0.0
    %5227 = vmatprep.subr.mxu0 0.0
    %5228 = vmatpush1.xpose.msra.mxu0 0.0
    %5229 = vmatprep.subr.mxu0 0.0
    %5230 = vmatpush1.xpose.msra.mxu0 0.0
    %5231 = vmatprep.subr.mxu0 0.0
    %5232 = vmatpush1.xpose.msra.mxu0 0.0
    %5233 = vmatprep.subr.mxu0 0.0
    %5234 = vmatpush1.xpose.msra.mxu0 0.0
    %5235 = vmatprep.subr.mxu0 0.0
    %5236 = vmatpush1.xpose.msra.mxu0 0.0
    %5237 = vmatprep.subr.mxu0 0.0
    %5238 = vmatpush1.xpose.msra.mxu0 0.0
    %5239 = vmatprep.subr.mxu0 0.0
    %5240 = vmatpush1.xpose.msra.mxu0 0.0
    %5241 = vmatprep.subr.mxu0 0.0
    %5242 = vmatpush1.xpose.msra.mxu0 0.0
    %5243 = vmatprep.subr.mxu0 0.0
    %5244 = vmatpush1.xpose.msra.mxu0 0.0
    %5245 = vmatprep.subr.mxu0 0.0
    %5246 = vmatpush1.xpose.msra.mxu0 0.0
    %5247 = vmatprep.subr.mxu0 0.0
    %5248 = vmatpush1.xpose.msra.mxu0 0.0
    %5249 = vmatprep.mubr.f32.mxu0 0.0
    %v5250 = vand.u32 %v4752, 4294901760
    %5251 = vmatmul.mubr.f32.gmra.mrb[0].mxu0 %v5250
    %v5252 = vpop.f32.mrb[0].mxu0
    %v5253 = vadd.f32 %v5174, %v5252
    %v5254 = vpop.f32.mrb[0].mxu0
    %5255 = vmatprep.mubr.f32.mxu0 0.0
    %v5256 = vand.u32 %v4754, 4294901760
    %5257 = vmatmul.mubr.f32.gmra.mrb[0].mxu0 %v5256
    %v5258 = vpop.f32.mrb[0].mxu0
    %v5259 = vadd.f32 %v5180, %v5258
    %v5260 = vpop.f32.mrb[0].mxu0
    %5261 = vdwg.mxu0
    %v5262 = vsel %vm2183, %v5253, -inf
    %5263 = vmax.xlane.f32.xlu0 %v5262
    %v5264 = vpop.xlane.xlu0 %5263
    %v5265 = vsel %vm2183, %v5259, -inf
    %5266 = vmax.xlane.f32.xlu0 %v5265
    %v5267 = vpop.xlane.xlu0 %5266
    %v5268 = vsub.f32 %v5253, %v5264
    %v5269 = vsub.f32 %v5259, %v5267
    %v5270 = vmul.f32 %v5268, 1.442695
    %v5271 = vpow.pop %v5270
    %v5272 = vmul.f32 %v5269, 1.442695
    %v5273 = vpow.pop %v5272
    %v5274 = vsel %vm2183, %v5271, 0.0
    %5275 = vadd.xlane.f32.xlu0 %v5274
    %v5276 = vpop.xlane.xlu0 %5275
    %v5277 = vsel %vm2183, %v5273, 0.0
    %5278 = vadd.xlane.f32.xlu0 %v5277
    %v5279 = vpop.xlane.xlu0 %5278
    %v5280 = vrcp.pop %v5276
    %v5281 = vmul.f32 %v5271, %v5280
    %v5282 = vrcp.pop %v5279
    %v5283 = vmul.f32 %v5273, %v5282
    %5286 = vrot.lane.b32.xlu0 %v1653, 120
    %v5287 = vpop.permute.xlu0 %5286
    %5288 = vrot.lane.b32.xlu0 %v1659, 120
    %v5289 = vpop.permute.xlu0 %5288
    %v5293 = vsel %vm2183, %v5281, 0
    %v5296 = vsel %vm2183, %v5283, 0
    %5298 = vmatprep.subr.mxu0 0.0
    %v5299 = vand.u32 %v5287, 4294901760
    %5300 = vmatpush1.msra.mxu0 %v5299
    %5301 = vmatprep.subr.mxu0 0.0
    %v5302 = vand.u32 %v5289, 4294901760
    %5303 = vmatpush1.msra.mxu0 %v5302
    %5304 = vmatprep.subr.mxu0 0.0
    %5305 = vmatpush1.msra.mxu0 0.0
    %5306 = vmatprep.subr.mxu0 0.0
    %5307 = vmatpush1.msra.mxu0 0.0
    %5308 = vmatprep.subr.mxu0 0.0
    %5309 = vmatpush1.msra.mxu0 0.0
    %5310 = vmatprep.subr.mxu0 0.0
    %5311 = vmatpush1.msra.mxu0 0.0
    %5312 = vmatprep.subr.mxu0 0.0
    %5313 = vmatpush1.msra.mxu0 0.0
    %5314 = vmatprep.subr.mxu0 0.0
    %5315 = vmatpush1.msra.mxu0 0.0
    %5316 = vmatprep.subr.mxu0 0.0
    %5317 = vmatpush1.msra.mxu0 0.0
    %5318 = vmatprep.subr.mxu0 0.0
    %5319 = vmatpush1.msra.mxu0 0.0
    %5320 = vmatprep.subr.mxu0 0.0
    %5321 = vmatpush1.msra.mxu0 0.0
    %5322 = vmatprep.subr.mxu0 0.0
    %5323 = vmatpush1.msra.mxu0 0.0
    %5324 = vmatprep.subr.mxu0 0.0
    %5325 = vmatpush1.msra.mxu0 0.0
    %5326 = vmatprep.subr.mxu0 0.0
    %5327 = vmatpush1.msra.mxu0 0.0
    %5328 = vmatprep.subr.mxu0 0.0
    %5329 = vmatpush1.msra.mxu0 0.0
    %5330 = vmatprep.subr.mxu0 0.0
    %5331 = vmatpush1.msra.mxu0 0.0
    %5332 = vmatprep.subr.mxu0 0.0
    %5333 = vmatpush1.msra.mxu0 0.0
    %5334 = vmatprep.subr.mxu0 0.0
    %5335 = vmatpush1.msra.mxu0 0.0
    %5336 = vmatprep.subr.mxu0 0.0
    %5337 = vmatpush1.msra.mxu0 0.0
    %5338 = vmatprep.subr.mxu0 0.0
    %5339 = vmatpush1.msra.mxu0 0.0
    %5340 = vmatprep.subr.mxu0 0.0
    %5341 = vmatpush1.msra.mxu0 0.0
    %5342 = vmatprep.subr.mxu0 0.0
    %5343 = vmatpush1.msra.mxu0 0.0
    %5344 = vmatprep.subr.mxu0 0.0
    %5345 = vmatpush1.msra.mxu0 0.0
    %5346 = vmatprep.subr.mxu0 0.0
    %5347 = vmatpush1.msra.mxu0 0.0
    %5348 = vmatprep.subr.mxu0 0.0
    %5349 = vmatpush1.msra.mxu0 0.0
    %5350 = vmatprep.subr.mxu0 0.0
    %5351 = vmatpush1.msra.mxu0 0.0
    %5352 = vmatprep.subr.mxu0 0.0
    %5353 = vmatpush1.msra.mxu0 0.0
    %5354 = vmatprep.subr.mxu0 0.0
    %5355 = vmatpush1.msra.mxu0 0.0
    %5356 = vmatprep.subr.mxu0 0.0
    %5357 = vmatpush1.msra.mxu0 0.0
    %5358 = vmatprep.subr.mxu0 0.0
    %5359 = vmatpush1.msra.mxu0 0.0
    %5360 = vmatprep.subr.mxu0 0.0
    %5361 = vmatpush1.msra.mxu0 0.0
    %5362 = vmatprep.subr.mxu0 0.0
    %5363 = vmatpush1.msra.mxu0 0.0
    %5364 = vmatprep.mubr.f32.mxu0 0.0
    %v5365 = vand.u32 %v5293, 4294901760
    %v5366 = vsub.f32 %v5293, %v5365
    %v5367 = vand.u32 %v5366, 4294901760
    %v5368 = vsub.f32 %v5366, %v5367
    %v5369 = vand.u32 %v5368, 4294901760
    %5370 = vmatmul.mubr.f32.gmra.mrb[0].mxu0 %v5369
    %v5371 = vpop.f32.mrb[0].mxu0
    %v5372 = vadd.f32 0.0, %v5371
    %v5373 = vpop.f32.mrb[0].mxu0
    %5374 = vmatprep.mubr.f32.mxu0 0.0
    %v5375 = vand.u32 %v5296, 4294901760
    %v5376 = vsub.f32 %v5296, %v5375
    %v5377 = vand.u32 %v5376, 4294901760
    %v5378 = vsub.f32 %v5376, %v5377
    %v5379 = vand.u32 %v5378, 4294901760
    %5380 = vmatmul.mubr.f32.gmra.mrb[0].mxu0 %v5379
    %v5381 = vpop.f32.mrb[0].mxu0
    %v5382 = vadd.f32 0.0, %v5381
    %v5383 = vpop.f32.mrb[0].mxu0
    %5384 = vdwg.mxu0
    %5385 = vmatprep.subr.mxu0 0.0
    %v5386 = vand.u32 %v5287, 4294901760
    %v5387 = vsub.f32 %v5287, %v5386
    %v5388 = vand.u32 %v5387, 4294901760
    %v5389 = vsub.f32 %v5387, %v5388
    %v5390 = vand.u32 %v5389, 4294901760
    %5391 = vmatpush1.msra.mxu0 %v5390
    %5392 = vmatprep.subr.mxu0 0.0
    %v5393 = vand.u32 %v5289, 4294901760
    %v5394 = vsub.f32 %v5289, %v5393
    %v5395 = vand.u32 %v5394, 4294901760
    %v5396 = vsub.f32 %v5394, %v5395
    %v5397 = vand.u32 %v5396, 4294901760
    %5398 = vmatpush1.msra.mxu0 %v5397
    %5399 = vmatprep.subr.mxu0 0.0
    %5400 = vmatpush1.msra.mxu0 0.0
    %5401 = vmatprep.subr.mxu0 0.0
    %5402 = vmatpush1.msra.mxu0 0.0
    %5403 = vmatprep.subr.mxu0 0.0
    %5404 = vmatpush1.msra.mxu0 0.0
    %5405 = vmatprep.subr.mxu0 0.0
    %5406 = vmatpush1.msra.mxu0 0.0
    %5407 = vmatprep.subr.mxu0 0.0
    %5408 = vmatpush1.msra.mxu0 0.0
    %5409 = vmatprep.subr.mxu0 0.0
    %5410 = vmatpush1.msra.mxu0 0.0
    %5411 = vmatprep.subr.mxu0 0.0
    %5412 = vmatpush1.msra.mxu0 0.0
    %5413 = vmatprep.subr.mxu0 0.0
    %5414 = vmatpush1.msra.mxu0 0.0
    %5415 = vmatprep.subr.mxu0 0.0
    %5416 = vmatpush1.msra.mxu0 0.0
    %5417 = vmatprep.subr.mxu0 0.0
    %5418 = vmatpush1.msra.mxu0 0.0
    %5419 = vmatprep.subr.mxu0 0.0
    %5420 = vmatpush1.msra.mxu0 0.0
    %5421 = vmatprep.subr.mxu0 0.0
    %5422 = vmatpush1.msra.mxu0 0.0
    %5423 = vmatprep.subr.mxu0 0.0
    %5424 = vmatpush1.msra.mxu0 0.0
    %5425 = vmatprep.subr.mxu0 0.0
    %5426 = vmatpush1.msra.mxu0 0.0
    %5427 = vmatprep.subr.mxu0 0.0
    %5428 = vmatpush1.msra.mxu0 0.0
    %5429 = vmatprep.subr.mxu0 0.0
    %5430 = vmatpush1.msra.mxu0 0.0
    %5431 = vmatprep.subr.mxu0 0.0
    %5432 = vmatpush1.msra.mxu0 0.0
    %5433 = vmatprep.subr.mxu0 0.0
    %5434 = vmatpush1.msra.mxu0 0.0
    %5435 = vmatprep.subr.mxu0 0.0
    %5436 = vmatpush1.msra.mxu0 0.0
    %5437 = vmatprep.subr.mxu0 0.0
    %5438 = vmatpush1.msra.mxu0 0.0
    %5439 = vmatprep.subr.mxu0 0.0
    %5440 = vmatpush1.msra.mxu0 0.0
    %5441 = vmatprep.subr.mxu0 0.0
    %5442 = vmatpush1.msra.mxu0 0.0
    %5443 = vmatprep.subr.mxu0 0.0
    %5444 = vmatpush1.msra.mxu0 0.0
    %5445 = vmatprep.subr.mxu0 0.0
    %5446 = vmatpush1.msra.mxu0 0.0
    %5447 = vmatprep.subr.mxu0 0.0
    %5448 = vmatpush1.msra.mxu0 0.0
    %5449 = vmatprep.subr.mxu0 0.0
    %5450 = vmatpush1.msra.mxu0 0.0
    %5451 = vmatprep.subr.mxu0 0.0
    %5452 = vmatpush1.msra.mxu0 0.0
    %5453 = vmatprep.subr.mxu0 0.0
    %5454 = vmatpush1.msra.mxu0 0.0
    %5455 = vmatprep.subr.mxu0 0.0
    %5456 = vmatpush1.msra.mxu0 0.0
    %5457 = vmatprep.subr.mxu0 0.0
    %5458 = vmatpush1.msra.mxu0 0.0
    %5459 = vmatprep.mubr.f32.mxu0 0.0
    %v5460 = vand.u32 %v5293, 4294901760
    %5461 = vmatmul.mubr.f32.gmra.mrb[0].mxu0 %v5460
    %v5462 = vpop.f32.mrb[0].mxu0
    %v5463 = vadd.f32 %v5372, %v5462
    %v5464 = vpop.f32.mrb[0].mxu0
    %5465 = vmatprep.mubr.f32.mxu0 0.0
    %v5466 = vand.u32 %v5296, 4294901760
    %5467 = vmatmul.mubr.f32.gmra.mrb[0].mxu0 %v5466
    %v5468 = vpop.f32.mrb[0].mxu0
    %v5469 = vadd.f32 %v5382, %v5468
    %v5470 = vpop.f32.mrb[0].mxu0
    %5471 = vdwg.mxu0
    %5472 = vmatprep.subr.mxu0 0.0
    %v5473 = vand.u32 %v5287, 4294901760
    %v5474 = vsub.f32 %v5287, %v5473
    %5475 = vmatpush1.msra.mxu0 %v5474
    %5476 = vmatprep.subr.mxu0 0.0
    %v5477 = vand.u32 %v5289, 4294901760
    %v5478 = vsub.f32 %v5289, %v5477
    %5479 = vmatpush1.msra.mxu0 %v5478
    %5480 = vmatprep.subr.mxu0 0.0
    %5481 = vmatpush1.msra.mxu0 0.0
    %5482 = vmatprep.subr.mxu0 0.0
    %5483 = vmatpush1.msra.mxu0 0.0
    %5484 = vmatprep.subr.mxu0 0.0
    %5485 = vmatpush1.msra.mxu0 0.0
    %5486 = vmatprep.subr.mxu0 0.0
    %5487 = vmatpush1.msra.mxu0 0.0
    %5488 = vmatprep.subr.mxu0 0.0
    %5489 = vmatpush1.msra.mxu0 0.0
    %5490 = vmatprep.subr.mxu0 0.0
    %5491 = vmatpush1.msra.mxu0 0.0
    %5492 = vmatprep.subr.mxu0 0.0
    %5493 = vmatpush1.msra.mxu0 0.0
    %5494 = vmatprep.subr.mxu0 0.0
    %5495 = vmatpush1.msra.mxu0 0.0
    %5496 = vmatprep.subr.mxu0 0.0
    %5497 = vmatpush1.msra.mxu0 0.0
    %5498 = vmatprep.subr.mxu0 0.0
    %5499 = vmatpush1.msra.mxu0 0.0
    %5500 = vmatprep.subr.mxu0 0.0
    %5501 = vmatpush1.msra.mxu0 0.0
    %5502 = vmatprep.subr.mxu0 0.0
    %5503 = vmatpush1.msra.mxu0 0.0
    %5504 = vmatprep.subr.mxu0 0.0
    %5505 = vmatpush1.msra.mxu0 0.0
    %5506 = vmatprep.subr.mxu0 0.0
    %5507 = vmatpush1.msra.mxu0 0.0
    %5508 = vmatprep.subr.mxu0 0.0
    %5509 = vmatpush1.msra.mxu0 0.0
    %5510 = vmatprep.subr.mxu0 0.0
    %5511 = vmatpush1.msra.mxu0 0.0
    %5512 = vmatprep.subr.mxu0 0.0
    %5513 = vmatpush1.msra.mxu0 0.0
    %5514 = vmatprep.subr.mxu0 0.0
    %5515 = vmatpush1.msra.mxu0 0.0
    %5516 = vmatprep.subr.mxu0 0.0
    %5517 = vmatpush1.msra.mxu0 0.0
    %5518 = vmatprep.subr.mxu0 0.0
    %5519 = vmatpush1.msra.mxu0 0.0
    %5520 = vmatprep.subr.mxu0 0.0
    %5521 = vmatpush1.msra.mxu0 0.0
    %5522 = vmatprep.subr.mxu0 0.0
    %5523 = vmatpush1.msra.mxu0 0.0
    %5524 = vmatprep.subr.mxu0 0.0
    %5525 = vmatpush1.msra.mxu0 0.0
    %5526 = vmatprep.subr.mxu0 0.0
    %5527 = vmatpush1.msra.mxu0 0.0
    %5528 = vmatprep.subr.mxu0 0.0
    %5529 = vmatpush1.msra.mxu0 0.0
    %5530 = vmatprep.subr.mxu0 0.0
    %5531 = vmatpush1.msra.mxu0 0.0
    %5532 = vmatprep.subr.mxu0 0.0
    %5533 = vmatpush1.msra.mxu0 0.0
    %5534 = vmatprep.subr.mxu0 0.0
    %5535 = vmatpush1.msra.mxu0 0.0
    %5536 = vmatprep.subr.mxu0 0.0
    %5537 = vmatpush1.msra.mxu0 0.0
    %5538 = vmatprep.subr.mxu0 0.0
    %5539 = vmatpush1.msra.mxu0 0.0
    %5540 = vmatprep.mubr.f32.mxu0 0.0
    %v5541 = vand.u32 %v5293, 4294901760
    %v5542 = vsub.f32 %v5293, %v5541
    %5543 = vmatmul.mubr.f32.gmra.mrb[0].mxu0 %v5542
    %v5544 = vpop.f32.mrb[0].mxu0
    %v5545 = vadd.f32 %v5463, %v5544
    %v5546 = vpop.f32.mrb[0].mxu0
    %5547 = vmatprep.mubr.f32.mxu0 0.0
    %v5548 = vand.u32 %v5296, 4294901760
    %v5549 = vsub.f32 %v5296, %v5548
    %5550 = vmatmul.mubr.f32.gmra.mrb[0].mxu0 %v5549
    %v5551 = vpop.f32.mrb[0].mxu0
    %v5552 = vadd.f32 %v5469, %v5551
    %v5553 = vpop.f32.mrb[0].mxu0
    %5554 = vdwg.mxu0
    %5555 = vmatprep.subr.mxu0 0.0
    %v5556 = vand.u32 %v5287, 4294901760
    %5557 = vmatpush1.msra.mxu0 %v5556
    %5558 = vmatprep.subr.mxu0 0.0
    %v5559 = vand.u32 %v5289, 4294901760
    %5560 = vmatpush1.msra.mxu0 %v5559
    %5561 = vmatprep.subr.mxu0 0.0
    %5562 = vmatpush1.msra.mxu0 0.0
    %5563 = vmatprep.subr.mxu0 0.0
    %5564 = vmatpush1.msra.mxu0 0.0
    %5565 = vmatprep.subr.mxu0 0.0
    %5566 = vmatpush1.msra.mxu0 0.0
    %5567 = vmatprep.subr.mxu0 0.0
    %5568 = vmatpush1.msra.mxu0 0.0
    %5569 = vmatprep.subr.mxu0 0.0
    %5570 = vmatpush1.msra.mxu0 0.0
    %5571 = vmatprep.subr.mxu0 0.0
    %5572 = vmatpush1.msra.mxu0 0.0
    %5573 = vmatprep.subr.mxu0 0.0
    %5574 = vmatpush1.msra.mxu0 0.0
    %5575 = vmatprep.subr.mxu0 0.0
    %5576 = vmatpush1.msra.mxu0 0.0
    %5577 = vmatprep.subr.mxu0 0.0
    %5578 = vmatpush1.msra.mxu0 0.0
    %5579 = vmatprep.subr.mxu0 0.0
    %5580 = vmatpush1.msra.mxu0 0.0
    %5581 = vmatprep.subr.mxu0 0.0
    %5582 = vmatpush1.msra.mxu0 0.0
    %5583 = vmatprep.subr.mxu0 0.0
    %5584 = vmatpush1.msra.mxu0 0.0
    %5585 = vmatprep.subr.mxu0 0.0
    %5586 = vmatpush1.msra.mxu0 0.0
    %5587 = vmatprep.subr.mxu0 0.0
    %5588 = vmatpush1.msra.mxu0 0.0
    %5589 = vmatprep.subr.mxu0 0.0
    %5590 = vmatpush1.msra.mxu0 0.0
    %5591 = vmatprep.subr.mxu0 0.0
    %5592 = vmatpush1.msra.mxu0 0.0
    %5593 = vmatprep.subr.mxu0 0.0
    %5594 = vmatpush1.msra.mxu0 0.0
    %5595 = vmatprep.subr.mxu0 0.0
    %5596 = vmatpush1.msra.mxu0 0.0
    %5597 = vmatprep.subr.mxu0 0.0
    %5598 = vmatpush1.msra.mxu0 0.0
    %5599 = vmatprep.subr.mxu0 0.0
    %5600 = vmatpush1.msra.mxu0 0.0
    %5601 = vmatprep.subr.mxu0 0.0
    %5602 = vmatpush1.msra.mxu0 0.0
    %5603 = vmatprep.subr.mxu0 0.0
    %5604 = vmatpush1.msra.mxu0 0.0
    %5605 = vmatprep.subr.mxu0 0.0
    %5606 = vmatpush1.msra.mxu0 0.0
    %5607 = vmatprep.subr.mxu0 0.0
    %5608 = vmatpush1.msra.mxu0 0.0
    %5609 = vmatprep.subr.mxu0 0.0
    %5610 = vmatpush1.msra.mxu0 0.0
    %5611 = vmatprep.subr.mxu0 0.0
    %5612 = vmatpush1.msra.mxu0 0.0
    %5613 = vmatprep.subr.mxu0 0.0
    %5614 = vmatpush1.msra.mxu0 0.0
    %5615 = vmatprep.subr.mxu0 0.0
    %5616 = vmatpush1.msra.mxu0 0.0
    %5617 = vmatprep.subr.mxu0 0.0
    %5618 = vmatpush1.msra.mxu0 0.0
    %5619 = vmatprep.subr.mxu0 0.0
    %5620 = vmatpush1.msra.mxu0 0.0
    %5621 = vmatprep.mubr.f32.mxu0 0.0
    %v5622 = vand.u32 %v5293, 4294901760
    %v5623 = vsub.f32 %v5293, %v5622
    %v5624 = vand.u32 %v5623, 4294901760
    %5625 = vmatmul.mubr.f32.gmra.mrb[0].mxu0 %v5624
    %v5626 = vpop.f32.mrb[0].mxu0
    %v5627 = vadd.f32 %v5545, %v5626
    %v5628 = vpop.f32.mrb[0].mxu0
    %5629 = vmatprep.mubr.f32.mxu0 0.0
    %v5630 = vand.u32 %v5296, 4294901760
    %v5631 = vsub.f32 %v5296, %v5630
    %v5632 = vand.u32 %v5631, 4294901760
    %5633 = vmatmul.mubr.f32.gmra.mrb[0].mxu0 %v5632
    %v5634 = vpop.f32.mrb[0].mxu0
    %v5635 = vadd.f32 %v5552, %v5634
    %v5636 = vpop.f32.mrb[0].mxu0
    %5637 = vdwg.mxu0
    %5638 = vmatprep.subr.mxu0 0.0
    %v5639 = vand.u32 %v5287, 4294901760
    %v5640 = vsub.f32 %v5287, %v5639
    %v5641 = vand.u32 %v5640, 4294901760
    %5642 = vmatpush1.msra.mxu0 %v5641
    %5643 = vmatprep.subr.mxu0 0.0
    %v5644 = vand.u32 %v5289, 4294901760
    %v5645 = vsub.f32 %v5289, %v5644
    %v5646 = vand.u32 %v5645, 4294901760
    %5647 = vmatpush1.msra.mxu0 %v5646
    %5648 = vmatprep.subr.mxu0 0.0
    %5649 = vmatpush1.msra.mxu0 0.0
    %5650 = vmatprep.subr.mxu0 0.0
    %5651 = vmatpush1.msra.mxu0 0.0
    %5652 = vmatprep.subr.mxu0 0.0
    %5653 = vmatpush1.msra.mxu0 0.0
    %5654 = vmatprep.subr.mxu0 0.0
    %5655 = vmatpush1.msra.mxu0 0.0
    %5656 = vmatprep.subr.mxu0 0.0
    %5657 = vmatpush1.msra.mxu0 0.0
    %5658 = vmatprep.subr.mxu0 0.0
    %5659 = vmatpush1.msra.mxu0 0.0
    %5660 = vmatprep.subr.mxu0 0.0
    %5661 = vmatpush1.msra.mxu0 0.0
    %5662 = vmatprep.subr.mxu0 0.0
    %5663 = vmatpush1.msra.mxu0 0.0
    %5664 = vmatprep.subr.mxu0 0.0
    %5665 = vmatpush1.msra.mxu0 0.0
    %5666 = vmatprep.subr.mxu0 0.0
    %5667 = vmatpush1.msra.mxu0 0.0
    %5668 = vmatprep.subr.mxu0 0.0
    %5669 = vmatpush1.msra.mxu0 0.0
    %5670 = vmatprep.subr.mxu0 0.0
    %5671 = vmatpush1.msra.mxu0 0.0
    %5672 = vmatprep.subr.mxu0 0.0
    %5673 = vmatpush1.msra.mxu0 0.0
    %5674 = vmatprep.subr.mxu0 0.0
    %5675 = vmatpush1.msra.mxu0 0.0
    %5676 = vmatprep.subr.mxu0 0.0
    %5677 = vmatpush1.msra.mxu0 0.0
    %5678 = vmatprep.subr.mxu0 0.0
    %5679 = vmatpush1.msra.mxu0 0.0
    %5680 = vmatprep.subr.mxu0 0.0
    %5681 = vmatpush1.msra.mxu0 0.0
    %5682 = vmatprep.subr.mxu0 0.0
    %5683 = vmatpush1.msra.mxu0 0.0
    %5684 = vmatprep.subr.mxu0 0.0
    %5685 = vmatpush1.msra.mxu0 0.0
    %5686 = vmatprep.subr.mxu0 0.0
    %5687 = vmatpush1.msra.mxu0 0.0
    %5688 = vmatprep.subr.mxu0 0.0
    %5689 = vmatpush1.msra.mxu0 0.0
    %5690 = vmatprep.subr.mxu0 0.0
    %5691 = vmatpush1.msra.mxu0 0.0
    %5692 = vmatprep.subr.mxu0 0.0
    %5693 = vmatpush1.msra.mxu0 0.0
    %5694 = vmatprep.subr.mxu0 0.0
    %5695 = vmatpush1.msra.mxu0 0.0
    %5696 = vmatprep.subr.mxu0 0.0
    %5697 = vmatpush1.msra.mxu0 0.0
    %5698 = vmatprep.subr.mxu0 0.0
    %5699 = vmatpush1.msra.mxu0 0.0
    %5700 = vmatprep.subr.mxu0 0.0
    %5701 = vmatpush1.msra.mxu0 0.0
    %5702 = vmatprep.subr.mxu0 0.0
    %5703 = vmatpush1.msra.mxu0 0.0
    %5704 = vmatprep.subr.mxu0 0.0
    %5705 = vmatpush1.msra.mxu0 0.0
    %5706 = vmatprep.subr.mxu0 0.0
    %5707 = vmatpush1.msra.mxu0 0.0
    %5708 = vmatprep.mubr.f32.mxu0 0.0
    %v5709 = vand.u32 %v5293, 4294901760
    %5710 = vmatmul.mubr.f32.gmra.mrb[0].mxu0 %v5709
    %v5711 = vpop.f32.mrb[0].mxu0
    %v5712 = vadd.f32 %v5627, %v5711
    %v5713 = vpop.f32.mrb[0].mxu0
    %5714 = vmatprep.mubr.f32.mxu0 0.0
    %v5715 = vand.u32 %v5296, 4294901760
    %5716 = vmatmul.mubr.f32.gmra.mrb[0].mxu0 %v5715
    %v5717 = vpop.f32.mrb[0].mxu0
    %v5718 = vadd.f32 %v5635, %v5717
    %v5719 = vpop.f32.mrb[0].mxu0
    %5720 = vdwg.mxu0
    %5721 = vmatprep.subr.mxu0 0.0
    %v5722 = vand.u32 %v5287, 4294901760
    %5723 = vmatpush1.msra.mxu0 %v5722
    %5724 = vmatprep.subr.mxu0 0.0
    %v5725 = vand.u32 %v5289, 4294901760
    %5726 = vmatpush1.msra.mxu0 %v5725
    %5727 = vmatprep.subr.mxu0 0.0
    %5728 = vmatpush1.msra.mxu0 0.0
    %5729 = vmatprep.subr.mxu0 0.0
    %5730 = vmatpush1.msra.mxu0 0.0
    %5731 = vmatprep.subr.mxu0 0.0
    %5732 = vmatpush1.msra.mxu0 0.0
    %5733 = vmatprep.subr.mxu0 0.0
    %5734 = vmatpush1.msra.mxu0 0.0
    %5735 = vmatprep.subr.mxu0 0.0
    %5736 = vmatpush1.msra.mxu0 0.0
    %5737 = vmatprep.subr.mxu0 0.0
    %5738 = vmatpush1.msra.mxu0 0.0
    %5739 = vmatprep.subr.mxu0 0.0
    %5740 = vmatpush1.msra.mxu0 0.0
    %5741 = vmatprep.subr.mxu0 0.0
    %5742 = vmatpush1.msra.mxu0 0.0
    %5743 = vmatprep.subr.mxu0 0.0
    %5744 = vmatpush1.msra.mxu0 0.0
    %5745 = vmatprep.subr.mxu0 0.0
    %5746 = vmatpush1.msra.mxu0 0.0
    %5747 = vmatprep.subr.mxu0 0.0
    %5748 = vmatpush1.msra.mxu0 0.0
    %5749 = vmatprep.subr.mxu0 0.0
    %5750 = vmatpush1.msra.mxu0 0.0
    %5751 = vmatprep.subr.mxu0 0.0
    %5752 = vmatpush1.msra.mxu0 0.0
    %5753 = vmatprep.subr.mxu0 0.0
    %5754 = vmatpush1.msra.mxu0 0.0
    %5755 = vmatprep.subr.mxu0 0.0
    %5756 = vmatpush1.msra.mxu0 0.0
    %5757 = vmatprep.subr.mxu0 0.0
    %5758 = vmatpush1.msra.mxu0 0.0
    %5759 = vmatprep.subr.mxu0 0.0
    %5760 = vmatpush1.msra.mxu0 0.0
    %5761 = vmatprep.subr.mxu0 0.0
    %5762 = vmatpush1.msra.mxu0 0.0
    %5763 = vmatprep.subr.mxu0 0.0
    %5764 = vmatpush1.msra.mxu0 0.0
    %5765 = vmatprep.subr.mxu0 0.0
    %5766 = vmatpush1.msra.mxu0 0.0
    %5767 = vmatprep.subr.mxu0 0.0
    %5768 = vmatpush1.msra.mxu0 0.0
    %5769 = vmatprep.subr.mxu0 0.0
    %5770 = vmatpush1.msra.mxu0 0.0
    %5771 = vmatprep.subr.mxu0 0.0
    %5772 = vmatpush1.msra.mxu0 0.0
    %5773 = vmatprep.subr.mxu0 0.0
    %5774 = vmatpush1.msra.mxu0 0.0
    %5775 = vmatprep.subr.mxu0 0.0
    %5776 = vmatpush1.msra.mxu0 0.0
    %5777 = vmatprep.subr.mxu0 0.0
    %5778 = vmatpush1.msra.mxu0 0.0
    %5779 = vmatprep.subr.mxu0 0.0
    %5780 = vmatpush1.msra.mxu0 0.0
    %5781 = vmatprep.subr.mxu0 0.0
    %5782 = vmatpush1.msra.mxu0 0.0
    %5783 = vmatprep.subr.mxu0 0.0
    %5784 = vmatpush1.msra.mxu0 0.0
    %5785 = vmatprep.subr.mxu0 0.0
    %5786 = vmatpush1.msra.mxu0 0.0
    %5787 = vmatprep.mubr.f32.mxu0 0.0
    %v5788 = vand.u32 %v5293, 4294901760
    %5789 = vmatmul.mubr.f32.gmra.mrb[0].mxu0 %v5788
    %v5790 = vpop.f32.mrb[0].mxu0
    %v5791 = vadd.f32 %v5712, %v5790
    %v5792 = vpop.f32.mrb[0].mxu0
    %5793 = vmatprep.mubr.f32.mxu0 0.0
    %v5794 = vand.u32 %v5296, 4294901760
    %5795 = vmatmul.mubr.f32.gmra.mrb[0].mxu0 %v5794
    %v5796 = vpop.f32.mrb[0].mxu0
    %v5797 = vadd.f32 %v5718, %v5796
    %v5798 = vpop.f32.mrb[0].mxu0
    %5799 = vdwg.mxu0
    %v5801 = vsel %vm1668, %v5791, 0
    %v5804 = vsel %vm1668, %v5797, 0
    %5806 = vmatprep.subr.mxu0 0.0
    %v5807 = vand.u32 %v1666, 4294901760
    %5808 = vmatpush1.msra.mxu0 %v5807
    %5809 = vmatprep.subr.mxu0 0.0
    %5810 = vmatpush1.msra.mxu0 0.0
    %5811 = vmatprep.subr.mxu0 0.0
    %5812 = vmatpush1.msra.mxu0 0.0
    %5813 = vmatprep.subr.mxu0 0.0
    %5814 = vmatpush1.msra.mxu0 0.0
    %5815 = vmatprep.subr.mxu0 0.0
    %5816 = vmatpush1.msra.mxu0 0.0
    %5817 = vmatprep.subr.mxu0 0.0
    %5818 = vmatpush1.msra.mxu0 0.0
    %5819 = vmatprep.subr.mxu0 0.0
    %5820 = vmatpush1.msra.mxu0 0.0
    %5821 = vmatprep.subr.mxu0 0.0
    %5822 = vmatpush1.msra.mxu0 0.0
    %5823 = vmatprep.subr.mxu0 0.0
    %5824 = vmatpush1.msra.mxu0 0.0
    %5825 = vmatprep.subr.mxu0 0.0
    %5826 = vmatpush1.msra.mxu0 0.0
    %5827 = vmatprep.subr.mxu0 0.0
    %5828 = vmatpush1.msra.mxu0 0.0
    %5829 = vmatprep.subr.mxu0 0.0
    %5830 = vmatpush1.msra.mxu0 0.0
    %5831 = vmatprep.subr.mxu0 0.0
    %5832 = vmatpush1.msra.mxu0 0.0
    %5833 = vmatprep.subr.mxu0 0.0
    %5834 = vmatpush1.msra.mxu0 0.0
    %5835 = vmatprep.subr.mxu0 0.0
    %5836 = vmatpush1.msra.mxu0 0.0
    %5837 = vmatprep.subr.mxu0 0.0
    %5838 = vmatpush1.msra.mxu0 0.0
    %5839 = vmatprep.subr.mxu0 0.0
    %5840 = vmatpush1.msra.mxu0 0.0
    %5841 = vmatprep.subr.mxu0 0.0
    %5842 = vmatpush1.msra.mxu0 0.0
    %5843 = vmatprep.subr.mxu0 0.0
    %5844 = vmatpush1.msra.mxu0 0.0
    %5845 = vmatprep.subr.mxu0 0.0
    %5846 = vmatpush1.msra.mxu0 0.0
    %5847 = vmatprep.subr.mxu0 0.0
    %5848 = vmatpush1.msra.mxu0 0.0
    %5849 = vmatprep.subr.mxu0 0.0
    %5850 = vmatpush1.msra.mxu0 0.0
    %5851 = vmatprep.subr.mxu0 0.0
    %5852 = vmatpush1.msra.mxu0 0.0
    %5853 = vmatprep.subr.mxu0 0.0
    %5854 = vmatpush1.msra.mxu0 0.0
    %5855 = vmatprep.subr.mxu0 0.0
    %5856 = vmatpush1.msra.mxu0 0.0
    %5857 = vmatprep.subr.mxu0 0.0
    %5858 = vmatpush1.msra.mxu0 0.0
    %5859 = vmatprep.subr.mxu0 0.0
    %5860 = vmatpush1.msra.mxu0 0.0
    %5861 = vmatprep.subr.mxu0 0.0
    %5862 = vmatpush1.msra.mxu0 0.0
    %5863 = vmatprep.subr.mxu0 0.0
    %5864 = vmatpush1.msra.mxu0 0.0
    %5865 = vmatprep.subr.mxu0 0.0
    %5866 = vmatpush1.msra.mxu0 0.0
    %5867 = vmatprep.subr.mxu0 0.0
    %5868 = vmatpush1.msra.mxu0 0.0
    %5869 = vmatprep.subr.mxu0 0.0
    %5870 = vmatpush1.msra.mxu0 0.0
    %5871 = vmatprep.mubr.f32.mxu0 0.0
    %v5872 = vand.u32 %v5801, 4294901760
    %v5873 = vsub.f32 %v5801, %v5872
    %v5874 = vand.u32 %v5873, 4294901760
    %v5875 = vsub.f32 %v5873, %v5874
    %v5876 = vand.u32 %v5875, 4294901760
    %5877 = vmatmul.mubr.f32.gmra.mrb[0].mxu0 %v5876
    %v5878 = vpop.f32.mrb[0].mxu0
    %v5879 = vadd.f32 0.0, %v5878
    %v5880 = vpop.f32.mrb[0].mxu0
    %5881 = vmatprep.mubr.f32.mxu0 0.0
    %v5882 = vand.u32 %v5804, 4294901760
    %v5883 = vsub.f32 %v5804, %v5882
    %v5884 = vand.u32 %v5883, 4294901760
    %v5885 = vsub.f32 %v5883, %v5884
    %v5886 = vand.u32 %v5885, 4294901760
    %5887 = vmatmul.mubr.f32.gmra.mrb[0].mxu0 %v5886
    %v5888 = vpop.f32.mrb[0].mxu0
    %v5889 = vadd.f32 0.0, %v5888
    %v5890 = vpop.f32.mrb[0].mxu0
    %5891 = vdwg.mxu0
    %5892 = vmatprep.subr.mxu0 0.0
    %v5893 = vand.u32 %v1666, 4294901760
    %v5894 = vsub.f32 %v1666, %v5893
    %v5895 = vand.u32 %v5894, 4294901760
    %v5896 = vsub.f32 %v5894, %v5895
    %v5897 = vand.u32 %v5896, 4294901760
    %5898 = vmatpush1.msra.mxu0 %v5897
    %5899 = vmatprep.subr.mxu0 0.0
    %5900 = vmatpush1.msra.mxu0 0.0
    %5901 = vmatprep.subr.mxu0 0.0
    %5902 = vmatpush1.msra.mxu0 0.0
    %5903 = vmatprep.subr.mxu0 0.0
    %5904 = vmatpush1.msra.mxu0 0.0
    %5905 = vmatprep.subr.mxu0 0.0
    %5906 = vmatpush1.msra.mxu0 0.0
    %5907 = vmatprep.subr.mxu0 0.0
    %5908 = vmatpush1.msra.mxu0 0.0
    %5909 = vmatprep.subr.mxu0 0.0
    %5910 = vmatpush1.msra.mxu0 0.0
    %5911 = vmatprep.subr.mxu0 0.0
    %5912 = vmatpush1.msra.mxu0 0.0
    %5913 = vmatprep.subr.mxu0 0.0
    %5914 = vmatpush1.msra.mxu0 0.0
    %5915 = vmatprep.subr.mxu0 0.0
    %5916 = vmatpush1.msra.mxu0 0.0
    %5917 = vmatprep.subr.mxu0 0.0
    %5918 = vmatpush1.msra.mxu0 0.0
    %5919 = vmatprep.subr.mxu0 0.0
    %5920 = vmatpush1.msra.mxu0 0.0
    %5921 = vmatprep.subr.mxu0 0.0
    %5922 = vmatpush1.msra.mxu0 0.0
    %5923 = vmatprep.subr.mxu0 0.0
    %5924 = vmatpush1.msra.mxu0 0.0
    %5925 = vmatprep.subr.mxu0 0.0
    %5926 = vmatpush1.msra.mxu0 0.0
    %5927 = vmatprep.subr.mxu0 0.0
    %5928 = vmatpush1.msra.mxu0 0.0
    %5929 = vmatprep.subr.mxu0 0.0
    %5930 = vmatpush1.msra.mxu0 0.0
    %5931 = vmatprep.subr.mxu0 0.0
    %5932 = vmatpush1.msra.mxu0 0.0
    %5933 = vmatprep.subr.mxu0 0.0
    %5934 = vmatpush1.msra.mxu0 0.0
    %5935 = vmatprep.subr.mxu0 0.0
    %5936 = vmatpush1.msra.mxu0 0.0
    %5937 = vmatprep.subr.mxu0 0.0
    %5938 = vmatpush1.msra.mxu0 0.0
    %5939 = vmatprep.subr.mxu0 0.0
    %5940 = vmatpush1.msra.mxu0 0.0
    %5941 = vmatprep.subr.mxu0 0.0
    %5942 = vmatpush1.msra.mxu0 0.0
    %5943 = vmatprep.subr.mxu0 0.0
    %5944 = vmatpush1.msra.mxu0 0.0
    %5945 = vmatprep.subr.mxu0 0.0
    %5946 = vmatpush1.msra.mxu0 0.0
    %5947 = vmatprep.subr.mxu0 0.0
    %5948 = vmatpush1.msra.mxu0 0.0
    %5949 = vmatprep.subr.mxu0 0.0
    %5950 = vmatpush1.msra.mxu0 0.0
    %5951 = vmatprep.subr.mxu0 0.0
    %5952 = vmatpush1.msra.mxu0 0.0
    %5953 = vmatprep.subr.mxu0 0.0
    %5954 = vmatpush1.msra.mxu0 0.0
    %5955 = vmatprep.subr.mxu0 0.0
    %5956 = vmatpush1.msra.mxu0 0.0
    %5957 = vmatprep.subr.mxu0 0.0
    %5958 = vmatpush1.msra.mxu0 0.0
    %5959 = vmatprep.subr.mxu0 0.0
    %5960 = vmatpush1.msra.mxu0 0.0
    %5961 = vmatprep.mubr.f32.mxu0 0.0
    %v5962 = vand.u32 %v5801, 4294901760
    %5963 = vmatmul.mubr.f32.gmra.mrb[0].mxu0 %v5962
    %v5964 = vpop.f32.mrb[0].mxu0
    %v5965 = vadd.f32 %v5879, %v5964
    %v5966 = vpop.f32.mrb[0].mxu0
    %5967 = vmatprep.mubr.f32.mxu0 0.0
    %v5968 = vand.u32 %v5804, 4294901760
    %5969 = vmatmul.mubr.f32.gmra.mrb[0].mxu0 %v5968
    %v5970 = vpop.f32.mrb[0].mxu0
    %v5971 = vadd.f32 %v5889, %v5970
    %v5972 = vpop.f32.mrb[0].mxu0
    %5973 = vdwg.mxu0
    %5974 = vmatprep.subr.mxu0 0.0
    %v5975 = vand.u32 %v1666, 4294901760
    %v5976 = vsub.f32 %v1666, %v5975
    %5977 = vmatpush1.msra.mxu0 %v5976
    %5978 = vmatprep.subr.mxu0 0.0
    %5979 = vmatpush1.msra.mxu0 0.0
    %5980 = vmatprep.subr.mxu0 0.0
    %5981 = vmatpush1.msra.mxu0 0.0
    %5982 = vmatprep.subr.mxu0 0.0
    %5983 = vmatpush1.msra.mxu0 0.0
    %5984 = vmatprep.subr.mxu0 0.0
    %5985 = vmatpush1.msra.mxu0 0.0
    %5986 = vmatprep.subr.mxu0 0.0
    %5987 = vmatpush1.msra.mxu0 0.0
    %5988 = vmatprep.subr.mxu0 0.0
    %5989 = vmatpush1.msra.mxu0 0.0
    %5990 = vmatprep.subr.mxu0 0.0
    %5991 = vmatpush1.msra.mxu0 0.0
    %5992 = vmatprep.subr.mxu0 0.0
    %5993 = vmatpush1.msra.mxu0 0.0
    %5994 = vmatprep.subr.mxu0 0.0
    %5995 = vmatpush1.msra.mxu0 0.0
    %5996 = vmatprep.subr.mxu0 0.0
    %5997 = vmatpush1.msra.mxu0 0.0
    %5998 = vmatprep.subr.mxu0 0.0
    %5999 = vmatpush1.msra.mxu0 0.0
    %6000 = vmatprep.subr.mxu0 0.0
    %6001 = vmatpush1.msra.mxu0 0.0
    %6002 = vmatprep.subr.mxu0 0.0
    %6003 = vmatpush1.msra.mxu0 0.0
    %6004 = vmatprep.subr.mxu0 0.0
    %6005 = vmatpush1.msra.mxu0 0.0
    %6006 = vmatprep.subr.mxu0 0.0
    %6007 = vmatpush1.msra.mxu0 0.0
    %6008 = vmatprep.subr.mxu0 0.0
    %6009 = vmatpush1.msra.mxu0 0.0
    %6010 = vmatprep.subr.mxu0 0.0
    %6011 = vmatpush1.msra.mxu0 0.0
    %6012 = vmatprep.subr.mxu0 0.0
    %6013 = vmatpush1.msra.mxu0 0.0
    %6014 = vmatprep.subr.mxu0 0.0
    %6015 = vmatpush1.msra.mxu0 0.0
    %6016 = vmatprep.subr.mxu0 0.0
    %6017 = vmatpush1.msra.mxu0 0.0
    %6018 = vmatprep.subr.mxu0 0.0
    %6019 = vmatpush1.msra.mxu0 0.0
    %6020 = vmatprep.subr.mxu0 0.0
    %6021 = vmatpush1.msra.mxu0 0.0
    %6022 = vmatprep.subr.mxu0 0.0
    %6023 = vmatpush1.msra.mxu0 0.0
    %6024 = vmatprep.subr.mxu0 0.0
    %6025 = vmatpush1.msra.mxu0 0.0
    %6026 = vmatprep.subr.mxu0 0.0
    %6027 = vmatpush1.msra.mxu0 0.0
    %6028 = vmatprep.subr.mxu0 0.0
    %6029 = vmatpush1.msra.mxu0 0.0
    %6030 = vmatprep.subr.mxu0 0.0
    %6031 = vmatpush1.msra.mxu0 0.0
    %6032 = vmatprep.subr.mxu0 0.0
    %6033 = vmatpush1.msra.mxu0 0.0
    %6034 = vmatprep.subr.mxu0 0.0
    %6035 = vmatpush1.msra.mxu0 0.0
    %6036 = vmatprep.subr.mxu0 0.0
    %6037 = vmatpush1.msra.mxu0 0.0
    %6038 = vmatprep.subr.mxu0 0.0
    %6039 = vmatpush1.msra.mxu0 0.0
    %6040 = vmatprep.mubr.f32.mxu0 0.0
    %v6041 = vand.u32 %v5801, 4294901760
    %v6042 = vsub.f32 %v5801, %v6041
    %6043 = vmatmul.mubr.f32.gmra.mrb[0].mxu0 %v6042
    %v6044 = vpop.f32.mrb[0].mxu0
    %v6045 = vadd.f32 %v5965, %v6044
    %v6046 = vpop.f32.mrb[0].mxu0
    %6047 = vmatprep.mubr.f32.mxu0 0.0
    %v6048 = vand.u32 %v5804, 4294901760
    %v6049 = vsub.f32 %v5804, %v6048
    %6050 = vmatmul.mubr.f32.gmra.mrb[0].mxu0 %v6049
    %v6051 = vpop.f32.mrb[0].mxu0
    %v6052 = vadd.f32 %v5971, %v6051
    %v6053 = vpop.f32.mrb[0].mxu0
    %6054 = vdwg.mxu0
    %6055 = vmatprep.subr.mxu0 0.0
    %v6056 = vand.u32 %v1666, 4294901760
    %6057 = vmatpush1.msra.mxu0 %v6056
    %6058 = vmatprep.subr.mxu0 0.0
    %6059 = vmatpush1.msra.mxu0 0.0
    %6060 = vmatprep.subr.mxu0 0.0
    %6061 = vmatpush1.msra.mxu0 0.0
    %6062 = vmatprep.subr.mxu0 0.0
    %6063 = vmatpush1.msra.mxu0 0.0
    %6064 = vmatprep.subr.mxu0 0.0
    %6065 = vmatpush1.msra.mxu0 0.0
    %6066 = vmatprep.subr.mxu0 0.0
    %6067 = vmatpush1.msra.mxu0 0.0
    %6068 = vmatprep.subr.mxu0 0.0
    %6069 = vmatpush1.msra.mxu0 0.0
    %6070 = vmatprep.subr.mxu0 0.0
    %6071 = vmatpush1.msra.mxu0 0.0
    %6072 = vmatprep.subr.mxu0 0.0
    %6073 = vmatpush1.msra.mxu0 0.0
    %6074 = vmatprep.subr.mxu0 0.0
    %6075 = vmatpush1.msra.mxu0 0.0
    %6076 = vmatprep.subr.mxu0 0.0
    %6077 = vmatpush1.msra.mxu0 0.0
    %6078 = vmatprep.subr.mxu0 0.0
    %6079 = vmatpush1.msra.mxu0 0.0
    %6080 = vmatprep.subr.mxu0 0.0
    %6081 = vmatpush1.msra.mxu0 0.0
    %6082 = vmatprep.subr.mxu0 0.0
    %6083 = vmatpush1.msra.mxu0 0.0
    %6084 = vmatprep.subr.mxu0 0.0
    %6085 = vmatpush1.msra.mxu0 0.0
    %6086 = vmatprep.subr.mxu0 0.0
    %6087 = vmatpush1.msra.mxu0 0.0
    %6088 = vmatprep.subr.mxu0 0.0
    %6089 = vmatpush1.msra.mxu0 0.0
    %6090 = vmatprep.subr.mxu0 0.0
    %6091 = vmatpush1.msra.mxu0 0.0
    %6092 = vmatprep.subr.mxu0 0.0
    %6093 = vmatpush1.msra.mxu0 0.0
    %6094 = vmatprep.subr.mxu0 0.0
    %6095 = vmatpush1.msra.mxu0 0.0
    %6096 = vmatprep.subr.mxu0 0.0
    %6097 = vmatpush1.msra.mxu0 0.0
    %6098 = vmatprep.subr.mxu0 0.0
    %6099 = vmatpush1.msra.mxu0 0.0
    %6100 = vmatprep.subr.mxu0 0.0
    %6101 = vmatpush1.msra.mxu0 0.0
    %6102 = vmatprep.subr.mxu0 0.0
    %6103 = vmatpush1.msra.mxu0 0.0
    %6104 = vmatprep.subr.mxu0 0.0
    %6105 = vmatpush1.msra.mxu0 0.0
    %6106 = vmatprep.subr.mxu0 0.0
    %6107 = vmatpush1.msra.mxu0 0.0
    %6108 = vmatprep.subr.mxu0 0.0
    %6109 = vmatpush1.msra.mxu0 0.0
    %6110 = vmatprep.subr.mxu0 0.0
    %6111 = vmatpush1.msra.mxu0 0.0
    %6112 = vmatprep.subr.mxu0 0.0
    %6113 = vmatpush1.msra.mxu0 0.0
    %6114 = vmatprep.subr.mxu0 0.0
    %6115 = vmatpush1.msra.mxu0 0.0
    %6116 = vmatprep.subr.mxu0 0.0
    %6117 = vmatpush1.msra.mxu0 0.0
    %6118 = vmatprep.subr.mxu0 0.0
    %6119 = vmatpush1.msra.mxu0 0.0
    %6120 = vmatprep.mubr.f32.mxu0 0.0
    %v6121 = vand.u32 %v5801, 4294901760
    %v6122 = vsub.f32 %v5801, %v6121
    %v6123 = vand.u32 %v6122, 4294901760
    %6124 = vmatmul.mubr.f32.gmra.mrb[0].mxu0 %v6123
    %v6125 = vpop.f32.mrb[0].mxu0
    %v6126 = vadd.f32 %v6045, %v6125
    %v6127 = vpop.f32.mrb[0].mxu0
    %6128 = vmatprep.mubr.f32.mxu0 0.0
    %v6129 = vand.u32 %v5804, 4294901760
    %v6130 = vsub.f32 %v5804, %v6129
    %v6131 = vand.u32 %v6130, 4294901760
    %6132 = vmatmul.mubr.f32.gmra.mrb[0].mxu0 %v6131
    %v6133 = vpop.f32.mrb[0].mxu0
    %v6134 = vadd.f32 %v6052, %v6133
    %v6135 = vpop.f32.mrb[0].mxu0
    %6136 = vdwg.mxu0
    %6137 = vmatprep.subr.mxu0 0.0
    %v6138 = vand.u32 %v1666, 4294901760
    %v6139 = vsub.f32 %v1666, %v6138
    %v6140 = vand.u32 %v6139, 4294901760
    %6141 = vmatpush1.msra.mxu0 %v6140
    %6142 = vmatprep.subr.mxu0 0.0
    %6143 = vmatpush1.msra.mxu0 0.0
    %6144 = vmatprep.subr.mxu0 0.0
    %6145 = vmatpush1.msra.mxu0 0.0
    %6146 = vmatprep.subr.mxu0 0.0
    %6147 = vmatpush1.msra.mxu0 0.0
    %6148 = vmatprep.subr.mxu0 0.0
    %6149 = vmatpush1.msra.mxu0 0.0
    %6150 = vmatprep.subr.mxu0 0.0
    %6151 = vmatpush1.msra.mxu0 0.0
    %6152 = vmatprep.subr.mxu0 0.0
    %6153 = vmatpush1.msra.mxu0 0.0
    %6154 = vmatprep.subr.mxu0 0.0
    %6155 = vmatpush1.msra.mxu0 0.0
    %6156 = vmatprep.subr.mxu0 0.0
    %6157 = vmatpush1.msra.mxu0 0.0
    %6158 = vmatprep.subr.mxu0 0.0
    %6159 = vmatpush1.msra.mxu0 0.0
    %6160 = vmatprep.subr.mxu0 0.0
    %6161 = vmatpush1.msra.mxu0 0.0
    %6162 = vmatprep.subr.mxu0 0.0
    %6163 = vmatpush1.msra.mxu0 0.0
    %6164 = vmatprep.subr.mxu0 0.0
    %6165 = vmatpush1.msra.mxu0 0.0
    %6166 = vmatprep.subr.mxu0 0.0
    %6167 = vmatpush1.msra.mxu0 0.0
    %6168 = vmatprep.subr.mxu0 0.0
    %6169 = vmatpush1.msra.mxu0 0.0
    %6170 = vmatprep.subr.mxu0 0.0
    %6171 = vmatpush1.msra.mxu0 0.0
    %6172 = vmatprep.subr.mxu0 0.0
    %6173 = vmatpush1.msra.mxu0 0.0
    %6174 = vmatprep.subr.mxu0 0.0
    %6175 = vmatpush1.msra.mxu0 0.0
    %6176 = vmatprep.subr.mxu0 0.0
    %6177 = vmatpush1.msra.mxu0 0.0
    %6178 = vmatprep.subr.mxu0 0.0
    %6179 = vmatpush1.msra.mxu0 0.0
    %6180 = vmatprep.subr.mxu0 0.0
    %6181 = vmatpush1.msra.mxu0 0.0
    %6182 = vmatprep.subr.mxu0 0.0
    %6183 = vmatpush1.msra.mxu0 0.0
    %6184 = vmatprep.subr.mxu0 0.0
    %6185 = vmatpush1.msra.mxu0 0.0
    %6186 = vmatprep.subr.mxu0 0.0
    %6187 = vmatpush1.msra.mxu0 0.0
    %6188 = vmatprep.subr.mxu0 0.0
    %6189 = vmatpush1.msra.mxu0 0.0
    %6190 = vmatprep.subr.mxu0 0.0
    %6191 = vmatpush1.msra.mxu0 0.0
    %6192 = vmatprep.subr.mxu0 0.0
    %6193 = vmatpush1.msra.mxu0 0.0
    %6194 = vmatprep.subr.mxu0 0.0
    %6195 = vmatpush1.msra.mxu0 0.0
    %6196 = vmatprep.subr.mxu0 0.0
    %6197 = vmatpush1.msra.mxu0 0.0
    %6198 = vmatprep.subr.mxu0 0.0
    %6199 = vmatpush1.msra.mxu0 0.0
    %6200 = vmatprep.subr.mxu0 0.0
    %6201 = vmatpush1.msra.mxu0 0.0
    %6202 = vmatprep.subr.mxu0 0.0
    %6203 = vmatpush1.msra.mxu0 0.0
    %6204 = vmatprep.mubr.f32.mxu0 0.0
    %v6205 = vand.u32 %v5801, 4294901760
    %6206 = vmatmul.mubr.f32.gmra.mrb[0].mxu0 %v6205
    %v6207 = vpop.f32.mrb[0].mxu0
    %v6208 = vadd.f32 %v6126, %v6207
    %v6209 = vpop.f32.mrb[0].mxu0
    %6210 = vmatprep.mubr.f32.mxu0 0.0
    %v6211 = vand.u32 %v5804, 4294901760
    %6212 = vmatmul.mubr.f32.gmra.mrb[0].mxu0 %v6211
    %v6213 = vpop.f32.mrb[0].mxu0
    %v6214 = vadd.f32 %v6134, %v6213
    %v6215 = vpop.f32.mrb[0].mxu0
    %6216 = vdwg.mxu0
    %6217 = vmatprep.subr.mxu0 0.0
    %v6218 = vand.u32 %v1666, 4294901760
    %6219 = vmatpush1.msra.mxu0 %v6218
    %6220 = vmatprep.subr.mxu0 0.0
    %6221 = vmatpush1.msra.mxu0 0.0
    %6222 = vmatprep.subr.mxu0 0.0
    %6223 = vmatpush1.msra.mxu0 0.0
    %6224 = vmatprep.subr.mxu0 0.0
    %6225 = vmatpush1.msra.mxu0 0.0
    %6226 = vmatprep.subr.mxu0 0.0
    %6227 = vmatpush1.msra.mxu0 0.0
    %6228 = vmatprep.subr.mxu0 0.0
    %6229 = vmatpush1.msra.mxu0 0.0
    %6230 = vmatprep.subr.mxu0 0.0
    %6231 = vmatpush1.msra.mxu0 0.0
    %6232 = vmatprep.subr.mxu0 0.0
    %6233 = vmatpush1.msra.mxu0 0.0
    %6234 = vmatprep.subr.mxu0 0.0
    %6235 = vmatpush1.msra.mxu0 0.0
    %6236 = vmatprep.subr.mxu0 0.0
    %6237 = vmatpush1.msra.mxu0 0.0
    %6238 = vmatprep.subr.mxu0 0.0
    %6239 = vmatpush1.msra.mxu0 0.0
    %6240 = vmatprep.subr.mxu0 0.0
    %6241 = vmatpush1.msra.mxu0 0.0
    %6242 = vmatprep.subr.mxu0 0.0
    %6243 = vmatpush1.msra.mxu0 0.0
    %6244 = vmatprep.subr.mxu0 0.0
    %6245 = vmatpush1.msra.mxu0 0.0
    %6246 = vmatprep.subr.mxu0 0.0
    %6247 = vmatpush1.msra.mxu0 0.0
    %6248 = vmatprep.subr.mxu0 0.0
    %6249 = vmatpush1.msra.mxu0 0.0
    %6250 = vmatprep.subr.mxu0 0.0
    %6251 = vmatpush1.msra.mxu0 0.0
    %6252 = vmatprep.subr.mxu0 0.0
    %6253 = vmatpush1.msra.mxu0 0.0
    %6254 = vmatprep.subr.mxu0 0.0
    %6255 = vmatpush1.msra.mxu0 0.0
    %6256 = vmatprep.subr.mxu0 0.0
    %6257 = vmatpush1.msra.mxu0 0.0
    %6258 = vmatprep.subr.mxu0 0.0
    %6259 = vmatpush1.msra.mxu0 0.0
    %6260 = vmatprep.subr.mxu0 0.0
    %6261 = vmatpush1.msra.mxu0 0.0
    %6262 = vmatprep.subr.mxu0 0.0
    %6263 = vmatpush1.msra.mxu0 0.0
    %6264 = vmatprep.subr.mxu0 0.0
    %6265 = vmatpush1.msra.mxu0 0.0
    %6266 = vmatprep.subr.mxu0 0.0
    %6267 = vmatpush1.msra.mxu0 0.0
    %6268 = vmatprep.subr.mxu0 0.0
    %6269 = vmatpush1.msra.mxu0 0.0
    %6270 = vmatprep.subr.mxu0 0.0
    %6271 = vmatpush1.msra.mxu0 0.0
    %6272 = vmatprep.subr.mxu0 0.0
    %6273 = vmatpush1.msra.mxu0 0.0
    %6274 = vmatprep.subr.mxu0 0.0
    %6275 = vmatpush1.msra.mxu0 0.0
    %6276 = vmatprep.subr.mxu0 0.0
    %6277 = vmatpush1.msra.mxu0 0.0
    %6278 = vmatprep.subr.mxu0 0.0
    %6279 = vmatpush1.msra.mxu0 0.0
    %6280 = vmatprep.subr.mxu0 0.0
    %6281 = vmatpush1.msra.mxu0 0.0
    %6282 = vmatprep.mubr.f32.mxu0 0.0
    %v6283 = vand.u32 %v5801, 4294901760
    %6284 = vmatmul.mubr.f32.gmra.mrb[0].mxu0 %v6283
    %v6285 = vpop.f32.mrb[0].mxu0
    %v6286 = vadd.f32 %v6208, %v6285
    %v6287 = vpop.f32.mrb[0].mxu0
    %6288 = vmatprep.mubr.f32.mxu0 0.0
    %v6289 = vand.u32 %v5804, 4294901760
    %6290 = vmatmul.mubr.f32.gmra.mrb[0].mxu0 %v6289
    %v6291 = vpop.f32.mrb[0].mxu0
    %v6292 = vadd.f32 %v6214, %v6291
    %v6293 = vpop.f32.mrb[0].mxu0
    %6294 = vdwg.mxu0
    %v6295 = vadd.f32 %v4735, %v6286
    %v6296 = vadd.f32 %v4741, %v6292
    %6297 = vrot.lane.b32.xlu0 %v575, 104
    %v6298 = vpop.permute.xlu0 %6297
    %6299 = vrot.lane.b32.xlu0 %v581, 104
    %v6300 = vpop.permute.xlu0 %6299
    %v6301 = vsel %vm1668, %v6298, 0
    %v6303 = vsel %vm1668, %v6300, 0
    %6305 = vmatprep.subr.mxu0 0.0
    %v6306 = vand.u32 %v4756, 4294901760
    %6307 = vmatpush1.xpose.msra.mxu0 %v6306
    %6308 = vmatprep.subr.mxu0 0.0
    %v6309 = vand.u32 %v4758, 4294901760
    %6310 = vmatpush1.xpose.msra.mxu0 %v6309
    %6311 = vmatprep.subr.mxu0 0.0
    %6312 = vmatpush1.xpose.msra.mxu0 0.0
    %6313 = vmatprep.subr.mxu0 0.0
    %6314 = vmatpush1.xpose.msra.mxu0 0.0
    %6315 = vmatprep.subr.mxu0 0.0
    %6316 = vmatpush1.xpose.msra.mxu0 0.0
    %6317 = vmatprep.subr.mxu0 0.0
    %6318 = vmatpush1.xpose.msra.mxu0 0.0
    %6319 = vmatprep.subr.mxu0 0.0
    %6320 = vmatpush1.xpose.msra.mxu0 0.0
    %6321 = vmatprep.subr.mxu0 0.0
    %6322 = vmatpush1.xpose.msra.mxu0 0.0
    %6323 = vmatprep.subr.mxu0 0.0
    %6324 = vmatpush1.xpose.msra.mxu0 0.0
    %6325 = vmatprep.subr.mxu0 0.0
    %6326 = vmatpush1.xpose.msra.mxu0 0.0
    %6327 = vmatprep.subr.mxu0 0.0
    %6328 = vmatpush1.xpose.msra.mxu0 0.0
    %6329 = vmatprep.subr.mxu0 0.0
    %6330 = vmatpush1.xpose.msra.mxu0 0.0
    %6331 = vmatprep.subr.mxu0 0.0
    %6332 = vmatpush1.xpose.msra.mxu0 0.0
    %6333 = vmatprep.subr.mxu0 0.0
    %6334 = vmatpush1.xpose.msra.mxu0 0.0
    %6335 = vmatprep.subr.mxu0 0.0
    %6336 = vmatpush1.xpose.msra.mxu0 0.0
    %6337 = vmatprep.subr.mxu0 0.0
    %6338 = vmatpush1.xpose.msra.mxu0 0.0
    %6339 = vmatprep.subr.mxu0 0.0
    %6340 = vmatpush1.xpose.msra.mxu0 0.0
    %6341 = vmatprep.subr.mxu0 0.0
    %6342 = vmatpush1.xpose.msra.mxu0 0.0
    %6343 = vmatprep.subr.mxu0 0.0
    %6344 = vmatpush1.xpose.msra.mxu0 0.0
    %6345 = vmatprep.subr.mxu0 0.0
    %6346 = vmatpush1.xpose.msra.mxu0 0.0
    %6347 = vmatprep.subr.mxu0 0.0
    %6348 = vmatpush1.xpose.msra.mxu0 0.0
    %6349 = vmatprep.subr.mxu0 0.0
    %6350 = vmatpush1.xpose.msra.mxu0 0.0
    %6351 = vmatprep.subr.mxu0 0.0
    %6352 = vmatpush1.xpose.msra.mxu0 0.0
    %6353 = vmatprep.subr.mxu0 0.0
    %6354 = vmatpush1.xpose.msra.mxu0 0.0
    %6355 = vmatprep.subr.mxu0 0.0
    %6356 = vmatpush1.xpose.msra.mxu0 0.0
    %6357 = vmatprep.subr.mxu0 0.0
    %6358 = vmatpush1.xpose.msra.mxu0 0.0
    %6359 = vmatprep.subr.mxu0 0.0
    %6360 = vmatpush1.xpose.msra.mxu0 0.0
    %6361 = vmatprep.subr.mxu0 0.0
    %6362 = vmatpush1.xpose.msra.mxu0 0.0
    %6363 = vmatprep.subr.mxu0 0.0
    %6364 = vmatpush1.xpose.msra.mxu0 0.0
    %6365 = vmatprep.subr.mxu0 0.0
    %6366 = vmatpush1.xpose.msra.mxu0 0.0
    %6367 = vmatprep.subr.mxu0 0.0
    %6368 = vmatpush1.xpose.msra.mxu0 0.0
    %6369 = vmatprep.subr.mxu0 0.0
    %6370 = vmatpush1.xpose.msra.mxu0 0.0
    %6371 = vmatprep.mubr.f32.mxu0 0.0
    %v6372 = vand.u32 %v6301, 4294901760
    %v6373 = vsub.f32 %v6301, %v6372
    %v6374 = vand.u32 %v6373, 4294901760
    %v6375 = vsub.f32 %v6373, %v6374
    %v6376 = vand.u32 %v6375, 4294901760
    %6377 = vmatmul.mubr.f32.gmra.mrb[0].mxu0 %v6376
    %v6378 = vpop.f32.mrb[0].mxu0
    %v6379 = vadd.f32 %v1662, %v6378
    %v6380 = vpop.f32.mrb[0].mxu0
    %6381 = vmatprep.mubr.f32.mxu0 0.0
    %v6382 = vand.u32 %v6303, 4294901760
    %v6383 = vsub.f32 %v6303, %v6382
    %v6384 = vand.u32 %v6383, 4294901760
    %v6385 = vsub.f32 %v6383, %v6384
    %v6386 = vand.u32 %v6385, 4294901760
    %6387 = vmatmul.mubr.f32.gmra.mrb[0].mxu0 %v6386
    %v6388 = vpop.f32.mrb[0].mxu0
    %v6389 = vadd.f32 %v1663, %v6388
    %v6390 = vpop.f32.mrb[0].mxu0
    %6391 = vdwg.mxu0
    %6392 = vmatprep.subr.mxu0 0.0
    %v6393 = vand.u32 %v4756, 4294901760
    %v6394 = vsub.f32 %v4756, %v6393
    %v6395 = vand.u32 %v6394, 4294901760
    %v6396 = vsub.f32 %v6394, %v6395
    %v6397 = vand.u32 %v6396, 4294901760
    %6398 = vmatpush1.xpose.msra.mxu0 %v6397
    %6399 = vmatprep.subr.mxu0 0.0
    %v6400 = vand.u32 %v4758, 4294901760
    %v6401 = vsub.f32 %v4758, %v6400
    %v6402 = vand.u32 %v6401, 4294901760
    %v6403 = vsub.f32 %v6401, %v6402
    %v6404 = vand.u32 %v6403, 4294901760
    %6405 = vmatpush1.xpose.msra.mxu0 %v6404
    %6406 = vmatprep.subr.mxu0 0.0
    %6407 = vmatpush1.xpose.msra.mxu0 0.0
    %6408 = vmatprep.subr.mxu0 0.0
    %6409 = vmatpush1.xpose.msra.mxu0 0.0
    %6410 = vmatprep.subr.mxu0 0.0
    %6411 = vmatpush1.xpose.msra.mxu0 0.0
    %6412 = vmatprep.subr.mxu0 0.0
    %6413 = vmatpush1.xpose.msra.mxu0 0.0
    %6414 = vmatprep.subr.mxu0 0.0
    %6415 = vmatpush1.xpose.msra.mxu0 0.0
    %6416 = vmatprep.subr.mxu0 0.0
    %6417 = vmatpush1.xpose.msra.mxu0 0.0
    %6418 = vmatprep.subr.mxu0 0.0
    %6419 = vmatpush1.xpose.msra.mxu0 0.0
    %6420 = vmatprep.subr.mxu0 0.0
    %6421 = vmatpush1.xpose.msra.mxu0 0.0
    %6422 = vmatprep.subr.mxu0 0.0
    %6423 = vmatpush1.xpose.msra.mxu0 0.0
    %6424 = vmatprep.subr.mxu0 0.0
    %6425 = vmatpush1.xpose.msra.mxu0 0.0
    %6426 = vmatprep.subr.mxu0 0.0
    %6427 = vmatpush1.xpose.msra.mxu0 0.0
    %6428 = vmatprep.subr.mxu0 0.0
    %6429 = vmatpush1.xpose.msra.mxu0 0.0
    %6430 = vmatprep.subr.mxu0 0.0
    %6431 = vmatpush1.xpose.msra.mxu0 0.0
    %6432 = vmatprep.subr.mxu0 0.0
    %6433 = vmatpush1.xpose.msra.mxu0 0.0
    %6434 = vmatprep.subr.mxu0 0.0
    %6435 = vmatpush1.xpose.msra.mxu0 0.0
    %6436 = vmatprep.subr.mxu0 0.0
    %6437 = vmatpush1.xpose.msra.mxu0 0.0
    %6438 = vmatprep.subr.mxu0 0.0
    %6439 = vmatpush1.xpose.msra.mxu0 0.0
    %6440 = vmatprep.subr.mxu0 0.0
    %6441 = vmatpush1.xpose.msra.mxu0 0.0
    %6442 = vmatprep.subr.mxu0 0.0
    %6443 = vmatpush1.xpose.msra.mxu0 0.0
    %6444 = vmatprep.subr.mxu0 0.0
    %6445 = vmatpush1.xpose.msra.mxu0 0.0
    %6446 = vmatprep.subr.mxu0 0.0
    %6447 = vmatpush1.xpose.msra.mxu0 0.0
    %6448 = vmatprep.subr.mxu0 0.0
    %6449 = vmatpush1.xpose.msra.mxu0 0.0
    %6450 = vmatprep.subr.mxu0 0.0
    %6451 = vmatpush1.xpose.msra.mxu0 0.0
    %6452 = vmatprep.subr.mxu0 0.0
    %6453 = vmatpush1.xpose.msra.mxu0 0.0
    %6454 = vmatprep.subr.mxu0 0.0
    %6455 = vmatpush1.xpose.msra.mxu0 0.0
    %6456 = vmatprep.subr.mxu0 0.0
    %6457 = vmatpush1.xpose.msra.mxu0 0.0
    %6458 = vmatprep.subr.mxu0 0.0
    %6459 = vmatpush1.xpose.msra.mxu0 0.0
    %6460 = vmatprep.subr.mxu0 0.0
    %6461 = vmatpush1.xpose.msra.mxu0 0.0
    %6462 = vmatprep.subr.mxu0 0.0
    %6463 = vmatpush1.xpose.msra.mxu0 0.0
    %6464 = vmatprep.subr.mxu0 0.0
    %6465 = vmatpush1.xpose.msra.mxu0 0.0
    %6466 = vmatprep.mubr.f32.mxu0 0.0
    %v6467 = vand.u32 %v6301, 4294901760
    %6468 = vmatmul.mubr.f32.gmra.mrb[0].mxu0 %v6467
    %v6469 = vpop.f32.mrb[0].mxu0
    %v6470 = vadd.f32 %v6379, %v6469
    %v6471 = vpop.f32.mrb[0].mxu0
    %6472 = vmatprep.mubr.f32.mxu0 0.0
    %v6473 = vand.u32 %v6303, 4294901760
    %6474 = vmatmul.mubr.f32.gmra.mrb[0].mxu0 %v6473
    %v6475 = vpop.f32.mrb[0].mxu0
    %v6476 = vadd.f32 %v6389, %v6475
    %v6477 = vpop.f32.mrb[0].mxu0
    %6478 = vdwg.mxu0
    %6479 = vmatprep.subr.mxu0 0.0
    %v6480 = vand.u32 %v4756, 4294901760
    %v6481 = vsub.f32 %v4756, %v6480
    %6482 = vmatpush1.xpose.msra.mxu0 %v6481
    %6483 = vmatprep.subr.mxu0 0.0
    %v6484 = vand.u32 %v4758, 4294901760
    %v6485 = vsub.f32 %v4758, %v6484
    %6486 = vmatpush1.xpose.msra.mxu0 %v6485
    %6487 = vmatprep.subr.mxu0 0.0
    %6488 = vmatpush1.xpose.msra.mxu0 0.0
    %6489 = vmatprep.subr.mxu0 0.0
    %6490 = vmatpush1.xpose.msra.mxu0 0.0
    %6491 = vmatprep.subr.mxu0 0.0
    %6492 = vmatpush1.xpose.msra.mxu0 0.0
    %6493 = vmatprep.subr.mxu0 0.0
    %6494 = vmatpush1.xpose.msra.mxu0 0.0
    %6495 = vmatprep.subr.mxu0 0.0
    %6496 = vmatpush1.xpose.msra.mxu0 0.0
    %6497 = vmatprep.subr.mxu0 0.0
    %6498 = vmatpush1.xpose.msra.mxu0 0.0
    %6499 = vmatprep.subr.mxu0 0.0
    %6500 = vmatpush1.xpose.msra.mxu0 0.0
    %6501 = vmatprep.subr.mxu0 0.0
    %6502 = vmatpush1.xpose.msra.mxu0 0.0
    %6503 = vmatprep.subr.mxu0 0.0
    %6504 = vmatpush1.xpose.msra.mxu0 0.0
    %6505 = vmatprep.subr.mxu0 0.0
    %6506 = vmatpush1.xpose.msra.mxu0 0.0
    %6507 = vmatprep.subr.mxu0 0.0
    %6508 = vmatpush1.xpose.msra.mxu0 0.0
    %6509 = vmatprep.subr.mxu0 0.0
    %6510 = vmatpush1.xpose.msra.mxu0 0.0
    %6511 = vmatprep.subr.mxu0 0.0
    %6512 = vmatpush1.xpose.msra.mxu0 0.0
    %6513 = vmatprep.subr.mxu0 0.0
    %6514 = vmatpush1.xpose.msra.mxu0 0.0
    %6515 = vmatprep.subr.mxu0 0.0
    %6516 = vmatpush1.xpose.msra.mxu0 0.0
    %6517 = vmatprep.subr.mxu0 0.0
    %6518 = vmatpush1.xpose.msra.mxu0 0.0
    %6519 = vmatprep.subr.mxu0 0.0
    %6520 = vmatpush1.xpose.msra.mxu0 0.0
    %6521 = vmatprep.subr.mxu0 0.0
    %6522 = vmatpush1.xpose.msra.mxu0 0.0
    %6523 = vmatprep.subr.mxu0 0.0
    %6524 = vmatpush1.xpose.msra.mxu0 0.0
    %6525 = vmatprep.subr.mxu0 0.0
    %6526 = vmatpush1.xpose.msra.mxu0 0.0
    %6527 = vmatprep.subr.mxu0 0.0
    %6528 = vmatpush1.xpose.msra.mxu0 0.0
    %6529 = vmatprep.subr.mxu0 0.0
    %6530 = vmatpush1.xpose.msra.mxu0 0.0
    %6531 = vmatprep.subr.mxu0 0.0
    %6532 = vmatpush1.xpose.msra.mxu0 0.0
    %6533 = vmatprep.subr.mxu0 0.0
    %6534 = vmatpush1.xpose.msra.mxu0 0.0
    %6535 = vmatprep.subr.mxu0 0.0
    %6536 = vmatpush1.xpose.msra.mxu0 0.0
    %6537 = vmatprep.subr.mxu0 0.0
    %6538 = vmatpush1.xpose.msra.mxu0 0.0
    %6539 = vmatprep.subr.mxu0 0.0
    %6540 = vmatpush1.xpose.msra.mxu0 0.0
    %6541 = vmatprep.subr.mxu0 0.0
    %6542 = vmatpush1.xpose.msra.mxu0 0.0
    %6543 = vmatprep.subr.mxu0 0.0
    %6544 = vmatpush1.xpose.msra.mxu0 0.0
    %6545 = vmatprep.subr.mxu0 0.0
    %6546 = vmatpush1.xpose.msra.mxu0 0.0
    %6547 = vmatprep.mubr.f32.mxu0 0.0
    %v6548 = vand.u32 %v6301, 4294901760
    %v6549 = vsub.f32 %v6301, %v6548
    %6550 = vmatmul.mubr.f32.gmra.mrb[0].mxu0 %v6549
    %v6551 = vpop.f32.mrb[0].mxu0
    %v6552 = vadd.f32 %v6470, %v6551
    %v6553 = vpop.f32.mrb[0].mxu0
    %6554 = vmatprep.mubr.f32.mxu0 0.0
    %v6555 = vand.u32 %v6303, 4294901760
    %v6556 = vsub.f32 %v6303, %v6555
    %6557 = vmatmul.mubr.f32.gmra.mrb[0].mxu0 %v6556
    %v6558 = vpop.f32.mrb[0].mxu0
    %v6559 = vadd.f32 %v6476, %v6558
    %v6560 = vpop.f32.mrb[0].mxu0
    %6561 = vdwg.mxu0
    %6562 = vmatprep.subr.mxu0 0.0
    %v6563 = vand.u32 %v4756, 4294901760
    %6564 = vmatpush1.xpose.msra.mxu0 %v6563
    %6565 = vmatprep.subr.mxu0 0.0
    %v6566 = vand.u32 %v4758, 4294901760
    %6567 = vmatpush1.xpose.msra.mxu0 %v6566
    %6568 = vmatprep.subr.mxu0 0.0
    %6569 = vmatpush1.xpose.msra.mxu0 0.0
    %6570 = vmatprep.subr.mxu0 0.0
    %6571 = vmatpush1.xpose.msra.mxu0 0.0
    %6572 = vmatprep.subr.mxu0 0.0
    %6573 = vmatpush1.xpose.msra.mxu0 0.0
    %6574 = vmatprep.subr.mxu0 0.0
    %6575 = vmatpush1.xpose.msra.mxu0 0.0
    %6576 = vmatprep.subr.mxu0 0.0
    %6577 = vmatpush1.xpose.msra.mxu0 0.0
    %6578 = vmatprep.subr.mxu0 0.0
    %6579 = vmatpush1.xpose.msra.mxu0 0.0
    %6580 = vmatprep.subr.mxu0 0.0
    %6581 = vmatpush1.xpose.msra.mxu0 0.0
    %6582 = vmatprep.subr.mxu0 0.0
    %6583 = vmatpush1.xpose.msra.mxu0 0.0
    %6584 = vmatprep.subr.mxu0 0.0
    %6585 = vmatpush1.xpose.msra.mxu0 0.0
    %6586 = vmatprep.subr.mxu0 0.0
    %6587 = vmatpush1.xpose.msra.mxu0 0.0
    %6588 = vmatprep.subr.mxu0 0.0
    %6589 = vmatpush1.xpose.msra.mxu0 0.0
    %6590 = vmatprep.subr.mxu0 0.0
    %6591 = vmatpush1.xpose.msra.mxu0 0.0
    %6592 = vmatprep.subr.mxu0 0.0
    %6593 = vmatpush1.xpose.msra.mxu0 0.0
    %6594 = vmatprep.subr.mxu0 0.0
    %6595 = vmatpush1.xpose.msra.mxu0 0.0
    %6596 = vmatprep.subr.mxu0 0.0
    %6597 = vmatpush1.xpose.msra.mxu0 0.0
    %6598 = vmatprep.subr.mxu0 0.0
    %6599 = vmatpush1.xpose.msra.mxu0 0.0
    %6600 = vmatprep.subr.mxu0 0.0
    %6601 = vmatpush1.xpose.msra.mxu0 0.0
    %6602 = vmatprep.subr.mxu0 0.0
    %6603 = vmatpush1.xpose.msra.mxu0 0.0
    %6604 = vmatprep.subr.mxu0 0.0
    %6605 = vmatpush1.xpose.msra.mxu0 0.0
    %6606 = vmatprep.subr.mxu0 0.0
    %6607 = vmatpush1.xpose.msra.mxu0 0.0
    %6608 = vmatprep.subr.mxu0 0.0
    %6609 = vmatpush1.xpose.msra.mxu0 0.0
    %6610 = vmatprep.subr.mxu0 0.0
    %6611 = vmatpush1.xpose.msra.mxu0 0.0
    %6612 = vmatprep.subr.mxu0 0.0
    %6613 = vmatpush1.xpose.msra.mxu0 0.0
    %6614 = vmatprep.subr.mxu0 0.0
    %6615 = vmatpush1.xpose.msra.mxu0 0.0
    %6616 = vmatprep.subr.mxu0 0.0
    %6617 = vmatpush1.xpose.msra.mxu0 0.0
    %6618 = vmatprep.subr.mxu0 0.0
    %6619 = vmatpush1.xpose.msra.mxu0 0.0
    %6620 = vmatprep.subr.mxu0 0.0
    %6621 = vmatpush1.xpose.msra.mxu0 0.0
    %6622 = vmatprep.subr.mxu0 0.0
    %6623 = vmatpush1.xpose.msra.mxu0 0.0
    %6624 = vmatprep.subr.mxu0 0.0
    %6625 = vmatpush1.xpose.msra.mxu0 0.0
    %6626 = vmatprep.subr.mxu0 0.0
    %6627 = vmatpush1.xpose.msra.mxu0 0.0
    %6628 = vmatprep.mubr.f32.mxu0 0.0
    %v6629 = vand.u32 %v6301, 4294901760
    %v6630 = vsub.f32 %v6301, %v6629
    %v6631 = vand.u32 %v6630, 4294901760
    %6632 = vmatmul.mubr.f32.gmra.mrb[0].mxu0 %v6631
    %v6633 = vpop.f32.mrb[0].mxu0
    %v6634 = vadd.f32 %v6552, %v6633
    %v6635 = vpop.f32.mrb[0].mxu0
    %6636 = vmatprep.mubr.f32.mxu0 0.0
    %v6637 = vand.u32 %v6303, 4294901760
    %v6638 = vsub.f32 %v6303, %v6637
    %v6639 = vand.u32 %v6638, 4294901760
    %6640 = vmatmul.mubr.f32.gmra.mrb[0].mxu0 %v6639
    %v6641 = vpop.f32.mrb[0].mxu0
    %v6642 = vadd.f32 %v6559, %v6641
    %v6643 = vpop.f32.mrb[0].mxu0
    %6644 = vdwg.mxu0
    %6645 = vmatprep.subr.mxu0 0.0
    %v6646 = vand.u32 %v4756, 4294901760
    %v6647 = vsub.f32 %v4756, %v6646
    %v6648 = vand.u32 %v6647, 4294901760
    %6649 = vmatpush1.xpose.msra.mxu0 %v6648
    %6650 = vmatprep.subr.mxu0 0.0
    %v6651 = vand.u32 %v4758, 4294901760
    %v6652 = vsub.f32 %v4758, %v6651
    %v6653 = vand.u32 %v6652, 4294901760
    %6654 = vmatpush1.xpose.msra.mxu0 %v6653
    %6655 = vmatprep.subr.mxu0 0.0
    %6656 = vmatpush1.xpose.msra.mxu0 0.0
    %6657 = vmatprep.subr.mxu0 0.0
    %6658 = vmatpush1.xpose.msra.mxu0 0.0
    %6659 = vmatprep.subr.mxu0 0.0
    %6660 = vmatpush1.xpose.msra.mxu0 0.0
    %6661 = vmatprep.subr.mxu0 0.0
    %6662 = vmatpush1.xpose.msra.mxu0 0.0
    %6663 = vmatprep.subr.mxu0 0.0
    %6664 = vmatpush1.xpose.msra.mxu0 0.0
    %6665 = vmatprep.subr.mxu0 0.0
    %6666 = vmatpush1.xpose.msra.mxu0 0.0
    %6667 = vmatprep.subr.mxu0 0.0
    %6668 = vmatpush1.xpose.msra.mxu0 0.0
    %6669 = vmatprep.subr.mxu0 0.0
    %6670 = vmatpush1.xpose.msra.mxu0 0.0
    %6671 = vmatprep.subr.mxu0 0.0
    %6672 = vmatpush1.xpose.msra.mxu0 0.0
    %6673 = vmatprep.subr.mxu0 0.0
    %6674 = vmatpush1.xpose.msra.mxu0 0.0
    %6675 = vmatprep.subr.mxu0 0.0
    %6676 = vmatpush1.xpose.msra.mxu0 0.0
    %6677 = vmatprep.subr.mxu0 0.0
    %6678 = vmatpush1.xpose.msra.mxu0 0.0
    %6679 = vmatprep.subr.mxu0 0.0
    %6680 = vmatpush1.xpose.msra.mxu0 0.0
    %6681 = vmatprep.subr.mxu0 0.0
    %6682 = vmatpush1.xpose.msra.mxu0 0.0
    %6683 = vmatprep.subr.mxu0 0.0
    %6684 = vmatpush1.xpose.msra.mxu0 0.0
    %6685 = vmatprep.subr.mxu0 0.0
    %6686 = vmatpush1.xpose.msra.mxu0 0.0
    %6687 = vmatprep.subr.mxu0 0.0
    %6688 = vmatpush1.xpose.msra.mxu0 0.0
    %6689 = vmatprep.subr.mxu0 0.0
    %6690 = vmatpush1.xpose.msra.mxu0 0.0
    %6691 = vmatprep.subr.mxu0 0.0
    %6692 = vmatpush1.xpose.msra.mxu0 0.0
    %6693 = vmatprep.subr.mxu0 0.0
    %6694 = vmatpush1.xpose.msra.mxu0 0.0
    %6695 = vmatprep.subr.mxu0 0.0
    %6696 = vmatpush1.xpose.msra.mxu0 0.0
    %6697 = vmatprep.subr.mxu0 0.0
    %6698 = vmatpush1.xpose.msra.mxu0 0.0
    %6699 = vmatprep.subr.mxu0 0.0
    %6700 = vmatpush1.xpose.msra.mxu0 0.0
    %6701 = vmatprep.subr.mxu0 0.0
    %6702 = vmatpush1.xpose.msra.mxu0 0.0
    %6703 = vmatprep.subr.mxu0 0.0
    %6704 = vmatpush1.xpose.msra.mxu0 0.0
    %6705 = vmatprep.subr.mxu0 0.0
    %6706 = vmatpush1.xpose.msra.mxu0 0.0
    %6707 = vmatprep.subr.mxu0 0.0
    %6708 = vmatpush1.xpose.msra.mxu0 0.0
    %6709 = vmatprep.subr.mxu0 0.0
    %6710 = vmatpush1.xpose.msra.mxu0 0.0
    %6711 = vmatprep.subr.mxu0 0.0
    %6712 = vmatpush1.xpose.msra.mxu0 0.0
    %6713 = vmatprep.subr.mxu0 0.0
    %6714 = vmatpush1.xpose.msra.mxu0 0.0
    %6715 = vmatprep.mubr.f32.mxu0 0.0
    %v6716 = vand.u32 %v6301, 4294901760
    %6717 = vmatmul.mubr.f32.gmra.mrb[0].mxu0 %v6716
    %v6718 = vpop.f32.mrb[0].mxu0
    %v6719 = vadd.f32 %v6634, %v6718
    %v6720 = vpop.f32.mrb[0].mxu0
    %6721 = vmatprep.mubr.f32.mxu0 0.0
    %v6722 = vand.u32 %v6303, 4294901760
    %6723 = vmatmul.mubr.f32.gmra.mrb[0].mxu0 %v6722
    %v6724 = vpop.f32.mrb[0].mxu0
    %v6725 = vadd.f32 %v6642, %v6724
    %v6726 = vpop.f32.mrb[0].mxu0
    %6727 = vdwg.mxu0
    %6728 = vmatprep.subr.mxu0 0.0
    %v6729 = vand.u32 %v4756, 4294901760
    %6730 = vmatpush1.xpose.msra.mxu0 %v6729
    %6731 = vmatprep.subr.mxu0 0.0
    %v6732 = vand.u32 %v4758, 4294901760
    %6733 = vmatpush1.xpose.msra.mxu0 %v6732
    %6734 = vmatprep.subr.mxu0 0.0
    %6735 = vmatpush1.xpose.msra.mxu0 0.0
    %6736 = vmatprep.subr.mxu0 0.0
    %6737 = vmatpush1.xpose.msra.mxu0 0.0
    %6738 = vmatprep.subr.mxu0 0.0
    %6739 = vmatpush1.xpose.msra.mxu0 0.0
    %6740 = vmatprep.subr.mxu0 0.0
    %6741 = vmatpush1.xpose.msra.mxu0 0.0
    %6742 = vmatprep.subr.mxu0 0.0
    %6743 = vmatpush1.xpose.msra.mxu0 0.0
    %6744 = vmatprep.subr.mxu0 0.0
    %6745 = vmatpush1.xpose.msra.mxu0 0.0
    %6746 = vmatprep.subr.mxu0 0.0
    %6747 = vmatpush1.xpose.msra.mxu0 0.0
    %6748 = vmatprep.subr.mxu0 0.0
    %6749 = vmatpush1.xpose.msra.mxu0 0.0
    %6750 = vmatprep.subr.mxu0 0.0
    %6751 = vmatpush1.xpose.msra.mxu0 0.0
    %6752 = vmatprep.subr.mxu0 0.0
    %6753 = vmatpush1.xpose.msra.mxu0 0.0
    %6754 = vmatprep.subr.mxu0 0.0
    %6755 = vmatpush1.xpose.msra.mxu0 0.0
    %6756 = vmatprep.subr.mxu0 0.0
    %6757 = vmatpush1.xpose.msra.mxu0 0.0
    %6758 = vmatprep.subr.mxu0 0.0
    %6759 = vmatpush1.xpose.msra.mxu0 0.0
    %6760 = vmatprep.subr.mxu0 0.0
    %6761 = vmatpush1.xpose.msra.mxu0 0.0
    %6762 = vmatprep.subr.mxu0 0.0
    %6763 = vmatpush1.xpose.msra.mxu0 0.0
    %6764 = vmatprep.subr.mxu0 0.0
    %6765 = vmatpush1.xpose.msra.mxu0 0.0
    %6766 = vmatprep.subr.mxu0 0.0
    %6767 = vmatpush1.xpose.msra.mxu0 0.0
    %6768 = vmatprep.subr.mxu0 0.0
    %6769 = vmatpush1.xpose.msra.mxu0 0.0
    %6770 = vmatprep.subr.mxu0 0.0
    %6771 = vmatpush1.xpose.msra.mxu0 0.0
    %6772 = vmatprep.subr.mxu0 0.0
    %6773 = vmatpush1.xpose.msra.mxu0 0.0
    %6774 = vmatprep.subr.mxu0 0.0
    %6775 = vmatpush1.xpose.msra.mxu0 0.0
    %6776 = vmatprep.subr.mxu0 0.0
    %6777 = vmatpush1.xpose.msra.mxu0 0.0
    %6778 = vmatprep.subr.mxu0 0.0
    %6779 = vmatpush1.xpose.msra.mxu0 0.0
    %6780 = vmatprep.subr.mxu0 0.0
    %6781 = vmatpush1.xpose.msra.mxu0 0.0
    %6782 = vmatprep.subr.mxu0 0.0
    %6783 = vmatpush1.xpose.msra.mxu0 0.0
    %6784 = vmatprep.subr.mxu0 0.0
    %6785 = vmatpush1.xpose.msra.mxu0 0.0
    %6786 = vmatprep.subr.mxu0 0.0
    %6787 = vmatpush1.xpose.msra.mxu0 0.0
    %6788 = vmatprep.subr.mxu0 0.0
    %6789 = vmatpush1.xpose.msra.mxu0 0.0
    %6790 = vmatprep.subr.mxu0 0.0
    %6791 = vmatpush1.xpose.msra.mxu0 0.0
    %6792 = vmatprep.subr.mxu0 0.0
    %6793 = vmatpush1.xpose.msra.mxu0 0.0
    %6794 = vmatprep.mubr.f32.mxu0 0.0
    %v6795 = vand.u32 %v6301, 4294901760
    %6796 = vmatmul.mubr.f32.gmra.mrb[0].mxu0 %v6795
    %v6797 = vpop.f32.mrb[0].mxu0
    %v6798 = vadd.f32 %v6719, %v6797
    %v6799 = vpop.f32.mrb[0].mxu0
    %6800 = vmatprep.mubr.f32.mxu0 0.0
    %v6801 = vand.u32 %v6303, 4294901760
    %6802 = vmatmul.mubr.f32.gmra.mrb[0].mxu0 %v6801
    %v6803 = vpop.f32.mrb[0].mxu0
    %v6804 = vadd.f32 %v6725, %v6803
    %v6805 = vpop.f32.mrb[0].mxu0
    %6806 = vdwg.mxu0
    %v6807 = vsel %vm2183, %v6798, -inf
    %6808 = vmax.xlane.f32.xlu0 %v6807
    %v6809 = vpop.xlane.xlu0 %6808
    %v6810 = vsel %vm2183, %v6804, -inf
    %6811 = vmax.xlane.f32.xlu0 %v6810
    %v6812 = vpop.xlane.xlu0 %6811
    %v6813 = vsub.f32 %v6798, %v6809
    %v6814 = vsub.f32 %v6804, %v6812
    %v6815 = vmul.f32 %v6813, 1.442695
    %v6816 = vpow.pop %v6815
    %v6817 = vmul.f32 %v6814, 1.442695
    %v6818 = vpow.pop %v6817
    %v6819 = vsel %vm2183, %v6816, 0.0
    %6820 = vadd.xlane.f32.xlu0 %v6819
    %v6821 = vpop.xlane.xlu0 %6820
    %v6822 = vsel %vm2183, %v6818, 0.0
    %6823 = vadd.xlane.f32.xlu0 %v6822
    %v6824 = vpop.xlane.xlu0 %6823
    %v6825 = vrcp.pop %v6821
    %v6826 = vmul.f32 %v6816, %v6825
    %v6827 = vrcp.pop %v6824
    %v6828 = vmul.f32 %v6818, %v6827
    %v6830 = vsel %vm2183, %v6826, 0
    %v6833 = vsel %vm2183, %v6828, 0
    %6835 = vmatprep.subr.mxu0 0.0
    %v6836 = vand.u32 %v5287, 4294901760
    %6837 = vmatpush1.msra.mxu0 %v6836
    %6838 = vmatprep.subr.mxu0 0.0
    %v6839 = vand.u32 %v5289, 4294901760
    %6840 = vmatpush1.msra.mxu0 %v6839
    %6841 = vmatprep.subr.mxu0 0.0
    %6842 = vmatpush1.msra.mxu0 0.0
    %6843 = vmatprep.subr.mxu0 0.0
    %6844 = vmatpush1.msra.mxu0 0.0
    %6845 = vmatprep.subr.mxu0 0.0
    %6846 = vmatpush1.msra.mxu0 0.0
    %6847 = vmatprep.subr.mxu0 0.0
    %6848 = vmatpush1.msra.mxu0 0.0
    %6849 = vmatprep.subr.mxu0 0.0
    %6850 = vmatpush1.msra.mxu0 0.0
    %6851 = vmatprep.subr.mxu0 0.0
    %6852 = vmatpush1.msra.mxu0 0.0
    %6853 = vmatprep.subr.mxu0 0.0
    %6854 = vmatpush1.msra.mxu0 0.0
    %6855 = vmatprep.subr.mxu0 0.0
    %6856 = vmatpush1.msra.mxu0 0.0
    %6857 = vmatprep.subr.mxu0 0.0
    %6858 = vmatpush1.msra.mxu0 0.0
    %6859 = vmatprep.subr.mxu0 0.0
    %6860 = vmatpush1.msra.mxu0 0.0
    %6861 = vmatprep.subr.mxu0 0.0
    %6862 = vmatpush1.msra.mxu0 0.0
    %6863 = vmatprep.subr.mxu0 0.0
    %6864 = vmatpush1.msra.mxu0 0.0
    %6865 = vmatprep.subr.mxu0 0.0
    %6866 = vmatpush1.msra.mxu0 0.0
    %6867 = vmatprep.subr.mxu0 0.0
    %6868 = vmatpush1.msra.mxu0 0.0
    %6869 = vmatprep.subr.mxu0 0.0
    %6870 = vmatpush1.msra.mxu0 0.0
    %6871 = vmatprep.subr.mxu0 0.0
    %6872 = vmatpush1.msra.mxu0 0.0
    %6873 = vmatprep.subr.mxu0 0.0
    %6874 = vmatpush1.msra.mxu0 0.0
    %6875 = vmatprep.subr.mxu0 0.0
    %6876 = vmatpush1.msra.mxu0 0.0
    %6877 = vmatprep.subr.mxu0 0.0
    %6878 = vmatpush1.msra.mxu0 0.0
    %6879 = vmatprep.subr.mxu0 0.0
    %6880 = vmatpush1.msra.mxu0 0.0
    %6881 = vmatprep.subr.mxu0 0.0
    %6882 = vmatpush1.msra.mxu0 0.0
    %6883 = vmatprep.subr.mxu0 0.0
    %6884 = vmatpush1.msra.mxu0 0.0
    %6885 = vmatprep.subr.mxu0 0.0
    %6886 = vmatpush1.msra.mxu0 0.0
    %6887 = vmatprep.subr.mxu0 0.0
    %6888 = vmatpush1.msra.mxu0 0.0
    %6889 = vmatprep.subr.mxu0 0.0
    %6890 = vmatpush1.msra.mxu0 0.0
    %6891 = vmatprep.subr.mxu0 0.0
    %6892 = vmatpush1.msra.mxu0 0.0
    %6893 = vmatprep.subr.mxu0 0.0
    %6894 = vmatpush1.msra.mxu0 0.0
    %6895 = vmatprep.subr.mxu0 0.0
    %6896 = vmatpush1.msra.mxu0 0.0
    %6897 = vmatprep.subr.mxu0 0.0
    %6898 = vmatpush1.msra.mxu0 0.0
    %6899 = vmatprep.subr.mxu0 0.0
    %6900 = vmatpush1.msra.mxu0 0.0
    %6901 = vmatprep.mubr.f32.mxu0 0.0
    %v6902 = vand.u32 %v6830, 4294901760
    %v6903 = vsub.f32 %v6830, %v6902
    %v6904 = vand.u32 %v6903, 4294901760
    %v6905 = vsub.f32 %v6903, %v6904
    %v6906 = vand.u32 %v6905, 4294901760
    %6907 = vmatmul.mubr.f32.gmra.mrb[0].mxu0 %v6906
    %v6908 = vpop.f32.mrb[0].mxu0
    %v6909 = vadd.f32 0.0, %v6908
    %v6910 = vpop.f32.mrb[0].mxu0
    %6911 = vmatprep.mubr.f32.mxu0 0.0
    %v6912 = vand.u32 %v6833, 4294901760
    %v6913 = vsub.f32 %v6833, %v6912
    %v6914 = vand.u32 %v6913, 4294901760
    %v6915 = vsub.f32 %v6913, %v6914
    %v6916 = vand.u32 %v6915, 4294901760
    %6917 = vmatmul.mubr.f32.gmra.mrb[0].mxu0 %v6916
    %v6918 = vpop.f32.mrb[0].mxu0
    %v6919 = vadd.f32 0.0, %v6918
    %v6920 = vpop.f32.mrb[0].mxu0
    %6921 = vdwg.mxu0
    %6922 = vmatprep.subr.mxu0 0.0
    %v6923 = vand.u32 %v5287, 4294901760
    %v6924 = vsub.f32 %v5287, %v6923
    %v6925 = vand.u32 %v6924, 4294901760
    %v6926 = vsub.f32 %v6924, %v6925
    %v6927 = vand.u32 %v6926, 4294901760
    %6928 = vmatpush1.msra.mxu0 %v6927
    %6929 = vmatprep.subr.mxu0 0.0
    %v6930 = vand.u32 %v5289, 4294901760
    %v6931 = vsub.f32 %v5289, %v6930
    %v6932 = vand.u32 %v6931, 4294901760
    %v6933 = vsub.f32 %v6931, %v6932
    %v6934 = vand.u32 %v6933, 4294901760
    %6935 = vmatpush1.msra.mxu0 %v6934
    %6936 = vmatprep.subr.mxu0 0.0
    %6937 = vmatpush1.msra.mxu0 0.0
    %6938 = vmatprep.subr.mxu0 0.0
    %6939 = vmatpush1.msra.mxu0 0.0
    %6940 = vmatprep.subr.mxu0 0.0
    %6941 = vmatpush1.msra.mxu0 0.0
    %6942 = vmatprep.subr.mxu0 0.0
    %6943 = vmatpush1.msra.mxu0 0.0
    %6944 = vmatprep.subr.mxu0 0.0
    %6945 = vmatpush1.msra.mxu0 0.0
    %6946 = vmatprep.subr.mxu0 0.0
    %6947 = vmatpush1.msra.mxu0 0.0
    %6948 = vmatprep.subr.mxu0 0.0
    %6949 = vmatpush1.msra.mxu0 0.0
    %6950 = vmatprep.subr.mxu0 0.0
    %6951 = vmatpush1.msra.mxu0 0.0
    %6952 = vmatprep.subr.mxu0 0.0
    %6953 = vmatpush1.msra.mxu0 0.0
    %6954 = vmatprep.subr.mxu0 0.0
    %6955 = vmatpush1.msra.mxu0 0.0
    %6956 = vmatprep.subr.mxu0 0.0
    %6957 = vmatpush1.msra.mxu0 0.0
    %6958 = vmatprep.subr.mxu0 0.0
    %6959 = vmatpush1.msra.mxu0 0.0
    %6960 = vmatprep.subr.mxu0 0.0
    %6961 = vmatpush1.msra.mxu0 0.0
    %6962 = vmatprep.subr.mxu0 0.0
    %6963 = vmatpush1.msra.mxu0 0.0
    %6964 = vmatprep.subr.mxu0 0.0
    %6965 = vmatpush1.msra.mxu0 0.0
    %6966 = vmatprep.subr.mxu0 0.0
    %6967 = vmatpush1.msra.mxu0 0.0
    %6968 = vmatprep.subr.mxu0 0.0
    %6969 = vmatpush1.msra.mxu0 0.0
    %6970 = vmatprep.subr.mxu0 0.0
    %6971 = vmatpush1.msra.mxu0 0.0
    %6972 = vmatprep.subr.mxu0 0.0
    %6973 = vmatpush1.msra.mxu0 0.0
    %6974 = vmatprep.subr.mxu0 0.0
    %6975 = vmatpush1.msra.mxu0 0.0
    %6976 = vmatprep.subr.mxu0 0.0
    %6977 = vmatpush1.msra.mxu0 0.0
    %6978 = vmatprep.subr.mxu0 0.0
    %6979 = vmatpush1.msra.mxu0 0.0
    %6980 = vmatprep.subr.mxu0 0.0
    %6981 = vmatpush1.msra.mxu0 0.0
    %6982 = vmatprep.subr.mxu0 0.0
    %6983 = vmatpush1.msra.mxu0 0.0
    %6984 = vmatprep.subr.mxu0 0.0
    %6985 = vmatpush1.msra.mxu0 0.0
    %6986 = vmatprep.subr.mxu0 0.0
    %6987 = vmatpush1.msra.mxu0 0.0
    %6988 = vmatprep.subr.mxu0 0.0
    %6989 = vmatpush1.msra.mxu0 0.0
    %6990 = vmatprep.subr.mxu0 0.0
    %6991 = vmatpush1.msra.mxu0 0.0
    %6992 = vmatprep.subr.mxu0 0.0
    %6993 = vmatpush1.msra.mxu0 0.0
    %6994 = vmatprep.subr.mxu0 0.0
    %6995 = vmatpush1.msra.mxu0 0.0
    %6996 = vmatprep.mubr.f32.mxu0 0.0
    %v6997 = vand.u32 %v6830, 4294901760
    %6998 = vmatmul.mubr.f32.gmra.mrb[0].mxu0 %v6997
    %v6999 = vpop.f32.mrb[0].mxu0
    %v7000 = vadd.f32 %v6909, %v6999
    %v7001 = vpop.f32.mrb[0].mxu0
    %7002 = vmatprep.mubr.f32.mxu0 0.0
    %v7003 = vand.u32 %v6833, 4294901760
    %7004 = vmatmul.mubr.f32.gmra.mrb[0].mxu0 %v7003
    %v7005 = vpop.f32.mrb[0].mxu0
    %v7006 = vadd.f32 %v6919, %v7005
    %v7007 = vpop.f32.mrb[0].mxu0
    %7008 = vdwg.mxu0
    %7009 = vmatprep.subr.mxu0 0.0
    %v7010 = vand.u32 %v5287, 4294901760
    %v7011 = vsub.f32 %v5287, %v7010
    %7012 = vmatpush1.msra.mxu0 %v7011
    %7013 = vmatprep.subr.mxu0 0.0
    %v7014 = vand.u32 %v5289, 4294901760
    %v7015 = vsub.f32 %v5289, %v7014
    %7016 = vmatpush1.msra.mxu0 %v7015
    %7017 = vmatprep.subr.mxu0 0.0
    %7018 = vmatpush1.msra.mxu0 0.0
    %7019 = vmatprep.subr.mxu0 0.0
    %7020 = vmatpush1.msra.mxu0 0.0
    %7021 = vmatprep.subr.mxu0 0.0
    %7022 = vmatpush1.msra.mxu0 0.0
    %7023 = vmatprep.subr.mxu0 0.0
    %7024 = vmatpush1.msra.mxu0 0.0
    %7025 = vmatprep.subr.mxu0 0.0
    %7026 = vmatpush1.msra.mxu0 0.0
    %7027 = vmatprep.subr.mxu0 0.0
    %7028 = vmatpush1.msra.mxu0 0.0
    %7029 = vmatprep.subr.mxu0 0.0
    %7030 = vmatpush1.msra.mxu0 0.0
    %7031 = vmatprep.subr.mxu0 0.0
    %7032 = vmatpush1.msra.mxu0 0.0
    %7033 = vmatprep.subr.mxu0 0.0
    %7034 = vmatpush1.msra.mxu0 0.0
    %7035 = vmatprep.subr.mxu0 0.0
    %7036 = vmatpush1.msra.mxu0 0.0
    %7037 = vmatprep.subr.mxu0 0.0
    %7038 = vmatpush1.msra.mxu0 0.0
    %7039 = vmatprep.subr.mxu0 0.0
    %7040 = vmatpush1.msra.mxu0 0.0
    %7041 = vmatprep.subr.mxu0 0.0
    %7042 = vmatpush1.msra.mxu0 0.0
    %7043 = vmatprep.subr.mxu0 0.0
    %7044 = vmatpush1.msra.mxu0 0.0
    %7045 = vmatprep.subr.mxu0 0.0
    %7046 = vmatpush1.msra.mxu0 0.0
    %7047 = vmatprep.subr.mxu0 0.0
    %7048 = vmatpush1.msra.mxu0 0.0
    %7049 = vmatprep.subr.mxu0 0.0
    %7050 = vmatpush1.msra.mxu0 0.0
    %7051 = vmatprep.subr.mxu0 0.0
    %7052 = vmatpush1.msra.mxu0 0.0
    %7053 = vmatprep.subr.mxu0 0.0
    %7054 = vmatpush1.msra.mxu0 0.0
    %7055 = vmatprep.subr.mxu0 0.0
    %7056 = vmatpush1.msra.mxu0 0.0
    %7057 = vmatprep.subr.mxu0 0.0
    %7058 = vmatpush1.msra.mxu0 0.0
    %7059 = vmatprep.subr.mxu0 0.0
    %7060 = vmatpush1.msra.mxu0 0.0
    %7061 = vmatprep.subr.mxu0 0.0
    %7062 = vmatpush1.msra.mxu0 0.0
    %7063 = vmatprep.subr.mxu0 0.0
    %7064 = vmatpush1.msra.mxu0 0.0
    %7065 = vmatprep.subr.mxu0 0.0
    %7066 = vmatpush1.msra.mxu0 0.0
    %7067 = vmatprep.subr.mxu0 0.0
    %7068 = vmatpush1.msra.mxu0 0.0
    %7069 = vmatprep.subr.mxu0 0.0
    %7070 = vmatpush1.msra.mxu0 0.0
    %7071 = vmatprep.subr.mxu0 0.0
    %7072 = vmatpush1.msra.mxu0 0.0
    %7073 = vmatprep.subr.mxu0 0.0
    %7074 = vmatpush1.msra.mxu0 0.0
    %7075 = vmatprep.subr.mxu0 0.0
    %7076 = vmatpush1.msra.mxu0 0.0
    %7077 = vmatprep.mubr.f32.mxu0 0.0
    %v7078 = vand.u32 %v6830, 4294901760
    %v7079 = vsub.f32 %v6830, %v7078
    %7080 = vmatmul.mubr.f32.gmra.mrb[0].mxu0 %v7079
    %v7081 = vpop.f32.mrb[0].mxu0
    %v7082 = vadd.f32 %v7000, %v7081
    %v7083 = vpop.f32.mrb[0].mxu0
    %7084 = vmatprep.mubr.f32.mxu0 0.0
    %v7085 = vand.u32 %v6833, 4294901760
    %v7086 = vsub.f32 %v6833, %v7085
    %7087 = vmatmul.mubr.f32.gmra.mrb[0].mxu0 %v7086
    %v7088 = vpop.f32.mrb[0].mxu0
    %v7089 = vadd.f32 %v7006, %v7088
    %v7090 = vpop.f32.mrb[0].mxu0
    %7091 = vdwg.mxu0
    %7092 = vmatprep.subr.mxu0 0.0
    %v7093 = vand.u32 %v5287, 4294901760
    %7094 = vmatpush1.msra.mxu0 %v7093
    %7095 = vmatprep.subr.mxu0 0.0
    %v7096 = vand.u32 %v5289, 4294901760
    %7097 = vmatpush1.msra.mxu0 %v7096
    %7098 = vmatprep.subr.mxu0 0.0
    %7099 = vmatpush1.msra.mxu0 0.0
    %7100 = vmatprep.subr.mxu0 0.0
    %7101 = vmatpush1.msra.mxu0 0.0
    %7102 = vmatprep.subr.mxu0 0.0
    %7103 = vmatpush1.msra.mxu0 0.0
    %7104 = vmatprep.subr.mxu0 0.0
    %7105 = vmatpush1.msra.mxu0 0.0
    %7106 = vmatprep.subr.mxu0 0.0
    %7107 = vmatpush1.msra.mxu0 0.0
    %7108 = vmatprep.subr.mxu0 0.0
    %7109 = vmatpush1.msra.mxu0 0.0
    %7110 = vmatprep.subr.mxu0 0.0
    %7111 = vmatpush1.msra.mxu0 0.0
    %7112 = vmatprep.subr.mxu0 0.0
    %7113 = vmatpush1.msra.mxu0 0.0
    %7114 = vmatprep.subr.mxu0 0.0
    %7115 = vmatpush1.msra.mxu0 0.0
    %7116 = vmatprep.subr.mxu0 0.0
    %7117 = vmatpush1.msra.mxu0 0.0
    %7118 = vmatprep.subr.mxu0 0.0
    %7119 = vmatpush1.msra.mxu0 0.0
    %7120 = vmatprep.subr.mxu0 0.0
    %7121 = vmatpush1.msra.mxu0 0.0
    %7122 = vmatprep.subr.mxu0 0.0
    %7123 = vmatpush1.msra.mxu0 0.0
    %7124 = vmatprep.subr.mxu0 0.0
    %7125 = vmatpush1.msra.mxu0 0.0
    %7126 = vmatprep.subr.mxu0 0.0
    %7127 = vmatpush1.msra.mxu0 0.0
    %7128 = vmatprep.subr.mxu0 0.0
    %7129 = vmatpush1.msra.mxu0 0.0
    %7130 = vmatprep.subr.mxu0 0.0
    %7131 = vmatpush1.msra.mxu0 0.0
    %7132 = vmatprep.subr.mxu0 0.0
    %7133 = vmatpush1.msra.mxu0 0.0
    %7134 = vmatprep.subr.mxu0 0.0
    %7135 = vmatpush1.msra.mxu0 0.0
    %7136 = vmatprep.subr.mxu0 0.0
    %7137 = vmatpush1.msra.mxu0 0.0
    %7138 = vmatprep.subr.mxu0 0.0
    %7139 = vmatpush1.msra.mxu0 0.0
    %7140 = vmatprep.subr.mxu0 0.0
    %7141 = vmatpush1.msra.mxu0 0.0
    %7142 = vmatprep.subr.mxu0 0.0
    %7143 = vmatpush1.msra.mxu0 0.0
    %7144 = vmatprep.subr.mxu0 0.0
    %7145 = vmatpush1.msra.mxu0 0.0
    %7146 = vmatprep.subr.mxu0 0.0
    %7147 = vmatpush1.msra.mxu0 0.0
    %7148 = vmatprep.subr.mxu0 0.0
    %7149 = vmatpush1.msra.mxu0 0.0
    %7150 = vmatprep.subr.mxu0 0.0
    %7151 = vmatpush1.msra.mxu0 0.0
    %7152 = vmatprep.subr.mxu0 0.0
    %7153 = vmatpush1.msra.mxu0 0.0
    %7154 = vmatprep.subr.mxu0 0.0
    %7155 = vmatpush1.msra.mxu0 0.0
    %7156 = vmatprep.subr.mxu0 0.0
    %7157 = vmatpush1.msra.mxu0 0.0
    %7158 = vmatprep.mubr.f32.mxu0 0.0
    %v7159 = vand.u32 %v6830, 4294901760
    %v7160 = vsub.f32 %v6830, %v7159
    %v7161 = vand.u32 %v7160, 4294901760
    %7162 = vmatmul.mubr.f32.gmra.mrb[0].mxu0 %v7161
    %v7163 = vpop.f32.mrb[0].mxu0
    %v7164 = vadd.f32 %v7082, %v7163
    %v7165 = vpop.f32.mrb[0].mxu0
    %7166 = vmatprep.mubr.f32.mxu0 0.0
    %v7167 = vand.u32 %v6833, 4294901760
    %v7168 = vsub.f32 %v6833, %v7167
    %v7169 = vand.u32 %v7168, 4294901760
    %7170 = vmatmul.mubr.f32.gmra.mrb[0].mxu0 %v7169
    %v7171 = vpop.f32.mrb[0].mxu0
    %v7172 = vadd.f32 %v7089, %v7171
    %v7173 = vpop.f32.mrb[0].mxu0
    %7174 = vdwg.mxu0
    %7175 = vmatprep.subr.mxu0 0.0
    %v7176 = vand.u32 %v5287, 4294901760
    %v7177 = vsub.f32 %v5287, %v7176
    %v7178 = vand.u32 %v7177, 4294901760
    %7179 = vmatpush1.msra.mxu0 %v7178
    %7180 = vmatprep.subr.mxu0 0.0
    %v7181 = vand.u32 %v5289, 4294901760
    %v7182 = vsub.f32 %v5289, %v7181
    %v7183 = vand.u32 %v7182, 4294901760
    %7184 = vmatpush1.msra.mxu0 %v7183
    %7185 = vmatprep.subr.mxu0 0.0
    %7186 = vmatpush1.msra.mxu0 0.0
    %7187 = vmatprep.subr.mxu0 0.0
    %7188 = vmatpush1.msra.mxu0 0.0
    %7189 = vmatprep.subr.mxu0 0.0
    %7190 = vmatpush1.msra.mxu0 0.0
    %7191 = vmatprep.subr.mxu0 0.0
    %7192 = vmatpush1.msra.mxu0 0.0
    %7193 = vmatprep.subr.mxu0 0.0
    %7194 = vmatpush1.msra.mxu0 0.0
    %7195 = vmatprep.subr.mxu0 0.0
    %7196 = vmatpush1.msra.mxu0 0.0
    %7197 = vmatprep.subr.mxu0 0.0
    %7198 = vmatpush1.msra.mxu0 0.0
    %7199 = vmatprep.subr.mxu0 0.0
    %7200 = vmatpush1.msra.mxu0 0.0
    %7201 = vmatprep.subr.mxu0 0.0
    %7202 = vmatpush1.msra.mxu0 0.0
    %7203 = vmatprep.subr.mxu0 0.0
    %7204 = vmatpush1.msra.mxu0 0.0
    %7205 = vmatprep.subr.mxu0 0.0
    %7206 = vmatpush1.msra.mxu0 0.0
    %7207 = vmatprep.subr.mxu0 0.0
    %7208 = vmatpush1.msra.mxu0 0.0
    %7209 = vmatprep.subr.mxu0 0.0
    %7210 = vmatpush1.msra.mxu0 0.0
    %7211 = vmatprep.subr.mxu0 0.0
    %7212 = vmatpush1.msra.mxu0 0.0
    %7213 = vmatprep.subr.mxu0 0.0
    %7214 = vmatpush1.msra.mxu0 0.0
    %7215 = vmatprep.subr.mxu0 0.0
    %7216 = vmatpush1.msra.mxu0 0.0
    %7217 = vmatprep.subr.mxu0 0.0
    %7218 = vmatpush1.msra.mxu0 0.0
    %7219 = vmatprep.subr.mxu0 0.0
    %7220 = vmatpush1.msra.mxu0 0.0
    %7221 = vmatprep.subr.mxu0 0.0
    %7222 = vmatpush1.msra.mxu0 0.0
    %7223 = vmatprep.subr.mxu0 0.0
    %7224 = vmatpush1.msra.mxu0 0.0
    %7225 = vmatprep.subr.mxu0 0.0
    %7226 = vmatpush1.msra.mxu0 0.0
    %7227 = vmatprep.subr.mxu0 0.0
    %7228 = vmatpush1.msra.mxu0 0.0
    %7229 = vmatprep.subr.mxu0 0.0
    %7230 = vmatpush1.msra.mxu0 0.0
    %7231 = vmatprep.subr.mxu0 0.0
    %7232 = vmatpush1.msra.mxu0 0.0
    %7233 = vmatprep.subr.mxu0 0.0
    %7234 = vmatpush1.msra.mxu0 0.0
    %7235 = vmatprep.subr.mxu0 0.0
    %7236 = vmatpush1.msra.mxu0 0.0
    %7237 = vmatprep.subr.mxu0 0.0
    %7238 = vmatpush1.msra.mxu0 0.0
    %7239 = vmatprep.subr.mxu0 0.0
    %7240 = vmatpush1.msra.mxu0 0.0
    %7241 = vmatprep.subr.mxu0 0.0
    %7242 = vmatpush1.msra.mxu0 0.0
    %7243 = vmatprep.subr.mxu0 0.0
    %7244 = vmatpush1.msra.mxu0 0.0
    %7245 = vmatprep.mubr.f32.mxu0 0.0
    %v7246 = vand.u32 %v6830, 4294901760
    %7247 = vmatmul.mubr.f32.gmra.mrb[0].mxu0 %v7246
    %v7248 = vpop.f32.mrb[0].mxu0
    %v7249 = vadd.f32 %v7164, %v7248
    %v7250 = vpop.f32.mrb[0].mxu0
    %7251 = vmatprep.mubr.f32.mxu0 0.0
    %v7252 = vand.u32 %v6833, 4294901760
    %7253 = vmatmul.mubr.f32.gmra.mrb[0].mxu0 %v7252
    %v7254 = vpop.f32.mrb[0].mxu0
    %v7255 = vadd.f32 %v7172, %v7254
    %v7256 = vpop.f32.mrb[0].mxu0
    %7257 = vdwg.mxu0
    %7258 = vmatprep.subr.mxu0 0.0
    %v7259 = vand.u32 %v5287, 4294901760
    %7260 = vmatpush1.msra.mxu0 %v7259
    %7261 = vmatprep.subr.mxu0 0.0
    %v7262 = vand.u32 %v5289, 4294901760
    %7263 = vmatpush1.msra.mxu0 %v7262
    %7264 = vmatprep.subr.mxu0 0.0
    %7265 = vmatpush1.msra.mxu0 0.0
    %7266 = vmatprep.subr.mxu0 0.0
    %7267 = vmatpush1.msra.mxu0 0.0
    %7268 = vmatprep.subr.mxu0 0.0
    %7269 = vmatpush1.msra.mxu0 0.0
    %7270 = vmatprep.subr.mxu0 0.0
    %7271 = vmatpush1.msra.mxu0 0.0
    %7272 = vmatprep.subr.mxu0 0.0
    %7273 = vmatpush1.msra.mxu0 0.0
    %7274 = vmatprep.subr.mxu0 0.0
    %7275 = vmatpush1.msra.mxu0 0.0
    %7276 = vmatprep.subr.mxu0 0.0
    %7277 = vmatpush1.msra.mxu0 0.0
    %7278 = vmatprep.subr.mxu0 0.0
    %7279 = vmatpush1.msra.mxu0 0.0
    %7280 = vmatprep.subr.mxu0 0.0
    %7281 = vmatpush1.msra.mxu0 0.0
    %7282 = vmatprep.subr.mxu0 0.0
    %7283 = vmatpush1.msra.mxu0 0.0
    %7284 = vmatprep.subr.mxu0 0.0
    %7285 = vmatpush1.msra.mxu0 0.0
    %7286 = vmatprep.subr.mxu0 0.0
    %7287 = vmatpush1.msra.mxu0 0.0
    %7288 = vmatprep.subr.mxu0 0.0
    %7289 = vmatpush1.msra.mxu0 0.0
    %7290 = vmatprep.subr.mxu0 0.0
    %7291 = vmatpush1.msra.mxu0 0.0
    %7292 = vmatprep.subr.mxu0 0.0
    %7293 = vmatpush1.msra.mxu0 0.0
    %7294 = vmatprep.subr.mxu0 0.0
    %7295 = vmatpush1.msra.mxu0 0.0
    %7296 = vmatprep.subr.mxu0 0.0
    %7297 = vmatpush1.msra.mxu0 0.0
    %7298 = vmatprep.subr.mxu0 0.0
    %7299 = vmatpush1.msra.mxu0 0.0
    %7300 = vmatprep.subr.mxu0 0.0
    %7301 = vmatpush1.msra.mxu0 0.0
    %7302 = vmatprep.subr.mxu0 0.0
    %7303 = vmatpush1.msra.mxu0 0.0
    %7304 = vmatprep.subr.mxu0 0.0
    %7305 = vmatpush1.msra.mxu0 0.0
    %7306 = vmatprep.subr.mxu0 0.0
    %7307 = vmatpush1.msra.mxu0 0.0
    %7308 = vmatprep.subr.mxu0 0.0
    %7309 = vmatpush1.msra.mxu0 0.0
    %7310 = vmatprep.subr.mxu0 0.0
    %7311 = vmatpush1.msra.mxu0 0.0
    %7312 = vmatprep.subr.mxu0 0.0
    %7313 = vmatpush1.msra.mxu0 0.0
    %7314 = vmatprep.subr.mxu0 0.0
    %7315 = vmatpush1.msra.mxu0 0.0
    %7316 = vmatprep.subr.mxu0 0.0
    %7317 = vmatpush1.msra.mxu0 0.0
    %7318 = vmatprep.subr.mxu0 0.0
    %7319 = vmatpush1.msra.mxu0 0.0
    %7320 = vmatprep.subr.mxu0 0.0
    %7321 = vmatpush1.msra.mxu0 0.0
    %7322 = vmatprep.subr.mxu0 0.0
    %7323 = vmatpush1.msra.mxu0 0.0
    %7324 = vmatprep.mubr.f32.mxu0 0.0
    %v7325 = vand.u32 %v6830, 4294901760
    %7326 = vmatmul.mubr.f32.gmra.mrb[0].mxu0 %v7325
    %v7327 = vpop.f32.mrb[0].mxu0
    %v7328 = vadd.f32 %v7249, %v7327
    %v7329 = vpop.f32.mrb[0].mxu0
    %7330 = vmatprep.mubr.f32.mxu0 0.0
    %v7331 = vand.u32 %v6833, 4294901760
    %7332 = vmatmul.mubr.f32.gmra.mrb[0].mxu0 %v7331
    %v7333 = vpop.f32.mrb[0].mxu0
    %v7334 = vadd.f32 %v7255, %v7333
    %v7335 = vpop.f32.mrb[0].mxu0
    %7336 = vdwg.mxu0
    %v7338 = vsel %vm1668, %v7328, 0
    %v7341 = vsel %vm1668, %v7334, 0
    %7343 = vmatprep.subr.mxu0 0.0
    %v7344 = vand.u32 %v1667, 4294901760
    %7345 = vmatpush1.msra.mxu0 %v7344
    %7346 = vmatprep.subr.mxu0 0.0
    %7347 = vmatpush1.msra.mxu0 0.0
    %7348 = vmatprep.subr.mxu0 0.0
    %7349 = vmatpush1.msra.mxu0 0.0
    %7350 = vmatprep.subr.mxu0 0.0
    %7351 = vmatpush1.msra.mxu0 0.0
    %7352 = vmatprep.subr.mxu0 0.0
    %7353 = vmatpush1.msra.mxu0 0.0
    %7354 = vmatprep.subr.mxu0 0.0
    %7355 = vmatpush1.msra.mxu0 0.0
    %7356 = vmatprep.subr.mxu0 0.0
    %7357 = vmatpush1.msra.mxu0 0.0
    %7358 = vmatprep.subr.mxu0 0.0
    %7359 = vmatpush1.msra.mxu0 0.0
    %7360 = vmatprep.subr.mxu0 0.0
    %7361 = vmatpush1.msra.mxu0 0.0
    %7362 = vmatprep.subr.mxu0 0.0
    %7363 = vmatpush1.msra.mxu0 0.0
    %7364 = vmatprep.subr.mxu0 0.0
    %7365 = vmatpush1.msra.mxu0 0.0
    %7366 = vmatprep.subr.mxu0 0.0
    %7367 = vmatpush1.msra.mxu0 0.0
    %7368 = vmatprep.subr.mxu0 0.0
    %7369 = vmatpush1.msra.mxu0 0.0
    %7370 = vmatprep.subr.mxu0 0.0
    %7371 = vmatpush1.msra.mxu0 0.0
    %7372 = vmatprep.subr.mxu0 0.0
    %7373 = vmatpush1.msra.mxu0 0.0
    %7374 = vmatprep.subr.mxu0 0.0
    %7375 = vmatpush1.msra.mxu0 0.0
    %7376 = vmatprep.subr.mxu0 0.0
    %7377 = vmatpush1.msra.mxu0 0.0
    %7378 = vmatprep.subr.mxu0 0.0
    %7379 = vmatpush1.msra.mxu0 0.0
    %7380 = vmatprep.subr.mxu0 0.0
    %7381 = vmatpush1.msra.mxu0 0.0
    %7382 = vmatprep.subr.mxu0 0.0
    %7383 = vmatpush1.msra.mxu0 0.0
    %7384 = vmatprep.subr.mxu0 0.0
    %7385 = vmatpush1.msra.mxu0 0.0
    %7386 = vmatprep.subr.mxu0 0.0
    %7387 = vmatpush1.msra.mxu0 0.0
    %7388 = vmatprep.subr.mxu0 0.0
    %7389 = vmatpush1.msra.mxu0 0.0
    %7390 = vmatprep.subr.mxu0 0.0
    %7391 = vmatpush1.msra.mxu0 0.0
    %7392 = vmatprep.subr.mxu0 0.0
    %7393 = vmatpush1.msra.mxu0 0.0
    %7394 = vmatprep.subr.mxu0 0.0
    %7395 = vmatpush1.msra.mxu0 0.0
    %7396 = vmatprep.subr.mxu0 0.0
    %7397 = vmatpush1.msra.mxu0 0.0
    %7398 = vmatprep.subr.mxu0 0.0
    %7399 = vmatpush1.msra.mxu0 0.0
    %7400 = vmatprep.subr.mxu0 0.0
    %7401 = vmatpush1.msra.mxu0 0.0
    %7402 = vmatprep.subr.mxu0 0.0
    %7403 = vmatpush1.msra.mxu0 0.0
    %7404 = vmatprep.subr.mxu0 0.0
    %7405 = vmatpush1.msra.mxu0 0.0
    %7406 = vmatprep.subr.mxu0 0.0
    %7407 = vmatpush1.msra.mxu0 0.0
    %7408 = vmatprep.mubr.f32.mxu0 0.0
    %v7409 = vand.u32 %v7338, 4294901760
    %v7410 = vsub.f32 %v7338, %v7409
    %v7411 = vand.u32 %v7410, 4294901760
    %v7412 = vsub.f32 %v7410, %v7411
    %v7413 = vand.u32 %v7412, 4294901760
    %7414 = vmatmul.mubr.f32.gmra.mrb[0].mxu0 %v7413
    %v7415 = vpop.f32.mrb[0].mxu0
    %v7416 = vadd.f32 0.0, %v7415
    %v7417 = vpop.f32.mrb[0].mxu0
    %7418 = vmatprep.mubr.f32.mxu0 0.0
    %v7419 = vand.u32 %v7341, 4294901760
    %v7420 = vsub.f32 %v7341, %v7419
    %v7421 = vand.u32 %v7420, 4294901760
    %v7422 = vsub.f32 %v7420, %v7421
    %v7423 = vand.u32 %v7422, 4294901760
    %7424 = vmatmul.mubr.f32.gmra.mrb[0].mxu0 %v7423
    %v7425 = vpop.f32.mrb[0].mxu0
    %v7426 = vadd.f32 0.0, %v7425
    %v7427 = vpop.f32.mrb[0].mxu0
    %7428 = vdwg.mxu0
    %7429 = vmatprep.subr.mxu0 0.0
    %v7430 = vand.u32 %v1667, 4294901760
    %v7431 = vsub.f32 %v1667, %v7430
    %v7432 = vand.u32 %v7431, 4294901760
    %v7433 = vsub.f32 %v7431, %v7432
    %v7434 = vand.u32 %v7433, 4294901760
    %7435 = vmatpush1.msra.mxu0 %v7434
    %7436 = vmatprep.subr.mxu0 0.0
    %7437 = vmatpush1.msra.mxu0 0.0
    %7438 = vmatprep.subr.mxu0 0.0
    %7439 = vmatpush1.msra.mxu0 0.0
    %7440 = vmatprep.subr.mxu0 0.0
    %7441 = vmatpush1.msra.mxu0 0.0
    %7442 = vmatprep.subr.mxu0 0.0
    %7443 = vmatpush1.msra.mxu0 0.0
    %7444 = vmatprep.subr.mxu0 0.0
    %7445 = vmatpush1.msra.mxu0 0.0
    %7446 = vmatprep.subr.mxu0 0.0
    %7447 = vmatpush1.msra.mxu0 0.0
    %7448 = vmatprep.subr.mxu0 0.0
    %7449 = vmatpush1.msra.mxu0 0.0
    %7450 = vmatprep.subr.mxu0 0.0
    %7451 = vmatpush1.msra.mxu0 0.0
    %7452 = vmatprep.subr.mxu0 0.0
    %7453 = vmatpush1.msra.mxu0 0.0
    %7454 = vmatprep.subr.mxu0 0.0
    %7455 = vmatpush1.msra.mxu0 0.0
    %7456 = vmatprep.subr.mxu0 0.0
    %7457 = vmatpush1.msra.mxu0 0.0
    %7458 = vmatprep.subr.mxu0 0.0
    %7459 = vmatpush1.msra.mxu0 0.0
    %7460 = vmatprep.subr.mxu0 0.0
    %7461 = vmatpush1.msra.mxu0 0.0
    %7462 = vmatprep.subr.mxu0 0.0
    %7463 = vmatpush1.msra.mxu0 0.0
    %7464 = vmatprep.subr.mxu0 0.0
    %7465 = vmatpush1.msra.mxu0 0.0
    %7466 = vmatprep.subr.mxu0 0.0
    %7467 = vmatpush1.msra.mxu0 0.0
    %7468 = vmatprep.subr.mxu0 0.0
    %7469 = vmatpush1.msra.mxu0 0.0
    %7470 = vmatprep.subr.mxu0 0.0
    %7471 = vmatpush1.msra.mxu0 0.0
    %7472 = vmatprep.subr.mxu0 0.0
    %7473 = vmatpush1.msra.mxu0 0.0
    %7474 = vmatprep.subr.mxu0 0.0
    %7475 = vmatpush1.msra.mxu0 0.0
    %7476 = vmatprep.subr.mxu0 0.0
    %7477 = vmatpush1.msra.mxu0 0.0
    %7478 = vmatprep.subr.mxu0 0.0
    %7479 = vmatpush1.msra.mxu0 0.0
    %7480 = vmatprep.subr.mxu0 0.0
    %7481 = vmatpush1.msra.mxu0 0.0
    %7482 = vmatprep.subr.mxu0 0.0
    %7483 = vmatpush1.msra.mxu0 0.0
    %7484 = vmatprep.subr.mxu0 0.0
    %7485 = vmatpush1.msra.mxu0 0.0
    %7486 = vmatprep.subr.mxu0 0.0
    %7487 = vmatpush1.msra.mxu0 0.0
    %7488 = vmatprep.subr.mxu0 0.0
    %7489 = vmatpush1.msra.mxu0 0.0
    %7490 = vmatprep.subr.mxu0 0.0
    %7491 = vmatpush1.msra.mxu0 0.0
    %7492 = vmatprep.subr.mxu0 0.0
    %7493 = vmatpush1.msra.mxu0 0.0
    %7494 = vmatprep.subr.mxu0 0.0
    %7495 = vmatpush1.msra.mxu0 0.0
    %7496 = vmatprep.subr.mxu0 0.0
    %7497 = vmatpush1.msra.mxu0 0.0
    %7498 = vmatprep.mubr.f32.mxu0 0.0
    %v7499 = vand.u32 %v7338, 4294901760
    %7500 = vmatmul.mubr.f32.gmra.mrb[0].mxu0 %v7499
    %v7501 = vpop.f32.mrb[0].mxu0
    %v7502 = vadd.f32 %v7416, %v7501
    %v7503 = vpop.f32.mrb[0].mxu0
    %7504 = vmatprep.mubr.f32.mxu0 0.0
    %v7505 = vand.u32 %v7341, 4294901760
    %7506 = vmatmul.mubr.f32.gmra.mrb[0].mxu0 %v7505
    %v7507 = vpop.f32.mrb[0].mxu0
    %v7508 = vadd.f32 %v7426, %v7507
    %v7509 = vpop.f32.mrb[0].mxu0
    %7510 = vdwg.mxu0
    %7511 = vmatprep.subr.mxu0 0.0
    %v7512 = vand.u32 %v1667, 4294901760
    %v7513 = vsub.f32 %v1667, %v7512
    %7514 = vmatpush1.msra.mxu0 %v7513
    %7515 = vmatprep.subr.mxu0 0.0
    %7516 = vmatpush1.msra.mxu0 0.0
    %7517 = vmatprep.subr.mxu0 0.0
    %7518 = vmatpush1.msra.mxu0 0.0
    %7519 = vmatprep.subr.mxu0 0.0
    %7520 = vmatpush1.msra.mxu0 0.0
    %7521 = vmatprep.subr.mxu0 0.0
    %7522 = vmatpush1.msra.mxu0 0.0
    %7523 = vmatprep.subr.mxu0 0.0
    %7524 = vmatpush1.msra.mxu0 0.0
    %7525 = vmatprep.subr.mxu0 0.0
    %7526 = vmatpush1.msra.mxu0 0.0
    %7527 = vmatprep.subr.mxu0 0.0
    %7528 = vmatpush1.msra.mxu0 0.0
    %7529 = vmatprep.subr.mxu0 0.0
    %7530 = vmatpush1.msra.mxu0 0.0
    %7531 = vmatprep.subr.mxu0 0.0
    %7532 = vmatpush1.msra.mxu0 0.0
    %7533 = vmatprep.subr.mxu0 0.0
    %7534 = vmatpush1.msra.mxu0 0.0
    %7535 = vmatprep.subr.mxu0 0.0
    %7536 = vmatpush1.msra.mxu0 0.0
    %7537 = vmatprep.subr.mxu0 0.0
    %7538 = vmatpush1.msra.mxu0 0.0
    %7539 = vmatprep.subr.mxu0 0.0
    %7540 = vmatpush1.msra.mxu0 0.0
    %7541 = vmatprep.subr.mxu0 0.0
    %7542 = vmatpush1.msra.mxu0 0.0
    %7543 = vmatprep.subr.mxu0 0.0
    %7544 = vmatpush1.msra.mxu0 0.0
    %7545 = vmatprep.subr.mxu0 0.0
    %7546 = vmatpush1.msra.mxu0 0.0
    %7547 = vmatprep.subr.mxu0 0.0
    %7548 = vmatpush1.msra.mxu0 0.0
    %7549 = vmatprep.subr.mxu0 0.0
    %7550 = vmatpush1.msra.mxu0 0.0
    %7551 = vmatprep.subr.mxu0 0.0
    %7552 = vmatpush1.msra.mxu0 0.0
    %7553 = vmatprep.subr.mxu0 0.0
    %7554 = vmatpush1.msra.mxu0 0.0
    %7555 = vmatprep.subr.mxu0 0.0
    %7556 = vmatpush1.msra.mxu0 0.0
    %7557 = vmatprep.subr.mxu0 0.0
    %7558 = vmatpush1.msra.mxu0 0.0
    %7559 = vmatprep.subr.mxu0 0.0
    %7560 = vmatpush1.msra.mxu0 0.0
    %7561 = vmatprep.subr.mxu0 0.0
    %7562 = vmatpush1.msra.mxu0 0.0
    %7563 = vmatprep.subr.mxu0 0.0
    %7564 = vmatpush1.msra.mxu0 0.0
    %7565 = vmatprep.subr.mxu0 0.0
    %7566 = vmatpush1.msra.mxu0 0.0
    %7567 = vmatprep.subr.mxu0 0.0
    %7568 = vmatpush1.msra.mxu0 0.0
    %7569 = vmatprep.subr.mxu0 0.0
    %7570 = vmatpush1.msra.mxu0 0.0
    %7571 = vmatprep.subr.mxu0 0.0
    %7572 = vmatpush1.msra.mxu0 0.0
    %7573 = vmatprep.subr.mxu0 0.0
    %7574 = vmatpush1.msra.mxu0 0.0
    %7575 = vmatprep.subr.mxu0 0.0
    %7576 = vmatpush1.msra.mxu0 0.0
    %7577 = vmatprep.mubr.f32.mxu0 0.0
    %v7578 = vand.u32 %v7338, 4294901760
    %v7579 = vsub.f32 %v7338, %v7578
    %7580 = vmatmul.mubr.f32.gmra.mrb[0].mxu0 %v7579
    %v7581 = vpop.f32.mrb[0].mxu0
    %v7582 = vadd.f32 %v7502, %v7581
    %v7583 = vpop.f32.mrb[0].mxu0
    %7584 = vmatprep.mubr.f32.mxu0 0.0
    %v7585 = vand.u32 %v7341, 4294901760
    %v7586 = vsub.f32 %v7341, %v7585
    %7587 = vmatmul.mubr.f32.gmra.mrb[0].mxu0 %v7586
    %v7588 = vpop.f32.mrb[0].mxu0
    %v7589 = vadd.f32 %v7508, %v7588
    %v7590 = vpop.f32.mrb[0].mxu0
    %7591 = vdwg.mxu0
    %7592 = vmatprep.subr.mxu0 0.0
    %v7593 = vand.u32 %v1667, 4294901760
    %7594 = vmatpush1.msra.mxu0 %v7593
    %7595 = vmatprep.subr.mxu0 0.0
    %7596 = vmatpush1.msra.mxu0 0.0
    %7597 = vmatprep.subr.mxu0 0.0
    %7598 = vmatpush1.msra.mxu0 0.0
    %7599 = vmatprep.subr.mxu0 0.0
    %7600 = vmatpush1.msra.mxu0 0.0
    %7601 = vmatprep.subr.mxu0 0.0
    %7602 = vmatpush1.msra.mxu0 0.0
    %7603 = vmatprep.subr.mxu0 0.0
    %7604 = vmatpush1.msra.mxu0 0.0
    %7605 = vmatprep.subr.mxu0 0.0
    %7606 = vmatpush1.msra.mxu0 0.0
    %7607 = vmatprep.subr.mxu0 0.0
    %7608 = vmatpush1.msra.mxu0 0.0
    %7609 = vmatprep.subr.mxu0 0.0
    %7610 = vmatpush1.msra.mxu0 0.0
    %7611 = vmatprep.subr.mxu0 0.0
    %7612 = vmatpush1.msra.mxu0 0.0
    %7613 = vmatprep.subr.mxu0 0.0
    %7614 = vmatpush1.msra.mxu0 0.0
    %7615 = vmatprep.subr.mxu0 0.0
    %7616 = vmatpush1.msra.mxu0 0.0
    %7617 = vmatprep.subr.mxu0 0.0
    %7618 = vmatpush1.msra.mxu0 0.0
    %7619 = vmatprep.subr.mxu0 0.0
    %7620 = vmatpush1.msra.mxu0 0.0
    %7621 = vmatprep.subr.mxu0 0.0
    %7622 = vmatpush1.msra.mxu0 0.0
    %7623 = vmatprep.subr.mxu0 0.0
    %7624 = vmatpush1.msra.mxu0 0.0
    %7625 = vmatprep.subr.mxu0 0.0
    %7626 = vmatpush1.msra.mxu0 0.0
    %7627 = vmatprep.subr.mxu0 0.0
    %7628 = vmatpush1.msra.mxu0 0.0
    %7629 = vmatprep.subr.mxu0 0.0
    %7630 = vmatpush1.msra.mxu0 0.0
    %7631 = vmatprep.subr.mxu0 0.0
    %7632 = vmatpush1.msra.mxu0 0.0
    %7633 = vmatprep.subr.mxu0 0.0
    %7634 = vmatpush1.msra.mxu0 0.0
    %7635 = vmatprep.subr.mxu0 0.0
    %7636 = vmatpush1.msra.mxu0 0.0
    %7637 = vmatprep.subr.mxu0 0.0
    %7638 = vmatpush1.msra.mxu0 0.0
    %7639 = vmatprep.subr.mxu0 0.0
    %7640 = vmatpush1.msra.mxu0 0.0
    %7641 = vmatprep.subr.mxu0 0.0
    %7642 = vmatpush1.msra.mxu0 0.0
    %7643 = vmatprep.subr.mxu0 0.0
    %7644 = vmatpush1.msra.mxu0 0.0
    %7645 = vmatprep.subr.mxu0 0.0
    %7646 = vmatpush1.msra.mxu0 0.0
    %7647 = vmatprep.subr.mxu0 0.0
    %7648 = vmatpush1.msra.mxu0 0.0
    %7649 = vmatprep.subr.mxu0 0.0
    %7650 = vmatpush1.msra.mxu0 0.0
    %7651 = vmatprep.subr.mxu0 0.0
    %7652 = vmatpush1.msra.mxu0 0.0
    %7653 = vmatprep.subr.mxu0 0.0
    %7654 = vmatpush1.msra.mxu0 0.0
    %7655 = vmatprep.subr.mxu0 0.0
    %7656 = vmatpush1.msra.mxu0 0.0
    %7657 = vmatprep.mubr.f32.mxu0 0.0
    %v7658 = vand.u32 %v7338, 4294901760
    %v7659 = vsub.f32 %v7338, %v7658
    %v7660 = vand.u32 %v7659, 4294901760
    %7661 = vmatmul.mubr.f32.gmra.mrb[0].mxu0 %v7660
    %v7662 = vpop.f32.mrb[0].mxu0
    %v7663 = vadd.f32 %v7582, %v7662
    %v7664 = vpop.f32.mrb[0].mxu0
    %7665 = vmatprep.mubr.f32.mxu0 0.0
    %v7666 = vand.u32 %v7341, 4294901760
    %v7667 = vsub.f32 %v7341, %v7666
    %v7668 = vand.u32 %v7667, 4294901760
    %7669 = vmatmul.mubr.f32.gmra.mrb[0].mxu0 %v7668
    %v7670 = vpop.f32.mrb[0].mxu0
    %v7671 = vadd.f32 %v7589, %v7670
    %v7672 = vpop.f32.mrb[0].mxu0
    %7673 = vdwg.mxu0
    %7674 = vmatprep.subr.mxu0 0.0
    %v7675 = vand.u32 %v1667, 4294901760
    %v7676 = vsub.f32 %v1667, %v7675
    %v7677 = vand.u32 %v7676, 4294901760
    %7678 = vmatpush1.msra.mxu0 %v7677
    %7679 = vmatprep.subr.mxu0 0.0
    %7680 = vmatpush1.msra.mxu0 0.0
    %7681 = vmatprep.subr.mxu0 0.0
    %7682 = vmatpush1.msra.mxu0 0.0
    %7683 = vmatprep.subr.mxu0 0.0
    %7684 = vmatpush1.msra.mxu0 0.0
    %7685 = vmatprep.subr.mxu0 0.0
    %7686 = vmatpush1.msra.mxu0 0.0
    %7687 = vmatprep.subr.mxu0 0.0
    %7688 = vmatpush1.msra.mxu0 0.0
    %7689 = vmatprep.subr.mxu0 0.0
    %7690 = vmatpush1.msra.mxu0 0.0
    %7691 = vmatprep.subr.mxu0 0.0
    %7692 = vmatpush1.msra.mxu0 0.0
    %7693 = vmatprep.subr.mxu0 0.0
    %7694 = vmatpush1.msra.mxu0 0.0
    %7695 = vmatprep.subr.mxu0 0.0
    %7696 = vmatpush1.msra.mxu0 0.0
    %7697 = vmatprep.subr.mxu0 0.0
    %7698 = vmatpush1.msra.mxu0 0.0
    %7699 = vmatprep.subr.mxu0 0.0
    %7700 = vmatpush1.msra.mxu0 0.0
    %7701 = vmatprep.subr.mxu0 0.0
    %7702 = vmatpush1.msra.mxu0 0.0
    %7703 = vmatprep.subr.mxu0 0.0
    %7704 = vmatpush1.msra.mxu0 0.0
    %7705 = vmatprep.subr.mxu0 0.0
    %7706 = vmatpush1.msra.mxu0 0.0
    %7707 = vmatprep.subr.mxu0 0.0
    %7708 = vmatpush1.msra.mxu0 0.0
    %7709 = vmatprep.subr.mxu0 0.0
    %7710 = vmatpush1.msra.mxu0 0.0
    %7711 = vmatprep.subr.mxu0 0.0
    %7712 = vmatpush1.msra.mxu0 0.0
    %7713 = vmatprep.subr.mxu0 0.0
    %7714 = vmatpush1.msra.mxu0 0.0
    %7715 = vmatprep.subr.mxu0 0.0
    %7716 = vmatpush1.msra.mxu0 0.0
    %7717 = vmatprep.subr.mxu0 0.0
    %7718 = vmatpush1.msra.mxu0 0.0
    %7719 = vmatprep.subr.mxu0 0.0
    %7720 = vmatpush1.msra.mxu0 0.0
    %7721 = vmatprep.subr.mxu0 0.0
    %7722 = vmatpush1.msra.mxu0 0.0
    %7723 = vmatprep.subr.mxu0 0.0
    %7724 = vmatpush1.msra.mxu0 0.0
    %7725 = vmatprep.subr.mxu0 0.0
    %7726 = vmatpush1.msra.mxu0 0.0
    %7727 = vmatprep.subr.mxu0 0.0
    %7728 = vmatpush1.msra.mxu0 0.0
    %7729 = vmatprep.subr.mxu0 0.0
    %7730 = vmatpush1.msra.mxu0 0.0
    %7731 = vmatprep.subr.mxu0 0.0
    %7732 = vmatpush1.msra.mxu0 0.0
    %7733 = vmatprep.subr.mxu0 0.0
    %7734 = vmatpush1.msra.mxu0 0.0
    %7735 = vmatprep.subr.mxu0 0.0
    %7736 = vmatpush1.msra.mxu0 0.0
    %7737 = vmatprep.subr.mxu0 0.0
    %7738 = vmatpush1.msra.mxu0 0.0
    %7739 = vmatprep.subr.mxu0 0.0
    %7740 = vmatpush1.msra.mxu0 0.0
    %7741 = vmatprep.mubr.f32.mxu0 0.0
    %v7742 = vand.u32 %v7338, 4294901760
    %7743 = vmatmul.mubr.f32.gmra.mrb[0].mxu0 %v7742
    %v7744 = vpop.f32.mrb[0].mxu0
    %v7745 = vadd.f32 %v7663, %v7744
    %v7746 = vpop.f32.mrb[0].mxu0
    %7747 = vmatprep.mubr.f32.mxu0 0.0
    %v7748 = vand.u32 %v7341, 4294901760
    %7749 = vmatmul.mubr.f32.gmra.mrb[0].mxu0 %v7748
    %v7750 = vpop.f32.mrb[0].mxu0
    %v7751 = vadd.f32 %v7671, %v7750
    %v7752 = vpop.f32.mrb[0].mxu0
    %7753 = vdwg.mxu0
    %7754 = vmatprep.subr.mxu0 0.0
    %v7755 = vand.u32 %v1667, 4294901760
    %7756 = vmatpush1.msra.mxu0 %v7755
    %7757 = vmatprep.subr.mxu0 0.0
    %7758 = vmatpush1.msra.mxu0 0.0
    %7759 = vmatprep.subr.mxu0 0.0
    %7760 = vmatpush1.msra.mxu0 0.0
    %7761 = vmatprep.subr.mxu0 0.0
    %7762 = vmatpush1.msra.mxu0 0.0
    %7763 = vmatprep.subr.mxu0 0.0
    %7764 = vmatpush1.msra.mxu0 0.0
    %7765 = vmatprep.subr.mxu0 0.0
    %7766 = vmatpush1.msra.mxu0 0.0
    %7767 = vmatprep.subr.mxu0 0.0
    %7768 = vmatpush1.msra.mxu0 0.0
    %7769 = vmatprep.subr.mxu0 0.0
    %7770 = vmatpush1.msra.mxu0 0.0
    %7771 = vmatprep.subr.mxu0 0.0
    %7772 = vmatpush1.msra.mxu0 0.0
    %7773 = vmatprep.subr.mxu0 0.0
    %7774 = vmatpush1.msra.mxu0 0.0
    %7775 = vmatprep.subr.mxu0 0.0
    %7776 = vmatpush1.msra.mxu0 0.0
    %7777 = vmatprep.subr.mxu0 0.0
    %7778 = vmatpush1.msra.mxu0 0.0
    %7779 = vmatprep.subr.mxu0 0.0
    %7780 = vmatpush1.msra.mxu0 0.0
    %7781 = vmatprep.subr.mxu0 0.0
    %7782 = vmatpush1.msra.mxu0 0.0
    %7783 = vmatprep.subr.mxu0 0.0
    %7784 = vmatpush1.msra.mxu0 0.0
    %7785 = vmatprep.subr.mxu0 0.0
    %7786 = vmatpush1.msra.mxu0 0.0
    %7787 = vmatprep.subr.mxu0 0.0
    %7788 = vmatpush1.msra.mxu0 0.0
    %7789 = vmatprep.subr.mxu0 0.0
    %7790 = vmatpush1.msra.mxu0 0.0
    %7791 = vmatprep.subr.mxu0 0.0
    %7792 = vmatpush1.msra.mxu0 0.0
    %7793 = vmatprep.subr.mxu0 0.0
    %7794 = vmatpush1.msra.mxu0 0.0
    %7795 = vmatprep.subr.mxu0 0.0
    %7796 = vmatpush1.msra.mxu0 0.0
    %7797 = vmatprep.subr.mxu0 0.0
    %7798 = vmatpush1.msra.mxu0 0.0
    %7799 = vmatprep.subr.mxu0 0.0
    %7800 = vmatpush1.msra.mxu0 0.0
    %7801 = vmatprep.subr.mxu0 0.0
    %7802 = vmatpush1.msra.mxu0 0.0
    %7803 = vmatprep.subr.mxu0 0.0
    %7804 = vmatpush1.msra.mxu0 0.0
    %7805 = vmatprep.subr.mxu0 0.0
    %7806 = vmatpush1.msra.mxu0 0.0
    %7807 = vmatprep.subr.mxu0 0.0
    %7808 = vmatpush1.msra.mxu0 0.0
    %7809 = vmatprep.subr.mxu0 0.0
    %7810 = vmatpush1.msra.mxu0 0.0
    %7811 = vmatprep.subr.mxu0 0.0
    %7812 = vmatpush1.msra.mxu0 0.0
    %7813 = vmatprep.subr.mxu0 0.0
    %7814 = vmatpush1.msra.mxu0 0.0
    %7815 = vmatprep.subr.mxu0 0.0
    %7816 = vmatpush1.msra.mxu0 0.0
    %7817 = vmatprep.subr.mxu0 0.0
    %7818 = vmatpush1.msra.mxu0 0.0
    %7819 = vmatprep.mubr.f32.mxu0 0.0
    %v7820 = vand.u32 %v7338, 4294901760
    %7821 = vmatmul.mubr.f32.gmra.mrb[0].mxu0 %v7820
    %v7822 = vpop.f32.mrb[0].mxu0
    %v7823 = vadd.f32 %v7745, %v7822
    %v7824 = vpop.f32.mrb[0].mxu0
    %7825 = vmatprep.mubr.f32.mxu0 0.0
    %v7826 = vand.u32 %v7341, 4294901760
    %7827 = vmatmul.mubr.f32.gmra.mrb[0].mxu0 %v7826
    %v7828 = vpop.f32.mrb[0].mxu0
    %v7829 = vadd.f32 %v7751, %v7828
    %v7830 = vpop.f32.mrb[0].mxu0
    %7831 = vdwg.mxu0
    %v7832 = vadd.f32 %v6295, %v7823
    %v7833 = vadd.f32 %v6296, %v7829
    %v7834 = vld [vmem:[%s8] sm:$0x1]
    %v7836 = vlaneseq
    %v7837 = vshrl.u32 %v7836, 7
    %v7838 = vsub.s32 0, %v7837
    %v7839 = vrot.slane %v7834, %v7838
    %v7841 = vadd.f32 %v7832, %v7839
    %v7842 = vadd.f32 %v7833, %v7839
    %7843 = vst.msk [vmem:[#allocation2] sm:$0xff] %vm49, %v7841
    %7844 = vst.msk [vmem:[#allocation2 + $0x8] sm:$0xff] %vm49, %v7842
    // Predicated region
    $region42: #{gqa_forward.1} parent=1 // pred_check
      _
    $region43: #{gqa_forward.1} parent=1 // pred_check_branch
      %7846 = sbr.rel (0) target = $region45
    $region44: #{gqa_forward.1} parent=1 // pred_region
      %s7848 = ssub.s32 256, 256
      %7849 = vsyncadd [#allocation3], %s7848
      %s7850 = sshll.u32 [#allocation2], 4
      %s7851 = int_to_ptr.vmem [resolvable:$true] %s7850
      %7856 = dma.vmem_to_hbm [thread:$0]  %s7851, 256, %s10, [#allocation3], 128, 128, 8
    $region45: #{gqa_forward.1} parent=1 // pred_fallthru
      _
    // Predicated region
    $region46: #{gqa_forward.1} parent=1 // pred_check
      _
    $region47: #{gqa_forward.1} parent=1 // pred_check_branch
      %7858 = sbr.rel (0) target = $region49
    $region48: #{gqa_forward.1} parent=1 // pred_region
      %7859 = dma.done [#allocation3], 256
    $region49: #{gqa_forward.1} parent=1 // pred_fallthru
      _
    %7860 = vsyncpa [#allocation3], 1

</llo_original>
